<compile_context>
chip_gen: v6e
topology: v6e:2x2x1
jax: 0.10.0
libtpu: 0.0.40
codegen_flags: <defaults>
</compile_context>

<pallas_src>
import functools

import jax
import jax.numpy as jnp
from jax import lax
from jax.experimental import pallas as pl
from jax.experimental.pallas import tpu as pltpu

EPS = 1e-5


def _round_up(x, m):
    return (x + m - 1) // m * m


def bn_fold(bn):
    gamma, beta, mean, var = bn
    scale = gamma / jnp.sqrt(var + EPS)
    shift = beta - mean * scale
    return scale, shift


# --------------------------------------------------------------------------
# Fused (optional BN+ReLU) -> matmul -> (optional BN) -> (optional ReLU)
# --------------------------------------------------------------------------
def _mm_kernel(*refs, pre_bn, post_bn, relu_out):
    o_ref = refs[-1]
    idx = 0
    x_ref = refs[idx]; idx += 1
    if pre_bn:
        s1_ref, b1_ref = refs[idx], refs[idx + 1]; idx += 2
    w_ref = refs[idx]; idx += 1
    if post_bn:
        s2_ref, b2_ref = refs[idx], refs[idx + 1]; idx += 2

    x = x_ref[...]
    if pre_bn:
        # folded BN + ReLU on the matmul LHS (bf16*f32 promotes to f32 math)
        x = jnp.maximum(x * s1_ref[...] + b1_ref[...], 0.0)
    y = jnp.dot(x.astype(jnp.bfloat16), w_ref[...],
                preferred_element_type=jnp.float32)
    if post_bn:
        y = y * s2_ref[...] + b2_ref[...]
    if relu_out:
        y = jnp.maximum(y, 0.0)
    o_ref[...] = y.astype(o_ref.dtype)


def fused_matmul(x, w, pre=None, post=None, relu_out=False,
                 out_dtype=jnp.bfloat16, tm=512):
    """y = [relu]( ([relu(x*s1+b1)] @ w) [*s2+b2] )  — row tiled over M."""
    M, K = x.shape
    N = w.shape[1]
    tm = min(tm, M)                       # full-dim block if M is small
    in_specs = [pl.BlockSpec((tm, K), lambda i: (i, 0))]
    args = [x]
    if pre is not None:
        s1, b1 = pre
        in_specs += [pl.BlockSpec((1, K), lambda i: (0, 0)),
                     pl.BlockSpec((1, K), lambda i: (0, 0))]
        args += [s1.reshape(1, K).astype(jnp.float32),
                 b1.reshape(1, K).astype(jnp.float32)]
    in_specs.append(pl.BlockSpec((K, N), lambda i: (0, 0)))
    args.append(w.astype(jnp.bfloat16))
    if post is not None:
        s2, b2 = post
        in_specs += [pl.BlockSpec((1, N), lambda i: (0, 0)),
                     pl.BlockSpec((1, N), lambda i: (0, 0))]
        args += [s2.reshape(1, N).astype(jnp.float32),
                 b2.reshape(1, N).astype(jnp.float32)]
    kernel = functools.partial(_mm_kernel, pre_bn=pre is not None,
                               post_bn=post is not None, relu_out=relu_out)
    return pl.pallas_call(
        kernel,
        out_shape=jax.ShapeDtypeStruct((M, N), out_dtype),
        grid=(pl.cdiv(M, tm),),
        in_specs=in_specs,
        out_specs=pl.BlockSpec((tm, N), lambda i: (i, 0)),
        compiler_params=pltpu.CompilerParams(
            dimension_semantics=("parallel",)),
    )(*args)


# --------------------------------------------------------------------------
# 3x3 / stride 1 / pad 1 convolution — ONE lane-dense matmul per row tile
# --------------------------------------------------------------------------
def _conv3x3_kernel(xf_ref, w_ref, o_ref, *, R, Wp, W, G, Lslice):
    # xf_ref: (1, (H+3)*Wp, C) bf16 flattened zero-padded activations (whole
    #         image, resident in VMEM across the row-tile axis)
    # w_ref : (C, 9*G)          bf16, column group t = ki*3+kj holds w[ki,kj]
    # o_ref : (1, R, W, G)      bf16 output row-tile
    i = pl.program_id(1)
    base = pl.multiple_of(i * (R * Wp), 8)
    x = xf_ref[0, pl.ds(base, Lslice), :]                       # (Lslice, C)
    # single lane-dense MXU pass: all 9 taps at once
    z = jnp.dot(x, w_ref[...], preferred_element_type=jnp.float32)
    M2 = R * Wp
    acc = z[0:M2, 0:G]                                          # tap (0,0)
    for ki in range(3):
        for kj in range(3):
            if ki == 0 and kj == 0:
                continue
            t = ki * 3 + kj
            off = ki * Wp + kj
            acc = acc + z[off:off + M2, t * G:(t + 1) * G]
    # drop the phantom columns introduced by flat row indexing, in-kernel
    for r in range(R):
        o_ref[0, r] = acc[r * Wp:r * Wp + W, :].astype(o_ref.dtype)


def _pick_row_tile(H):
    for r in (8, 7, 16, 14, 12, 10, 9, 6, 5, 4, 3, 2):
        if r <= H and H % r == 0:
            return r
    return H


def conv3x3(h, w2r, G):
    """h: (B,H,W,C) bf16 (already BN2+ReLU2'd), w2r: (C, 9*G) bf16.

    Returns (B,H,W,G) bf16.  Padding: 1 top / 2 bottom / 1 left / right up to
    a sublane-aligned row width Wp (multiple of 8); the extra zeros keep every
    flattened tap slice in bounds and never touch valid outputs.
    """
    B, H, W, C = h.shape
    Wp = _round_up(W + 2, 8)
    R = _pick_row_tile(H)
    Hpad = H + 3
    hp = jnp.pad(h, ((0, 0), (1, 2), (1, Wp - W - 1), (0, 0)))
    hp = hp.reshape(B, Hpad * Wp, C)
    Lslice = (R + 2) * Wp + 8          # covers max tap offset 2*Wp+2
    return pl.pallas_call(
        functools.partial(_conv3x3_kernel, R=R, Wp=Wp, W=W, G=G,
                          Lslice=Lslice),
        out_shape=jax.ShapeDtypeStruct((B, H, W, G), jnp.bfloat16),
        grid=(B, H // R),
        in_specs=[pl.BlockSpec((1, Hpad * Wp, C), lambda b, i: (b, 0, 0)),
                  pl.BlockSpec((C, 9 * G), lambda b, i: (0, 0))],
        out_specs=pl.BlockSpec((1, R, W, G), lambda b, i: (b, i, 0, 0)),
        compiler_params=pltpu.CompilerParams(
            dimension_semantics=("parallel", "parallel")),
    )(hp, w2r)


# --------------------------------------------------------------------------
# MaxPool2d(3, stride=2, padding=1) — 4 stride-2 phases, max reduced in VMEM
# --------------------------------------------------------------------------
def _maxpool_kernel(p00_ref, p01_ref, p10_ref, p11_ref, o_ref, *, Ho, Wo):
    a = p00_ref[0].astype(jnp.float32)
    b = p01_ref[0].astype(jnp.float32)
    c = p10_ref[0].astype(jnp.float32)
    d = p11_ref[0].astype(jnp.float32)
    m = a[:Ho, :Wo]
    m = jnp.maximum(m, a[:Ho, 1:Wo + 1])
    m = jnp.maximum(m, a[1:Ho + 1, :Wo])
    m = jnp.maximum(m, a[1:Ho + 1, 1:Wo + 1])
    m = jnp.maximum(m, b[:Ho, :Wo])
    m = jnp.maximum(m, b[1:Ho + 1, :Wo])
    m = jnp.maximum(m, c[:Ho, :Wo])
    m = jnp.maximum(m, c[:Ho, 1:Wo + 1])
    m = jnp.maximum(m, d[:Ho, :Wo])
    o_ref[0] = m.astype(o_ref.dtype)


def maxpool_3x3_s2_p1(x):
    B, H, W, C = x.shape
    assert H % 2 == 0 and W % 2 == 0
    Ho, Wo = H // 2, W // 2
    # inputs are post-ReLU (>= 0), so zero padding never changes a window max
    xp = jnp.pad(x, ((0, 0), (1, 1), (1, 1), (0, 0)))
    # TODO(synk): do the even/odd phase selection in-kernel (strided pl.ds
    # loads) to avoid materializing the 4 phase tensors in HBM.
    p00 = xp[:, 0::2, 0::2, :]
    p01 = xp[:, 0::2, 1::2, :]
    p10 = xp[:, 1::2, 0::2, :]
    p11 = xp[:, 1::2, 1::2, :]
    spec = pl.BlockSpec((1, Ho + 1, Wo + 1, C), lambda b: (b, 0, 0, 0))
    return pl.pallas_call(
        functools.partial(_maxpool_kernel, Ho=Ho, Wo=Wo),
        out_shape=jax.ShapeDtypeStruct((B, Ho, Wo, C), jnp.bfloat16),
        grid=(B,),
        in_specs=[spec, spec, spec, spec],
        out_specs=pl.BlockSpec((1, Ho, Wo, C), lambda b: (b, 0, 0, 0)),
        compiler_params=pltpu.CompilerParams(
            dimension_semantics=("parallel",)),
    )(p00, p01, p10, p11)


# --------------------------------------------------------------------------
# Transition: BN -> ReLU -> 2x2 avg-pool -> 1x1 conv, fused into ONE kernel
# --------------------------------------------------------------------------
def _transition_kernel(x00_ref, x01_ref, x10_ref, x11_ref, s_ref, b_ref,
                       w_ref, o_ref):
    s = s_ref[...]
    b = b_ref[...]

    def act(r):
        return jnp.maximum(r[...] * s + b, 0.0)      # bf16*f32 -> f32 math

    pooled = (act(x00_ref) + act(x01_ref) + act(x10_ref) + act(x11_ref)) * 0.25
    y = jnp.dot(pooled.astype(jnp.bfloat16), w_ref[...],
                preferred_element_type=jnp.float32)
    o_ref[...] = y.astype(o_ref.dtype)


def transition_forward(x, tp, tm=512):
    B, H, W, C = x.shape
    assert H % 2 == 0 and W % 2 == 0
    Ho, Wo = H // 2, W // 2
    Cout = tp["w"].shape[1]
    # 2x2 avg-pool commutes with the 1x1 conv -> pool first (4x less matmul
    # input traffic) and feed the pooled tile straight into the matmul inside
    # the same kernel (no pooled tensor in HBM).
    # TODO(synk): move the stride-2 phase selection in-kernel too.
    x00 = x[:, 0::2, 0::2, :].reshape(-1, C)
    x01 = x[:, 0::2, 1::2, :].reshape(-1, C)
    x10 = x[:, 1::2, 0::2, :].reshape(-1, C)
    x11 = x[:, 1::2, 1::2, :].reshape(-1, C)
    M = B * Ho * Wo
    t = min(tm, M)
    row_spec = pl.BlockSpec((t, C), lambda i: (i, 0))
    vec_spec = pl.BlockSpec((1, C), lambda i: (0, 0))
    y = pl.pallas_call(
        _transition_kernel,
        out_shape=jax.ShapeDtypeStruct((M, Cout), jnp.bfloat16),
        grid=(pl.cdiv(M, t),),
        in_specs=[row_spec, row_spec, row_spec, row_spec, vec_spec, vec_spec,
                  pl.BlockSpec((C, Cout), lambda i: (0, 0))],
        out_specs=pl.BlockSpec((t, Cout), lambda i: (i, 0)),
        compiler_params=pltpu.CompilerParams(
            dimension_semantics=("parallel",)),
    )(x00, x01, x10, x11,
      tp["s"].reshape(1, C).astype(jnp.float32),
      tp["b"].reshape(1, C).astype(jnp.float32),
      tp["w"])
    return y.reshape(B, Ho, Wo, Cout)


# --------------------------------------------------------------------------
# Classifier head: final BN -> global 7x7 avg-pool -> Linear (single kernel)
# (No ReLU before the pool: matches the reference PyTorch module exactly.)
# --------------------------------------------------------------------------
def _head_kernel(x_ref, s_ref, b_ref, w_ref, bias_ref, o_ref):
    x = x_ref[...] * s_ref[...] + b_ref[...]          # (B, S, C) folded BN
    pooled = jnp.mean(x, axis=1)                      # (B, C)  7x7 avg pool
    o_ref[...] = (jnp.dot(pooled.astype(jnp.bfloat16), w_ref[...],
                          preferred_element_type=jnp.float32)
                  + bias_ref[...])


def head(x, scale, shift, w, bias):
    B, S, C = x.shape
    N = w.shape[1]
    # TODO(synk): tile over batch / fold into the previous kernel so v7x's
    # two TensorCores both get work (grid here is a single step).
    return pl.pallas_call(
        _head_kernel,
        out_shape=jax.ShapeDtypeStruct((B, N), jnp.float32),
        grid=(1,),
        in_specs=[
            pl.BlockSpec((B, S, C), lambda i: (0, 0, 0)),
            pl.BlockSpec((1, 1, C), lambda i: (0, 0, 0)),
            pl.BlockSpec((1, 1, C), lambda i: (0, 0, 0)),
            pl.BlockSpec((C, N), lambda i: (0, 0)),
            pl.BlockSpec((1, N), lambda i: (0, 0)),
        ],
        out_specs=pl.BlockSpec((B, N), lambda i: (0, 0)),
        compiler_params=pltpu.CompilerParams(
            dimension_semantics=("arbitrary",)),
    )(x, scale.reshape(1, 1, C).astype(jnp.float32),
      shift.reshape(1, 1, C).astype(jnp.float32),
      w.astype(jnp.bfloat16), bias.reshape(1, N).astype(jnp.float32))


# --------------------------------------------------------------------------
# Glue helpers
# --------------------------------------------------------------------------
def im2col(x, k, stride, pad):
    """x: (B,H,W,C) -> patches (B*Ho*Wo, k*k*C).  Used only for the 3-channel
    7x7 stem where patch duplication is negligible."""
    B, H, W, C = x.shape
    xp = jnp.pad(x, ((0, 0), (pad, pad), (pad, pad), (0, 0)))
    Ho = (H + 2 * pad - k) // stride + 1
    Wo = (W + 2 * pad - k) // stride + 1
    cols = []
    for ki in range(k):
        for kj in range(k):
            cols.append(
                xp[:, ki:ki + stride * Ho:stride, kj:kj + stride * Wo:stride, :])
    patches = jnp.concatenate(cols, axis=-1)
    return patches.reshape(B * Ho * Wo, k * k * C), (B, Ho, Wo)


# --------------------------------------------------------------------------
# DenseNet forward
# --------------------------------------------------------------------------
def dense_layer_forward(slab, lp, growth):
    B, H, W, c_full = slab.shape
    inter = lp["w1"].shape[1]
    # bn1 -> relu1 -> conv1(1x1) -> bn2 -> relu2 : one fused MXU kernel.
    # (conv1 weight / bn1 params are pre-padded to the full slab width, so
    #  the not-yet-written slab channels contribute exactly zero.)
    h = fused_matmul(slab.reshape(B * H * W, c_full), lp["w1"],
                     pre=(lp["s1"], lp["b1"]), post=(lp["s2"], lp["b2"]),
                     relu_out=True, out_dtype=jnp.bfloat16)
    h = h.reshape(B, H, W, inter)
    # conv2 (3x3, pad 1): one lane-dense matmul per row tile + 9 shifted adds.
    return conv3x3(h, lp["w2r"], growth)


def dense_block_forward(x, block_params, growth):
    B, H, W, c0 = x.shape
    c_final = c0 + len(block_params) * growth
    # preallocated full-width bf16 channel slab instead of per-layer concat
    slab = jnp.zeros((B, H, W, c_final), jnp.bfloat16)
    slab = lax.dynamic_update_slice(slab, x.astype(jnp.bfloat16), (0, 0, 0, 0))
    for li, lp in enumerate(block_params):
        c_cur = c0 + li * growth
        new = dense_layer_forward(slab, lp, growth)
        # TODO(synk): write conv2's growth channels straight into the slab via
        # input_output_aliases (channel-blocked out spec) to drop this hop.
        slab = lax.dynamic_update_slice(slab, new, (0, 0, 0, c_cur))
    return slab


def densenet_forward(x_nchw, pp, growth):
    x = jnp.transpose(x_nchw, (0, 2, 3, 1)).astype(jnp.bfloat16)  # NCHW->NHWC
    B = x.shape[0]

    # conv0 (7x7, stride 2, pad 3): only 3 input channels, so JAX-side patch
    # extraction is cheap; the kernel fuses matmul + bn0 + relu0.
    patches, (_, Ho, Wo) = im2col(x, 7, 2, 3)
    h = fused_matmul(patches, pp["conv0_w"], post=(pp["bn0_s"], pp["bn0_b"]),
                     relu_out=True, out_dtype=jnp.bfloat16)
    h = h.reshape(B, Ho, Wo, -1)
    h = maxpool_3x3_s2_p1(h)

    for bi, bp in enumerate(pp["blocks"]):
        h = dense_block_forward(h, bp, growth)
        if bi != len(pp["blocks"]) - 1:
            h = transition_forward(h, pp["transitions"][bi])

    B, H, W, C = h.shape
    assert H == 7 and W == 7, "classifier head expects a 7x7 feature map"
    return head(h.reshape(B, H * W, C), pp["bnF_s"], pp["bnF_b"],
                pp["fc_w"], pp["fc_b"])


# --------------------------------------------------------------------------
# Deterministic parameter construction + one-time preprocessing
# --------------------------------------------------------------------------
def make_params(key, in_feature, num_classes, num_dense_block, growth_rate,
                compression):
    keys = iter(jax.random.split(key, 512))

    def conv_w(cin, cout, ksz):
        return jax.random.normal(next(keys), (ksz * ksz * cin, cout),
                                 jnp.float32) * 0.1

    def bn_init(c):
        k1, k2, k3, k4 = jax.random.split(next(keys), 4)
        gamma = jax.random.uniform(k1, (c,), jnp.float32, 0.5, 1.5)
        beta = jax.random.normal(k2, (c,), jnp.float32) * 0.1
        mean = jax.random.normal(k3, (c,), jnp.float32) * 0.1
        var = jax.random.uniform(k4, (c,), jnp.float32, 0.5, 1.5)
        return (gamma, beta, mean, var)

    params = {}
    feat = 2 * growth_rate
    params["conv0_w"] = conv_w(in_feature, feat, 7)
    params["bn0"] = bn_init(feat)

    blocks, transitions = [], []
    for idx, num_layer in enumerate(num_dense_block):
        block = []
        for li in range(num_layer):
            cin = feat + li * growth_rate
            inter = 4 * growth_rate
            block.append({
                "bn1": bn_init(cin),
                "conv1_w": conv_w(cin, inter, 1),
                "bn2": bn_init(inter),
                "conv2_w": conv_w(inter, growth_rate, 3),
            })
        blocks.append(block)
        feat = feat + num_layer * growth_rate
        if idx != len(num_dense_block) - 1:
            cout = int(feat * compression)
            transitions.append({
                "bn": bn_init(feat),
                "conv_w": conv_w(feat, cout, 1),
            })
            feat = cout

    params["blocks"] = blocks
    params["transitions"] = transitions
    params["bn_final"] = bn_init(feat)
    params["fc_w"] = jax.random.normal(next(keys), (feat, num_classes),
                                       jnp.float32) * 0.1
    params["fc_b"] = jax.random.normal(next(keys), (num_classes,),
                                       jnp.float32) * 0.1
    return params


def preprocess_params(params, growth):
    """Fold BNs, pad conv1/bn1 to the slab width, reshape conv2 weights to the
    lane-dense (Cin, 9*growth) layout and cast matmul weights to bf16 — all
    hoisted out of the forward pass (run once).
    NOTE: conv2_w flattening assumes (ki, kj, cin) row order as produced by
    make_params; real PyTorch (cout, cin, kh, kw) weights must be permuted."""
    pp = {}
    s0, b0 = bn_fold(params["bn0"])
    pp["conv0_w"] = params["conv0_w"].astype(jnp.bfloat16)
    pp["bn0_s"], pp["bn0_b"] = s0, b0

    blocks = []
    for bp in params["blocks"]:
        L = len(bp)
        c0 = bp[0]["bn1"][0].shape[0]
        c_final = c0 + L * growth
        layers = []
        for li, lp in enumerate(bp):
            c_cur = c0 + li * growth
            inter = lp["conv1_w"].shape[1]
            pad = c_final - c_cur
            s1, b1 = bn_fold(lp["bn1"])
            s1 = jnp.pad(s1, (0, pad))
            b1 = jnp.pad(b1, (0, pad))
            w1 = jnp.pad(lp["conv1_w"], ((0, pad), (0, 0))).astype(jnp.bfloat16)
            s2, b2 = bn_fold(lp["bn2"])
            w2r = (lp["conv2_w"].reshape(3, 3, inter, growth)
                   .transpose(2, 0, 1, 3)
                   .reshape(inter, 9 * growth).astype(jnp.bfloat16))
            layers.append({"s1": s1, "b1": b1, "w1": w1,
                           "s2": s2, "b2": b2, "w2r": w2r})
        blocks.append(layers)
    pp["blocks"] = blocks

    trans = []
    for tp in params["transitions"]:
        s, b = bn_fold(tp["bn"])
        trans.append({"s": s, "b": b, "w": tp["conv_w"].astype(jnp.bfloat16)})
    pp["transitions"] = trans

    sF, bF = bn_fold(params["bn_final"])
    pp["bnF_s"], pp["bnF_b"] = sF, bF
    pp["fc_w"] = params["fc_w"].astype(jnp.bfloat16)
    pp["fc_b"] = params["fc_b"]
    return pp


# --------------------------------------------------------------------------
if __name__ == "__main__":
    key = jax.random.PRNGKey(0)
    kx, kp = jax.random.split(key)

    # Small DenseNet config (same structure as the PyTorch module, scaled
    # down): growth_rate=16, blocks=[2, 2], compression=0.5, classes=10,
    # input 3x56x56 so the final feature map is 7x7 (AvgPool2d(7, 3) -> 1x1).
    B, Cin, H, W = 2, 3, 56, 56
    growth = 16
    x = jax.random.normal(kx, (B, Cin, H, W), jnp.float32)   # NCHW like PyTorch

    params = make_params(kp, in_feature=Cin, num_classes=10,
                         num_dense_block=[2, 2], growth_rate=growth,
                         compression=0.5)
    pp = preprocess_params(params, growth)

    forward = jax.jit(functools.partial(densenet_forward, growth=growth))
    logits = jax.block_until_ready(forward(x, pp))
    assert logits.shape == (B, 10)
    assert bool(jnp.all(jnp.isfinite(logits)))
    print("KERNEL_OK")
</pallas_src>

<mosaic_0001>
module attributes {stable_mosaic.version = 11 : i64} {
  func.func @_mm_kernel(%arg0: i32, %arg1: memref<512x147xbf16, #tpu.memory_space<vmem>>, %arg2: memref<147x32xbf16, #tpu.memory_space<vmem>>, %arg3: memref<1x32xf32, #tpu.memory_space<vmem>>, %arg4: memref<1x32xf32, #tpu.memory_space<vmem>>, %arg5: memref<512x32xbf16, #tpu.memory_space<vmem>>) attributes {dimension_semantics = [#tpu.dimension_semantics<parallel>], iteration_bounds = array<i64: 4>, scalar_prefetch = 0 : i64, scratch_operands = 0 : i64, tpu.core_type = #tpu.core_type<tc>, window_params = [{transform_indices = @transform_0, window_bounds = array<i64: 512, 147>}, {pipeline_mode = #tpu.pipeline_mode<synchronous>, transform_indices = @transform_1, window_bounds = array<i64: 147, 32>}, {pipeline_mode = #tpu.pipeline_mode<synchronous>, transform_indices = @transform_2, window_bounds = array<i64: 1, 32>}, {pipeline_mode = #tpu.pipeline_mode<synchronous>, transform_indices = @transform_3, window_bounds = array<i64: 1, 32>}, {transform_indices = @transform_4, window_bounds = array<i64: 512, 32>}]} {
    %c0 = arith.constant 0 : index
    %c0_0 = arith.constant 0 : index
    %0 = vector.load %arg1[%c0, %c0_0] : memref<512x147xbf16, #tpu.memory_space<vmem>>, vector<512x147xbf16>
    %c0_1 = arith.constant 0 : index
    %c0_2 = arith.constant 0 : index
    %1 = vector.load %arg2[%c0_1, %c0_2] : memref<147x32xbf16, #tpu.memory_space<vmem>>, vector<147x32xbf16>
    %cst = arith.constant dense<0.000000e+00> : vector<512x32xf32>
    %2 = tpu.matmul %0, %1, %cst {dimension_numbers = #tpu.dot_dimension_numbers<[1], [0], [0], [1], [0, 0, 1, 1], [], []>} : vector<512x147xbf16>, vector<147x32xbf16>, vector<512x32xf32> -> vector<512x32xf32>
    %c0_3 = arith.constant 0 : index
    %c0_4 = arith.constant 0 : index
    %3 = vector.load %arg3[%c0_3, %c0_4] : memref<1x32xf32, #tpu.memory_space<vmem>>, vector<1x32xf32>
    %4 = vector.broadcast %3 : vector<1x32xf32> to vector<512x32xf32>
    %5 = arith.mulf %2, %4 : vector<512x32xf32>
    %c0_5 = arith.constant 0 : index
    %c0_6 = arith.constant 0 : index
    %6 = vector.load %arg4[%c0_5, %c0_6] : memref<1x32xf32, #tpu.memory_space<vmem>>, vector<1x32xf32>
    %7 = vector.broadcast %6 : vector<1x32xf32> to vector<512x32xf32>
    %8 = arith.addf %5, %7 : vector<512x32xf32>
    %cst_7 = arith.constant 0.000000e+00 : f32
    %9 = vector.broadcast %cst_7 : f32 to vector<512x32xf32>
    %10 = arith.maximumf %8, %9 : vector<512x32xf32>
    %11 = arith.truncf %10 : vector<512x32xf32> to vector<512x32xbf16>
    %c0_8 = arith.constant 0 : index
    %c0_9 = arith.constant 0 : index
    %12 = vector.load %arg5[%c0_8, %c0_9] : memref<512x32xbf16, #tpu.memory_space<vmem>>, vector<512x32xbf16>
    tpu.vector_store %arg5[%c0_8, %c0_9], %11 {strides = array<i32>} : memref<512x32xbf16, #tpu.memory_space<vmem>>, vector<512x32xbf16>,
    return
  }
  func.func @transform_0(%arg0: i32) -> (i32, i32) {
    %c0_i32 = arith.constant 0 : i32
    %c0_i32_0 = arith.constant 0 : i32
    return %arg0, %c0_i32 : i32, i32
  }
  func.func @transform_1(%arg0: i32) -> (i32, i32) {
    %c0_i32 = arith.constant 0 : i32
    %c0_i32_0 = arith.constant 0 : i32
    %c0_i32_1 = arith.constant 0 : i32
    return %c0_i32, %c0_i32_0 : i32, i32
  }
  func.func @transform_2(%arg0: i32) -> (i32, i32) {
    %c0_i32 = arith.constant 0 : i32
    %c0_i32_0 = arith.constant 0 : i32
    %c0_i32_1 = arith.constant 0 : i32
    return %c0_i32, %c0_i32_0 : i32, i32
  }
  func.func @transform_3(%arg0: i32) -> (i32, i32) {
    %c0_i32 = arith.constant 0 : i32
    %c0_i32_0 = arith.constant 0 : i32
    %c0_i32_1 = arith.constant 0 : i32
    return %c0_i32, %c0_i32_0 : i32, i32
  }
  func.func @transform_4(%arg0: i32) -> (i32, i32) {
    %c0_i32 = arith.constant 0 : i32
    %c0_i32_0 = arith.constant 0 : i32
    return %arg0, %c0_i32 : i32, i32
  }
}

module attributes {stable_mosaic.version = 11 : i64} {
  func.func @_maxpool_kernel(%arg0: i32, %arg1: memref<1x15x15x32xbf16, #tpu.memory_space<vmem>>, %arg2: memref<1x15x15x32xbf16, #tpu.memory_space<vmem>>, %arg3: memref<1x15x15x32xbf16, #tpu.memory_space<vmem>>, %arg4: memref<1x15x15x32xbf16, #tpu.memory_space<vmem>>, %arg5: memref<1x14x14x32xbf16, #tpu.memory_space<vmem>>) attributes {dimension_semantics = [#tpu.dimension_semantics<parallel>], iteration_bounds = array<i64: 2>, scalar_prefetch = 0 : i64, scratch_operands = 0 : i64, tpu.core_type = #tpu.core_type<tc>, window_params = [{transform_indices = @transform_0, window_bounds = array<i64: 1, 15, 15, 32>}, {transform_indices = @transform_1, window_bounds = array<i64: 1, 15, 15, 32>}, {transform_indices = @transform_2, window_bounds = array<i64: 1, 15, 15, 32>}, {transform_indices = @transform_3, window_bounds = array<i64: 1, 15, 15, 32>}, {transform_indices = @transform_4, window_bounds = array<i64: 1, 14, 14, 32>}]} {
    %c0 = arith.constant 0 : index
    %c0_0 = arith.constant 0 : index
    %c0_1 = arith.constant 0 : index
    %c0_2 = arith.constant 0 : index
    %0 = vector.load %arg1[%c0, %c0_0, %c0_1, %c0_2] : memref<1x15x15x32xbf16, #tpu.memory_space<vmem>>, vector<1x15x15x32xbf16>
    %1 = vector.shape_cast %0 : vector<1x15x15x32xbf16> to vector<15x15x32xbf16>
    %2 = arith.extf %1 : vector<15x15x32xbf16> to vector<15x15x32xf32>
    %c0_3 = arith.constant 0 : index
    %c0_4 = arith.constant 0 : index
    %c0_5 = arith.constant 0 : index
    %c0_6 = arith.constant 0 : index
    %3 = vector.load %arg2[%c0_3, %c0_4, %c0_5, %c0_6] : memref<1x15x15x32xbf16, #tpu.memory_space<vmem>>, vector<1x15x15x32xbf16>
    %4 = vector.shape_cast %3 : vector<1x15x15x32xbf16> to vector<15x15x32xbf16>
    %5 = arith.extf %4 : vector<15x15x32xbf16> to vector<15x15x32xf32>
    %c0_7 = arith.constant 0 : index
    %c0_8 = arith.constant 0 : index
    %c0_9 = arith.constant 0 : index
    %c0_10 = arith.constant 0 : index
    %6 = vector.load %arg3[%c0_7, %c0_8, %c0_9, %c0_10] : memref<1x15x15x32xbf16, #tpu.memory_space<vmem>>, vector<1x15x15x32xbf16>
    %7 = vector.shape_cast %6 : vector<1x15x15x32xbf16> to vector<15x15x32xbf16>
    %8 = arith.extf %7 : vector<15x15x32xbf16> to vector<15x15x32xf32>
    %c0_11 = arith.constant 0 : index
    %c0_12 = arith.constant 0 : index
    %c0_13 = arith.constant 0 : index
    %c0_14 = arith.constant 0 : index
    %9 = vector.load %arg4[%c0_11, %c0_12, %c0_13, %c0_14] : memref<1x15x15x32xbf16, #tpu.memory_space<vmem>>, vector<1x15x15x32xbf16>
    %10 = vector.shape_cast %9 : vector<1x15x15x32xbf16> to vector<15x15x32xbf16>
    %11 = arith.extf %10 : vector<15x15x32xbf16> to vector<15x15x32xf32>
    %12 = vector.extract_strided_slice %2 {offsets = [0, 0, 0], sizes = [14, 14, 32], strides = [1, 1, 1]} : vector<15x15x32xf32> to vector<14x14x32xf32>
    %13 = vector.extract_strided_slice %2 {offsets = [0, 1, 0], sizes = [14, 14, 32], strides = [1, 1, 1]} : vector<15x15x32xf32> to vector<14x14x32xf32>
    %14 = arith.maximumf %12, %13 : vector<14x14x32xf32>
    %15 = vector.extract_strided_slice %2 {offsets = [1, 0, 0], sizes = [14, 14, 32], strides = [1, 1, 1]} : vector<15x15x32xf32> to vector<14x14x32xf32>
    %16 = arith.maximumf %14, %15 : vector<14x14x32xf32>
    %17 = vector.extract_strided_slice %2 {offsets = [1, 1, 0], sizes = [14, 14, 32], strides = [1, 1, 1]} : vector<15x15x32xf32> to vector<14x14x32xf32>
    %18 = arith.maximumf %16, %17 : vector<14x14x32xf32>
    %19 = vector.extract_strided_slice %5 {offsets = [0, 0, 0], sizes = [14, 14, 32], strides = [1, 1, 1]} : vector<15x15x32xf32> to vector<14x14x32xf32>
    %20 = arith.maximumf %18, %19 : vector<14x14x32xf32>
    %21 = vector.extract_strided_slice %5 {offsets = [1, 0, 0], sizes = [14, 14, 32], strides = [1, 1, 1]} : vector<15x15x32xf32> to vector<14x14x32xf32>
    %22 = arith.maximumf %20, %21 : vector<14x14x32xf32>
    %23 = vector.extract_strided_slice %8 {offsets = [0, 0, 0], sizes = [14, 14, 32], strides = [1, 1, 1]} : vector<15x15x32xf32> to vector<14x14x32xf32>
    %24 = arith.maximumf %22, %23 : vector<14x14x32xf32>
    %25 = vector.extract_strided_slice %8 {offsets = [0, 1, 0], sizes = [14, 14, 32], strides = [1, 1, 1]} : vector<15x15x32xf32> to vector<14x14x32xf32>
    %26 = arith.maximumf %24, %25 : vector<14x14x32xf32>
    %27 = vector.extract_strided_slice %11 {offsets = [0, 0, 0], sizes = [14, 14, 32], strides = [1, 1, 1]} : vector<15x15x32xf32> to vector<14x14x32xf32>
    %28 = arith.maximumf %26, %27 : vector<14x14x32xf32>
    %29 = arith.truncf %28 : vector<14x14x32xf32> to vector<14x14x32xbf16>
    %c0_15 = arith.constant 0 : index
    %c0_16 = arith.constant 0 : index
    %c0_17 = arith.constant 0 : index
    %c0_18 = arith.constant 0 : index
    %30 = vector.load %arg5[%c0_15, %c0_16, %c0_17, %c0_18] : memref<1x14x14x32xbf16, #tpu.memory_space<vmem>>, vector<1x14x14x32xbf16>
    %31 = vector.shape_cast %30 : vector<1x14x14x32xbf16> to vector<14x14x32xbf16>
    %32 = vector.shape_cast %29 : vector<14x14x32xbf16> to vector<1x14x14x32xbf16>
    tpu.vector_store %arg5[%c0_15, %c0_16, %c0_17, %c0_18], %32 {strides = array<i32>} : memref<1x14x14x32xbf16, #tpu.memory_space<vmem>>, vector<1x14x14x32xbf16>,
    return
  }
  func.func @transform_0(%arg0: i32) -> (i32, i32, i32, i32) {
    %c0_i32 = arith.constant 0 : i32
    %c0_i32_0 = arith.constant 0 : i32
    %c0_i32_1 = arith.constant 0 : i32
    %c0_i32_2 = arith.constant 0 : i32
    return %arg0, %c0_i32, %c0_i32_0, %c0_i32_1 : i32, i32, i32, i32
  }
  func.func @transform_1(%arg0: i32) -> (i32, i32, i32, i32) {
    %c0_i32 = arith.constant 0 : i32
    %c0_i32_0 = arith.constant 0 : i32
    %c0_i32_1 = arith.constant 0 : i32
    %c0_i32_2 = arith.constant 0 : i32
    return %arg0, %c0_i32, %c0_i32_0, %c0_i32_1 : i32, i32, i32, i32
  }
  func.func @transform_2(%arg0: i32) -> (i32, i32, i32, i32) {
    %c0_i32 = arith.constant 0 : i32
    %c0_i32_0 = arith.constant 0 : i32
    %c0_i32_1 = arith.constant 0 : i32
    %c0_i32_2 = arith.constant 0 : i32
    return %arg0, %c0_i32, %c0_i32_0, %c0_i32_1 : i32, i32, i32, i32
  }
  func.func @transform_3(%arg0: i32) -> (i32, i32, i32, i32) {
    %c0_i32 = arith.constant 0 : i32
    %c0_i32_0 = arith.constant 0 : i32
    %c0_i32_1 = arith.constant 0 : i32
    %c0_i32_2 = arith.constant 0 : i32
    return %arg0, %c0_i32, %c0_i32_0, %c0_i32_1 : i32, i32, i32, i32
  }
  func.func @transform_4(%arg0: i32) -> (i32, i32, i32, i32) {
    %c0_i32 = arith.constant 0 : i32
    %c0_i32_0 = arith.constant 0 : i32
    %c0_i32_1 = arith.constant 0 : i32
    %c0_i32_2 = arith.constant 0 : i32
    return %arg0, %c0_i32, %c0_i32_0, %c0_i32_1 : i32, i32, i32, i32
  }
}

module attributes {stable_mosaic.version = 11 : i64} {
  func.func @_mm_kernel(%arg0: i32, %arg1: memref<392x64xbf16, #tpu.memory_space<vmem>>, %arg2: memref<1x64xf32, #tpu.memory_space<vmem>>, %arg3: memref<1x64xf32, #tpu.memory_space<vmem>>, %arg4: memref<64x64xbf16, #tpu.memory_space<vmem>>, %arg5: memref<1x64xf32, #tpu.memory_space<vmem>>, %arg6: memref<1x64xf32, #tpu.memory_space<vmem>>, %arg7: memref<392x64xbf16, #tpu.memory_space<vmem>>) attributes {dimension_semantics = [#tpu.dimension_semantics<parallel>], iteration_bounds = array<i64: 1>, scalar_prefetch = 0 : i64, scratch_operands = 0 : i64, tpu.core_type = #tpu.core_type<tc>, window_params = [{transform_indices = @transform_0, window_bounds = array<i64: 392, 64>}, {pipeline_mode = #tpu.pipeline_mode<synchronous>, transform_indices = @transform_1, window_bounds = array<i64: 1, 64>}, {pipeline_mode = #tpu.pipeline_mode<synchronous>, transform_indices = @transform_2, window_bounds = array<i64: 1, 64>}, {pipeline_mode = #tpu.pipeline_mode<synchronous>, transform_indices = @transform_3, window_bounds = array<i64: 64, 64>}, {pipeline_mode = #tpu.pipeline_mode<synchronous>, transform_indices = @transform_4, window_bounds = array<i64: 1, 64>}, {pipeline_mode = #tpu.pipeline_mode<synchronous>, transform_indices = @transform_5, window_bounds = array<i64: 1, 64>}, {transform_indices = @transform_6, window_bounds = array<i64: 392, 64>}]} {
    %c0 = arith.constant 0 : index
    %c0_0 = arith.constant 0 : index
    %0 = vector.load %arg1[%c0, %c0_0] : memref<392x64xbf16, #tpu.memory_space<vmem>>, vector<392x64xbf16>
    %c0_1 = arith.constant 0 : index
    %c0_2 = arith.constant 0 : index
    %1 = vector.load %arg2[%c0_1, %c0_2] : memref<1x64xf32, #tpu.memory_space<vmem>>, vector<1x64xf32>
    %2 = arith.extf %0 : vector<392x64xbf16> to vector<392x64xf32>
    %3 = vector.broadcast %1 : vector<1x64xf32> to vector<392x64xf32>
    %4 = arith.mulf %2, %3 : vector<392x64xf32>
    %c0_3 = arith.constant 0 : index
    %c0_4 = arith.constant 0 : index
    %5 = vector.load %arg3[%c0_3, %c0_4] : memref<1x64xf32, #tpu.memory_space<vmem>>, vector<1x64xf32>
    %6 = vector.broadcast %5 : vector<1x64xf32> to vector<392x64xf32>
    %7 = arith.addf %4, %6 : vector<392x64xf32>
    %cst = arith.constant 0.000000e+00 : f32
    %8 = vector.broadcast %cst : f32 to vector<392x64xf32>
    %9 = arith.maximumf %7, %8 : vector<392x64xf32>
    %10 = arith.truncf %9 : vector<392x64xf32> to vector<392x64xbf16>
    %c0_5 = arith.constant 0 : index
    %c0_6 = arith.constant 0 : index
    %11 = vector.load %arg4[%c0_5, %c0_6] : memref<64x64xbf16, #tpu.memory_space<vmem>>, vector<64x64xbf16>
    %cst_7 = arith.constant dense<0.000000e+00> : vector<392x64xf32>
    %12 = tpu.matmul %10, %11, %cst_7 {dimension_numbers = #tpu.dot_dimension_numbers<[1], [0], [0], [1], [0, 0, 1, 1], [], []>} : vector<392x64xbf16>, vector<64x64xbf16>, vector<392x64xf32> -> vector<392x64xf32>
    %c0_8 = arith.constant 0 : index
    %c0_9 = arith.constant 0 : index
    %13 = vector.load %arg5[%c0_8, %c0_9] : memref<1x64xf32, #tpu.memory_space<vmem>>, vector<1x64xf32>
    %14 = vector.broadcast %13 : vector<1x64xf32> to vector<392x64xf32>
    %15 = arith.mulf %12, %14 : vector<392x64xf32>
    %c0_10 = arith.constant 0 : index
    %c0_11 = arith.constant 0 : index
    %16 = vector.load %arg6[%c0_10, %c0_11] : memref<1x64xf32, #tpu.memory_space<vmem>>, vector<1x64xf32>
    %17 = vector.broadcast %16 : vector<1x64xf32> to vector<392x64xf32>
    %18 = arith.addf %15, %17 : vector<392x64xf32>
    %cst_12 = arith.constant 0.000000e+00 : f32
    %19 = vector.broadcast %cst_12 : f32 to vector<392x64xf32>
    %20 = arith.maximumf %18, %19 : vector<392x64xf32>
    %21 = arith.truncf %20 : vector<392x64xf32> to vector<392x64xbf16>
    %c0_13 = arith.constant 0 : index
    %c0_14 = arith.constant 0 : index
    %22 = vector.load %arg7[%c0_13, %c0_14] : memref<392x64xbf16, #tpu.memory_space<vmem>>, vector<392x64xbf16>
    tpu.vector_store %arg7[%c0_13, %c0_14], %21 {strides = array<i32>} : memref<392x64xbf16, #tpu.memory_space<vmem>>, vector<392x64xbf16>,
    return
  }
  func.func @transform_0(%arg0: i32) -> (i32, i32) {
    %c0_i32 = arith.constant 0 : i32
    %c0_i32_0 = arith.constant 0 : i32
    return %arg0, %c0_i32 : i32, i32
  }
  func.func @transform_1(%arg0: i32) -> (i32, i32) {
    %c0_i32 = arith.constant 0 : i32
    %c0_i32_0 = arith.constant 0 : i32
    %c0_i32_1 = arith.constant 0 : i32
    return %c0_i32, %c0_i32_0 : i32, i32
  }
  func.func @transform_2(%arg0: i32) -> (i32, i32) {
    %c0_i32 = arith.constant 0 : i32
    %c0_i32_0 = arith.constant 0 : i32
    %c0_i32_1 = arith.constant 0 : i32
    return %c0_i32, %c0_i32_0 : i32, i32
  }
  func.func @transform_3(%arg0: i32) -> (i32, i32) {
    %c0_i32 = arith.constant 0 : i32
    %c0_i32_0 = arith.constant 0 : i32
    %c0_i32_1 = arith.constant 0 : i32
    return %c0_i32, %c0_i32_0 : i32, i32
  }
  func.func @transform_4(%arg0: i32) -> (i32, i32) {
    %c0_i32 = arith.constant 0 : i32
    %c0_i32_0 = arith.constant 0 : i32
    %c0_i32_1 = arith.constant 0 : i32
    return %c0_i32, %c0_i32_0 : i32, i32
  }
  func.func @transform_5(%arg0: i32) -> (i32, i32) {
    %c0_i32 = arith.constant 0 : i32
    %c0_i32_0 = arith.constant 0 : i32
    %c0_i32_1 = arith.constant 0 : i32
    return %c0_i32, %c0_i32_0 : i32, i32
  }
  func.func @transform_6(%arg0: i32) -> (i32, i32) {
    %c0_i32 = arith.constant 0 : i32
    %c0_i32_0 = arith.constant 0 : i32
    return %arg0, %c0_i32 : i32, i32
  }
}

module attributes {stable_mosaic.version = 11 : i64} {
  func.func @_conv3x3_kernel(%arg0: i32, %arg1: i32, %arg2: memref<1x272x64xbf16, #tpu.memory_space<vmem>>, %arg3: memref<64x144xbf16, #tpu.memory_space<vmem>>, %arg4: memref<1x7x14x16xbf16, #tpu.memory_space<vmem>>) attributes {dimension_semantics = [#tpu.dimension_semantics<parallel>, #tpu.dimension_semantics<parallel>], iteration_bounds = array<i64: 2, 2>, scalar_prefetch = 0 : i64, scratch_operands = 0 : i64, tpu.core_type = #tpu.core_type<tc>, window_params = [{transform_indices = @transform_0, window_bounds = array<i64: 1, 272, 64>}, {pipeline_mode = #tpu.pipeline_mode<synchronous>, transform_indices = @transform_1, window_bounds = array<i64: 64, 144>}, {transform_indices = @transform_2, window_bounds = array<i64: 1, 7, 14, 16>}]} {
    %c112_i32 = arith.constant 112 : i32
    %0 = arith.muli %arg1, %c112_i32 : i32
    %1 = tpu.assume_multiple %0, 8 : i32
    %c0 = arith.constant 0 : index
    %2 = arith.index_cast %1 : i32 to index
    %c0_0 = arith.constant 0 : index
    %3 = vector.load %arg2[%c0, %2, %c0_0] : memref<1x272x64xbf16, #tpu.memory_space<vmem>>, vector<1x152x64xbf16>
    %4 = vector.shape_cast %3 : vector<1x152x64xbf16> to vector<152x64xbf16>
    %c0_1 = arith.constant 0 : index
    %c0_2 = arith.constant 0 : index
    %5 = vector.load %arg3[%c0_1, %c0_2] : memref<64x144xbf16, #tpu.memory_space<vmem>>, vector<64x144xbf16>
    %cst = arith.constant dense<0.000000e+00> : vector<152x144xf32>
    %6 = tpu.matmul %4, %5, %cst {dimension_numbers = #tpu.dot_dimension_numbers<[1], [0], [0], [1], [0, 0, 1, 1], [], []>} : vector<152x64xbf16>, vector<64x144xbf16>, vector<152x144xf32> -> vector<152x144xf32>
    %7 = vector.extract_strided_slice %6 {offsets = [0, 0], sizes = [112, 16], strides = [1, 1]} : vector<152x144xf32> to vector<112x16xf32>
    %8 = vector.extract_strided_slice %6 {offsets = [1, 16], sizes = [112, 16], strides = [1, 1]} : vector<152x144xf32> to vector<112x16xf32>
    %9 = arith.addf %7, %8 : vector<112x16xf32>
    %10 = vector.extract_strided_slice %6 {offsets = [2, 32], sizes = [112, 16], strides = [1, 1]} : vector<152x144xf32> to vector<112x16xf32>
    %11 = arith.addf %9, %10 : vector<112x16xf32>
    %12 = vector.extract_strided_slice %6 {offsets = [16, 48], sizes = [112, 16], strides = [1, 1]} : vector<152x144xf32> to vector<112x16xf32>
    %13 = arith.addf %11, %12 : vector<112x16xf32>
    %14 = vector.extract_strided_slice %6 {offsets = [17, 64], sizes = [112, 16], strides = [1, 1]} : vector<152x144xf32> to vector<112x16xf32>
    %15 = arith.addf %13, %14 : vector<112x16xf32>
    %16 = vector.extract_strided_slice %6 {offsets = [18, 80], sizes = [112, 16], strides = [1, 1]} : vector<152x144xf32> to vector<112x16xf32>
    %17 = arith.addf %15, %16 : vector<112x16xf32>
    %18 = vector.extract_strided_slice %6 {offsets = [32, 96], sizes = [112, 16], strides = [1, 1]} : vector<152x144xf32> to vector<112x16xf32>
    %19 = arith.addf %17, %18 : vector<112x16xf32>
    %20 = vector.extract_strided_slice %6 {offsets = [33, 112], sizes = [112, 16], strides = [1, 1]} : vector<152x144xf32> to vector<112x16xf32>
    %21 = arith.addf %19, %20 : vector<112x16xf32>
    %22 = vector.extract_strided_slice %6 {offsets = [34, 128], sizes = [112, 16], strides = [1, 1]} : vector<152x144xf32> to vector<112x16xf32>
    %23 = arith.addf %21, %22 : vector<112x16xf32>
    %24 = vector.extract_strided_slice %23 {offsets = [0, 0], sizes = [14, 16], strides = [1, 1]} : vector<112x16xf32> to vector<14x16xf32>
    %25 = arith.truncf %24 : vector<14x16xf32> to vector<14x16xbf16>
    %c0_3 = arith.constant 0 : index
    %c0_4 = arith.constant 0 : index
    %c0_5 = arith.constant 0 : index
    %c0_6 = arith.constant 0 : index
    %26 = vector.load %arg4[%c0_3, %c0_4, %c0_5, %c0_6] : memref<1x7x14x16xbf16, #tpu.memory_space<vmem>>, vector<1x1x14x16xbf16>
    %27 = vector.shape_cast %26 : vector<1x1x14x16xbf16> to vector<14x16xbf16>
    %28 = vector.shape_cast %25 : vector<14x16xbf16> to vector<1x1x14x16xbf16>
    tpu.vector_store %arg4[%c0_3, %c0_4, %c0_5, %c0_6], %28 {strides = array<i32>} : memref<1x7x14x16xbf16, #tpu.memory_space<vmem>>, vector<1x1x14x16xbf16>,
    %29 = vector.extract_strided_slice %23 {offsets = [16, 0], sizes = [14, 16], strides = [1, 1]} : vector<112x16xf32> to vector<14x16xf32>
    %30 = arith.truncf %29 : vector<14x16xf32> to vector<14x16xbf16>
    %c0_7 = arith.constant 0 : index
    %c1 = arith.constant 1 : index
    %c0_8 = arith.constant 0 : index
    %c0_9 = arith.constant 0 : index
    %31 = vector.load %arg4[%c0_7, %c1, %c0_8, %c0_9] : memref<1x7x14x16xbf16, #tpu.memory_space<vmem>>, vector<1x1x14x16xbf16>
    %32 = vector.shape_cast %31 : vector<1x1x14x16xbf16> to vector<14x16xbf16>
    %33 = vector.shape_cast %30 : vector<14x16xbf16> to vector<1x1x14x16xbf16>
    tpu.vector_store %arg4[%c0_7, %c1, %c0_8, %c0_9], %33 {strides = array<i32>} : memref<1x7x14x16xbf16, #tpu.memory_space<vmem>>, vector<1x1x14x16xbf16>,
    %34 = vector.extract_strided_slice %23 {offsets = [32, 0], sizes = [14, 16], strides = [1, 1]} : vector<112x16xf32> to vector<14x16xf32>
    %35 = arith.truncf %34 : vector<14x16xf32> to vector<14x16xbf16>
    %c0_10 = arith.constant 0 : index
    %c2 = arith.constant 2 : index
    %c0_11 = arith.constant 0 : index
    %c0_12 = arith.constant 0 : index
    %36 = vector.load %arg4[%c0_10, %c2, %c0_11, %c0_12] : memref<1x7x14x16xbf16, #tpu.memory_space<vmem>>, vector<1x1x14x16xbf16>
    %37 = vector.shape_cast %36 : vector<1x1x14x16xbf16> to vector<14x16xbf16>
    %38 = vector.shape_cast %35 : vector<14x16xbf16> to vector<1x1x14x16xbf16>
    tpu.vector_store %arg4[%c0_10, %c2, %c0_11, %c0_12], %38 {strides = array<i32>} : memref<1x7x14x16xbf16, #tpu.memory_space<vmem>>, vector<1x1x14x16xbf16>,
    %39 = vector.extract_strided_slice %23 {offsets = [48, 0], sizes = [14, 16], strides = [1, 1]} : vector<112x16xf32> to vector<14x16xf32>
    %40 = arith.truncf %39 : vector<14x16xf32> to vector<14x16xbf16>
    %c0_13 = arith.constant 0 : index
    %c3 = arith.constant 3 : index
    %c0_14 = arith.constant 0 : index
    %c0_15 = arith.constant 0 : index
    %41 = vector.load %arg4[%c0_13, %c3, %c0_14, %c0_15] : memref<1x7x14x16xbf16, #tpu.memory_space<vmem>>, vector<1x1x14x16xbf16>
    %42 = vector.shape_cast %41 : vector<1x1x14x16xbf16> to vector<14x16xbf16>
    %43 = vector.shape_cast %40 : vector<14x16xbf16> to vector<1x1x14x16xbf16>
    tpu.vector_store %arg4[%c0_13, %c3, %c0_14, %c0_15], %43 {strides = array<i32>} : memref<1x7x14x16xbf16, #tpu.memory_space<vmem>>, vector<1x1x14x16xbf16>,
    %44 = vector.extract_strided_slice %23 {offsets = [64, 0], sizes = [14, 16], strides = [1, 1]} : vector<112x16xf32> to vector<14x16xf32>
    %45 = arith.truncf %44 : vector<14x16xf32> to vector<14x16xbf16>
    %c0_16 = arith.constant 0 : index
    %c4 = arith.constant 4 : index
    %c0_17 = arith.constant 0 : index
    %c0_18 = arith.constant 0 : index
    %46 = vector.load %arg4[%c0_16, %c4, %c0_17, %c0_18] : memref<1x7x14x16xbf16, #tpu.memory_space<vmem>>, vector<1x1x14x16xbf16>
    %47 = vector.shape_cast %46 : vector<1x1x14x16xbf16> to vector<14x16xbf16>
    %48 = vector.shape_cast %45 : vector<14x16xbf16> to vector<1x1x14x16xbf16>
    tpu.vector_store %arg4[%c0_16, %c4, %c0_17, %c0_18], %48 {strides = array<i32>} : memref<1x7x14x16xbf16, #tpu.memory_space<vmem>>, vector<1x1x14x16xbf16>,
    %49 = vector.extract_strided_slice %23 {offsets = [80, 0], sizes = [14, 16], strides = [1, 1]} : vector<112x16xf32> to vector<14x16xf32>
    %50 = arith.truncf %49 : vector<14x16xf32> to vector<14x16xbf16>
    %c0_19 = arith.constant 0 : index
    %c5 = arith.constant 5 : index
    %c0_20 = arith.constant 0 : index
    %c0_21 = arith.constant 0 : index
    %51 = vector.load %arg4[%c0_19, %c5, %c0_20, %c0_21] : memref<1x7x14x16xbf16, #tpu.memory_space<vmem>>, vector<1x1x14x16xbf16>
    %52 = vector.shape_cast %51 : vector<1x1x14x16xbf16> to vector<14x16xbf16>
    %53 = vector.shape_cast %50 : vector<14x16xbf16> to vector<1x1x14x16xbf16>
    tpu.vector_store %arg4[%c0_19, %c5, %c0_20, %c0_21], %53 {strides = array<i32>} : memref<1x7x14x16xbf16, #tpu.memory_space<vmem>>, vector<1x1x14x16xbf16>,
    %54 = vector.extract_strided_slice %23 {offsets = [96, 0], sizes = [14, 16], strides = [1, 1]} : vector<112x16xf32> to vector<14x16xf32>
    %55 = arith.truncf %54 : vector<14x16xf32> to vector<14x16xbf16>
    %c0_22 = arith.constant 0 : index
    %c6 = arith.constant 6 : index
    %c0_23 = arith.constant 0 : index
    %c0_24 = arith.constant 0 : index
    %56 = vector.load %arg4[%c0_22, %c6, %c0_23, %c0_24] : memref<1x7x14x16xbf16, #tpu.memory_space<vmem>>, vector<1x1x14x16xbf16>
    %57 = vector.shape_cast %56 : vector<1x1x14x16xbf16> to vector<14x16xbf16>
    %58 = vector.shape_cast %55 : vector<14x16xbf16> to vector<1x1x14x16xbf16>
    tpu.vector_store %arg4[%c0_22, %c6, %c0_23, %c0_24], %58 {strides = array<i32>} : memref<1x7x14x16xbf16, #tpu.memory_space<vmem>>, vector<1x1x14x16xbf16>,
    return
  }
  func.func @transform_0(%arg0: i32, %arg1: i32) -> (i32, i32, i32) {
    %c0_i32 = arith.constant 0 : i32
    %c0_i32_0 = arith.constant 0 : i32
    %c0_i32_1 = arith.constant 0 : i32
    return %arg0, %c0_i32, %c0_i32_0 : i32, i32, i32
  }
  func.func @transform_1(%arg0: i32, %arg1: i32) -> (i32, i32) {
    %c0_i32 = arith.constant 0 : i32
    %c0_i32_0 = arith.constant 0 : i32
    %c0_i32_1 = arith.constant 0 : i32
    return %c0_i32, %c0_i32_0 : i32, i32
  }
  func.func @transform_2(%arg0: i32, %arg1: i32) -> (i32, i32, i32, i32) {
    %c0_i32 = arith.constant 0 : i32
    %c0_i32_0 = arith.constant 0 : i32
    %c0_i32_1 = arith.constant 0 : i32
    return %arg0, %arg1, %c0_i32, %c0_i32_0 : i32, i32, i32, i32
  }
}

module attributes {stable_mosaic.version = 11 : i64} {
  func.func @_transition_kernel(%arg0: i32, %arg1: memref<98x64xbf16, #tpu.memory_space<vmem>>, %arg2: memref<98x64xbf16, #tpu.memory_space<vmem>>, %arg3: memref<98x64xbf16, #tpu.memory_space<vmem>>, %arg4: memref<98x64xbf16, #tpu.memory_space<vmem>>, %arg5: memref<1x64xf32, #tpu.memory_space<vmem>>, %arg6: memref<1x64xf32, #tpu.memory_space<vmem>>, %arg7: memref<64x32xbf16, #tpu.memory_space<vmem>>, %arg8: memref<98x32xbf16, #tpu.memory_space<vmem>>) attributes {dimension_semantics = [#tpu.dimension_semantics<parallel>], iteration_bounds = array<i64: 1>, scalar_prefetch = 0 : i64, scratch_operands = 0 : i64, tpu.core_type = #tpu.core_type<tc>, window_params = [{transform_indices = @transform_0, window_bounds = array<i64: 98, 64>}, {transform_indices = @transform_1, window_bounds = array<i64: 98, 64>}, {transform_indices = @transform_2, window_bounds = array<i64: 98, 64>}, {transform_indices = @transform_3, window_bounds = array<i64: 98, 64>}, {pipeline_mode = #tpu.pipeline_mode<synchronous>, transform_indices = @transform_4, window_bounds = array<i64: 1, 64>}, {pipeline_mode = #tpu.pipeline_mode<synchronous>, transform_indices = @transform_5, window_bounds = array<i64: 1, 64>}, {pipeline_mode = #tpu.pipeline_mode<synchronous>, transform_indices = @transform_6, window_bounds = array<i64: 64, 32>}, {transform_indices = @transform_7, window_bounds = array<i64: 98, 32>}]} {
    %c0 = arith.constant 0 : index
    %c0_0 = arith.constant 0 : index
    %0 = vector.load %arg5[%c0, %c0_0] : memref<1x64xf32, #tpu.memory_space<vmem>>, vector<1x64xf32>
    %c0_1 = arith.constant 0 : index
    %c0_2 = arith.constant 0 : index
    %1 = vector.load %arg6[%c0_1, %c0_2] : memref<1x64xf32, #tpu.memory_space<vmem>>, vector<1x64xf32>
    %c0_3 = arith.constant 0 : index
    %c0_4 = arith.constant 0 : index
    %2 = vector.load %arg1[%c0_3, %c0_4] : memref<98x64xbf16, #tpu.memory_space<vmem>>, vector<98x64xbf16>
    %3 = arith.extf %2 : vector<98x64xbf16> to vector<98x64xf32>
    %4 = vector.broadcast %0 : vector<1x64xf32> to vector<98x64xf32>
    %5 = arith.mulf %3, %4 : vector<98x64xf32>
    %6 = vector.broadcast %1 : vector<1x64xf32> to vector<98x64xf32>
    %7 = arith.addf %5, %6 : vector<98x64xf32>
    %cst = arith.constant 0.000000e+00 : f32
    %8 = vector.broadcast %cst : f32 to vector<98x64xf32>
    %9 = arith.maximumf %7, %8 : vector<98x64xf32>
    %c0_5 = arith.constant 0 : index
    %c0_6 = arith.constant 0 : index
    %10 = vector.load %arg2[%c0_5, %c0_6] : memref<98x64xbf16, #tpu.memory_space<vmem>>, vector<98x64xbf16>
    %11 = arith.extf %10 : vector<98x64xbf16> to vector<98x64xf32>
    %12 = vector.broadcast %0 : vector<1x64xf32> to vector<98x64xf32>
    %13 = arith.mulf %11, %12 : vector<98x64xf32>
    %14 = vector.broadcast %1 : vector<1x64xf32> to vector<98x64xf32>
    %15 = arith.addf %13, %14 : vector<98x64xf32>
    %cst_7 = arith.constant 0.000000e+00 : f32
    %16 = vector.broadcast %cst_7 : f32 to vector<98x64xf32>
    %17 = arith.maximumf %15, %16 : vector<98x64xf32>
    %18 = arith.addf %9, %17 : vector<98x64xf32>
    %c0_8 = arith.constant 0 : index
    %c0_9 = arith.constant 0 : index
    %19 = vector.load %arg3[%c0_8, %c0_9] : memref<98x64xbf16, #tpu.memory_space<vmem>>, vector<98x64xbf16>
    %20 = arith.extf %19 : vector<98x64xbf16> to vector<98x64xf32>
    %21 = vector.broadcast %0 : vector<1x64xf32> to vector<98x64xf32>
    %22 = arith.mulf %20, %21 : vector<98x64xf32>
    %23 = vector.broadcast %1 : vector<1x64xf32> to vector<98x64xf32>
    %24 = arith.addf %22, %23 : vector<98x64xf32>
    %cst_10 = arith.constant 0.000000e+00 : f32
    %25 = vector.broadcast %cst_10 : f32 to vector<98x64xf32>
    %26 = arith.maximumf %24, %25 : vector<98x64xf32>
    %27 = arith.addf %18, %26 : vector<98x64xf32>
    %c0_11 = arith.constant 0 : index
    %c0_12 = arith.constant 0 : index
    %28 = vector.load %arg4[%c0_11, %c0_12] : memref<98x64xbf16, #tpu.memory_space<vmem>>, vector<98x64xbf16>
    %29 = arith.extf %28 : vector<98x64xbf16> to vector<98x64xf32>
    %30 = vector.broadcast %0 : vector<1x64xf32> to vector<98x64xf32>
    %31 = arith.mulf %29, %30 : vector<98x64xf32>
    %32 = vector.broadcast %1 : vector<1x64xf32> to vector<98x64xf32>
    %33 = arith.addf %31, %32 : vector<98x64xf32>
    %cst_13 = arith.constant 0.000000e+00 : f32
    %34 = vector.broadcast %cst_13 : f32 to vector<98x64xf32>
    %35 = arith.maximumf %33, %34 : vector<98x64xf32>
    %36 = arith.addf %27, %35 : vector<98x64xf32>
    %cst_14 = arith.constant 2.500000e-01 : f32
    %37 = vector.broadcast %cst_14 : f32 to vector<98x64xf32>
    %38 = arith.mulf %36, %37 : vector<98x64xf32>
    %39 = arith.truncf %38 : vector<98x64xf32> to vector<98x64xbf16>
    %c0_15 = arith.constant 0 : index
    %c0_16 = arith.constant 0 : index
    %40 = vector.load %arg7[%c0_15, %c0_16] : memref<64x32xbf16, #tpu.memory_space<vmem>>, vector<64x32xbf16>
    %cst_17 = arith.constant dense<0.000000e+00> : vector<98x32xf32>
    %41 = tpu.matmul %39, %40, %cst_17 {dimension_numbers = #tpu.dot_dimension_numbers<[1], [0], [0], [1], [0, 0, 1, 1], [], []>} : vector<98x64xbf16>, vector<64x32xbf16>, vector<98x32xf32> -> vector<98x32xf32>
    %42 = arith.truncf %41 : vector<98x32xf32> to vector<98x32xbf16>
    %c0_18 = arith.constant 0 : index
    %c0_19 = arith.constant 0 : index
    %43 = vector.load %arg8[%c0_18, %c0_19] : memref<98x32xbf16, #tpu.memory_space<vmem>>, vector<98x32xbf16>
    tpu.vector_store %arg8[%c0_18, %c0_19], %42 {strides = array<i32>} : memref<98x32xbf16, #tpu.memory_space<vmem>>, vector<98x32xbf16>,
    return
  }
  func.func @transform_0(%arg0: i32) -> (i32, i32) {
    %c0_i32 = arith.constant 0 : i32
    %c0_i32_0 = arith.constant 0 : i32
    return %arg0, %c0_i32 : i32, i32
  }
  func.func @transform_1(%arg0: i32) -> (i32, i32) {
    %c0_i32 = arith.constant 0 : i32
    %c0_i32_0 = arith.constant 0 : i32
    return %arg0, %c0_i32 : i32, i32
  }
  func.func @transform_2(%arg0: i32) -> (i32, i32) {
    %c0_i32 = arith.constant 0 : i32
    %c0_i32_0 = arith.constant 0 : i32
    return %arg0, %c0_i32 : i32, i32
  }
  func.func @transform_3(%arg0: i32) -> (i32, i32) {
    %c0_i32 = arith.constant 0 : i32
    %c0_i32_0 = arith.constant 0 : i32
    return %arg0, %c0_i32 : i32, i32
  }
  func.func @transform_4(%arg0: i32) -> (i32, i32) {
    %c0_i32 = arith.constant 0 : i32
    %c0_i32_0 = arith.constant 0 : i32
    %c0_i32_1 = arith.constant 0 : i32
    return %c0_i32, %c0_i32_0 : i32, i32
  }
  func.func @transform_5(%arg0: i32) -> (i32, i32) {
    %c0_i32 = arith.constant 0 : i32
    %c0_i32_0 = arith.constant 0 : i32
    %c0_i32_1 = arith.constant 0 : i32
    return %c0_i32, %c0_i32_0 : i32, i32
  }
  func.func @transform_6(%arg0: i32) -> (i32, i32) {
    %c0_i32 = arith.constant 0 : i32
    %c0_i32_0 = arith.constant 0 : i32
    %c0_i32_1 = arith.constant 0 : i32
    return %c0_i32, %c0_i32_0 : i32, i32
  }
  func.func @transform_7(%arg0: i32) -> (i32, i32) {
    %c0_i32 = arith.constant 0 : i32
    %c0_i32_0 = arith.constant 0 : i32
    return %arg0, %c0_i32 : i32, i32
  }
}

module attributes {stable_mosaic.version = 11 : i64} {
  func.func @_mm_kernel(%arg0: i32, %arg1: memref<98x64xbf16, #tpu.memory_space<vmem>>, %arg2: memref<1x64xf32, #tpu.memory_space<vmem>>, %arg3: memref<1x64xf32, #tpu.memory_space<vmem>>, %arg4: memref<64x64xbf16, #tpu.memory_space<vmem>>, %arg5: memref<1x64xf32, #tpu.memory_space<vmem>>, %arg6: memref<1x64xf32, #tpu.memory_space<vmem>>, %arg7: memref<98x64xbf16, #tpu.memory_space<vmem>>) attributes {dimension_semantics = [#tpu.dimension_semantics<parallel>], iteration_bounds = array<i64: 1>, scalar_prefetch = 0 : i64, scratch_operands = 0 : i64, tpu.core_type = #tpu.core_type<tc>, window_params = [{transform_indices = @transform_0, window_bounds = array<i64: 98, 64>}, {pipeline_mode = #tpu.pipeline_mode<synchronous>, transform_indices = @transform_1, window_bounds = array<i64: 1, 64>}, {pipeline_mode = #tpu.pipeline_mode<synchronous>, transform_indices = @transform_2, window_bounds = array<i64: 1, 64>}, {pipeline_mode = #tpu.pipeline_mode<synchronous>, transform_indices = @transform_3, window_bounds = array<i64: 64, 64>}, {pipeline_mode = #tpu.pipeline_mode<synchronous>, transform_indices = @transform_4, window_bounds = array<i64: 1, 64>}, {pipeline_mode = #tpu.pipeline_mode<synchronous>, transform_indices = @transform_5, window_bounds = array<i64: 1, 64>}, {transform_indices = @transform_6, window_bounds = array<i64: 98, 64>}]} {
    %c0 = arith.constant 0 : index
    %c0_0 = arith.constant 0 : index
    %0 = vector.load %arg1[%c0, %c0_0] : memref<98x64xbf16, #tpu.memory_space<vmem>>, vector<98x64xbf16>
    %c0_1 = arith.constant 0 : index
    %c0_2 = arith.constant 0 : index
    %1 = vector.load %arg2[%c0_1, %c0_2] : memref<1x64xf32, #tpu.memory_space<vmem>>, vector<1x64xf32>
    %2 = arith.extf %0 : vector<98x64xbf16> to vector<98x64xf32>
    %3 = vector.broadcast %1 : vector<1x64xf32> to vector<98x64xf32>
    %4 = arith.mulf %2, %3 : vector<98x64xf32>
    %c0_3 = arith.constant 0 : index
    %c0_4 = arith.constant 0 : index
    %5 = vector.load %arg3[%c0_3, %c0_4] : memref<1x64xf32, #tpu.memory_space<vmem>>, vector<1x64xf32>
    %6 = vector.broadcast %5 : vector<1x64xf32> to vector<98x64xf32>
    %7 = arith.addf %4, %6 : vector<98x64xf32>
    %cst = arith.constant 0.000000e+00 : f32
    %8 = vector.broadcast %cst : f32 to vector<98x64xf32>
    %9 = arith.maximumf %7, %8 : vector<98x64xf32>
    %10 = arith.truncf %9 : vector<98x64xf32> to vector<98x64xbf16>
    %c0_5 = arith.constant 0 : index
    %c0_6 = arith.constant 0 : index
    %11 = vector.load %arg4[%c0_5, %c0_6] : memref<64x64xbf16, #tpu.memory_space<vmem>>, vector<64x64xbf16>
    %cst_7 = arith.constant dense<0.000000e+00> : vector<98x64xf32>
    %12 = tpu.matmul %10, %11, %cst_7 {dimension_numbers = #tpu.dot_dimension_numbers<[1], [0], [0], [1], [0, 0, 1, 1], [], []>} : vector<98x64xbf16>, vector<64x64xbf16>, vector<98x64xf32> -> vector<98x64xf32>
    %c0_8 = arith.constant 0 : index
    %c0_9 = arith.constant 0 : index
    %13 = vector.load %arg5[%c0_8, %c0_9] : memref<1x64xf32, #tpu.memory_space<vmem>>, vector<1x64xf32>
    %14 = vector.broadcast %13 : vector<1x64xf32> to vector<98x64xf32>
    %15 = arith.mulf %12, %14 : vector<98x64xf32>
    %c0_10 = arith.constant 0 : index
    %c0_11 = arith.constant 0 : index
    %16 = vector.load %arg6[%c0_10, %c0_11] : memref<1x64xf32, #tpu.memory_space<vmem>>, vector<1x64xf32>
    %17 = vector.broadcast %16 : vector<1x64xf32> to vector<98x64xf32>
    %18 = arith.addf %15, %17 : vector<98x64xf32>
    %cst_12 = arith.constant 0.000000e+00 : f32
    %19 = vector.broadcast %cst_12 : f32 to vector<98x64xf32>
    %20 = arith.maximumf %18, %19 : vector<98x64xf32>
    %21 = arith.truncf %20 : vector<98x64xf32> to vector<98x64xbf16>
    %c0_13 = arith.constant 0 : index
    %c0_14 = arith.constant 0 : index
    %22 = vector.load %arg7[%c0_13, %c0_14] : memref<98x64xbf16, #tpu.memory_space<vmem>>, vector<98x64xbf16>
    tpu.vector_store %arg7[%c0_13, %c0_14], %21 {strides = array<i32>} : memref<98x64xbf16, #tpu.memory_space<vmem>>, vector<98x64xbf16>,
    return
  }
  func.func @transform_0(%arg0: i32) -> (i32, i32) {
    %c0_i32 = arith.constant 0 : i32
    %c0_i32_0 = arith.constant 0 : i32
    return %arg0, %c0_i32 : i32, i32
  }
  func.func @transform_1(%arg0: i32) -> (i32, i32) {
    %c0_i32 = arith.constant 0 : i32
    %c0_i32_0 = arith.constant 0 : i32
    %c0_i32_1 = arith.constant 0 : i32
    return %c0_i32, %c0_i32_0 : i32, i32
  }
  func.func @transform_2(%arg0: i32) -> (i32, i32) {
    %c0_i32 = arith.constant 0 : i32
    %c0_i32_0 = arith.constant 0 : i32
    %c0_i32_1 = arith.constant 0 : i32
    return %c0_i32, %c0_i32_0 : i32, i32
  }
  func.func @transform_3(%arg0: i32) -> (i32, i32) {
    %c0_i32 = arith.constant 0 : i32
    %c0_i32_0 = arith.constant 0 : i32
    %c0_i32_1 = arith.constant 0 : i32
    return %c0_i32, %c0_i32_0 : i32, i32
  }
  func.func @transform_4(%arg0: i32) -> (i32, i32) {
    %c0_i32 = arith.constant 0 : i32
    %c0_i32_0 = arith.constant 0 : i32
    %c0_i32_1 = arith.constant 0 : i32
    return %c0_i32, %c0_i32_0 : i32, i32
  }
  func.func @transform_5(%arg0: i32) -> (i32, i32) {
    %c0_i32 = arith.constant 0 : i32
    %c0_i32_0 = arith.constant 0 : i32
    %c0_i32_1 = arith.constant 0 : i32
    return %c0_i32, %c0_i32_0 : i32, i32
  }
  func.func @transform_6(%arg0: i32) -> (i32, i32) {
    %c0_i32 = arith.constant 0 : i32
    %c0_i32_0 = arith.constant 0 : i32
    return %arg0, %c0_i32 : i32, i32
  }
}

module attributes {stable_mosaic.version = 11 : i64} {
  func.func @_conv3x3_kernel(%arg0: i32, %arg1: i32, %arg2: memref<1x160x64xbf16, #tpu.memory_space<vmem>>, %arg3: memref<64x144xbf16, #tpu.memory_space<vmem>>, %arg4: memref<1x7x7x16xbf16, #tpu.memory_space<vmem>>) attributes {dimension_semantics = [#tpu.dimension_semantics<parallel>, #tpu.dimension_semantics<parallel>], iteration_bounds = array<i64: 2, 1>, scalar_prefetch = 0 : i64, scratch_operands = 0 : i64, tpu.core_type = #tpu.core_type<tc>, window_params = [{transform_indices = @transform_0, window_bounds = array<i64: 1, 160, 64>}, {pipeline_mode = #tpu.pipeline_mode<synchronous>, transform_indices = @transform_1, window_bounds = array<i64: 64, 144>}, {transform_indices = @transform_2, window_bounds = array<i64: 1, 7, 7, 16>}]} {
    %c112_i32 = arith.constant 112 : i32
    %0 = arith.muli %arg1, %c112_i32 : i32
    %1 = tpu.assume_multiple %0, 8 : i32
    %c0 = arith.constant 0 : index
    %2 = arith.index_cast %1 : i32 to index
    %c0_0 = arith.constant 0 : index
    %3 = vector.load %arg2[%c0, %2, %c0_0] : memref<1x160x64xbf16, #tpu.memory_space<vmem>>, vector<1x152x64xbf16>
    %4 = vector.shape_cast %3 : vector<1x152x64xbf16> to vector<152x64xbf16>
    %c0_1 = arith.constant 0 : index
    %c0_2 = arith.constant 0 : index
    %5 = vector.load %arg3[%c0_1, %c0_2] : memref<64x144xbf16, #tpu.memory_space<vmem>>, vector<64x144xbf16>
    %cst = arith.constant dense<0.000000e+00> : vector<152x144xf32>
    %6 = tpu.matmul %4, %5, %cst {dimension_numbers = #tpu.dot_dimension_numbers<[1], [0], [0], [1], [0, 0, 1, 1], [], []>} : vector<152x64xbf16>, vector<64x144xbf16>, vector<152x144xf32> -> vector<152x144xf32>
    %7 = vector.extract_strided_slice %6 {offsets = [0, 0], sizes = [112, 16], strides = [1, 1]} : vector<152x144xf32> to vector<112x16xf32>
    %8 = vector.extract_strided_slice %6 {offsets = [1, 16], sizes = [112, 16], strides = [1, 1]} : vector<152x144xf32> to vector<112x16xf32>
    %9 = arith.addf %7, %8 : vector<112x16xf32>
    %10 = vector.extract_strided_slice %6 {offsets = [2, 32], sizes = [112, 16], strides = [1, 1]} : vector<152x144xf32> to vector<112x16xf32>
    %11 = arith.addf %9, %10 : vector<112x16xf32>
    %12 = vector.extract_strided_slice %6 {offsets = [16, 48], sizes = [112, 16], strides = [1, 1]} : vector<152x144xf32> to vector<112x16xf32>
    %13 = arith.addf %11, %12 : vector<112x16xf32>
    %14 = vector.extract_strided_slice %6 {offsets = [17, 64], sizes = [112, 16], strides = [1, 1]} : vector<152x144xf32> to vector<112x16xf32>
    %15 = arith.addf %13, %14 : vector<112x16xf32>
    %16 = vector.extract_strided_slice %6 {offsets = [18, 80], sizes = [112, 16], strides = [1, 1]} : vector<152x144xf32> to vector<112x16xf32>
    %17 = arith.addf %15, %16 : vector<112x16xf32>
    %18 = vector.extract_strided_slice %6 {offsets = [32, 96], sizes = [112, 16], strides = [1, 1]} : vector<152x144xf32> to vector<112x16xf32>
    %19 = arith.addf %17, %18 : vector<112x16xf32>
    %20 = vector.extract_strided_slice %6 {offsets = [33, 112], sizes = [112, 16], strides = [1, 1]} : vector<152x144xf32> to vector<112x16xf32>
    %21 = arith.addf %19, %20 : vector<112x16xf32>
    %22 = vector.extract_strided_slice %6 {offsets = [34, 128], sizes = [112, 16], strides = [1, 1]} : vector<152x144xf32> to vector<112x16xf32>
    %23 = arith.addf %21, %22 : vector<112x16xf32>
    %24 = vector.extract_strided_slice %23 {offsets = [0, 0], sizes = [7, 16], strides = [1, 1]} : vector<112x16xf32> to vector<7x16xf32>
    %25 = arith.truncf %24 : vector<7x16xf32> to vector<7x16xbf16>
    %c0_3 = arith.constant 0 : index
    %c0_4 = arith.constant 0 : index
    %c0_5 = arith.constant 0 : index
    %c0_6 = arith.constant 0 : index
    %26 = vector.load %arg4[%c0_3, %c0_4, %c0_5, %c0_6] : memref<1x7x7x16xbf16, #tpu.memory_space<vmem>>, vector<1x1x7x16xbf16>
    %27 = vector.shape_cast %26 : vector<1x1x7x16xbf16> to vector<7x16xbf16>
    %28 = vector.shape_cast %25 : vector<7x16xbf16> to vector<1x1x7x16xbf16>
    tpu.vector_store %arg4[%c0_3, %c0_4, %c0_5, %c0_6], %28 {strides = array<i32>} : memref<1x7x7x16xbf16, #tpu.memory_space<vmem>>, vector<1x1x7x16xbf16>,
    %29 = vector.extract_strided_slice %23 {offsets = [16, 0], sizes = [7, 16], strides = [1, 1]} : vector<112x16xf32> to vector<7x16xf32>
    %30 = arith.truncf %29 : vector<7x16xf32> to vector<7x16xbf16>
    %c0_7 = arith.constant 0 : index
    %c1 = arith.constant 1 : index
    %c0_8 = arith.constant 0 : index
    %c0_9 = arith.constant 0 : index
    %31 = vector.load %arg4[%c0_7, %c1, %c0_8, %c0_9] : memref<1x7x7x16xbf16, #tpu.memory_space<vmem>>, vector<1x1x7x16xbf16>
    %32 = vector.shape_cast %31 : vector<1x1x7x16xbf16> to vector<7x16xbf16>
    %33 = vector.shape_cast %30 : vector<7x16xbf16> to vector<1x1x7x16xbf16>
    tpu.vector_store %arg4[%c0_7, %c1, %c0_8, %c0_9], %33 {strides = array<i32>} : memref<1x7x7x16xbf16, #tpu.memory_space<vmem>>, vector<1x1x7x16xbf16>,
    %34 = vector.extract_strided_slice %23 {offsets = [32, 0], sizes = [7, 16], strides = [1, 1]} : vector<112x16xf32> to vector<7x16xf32>
    %35 = arith.truncf %34 : vector<7x16xf32> to vector<7x16xbf16>
    %c0_10 = arith.constant 0 : index
    %c2 = arith.constant 2 : index
    %c0_11 = arith.constant 0 : index
    %c0_12 = arith.constant 0 : index
    %36 = vector.load %arg4[%c0_10, %c2, %c0_11, %c0_12] : memref<1x7x7x16xbf16, #tpu.memory_space<vmem>>, vector<1x1x7x16xbf16>
    %37 = vector.shape_cast %36 : vector<1x1x7x16xbf16> to vector<7x16xbf16>
    %38 = vector.shape_cast %35 : vector<7x16xbf16> to vector<1x1x7x16xbf16>
    tpu.vector_store %arg4[%c0_10, %c2, %c0_11, %c0_12], %38 {strides = array<i32>} : memref<1x7x7x16xbf16, #tpu.memory_space<vmem>>, vector<1x1x7x16xbf16>,
    %39 = vector.extract_strided_slice %23 {offsets = [48, 0], sizes = [7, 16], strides = [1, 1]} : vector<112x16xf32> to vector<7x16xf32>
    %40 = arith.truncf %39 : vector<7x16xf32> to vector<7x16xbf16>
    %c0_13 = arith.constant 0 : index
    %c3 = arith.constant 3 : index
    %c0_14 = arith.constant 0 : index
    %c0_15 = arith.constant 0 : index
    %41 = vector.load %arg4[%c0_13, %c3, %c0_14, %c0_15] : memref<1x7x7x16xbf16, #tpu.memory_space<vmem>>, vector<1x1x7x16xbf16>
    %42 = vector.shape_cast %41 : vector<1x1x7x16xbf16> to vector<7x16xbf16>
    %43 = vector.shape_cast %40 : vector<7x16xbf16> to vector<1x1x7x16xbf16>
    tpu.vector_store %arg4[%c0_13, %c3, %c0_14, %c0_15], %43 {strides = array<i32>} : memref<1x7x7x16xbf16, #tpu.memory_space<vmem>>, vector<1x1x7x16xbf16>,
    %44 = vector.extract_strided_slice %23 {offsets = [64, 0], sizes = [7, 16], strides = [1, 1]} : vector<112x16xf32> to vector<7x16xf32>
    %45 = arith.truncf %44 : vector<7x16xf32> to vector<7x16xbf16>
    %c0_16 = arith.constant 0 : index
    %c4 = arith.constant 4 : index
    %c0_17 = arith.constant 0 : index
    %c0_18 = arith.constant 0 : index
    %46 = vector.load %arg4[%c0_16, %c4, %c0_17, %c0_18] : memref<1x7x7x16xbf16, #tpu.memory_space<vmem>>, vector<1x1x7x16xbf16>
    %47 = vector.shape_cast %46 : vector<1x1x7x16xbf16> to vector<7x16xbf16>
    %48 = vector.shape_cast %45 : vector<7x16xbf16> to vector<1x1x7x16xbf16>
    tpu.vector_store %arg4[%c0_16, %c4, %c0_17, %c0_18], %48 {strides = array<i32>} : memref<1x7x7x16xbf16, #tpu.memory_space<vmem>>, vector<1x1x7x16xbf16>,
    %49 = vector.extract_strided_slice %23 {offsets = [80, 0], sizes = [7, 16], strides = [1, 1]} : vector<112x16xf32> to vector<7x16xf32>
    %50 = arith.truncf %49 : vector<7x16xf32> to vector<7x16xbf16>
    %c0_19 = arith.constant 0 : index
    %c5 = arith.constant 5 : index
    %c0_20 = arith.constant 0 : index
    %c0_21 = arith.constant 0 : index
    %51 = vector.load %arg4[%c0_19, %c5, %c0_20, %c0_21] : memref<1x7x7x16xbf16, #tpu.memory_space<vmem>>, vector<1x1x7x16xbf16>
    %52 = vector.shape_cast %51 : vector<1x1x7x16xbf16> to vector<7x16xbf16>
    %53 = vector.shape_cast %50 : vector<7x16xbf16> to vector<1x1x7x16xbf16>
    tpu.vector_store %arg4[%c0_19, %c5, %c0_20, %c0_21], %53 {strides = array<i32>} : memref<1x7x7x16xbf16, #tpu.memory_space<vmem>>, vector<1x1x7x16xbf16>,
    %54 = vector.extract_strided_slice %23 {offsets = [96, 0], sizes = [7, 16], strides = [1, 1]} : vector<112x16xf32> to vector<7x16xf32>
    %55 = arith.truncf %54 : vector<7x16xf32> to vector<7x16xbf16>
    %c0_22 = arith.constant 0 : index
    %c6 = arith.constant 6 : index
    %c0_23 = arith.constant 0 : index
    %c0_24 = arith.constant 0 : index
    %56 = vector.load %arg4[%c0_22, %c6, %c0_23, %c0_24] : memref<1x7x7x16xbf16, #tpu.memory_space<vmem>>, vector<1x1x7x16xbf16>
    %57 = vector.shape_cast %56 : vector<1x1x7x16xbf16> to vector<7x16xbf16>
    %58 = vector.shape_cast %55 : vector<7x16xbf16> to vector<1x1x7x16xbf16>
    tpu.vector_store %arg4[%c0_22, %c6, %c0_23, %c0_24], %58 {strides = array<i32>} : memref<1x7x7x16xbf16, #tpu.memory_space<vmem>>, vector<1x1x7x16xbf16>,
    return
  }
  func.func @transform_0(%arg0: i32, %arg1: i32) -> (i32, i32, i32) {
    %c0_i32 = arith.constant 0 : i32
    %c0_i32_0 = arith.constant 0 : i32
    %c0_i32_1 = arith.constant 0 : i32
    return %arg0, %c0_i32, %c0_i32_0 : i32, i32, i32
  }
  func.func @transform_1(%arg0: i32, %arg1: i32) -> (i32, i32) {
    %c0_i32 = arith.constant 0 : i32
    %c0_i32_0 = arith.constant 0 : i32
    %c0_i32_1 = arith.constant 0 : i32
    return %c0_i32, %c0_i32_0 : i32, i32
  }
  func.func @transform_2(%arg0: i32, %arg1: i32) -> (i32, i32, i32, i32) {
    %c0_i32 = arith.constant 0 : i32
    %c0_i32_0 = arith.constant 0 : i32
    %c0_i32_1 = arith.constant 0 : i32
    return %arg0, %arg1, %c0_i32, %c0_i32_0 : i32, i32, i32, i32
  }
}

module attributes {stable_mosaic.version = 11 : i64} {
  func.func @_head_kernel(%arg0: i32, %arg1: memref<2x49x64xbf16, #tpu.memory_space<vmem>>, %arg2: memref<1x1x64xf32, #tpu.memory_space<vmem>>, %arg3: memref<1x1x64xf32, #tpu.memory_space<vmem>>, %arg4: memref<64x10xbf16, #tpu.memory_space<vmem>>, %arg5: memref<1x10xf32, #tpu.memory_space<vmem>>, %arg6: memref<2x10xf32, #tpu.memory_space<vmem>>) attributes {dimension_semantics = [#tpu.dimension_semantics<arbitrary>], iteration_bounds = array<i64: 1>, scalar_prefetch = 0 : i64, scratch_operands = 0 : i64, tpu.core_type = #tpu.core_type<tc>, window_params = [{pipeline_mode = #tpu.pipeline_mode<synchronous>, transform_indices = @transform_0, window_bounds = array<i64: 2, 49, 64>}, {pipeline_mode = #tpu.pipeline_mode<synchronous>, transform_indices = @transform_1, window_bounds = array<i64: 1, 1, 64>}, {pipeline_mode = #tpu.pipeline_mode<synchronous>, transform_indices = @transform_2, window_bounds = array<i64: 1, 1, 64>}, {pipeline_mode = #tpu.pipeline_mode<synchronous>, transform_indices = @transform_3, window_bounds = array<i64: 64, 10>}, {pipeline_mode = #tpu.pipeline_mode<synchronous>, transform_indices = @transform_4, window_bounds = array<i64: 1, 10>}, {pipeline_mode = #tpu.pipeline_mode<synchronous>, transform_indices = @transform_5, window_bounds = array<i64: 2, 10>}]} {
    %c0 = arith.constant 0 : index
    %c0_0 = arith.constant 0 : index
    %c0_1 = arith.constant 0 : index
    %0 = vector.load %arg1[%c0, %c0_0, %c0_1] : memref<2x49x64xbf16, #tpu.memory_space<vmem>>, vector<2x49x64xbf16>
    %c0_2 = arith.constant 0 : index
    %c0_3 = arith.constant 0 : index
    %c0_4 = arith.constant 0 : index
    %1 = vector.load %arg2[%c0_2, %c0_3, %c0_4] : memref<1x1x64xf32, #tpu.memory_space<vmem>>, vector<1x1x64xf32>
    %2 = arith.extf %0 : vector<2x49x64xbf16> to vector<2x49x64xf32>
    %3 = vector.broadcast %1 : vector<1x1x64xf32> to vector<2x49x64xf32>
    %4 = arith.mulf %2, %3 : vector<2x49x64xf32>
    %c0_5 = arith.constant 0 : index
    %c0_6 = arith.constant 0 : index
    %c0_7 = arith.constant 0 : index
    %5 = vector.load %arg3[%c0_5, %c0_6, %c0_7] : memref<1x1x64xf32, #tpu.memory_space<vmem>>, vector<1x1x64xf32>
    %6 = vector.broadcast %5 : vector<1x1x64xf32> to vector<2x49x64xf32>
    %7 = arith.addf %4, %6 : vector<2x49x64xf32>
    %cst = arith.constant dense<0.000000e+00> : vector<2x64xf32>
    %8 = vector.multi_reduction <add>, %7, %cst [1] : vector<2x49x64xf32> to vector<2x64xf32>
    %cst_8 = arith.constant 4.900000e+01 : f32
    %9 = vector.broadcast %cst_8 : f32 to vector<2x64xf32>
    %10 = arith.divf %8, %9 : vector<2x64xf32>
    %11 = arith.truncf %10 : vector<2x64xf32> to vector<2x64xbf16>
    %c0_9 = arith.constant 0 : index
    %c0_10 = arith.constant 0 : index
    %12 = vector.load %arg4[%c0_9, %c0_10] : memref<64x10xbf16, #tpu.memory_space<vmem>>, vector<64x10xbf16>
    %cst_11 = arith.constant dense<0.000000e+00> : vector<2x10xf32>
    %13 = tpu.matmul %11, %12, %cst_11 {dimension_numbers = #tpu.dot_dimension_numbers<[1], [0], [0], [1], [0, 0, 1, 1], [], []>} : vector<2x64xbf16>, vector<64x10xbf16>, vector<2x10xf32> -> vector<2x10xf32>
    %c0_12 = arith.constant 0 : index
    %c0_13 = arith.constant 0 : index
    %14 = vector.load %arg5[%c0_12, %c0_13] : memref<1x10xf32, #tpu.memory_space<vmem>>, vector<1x10xf32>
    %15 = vector.broadcast %14 : vector<1x10xf32> to vector<2x10xf32>
    %16 = arith.addf %13, %15 : vector<2x10xf32>
    %c0_14 = arith.constant 0 : index
    %c0_15 = arith.constant 0 : index
    %17 = vector.load %arg6[%c0_14, %c0_15] : memref<2x10xf32, #tpu.memory_space<vmem>>, vector<2x10xf32>
    tpu.vector_store %arg6[%c0_14, %c0_15], %16 {strides = array<i32>} : memref<2x10xf32, #tpu.memory_space<vmem>>, vector<2x10xf32>,
    return
  }
  func.func @transform_0(%arg0: i32) -> (i32, i32, i32) {
    %c0_i32 = arith.constant 0 : i32
    %c0_i32_0 = arith.constant 0 : i32
    %c0_i32_1 = arith.constant 0 : i32
    %c0_i32_2 = arith.constant 0 : i32
    return %c0_i32, %c0_i32_0, %c0_i32_1 : i32, i32, i32
  }
  func.func @transform_1(%arg0: i32) -> (i32, i32, i32) {
    %c0_i32 = arith.constant 0 : i32
    %c0_i32_0 = arith.constant 0 : i32
    %c0_i32_1 = arith.constant 0 : i32
    %c0_i32_2 = arith.constant 0 : i32
    return %c0_i32, %c0_i32_0, %c0_i32_1 : i32, i32, i32
  }
  func.func @transform_2(%arg0: i32) -> (i32, i32, i32) {
    %c0_i32 = arith.constant 0 : i32
    %c0_i32_0 = arith.constant 0 : i32
    %c0_i32_1 = arith.constant 0 : i32
    %c0_i32_2 = arith.constant 0 : i32
    return %c0_i32, %c0_i32_0, %c0_i32_1 : i32, i32, i32
  }
  func.func @transform_3(%arg0: i32) -> (i32, i32) {
    %c0_i32 = arith.constant 0 : i32
    %c0_i32_0 = arith.constant 0 : i32
    %c0_i32_1 = arith.constant 0 : i32
    return %c0_i32, %c0_i32_0 : i32, i32
  }
  func.func @transform_4(%arg0: i32) -> (i32, i32) {
    %c0_i32 = arith.constant 0 : i32
    %c0_i32_0 = arith.constant 0 : i32
    %c0_i32_1 = arith.constant 0 : i32
    return %c0_i32, %c0_i32_0 : i32, i32
  }
  func.func @transform_5(%arg0: i32) -> (i32, i32) {
    %c0_i32 = arith.constant 0 : i32
    %c0_i32_0 = arith.constant 0 : i32
    %c0_i32_1 = arith.constant 0 : i32
    return %c0_i32, %c0_i32_0 : i32, i32
  }
}

</mosaic_0001>

<llo_original>
// kernel: densenet_forward.12
$region0: #{densenet_forward.12}
  #allocation0 [shape = 'u32[]', space=smem, size = 0x4, offset = 0x4, fixed_abs, tag = 'smem constant byte address 0x4 - core index']
  #allocation1 [shape = 'u32[144,128]{1,0:T(1,128)}', space=vmem, size = 0x12000, scoped, tag = 'internal scratch']
  %s0 = inlined_call_operand.vmem [shape: bf16[1568,147], index: 0, kind: input, shape index: {}]
  %s1 = inlined_call_operand.vmem [shape: bf16[147,32], index: 1, kind: input, shape index: {}]
  %s2 = inlined_call_operand.vmem [shape: f32[1,32], index: 2, kind: input, shape index: {}]
  %s3 = inlined_call_operand.vmem [shape: f32[1,32], index: 3, kind: input, shape index: {}]
  %s4 = inlined_call_operand.vmem [shape: bf16[1568,32], index: 4, kind: output, shape index: {}]
  %s5 = sld [smem:[#allocation0]]
  $region93: #{densenet_forward.12} parent=0
    _
  %s7 = ssub.s32 1, %s5
  %s8 = scalar_select 0, %s7, %s5
  $region1: #{densenet_forward.12} parent=0
    #allocation2 [shape = 'u8[262144]{0}', space=vmem, size = 0x40000, scoped, tag = 'output window, operand 0']
    loop: start=0, step=1, limit=6
    $region2: #{densenet_forward.12} parent=1 // loop_pre_header
      _
    $region3: #{densenet_forward.12} parent=1 // loop_header
      %s10 = sphi 0, %s14
      %p11 = scmp.ge.s32.totalorder %s10, 6
      %s20 = sphi 0, %s22
      %s23 = sphi 0, %s20
      %s24 = sphi 0, %s23
      %s40 = sphi 0, %s24
      %s44 = sphi 0, %s44
      %s46 = sphi 0, %s44
      %s47 = sphi 0, %s46
      %s61 = sphi 0, %s47
      %s65 = sphi 0, %s65
      %s67 = sphi 0, %s65
      %s68 = sphi 0, %s67
      %s82 = sphi 0, %s68
      %s86 = sphi 0, %s86
      %s88 = sphi 0, %s86
      %s89 = sphi 0, %s88
      %s103 = sphi 0, %s89
      %s109 = sphi 0, %s111
      %s112 = sphi 0, %s109
      %s113 = sphi 0, %s112
      %s129 = sphi 0, %s113
    $region4: #{densenet_forward.12} parent=1 // loop_header_branch
      %13 = sbr.rel (%p11) target = $region8
    $region5: #{densenet_forward.12} parent=1 // loop_body
      %s15 = ssub.s32 %s10, 1
      %s16 = ssub.s32 %s10, 2
      %s17 = sadd.s32 %s10, 1
      %s18 = ssub.s32 %s10, %s17
      %p19 = scmp.eq.s32.totalorder %s18, 0
      %s21 = sadd.s32 %s20, 1
      %s22 = scalar_select %p19, %s20, %s21
      %p25 = pneg %p19
      %p26 = scmp.eq.s32.totalorder %s10, 3
      %p27 = por %p25, %p26
      %p28 = scmp.ne.s32.totalorder %s20, %s23
      %p29 = scmp.eq.s32.totalorder %s10, 0
      %p30 = por %p28, %p29
      %p31 = scmp.ne.s32.totalorder %s20, %s23
      %p32 = scmp.eq.s32.totalorder %s15, 3
      %p33 = por %p31, %p32
      %p34 = scmp.ne.s32.totalorder %s23, %s24
      %p35 = scmp.eq.s32.totalorder %s15, 0
      %p36 = por %p34, %p35
      %p37 = scmp.ne.s32.totalorder %s23, %s24
      %p38 = scmp.eq.s32.totalorder %s16, 3
      %p39 = por %p37, %p38
      %p41 = scmp.ne.s32.totalorder %s24, %s40
      %p42 = scmp.eq.s32.totalorder %s16, 0
      %p43 = por %p41, %p42
      %s45 = sadd.s32 %s44, 1
      %p48 = scmp.eq.s32.totalorder %s10, 3
      %p49 = scmp.ne.s32.totalorder %s44, %s46
      %p50 = scmp.eq.s32.totalorder %s10, 0
      %p51 = por %p49, %p50
      %p52 = scmp.ne.s32.totalorder %s44, %s46
      %p53 = scmp.eq.s32.totalorder %s15, 3
      %p54 = por %p52, %p53
      %p55 = scmp.ne.s32.totalorder %s46, %s47
      %p56 = scmp.eq.s32.totalorder %s15, 0
      %p57 = por %p55, %p56
      %p58 = scmp.ne.s32.totalorder %s46, %s47
      %p59 = scmp.eq.s32.totalorder %s16, 3
      %p60 = por %p58, %p59
      %p62 = scmp.ne.s32.totalorder %s47, %s61
      %p63 = scmp.eq.s32.totalorder %s16, 0
      %p64 = por %p62, %p63
      %s66 = sadd.s32 %s65, 1
      %p69 = scmp.eq.s32.totalorder %s10, 3
      %p70 = scmp.ne.s32.totalorder %s65, %s67
      %p71 = scmp.eq.s32.totalorder %s10, 0
      %p72 = por %p70, %p71
      %p73 = scmp.ne.s32.totalorder %s65, %s67
      %p74 = scmp.eq.s32.totalorder %s15, 3
      %p75 = por %p73, %p74
      %p76 = scmp.ne.s32.totalorder %s67, %s68
      %p77 = scmp.eq.s32.totalorder %s15, 0
      %p78 = por %p76, %p77
      %p79 = scmp.ne.s32.totalorder %s67, %s68
      %p80 = scmp.eq.s32.totalorder %s16, 3
      %p81 = por %p79, %p80
      %p83 = scmp.ne.s32.totalorder %s68, %s82
      %p84 = scmp.eq.s32.totalorder %s16, 0
      %p85 = por %p83, %p84
      %s87 = sadd.s32 %s86, 1
      %p90 = scmp.eq.s32.totalorder %s10, 3
      %p91 = scmp.ne.s32.totalorder %s86, %s88
      %p92 = scmp.eq.s32.totalorder %s10, 0
      %p93 = por %p91, %p92
      %p94 = scmp.ne.s32.totalorder %s86, %s88
      %p95 = scmp.eq.s32.totalorder %s15, 3
      %p96 = por %p94, %p95
      %p97 = scmp.ne.s32.totalorder %s88, %s89
      %p98 = scmp.eq.s32.totalorder %s15, 0
      %p99 = por %p97, %p98
      %p100 = scmp.ne.s32.totalorder %s88, %s89
      %p101 = scmp.eq.s32.totalorder %s16, 3
      %p102 = por %p100, %p101
      %p104 = scmp.ne.s32.totalorder %s89, %s103
      %p105 = scmp.eq.s32.totalorder %s16, 0
      %p106 = por %p104, %p105
      %s107 = ssub.s32 %s10, %s17
      %p108 = scmp.eq.s32.totalorder %s107, 0
      %s110 = sadd.s32 %s109, 1
      %s111 = scalar_select %p108, %s109, %s110
      %p114 = pneg %p108
      %p115 = scmp.eq.s32.totalorder %s10, 3
      %p116 = por %p114, %p115
      %p117 = scmp.ne.s32.totalorder %s109, %s112
      %p118 = scmp.eq.s32.totalorder %s10, 0
      %p119 = por %p117, %p118
      %p120 = scmp.ne.s32.totalorder %s109, %s112
      %p121 = scmp.eq.s32.totalorder %s15, 3
      %p122 = por %p120, %p121
      %p123 = scmp.ne.s32.totalorder %s112, %s113
      %p124 = scmp.eq.s32.totalorder %s15, 0
      %p125 = por %p123, %p124
      %p126 = scmp.ne.s32.totalorder %s112, %s113
      %p127 = scmp.eq.s32.totalorder %s16, 3
      %p128 = por %p126, %p127
      %p130 = scmp.ne.s32.totalorder %s113, %s129
      %p131 = scmp.eq.s32.totalorder %s16, 0
      %p132 = por %p130, %p131
      %p133 = scmp.le.s32.totalorder 1, %s10
      %p134 = scmp.lt.s32.totalorder %s10, 5
      %p135 = pnand %p133, %p134
      %p136 = pneg %p135
      // Predicated region
      $region9: #{densenet_forward.12} parent=5 // pred_check
        _
      $region10: #{densenet_forward.12} parent=5 // pred_check_branch
        %138 = sbr.rel (%p135) target = $region12
      $region11: #{densenet_forward.12} parent=5 // pred_region
        %s139 = ssub.s32 %s10, 1
        // Predicated region
        $region13: #{densenet_forward.12} parent=11 // pred_check
          %p140 = pneg %p57
        $region14: #{densenet_forward.12} parent=11 // pred_check_branch
          %142 = sbr.rel (%p140) target = $region16
        $region15: #{densenet_forward.12} parent=11 // pred_region
          _
        $region16: #{densenet_forward.12} parent=11 // pred_fallthru
          _
        // Predicated region
        $region17: #{densenet_forward.12} parent=11 // pred_check
          %p143 = pneg %p78
        $region18: #{densenet_forward.12} parent=11 // pred_check_branch
          %145 = sbr.rel (%p143) target = $region20
        $region19: #{densenet_forward.12} parent=11 // pred_region
          _
        $region20: #{densenet_forward.12} parent=11 // pred_fallthru
          _
        // Predicated region
        $region21: #{densenet_forward.12} parent=11 // pred_check
          %p146 = pneg %p99
        $region22: #{densenet_forward.12} parent=11 // pred_check_branch
          %148 = sbr.rel (%p146) target = $region24
        $region23: #{densenet_forward.12} parent=11 // pred_region
          _
        $region24: #{densenet_forward.12} parent=11 // pred_fallthru
          _
      $region12: #{densenet_forward.12} parent=5 // pred_fallthru
        _
      %p149 = scmp.lt.s32.totalorder %s10, 4
      // Predicated region
      $region25: #{densenet_forward.12} parent=5 // pred_check
        %p150 = pneg %p149
      $region26: #{densenet_forward.12} parent=5 // pred_check_branch
        %152 = sbr.rel (%p150) target = $region28
      $region27: #{densenet_forward.12} parent=5 // pred_region
        // Predicated region
        $region29: #{densenet_forward.12} parent=27 // pred_check
          %p153 = pneg %p30
        $region30: #{densenet_forward.12} parent=27 // pred_check_branch
          %155 = sbr.rel (%p153) target = $region32
        $region31: #{densenet_forward.12} parent=27 // pred_region
          %s156 = smul.u32 64, %s10
          %s157 = ssub.s32 196, %s156
          %p158 = scmp.lt.s32.totalorder %s157, 64
          %s159 = scalar_select %p158, %s157, 64
          %s160 = smul.u32 64, %s159
          %s161 = smul.u32 %s160, 2
          %p162 = scmp.lt.s32.totalorder %s156, 195
          %s163 = scalar_select %p162, %s156, 195
          %s164 = smul.addr %s163, 2
          %s165 = smul.addr %s164, 4
          %s166 = scalar_lea.vmem %s0, %s165
          %s167 = smul.u32 64, %s10
          %s168 = ssub.s32 196, %s167
          %p169 = scmp.lt.s32.totalorder %s168, 64
          %s170 = scalar_select %p169, %s168, 64
          %s171 = smul.u32 64, %s170
          %s172 = smul.u32 %s171, 2
        $region32: #{densenet_forward.12} parent=27 // pred_fallthru
          _
      $region28: #{densenet_forward.12} parent=5 // pred_fallthru
        _
      %p173 = scmp.le.s32.totalorder 1, %s10
      %p174 = scmp.lt.s32.totalorder %s10, 5
      %p175 = pnand %p173, %p174
      %p176 = pneg %p175
      // Predicated region
      $region33: #{densenet_forward.12} parent=5 // pred_check
        _
      $region34: #{densenet_forward.12} parent=5 // pred_check_branch
        %178 = sbr.rel (%p175) target = $region36
      $region35: #{densenet_forward.12} parent=5 // pred_region
        %s179 = ssub.s32 %s10, 1
        %s180 = smul.u32 64, %s15
        %s181 = ssub.s32 196, %s180
        %p182 = scmp.lt.s32.totalorder %s181, 64
        %s183 = scalar_select %p182, %s181, 64
        %s184 = smul.u32 64, %s183
        %s185 = smul.u32 %s184, 2
        %p186 = scmp.lt.s32.totalorder %s180, 195
        %s187 = scalar_select %p186, %s180, 195
        %s188 = smul.addr %s187, 2
        %s189 = smul.addr %s188, 4
        %s190 = scalar_lea.vmem %s0, %s189
        %p191 = pneg %p36
        %p192 = pneg %p33
        %p193 = pneg %p57
        %p194 = pneg %p54
        %p195 = pneg %p78
        %p196 = pneg %p75
        %p197 = pneg %p99
        %p198 = pneg %p96
        %p199 = pneg %p125
        %p200 = pneg %p122
        %s201 = sand.u32 %s112, 1
        %s202 = sand.u32 %s112, 1
        %s203 = smul.addr %s202, 256
        %s204 = scalar_lea.vmem [#allocation2], %s203
        %s205 = smul.u32 64, %s15
        %s206 = ssub.s32 196, %s205
        %p207 = scmp.lt.s32.totalorder %s206, 64
        %s208 = scalar_select %p207, %s206, 64
        %s209 = smul.u32 64, %s208
        %s210 = smul.u32 %s209, 2
        %p211 = scmp.lt.s32.totalorder %s205, 195
        %s212 = scalar_select %p211, %s205, 195
        %s213 = smul.addr %s212, 2
        %s214 = smul.addr %s213, 4
        %s215 = scalar_lea.vmem %s0, %s214
        %s216 = smul.u32 64, %s15
        %s217 = ssub.s32 196, %s216
        %p218 = scmp.lt.s32.totalorder %s217, 64
        %s219 = scalar_select %p218, %s217, 64
        %s220 = smul.u32 64, %s219
        %s221 = smul.u32 %s220, 2
        %s222 = smul.u32 64, %s15
        %s223 = ssub.s32 196, %s222
        %p224 = scmp.lt.s32.totalorder %s223, 64
        %s225 = scalar_select %p224, %s223, 64
        %s226 = smul.u32 64, %s225
        %v228 = vld [vmem:[%s215] sm:$0xff]
        %v229 = vld [vmem:[%s215 + $0x8] sm:$0xff]
        %v230 = vld [vmem:[%s215 + $0x10] sm:$0xff]
        %v231 = vld [vmem:[%s215 + $0x18] sm:$0xff]
        %v232 = vld [vmem:[%s215 + $0x20] sm:$0xff]
        %v233 = vld [vmem:[%s215 + $0x28] sm:$0xff]
        %v234 = vld [vmem:[%s215 + $0x30] sm:$0xff]
        %v235 = vld [vmem:[%s215 + $0x38] sm:$0xff]
        %v236 = vld [vmem:[%s215 + $0x40] sm:$0xff]
        %v237 = vld [vmem:[%s215 + $0x48] sm:$0xff]
        %v238 = vld [vmem:[%s215 + $0x50] sm:$0xff]
        %v239 = vld [vmem:[%s215 + $0x58] sm:$0xff]
        %v240 = vld [vmem:[%s215 + $0x60] sm:$0xff]
        %v241 = vld [vmem:[%s215 + $0x68] sm:$0xff]
        %v242 = vld [vmem:[%s215 + $0x70] sm:$0xff]
        %v243 = vld [vmem:[%s215 + $0x78] sm:$0xff]
        %v244 = vld [vmem:[%s215 + $0x80] sm:$0xff]
        %v245 = vld [vmem:[%s215 + $0x88] sm:$0xff]
        %v246 = vld [vmem:[%s215 + $0x90] sm:$0xff]
        %v247 = vld [vmem:[%s215 + $0x98] sm:$0xff]
        %v248 = vld [vmem:[%s215 + $0xa0] sm:$0xff]
        %v249 = vld [vmem:[%s215 + $0xa8] sm:$0xff]
        %v250 = vld [vmem:[%s215 + $0xb0] sm:$0xff]
        %v251 = vld [vmem:[%s215 + $0xb8] sm:$0xff]
        %v252 = vld [vmem:[%s215 + $0xc0] sm:$0xff]
        %v253 = vld [vmem:[%s215 + $0xc8] sm:$0xff]
        %v254 = vld [vmem:[%s215 + $0xd0] sm:$0xff]
        %v255 = vld [vmem:[%s215 + $0xd8] sm:$0xff]
        %v256 = vld [vmem:[%s215 + $0xe0] sm:$0xff]
        %v257 = vld [vmem:[%s215 + $0xe8] sm:$0xff]
        %v258 = vld [vmem:[%s215 + $0xf0] sm:$0xff]
        %v259 = vld [vmem:[%s215 + $0xf8] sm:$0xff]
        %v260 = vld [vmem:[%s215 + $0x100] sm:$0xff]
        %v261 = vld [vmem:[%s215 + $0x108] sm:$0xff]
        %v262 = vld [vmem:[%s215 + $0x110] sm:$0xff]
        %v263 = vld [vmem:[%s215 + $0x118] sm:$0xff]
        %v264 = vld [vmem:[%s215 + $0x120] sm:$0xff]
        %v265 = vld [vmem:[%s215 + $0x128] sm:$0xff]
        %v266 = vld [vmem:[%s215 + $0x130] sm:$0xff]
        %v267 = vld [vmem:[%s215 + $0x138] sm:$0xff]
        %v268 = vld [vmem:[%s215 + $0x140] sm:$0xff]
        %v269 = vld [vmem:[%s215 + $0x148] sm:$0xff]
        %v270 = vld [vmem:[%s215 + $0x150] sm:$0xff]
        %v271 = vld [vmem:[%s215 + $0x158] sm:$0xff]
        %v272 = vld [vmem:[%s215 + $0x160] sm:$0xff]
        %v273 = vld [vmem:[%s215 + $0x168] sm:$0xff]
        %v274 = vld [vmem:[%s215 + $0x170] sm:$0xff]
        %v275 = vld [vmem:[%s215 + $0x178] sm:$0xff]
        %v276 = vld [vmem:[%s215 + $0x180] sm:$0xff]
        %v277 = vld [vmem:[%s215 + $0x188] sm:$0xff]
        %v278 = vld [vmem:[%s215 + $0x190] sm:$0xff]
        %v279 = vld [vmem:[%s215 + $0x198] sm:$0xff]
        %v280 = vld [vmem:[%s215 + $0x1a0] sm:$0xff]
        %v281 = vld [vmem:[%s215 + $0x1a8] sm:$0xff]
        %v282 = vld [vmem:[%s215 + $0x1b0] sm:$0xff]
        %v283 = vld [vmem:[%s215 + $0x1b8] sm:$0xff]
        %v284 = vld [vmem:[%s215 + $0x1c0] sm:$0xff]
        %v285 = vld [vmem:[%s215 + $0x1c8] sm:$0xff]
        %v286 = vld [vmem:[%s215 + $0x1d0] sm:$0xff]
        %v287 = vld [vmem:[%s215 + $0x1d8] sm:$0xff]
        %v288 = vld [vmem:[%s215 + $0x1e0] sm:$0xff]
        %v289 = vld [vmem:[%s215 + $0x1e8] sm:$0xff]
        %v290 = vld [vmem:[%s215 + $0x1f0] sm:$0xff]
        %v291 = vld [vmem:[%s215 + $0x1f8] sm:$0xff]
        %v292 = vld [vmem:[%s1] sm:$0xf]
        %v293 = vld [vmem:[%s1 + $0x4] sm:$0xf]
        %v294 = vld [vmem:[%s1 + $0x8] sm:$0xf]
        %v295 = vld [vmem:[%s1 + $0xc] sm:$0xf]
        %v296 = vld [vmem:[%s1 + $0x10] sm:$0xf]
        %v297 = vld [vmem:[%s1 + $0x14] sm:$0xf]
        %v298 = vld [vmem:[%s1 + $0x18] sm:$0xf]
        %v299 = vld [vmem:[%s1 + $0x1c] sm:$0xf]
        %v300 = vld [vmem:[%s1 + $0x20] sm:$0xf]
        %v301 = vld [vmem:[%s1 + $0x24] sm:$0xf]
        %v302 = vld [vmem:[%s1 + $0x28] sm:$0xf]
        %v303 = vld [vmem:[%s1 + $0x2c] sm:$0xf]
        %v304 = vld [vmem:[%s1 + $0x30] sm:$0xf]
        %v305 = vld [vmem:[%s1 + $0x34] sm:$0xf]
        %v306 = vld [vmem:[%s1 + $0x38] sm:$0xf]
        %v307 = vld [vmem:[%s1 + $0x3c] sm:$0xf]
        %v308 = vld [vmem:[%s1 + $0x40] sm:$0xf]
        %v309 = vld [vmem:[%s1 + $0x44] sm:$0xf]
        %v310 = vld [vmem:[%s1 + $0x48] sm:$0x3]
        %v375 = vunpack.c.l.b16 %v228
        %v376 = vunpack.c.h.b16 %v228
        %v377 = vunpack.c.l.b16 %v229
        %v378 = vunpack.c.h.b16 %v229
        %v379 = vunpack.c.l.b16 %v230
        %v380 = vunpack.c.h.b16 %v230
        %v381 = vunpack.c.l.b16 %v231
        %v382 = vunpack.c.h.b16 %v231
        %v383 = vunpack.c.l.b16 %v232
        %v384 = vunpack.c.h.b16 %v232
        %v385 = vunpack.c.l.b16 %v233
        %v386 = vunpack.c.h.b16 %v233
        %v387 = vunpack.c.l.b16 %v234
        %v388 = vunpack.c.h.b16 %v234
        %v389 = vunpack.c.l.b16 %v235
        %v390 = vunpack.c.h.b16 %v235
        %v391 = vunpack.c.l.b16 %v236
        %v392 = vunpack.c.h.b16 %v236
        %v393 = vunpack.c.l.b16 %v237
        %v394 = vunpack.c.h.b16 %v237
        %v395 = vunpack.c.l.b16 %v238
        %v396 = vunpack.c.h.b16 %v238
        %v397 = vunpack.c.l.b16 %v239
        %v398 = vunpack.c.h.b16 %v239
        %v399 = vunpack.c.l.b16 %v240
        %v400 = vunpack.c.h.b16 %v240
        %v401 = vunpack.c.l.b16 %v241
        %v402 = vunpack.c.h.b16 %v241
        %v403 = vunpack.c.l.b16 %v242
        %v404 = vunpack.c.h.b16 %v242
        %v405 = vunpack.c.l.b16 %v243
        %v406 = vunpack.c.h.b16 %v243
        %v407 = vunpack.c.l.b16 %v244
        %v408 = vunpack.c.h.b16 %v244
        %v409 = vunpack.c.l.b16 %v245
        %v410 = vunpack.c.h.b16 %v245
        %v411 = vunpack.c.l.b16 %v246
        %v412 = vunpack.c.h.b16 %v246
        %v413 = vunpack.c.l.b16 %v247
        %v414 = vunpack.c.h.b16 %v247
        %v415 = vunpack.c.l.b16 %v248
        %v416 = vunpack.c.h.b16 %v248
        %v417 = vunpack.c.l.b16 %v249
        %v418 = vunpack.c.h.b16 %v249
        %v419 = vunpack.c.l.b16 %v250
        %v420 = vunpack.c.h.b16 %v250
        %v421 = vunpack.c.l.b16 %v251
        %v422 = vunpack.c.h.b16 %v251
        %v423 = vunpack.c.l.b16 %v252
        %v424 = vunpack.c.h.b16 %v252
        %v425 = vunpack.c.l.b16 %v253
        %v426 = vunpack.c.h.b16 %v253
        %v427 = vunpack.c.l.b16 %v254
        %v428 = vunpack.c.h.b16 %v254
        %v429 = vunpack.c.l.b16 %v255
        %v430 = vunpack.c.h.b16 %v255
        %v431 = vunpack.c.l.b16 %v256
        %v432 = vunpack.c.h.b16 %v256
        %v433 = vunpack.c.l.b16 %v257
        %v434 = vunpack.c.h.b16 %v257
        %v435 = vunpack.c.l.b16 %v258
        %v436 = vunpack.c.h.b16 %v258
        %v437 = vunpack.c.l.b16 %v259
        %v438 = vunpack.c.h.b16 %v259
        %v439 = vunpack.c.l.b16 %v260
        %v440 = vunpack.c.h.b16 %v260
        %v441 = vunpack.c.l.b16 %v261
        %v442 = vunpack.c.h.b16 %v261
        %v443 = vunpack.c.l.b16 %v262
        %v444 = vunpack.c.h.b16 %v262
        %v445 = vunpack.c.l.b16 %v263
        %v446 = vunpack.c.h.b16 %v263
        %v447 = vunpack.c.l.b16 %v264
        %v448 = vunpack.c.h.b16 %v264
        %v449 = vunpack.c.l.b16 %v265
        %v450 = vunpack.c.h.b16 %v265
        %v451 = vunpack.c.l.b16 %v266
        %v452 = vunpack.c.h.b16 %v266
        %v453 = vunpack.c.l.b16 %v267
        %v454 = vunpack.c.h.b16 %v267
        %v455 = vunpack.c.l.b16 %v268
        %v456 = vunpack.c.h.b16 %v268
        %v457 = vunpack.c.l.b16 %v269
        %v458 = vunpack.c.h.b16 %v269
        %v459 = vunpack.c.l.b16 %v270
        %v460 = vunpack.c.h.b16 %v270
        %v461 = vunpack.c.l.b16 %v271
        %v462 = vunpack.c.h.b16 %v271
        %v463 = vunpack.c.l.b16 %v272
        %v464 = vunpack.c.h.b16 %v272
        %v465 = vunpack.c.l.b16 %v273
        %v466 = vunpack.c.h.b16 %v273
        %v467 = vunpack.c.l.b16 %v274
        %v468 = vunpack.c.h.b16 %v274
        %v469 = vunpack.c.l.b16 %v275
        %v470 = vunpack.c.h.b16 %v275
        %v471 = vunpack.c.l.b16 %v276
        %v472 = vunpack.c.h.b16 %v276
        %v473 = vunpack.c.l.b16 %v277
        %v474 = vunpack.c.h.b16 %v277
        %v475 = vunpack.c.l.b16 %v278
        %v476 = vunpack.c.h.b16 %v278
        %v477 = vunpack.c.l.b16 %v279
        %v478 = vunpack.c.h.b16 %v279
        %v479 = vunpack.c.l.b16 %v280
        %v480 = vunpack.c.h.b16 %v280
        %v481 = vunpack.c.l.b16 %v281
        %v482 = vunpack.c.h.b16 %v281
        %v483 = vunpack.c.l.b16 %v282
        %v484 = vunpack.c.h.b16 %v282
        %v485 = vunpack.c.l.b16 %v283
        %v486 = vunpack.c.h.b16 %v283
        %v487 = vunpack.c.l.b16 %v284
        %v488 = vunpack.c.h.b16 %v284
        %v489 = vunpack.c.l.b16 %v285
        %v490 = vunpack.c.h.b16 %v285
        %v491 = vunpack.c.l.b16 %v286
        %v492 = vunpack.c.h.b16 %v286
        %v493 = vunpack.c.l.b16 %v287
        %v494 = vunpack.c.h.b16 %v287
        %v495 = vunpack.c.l.b16 %v288
        %v496 = vunpack.c.h.b16 %v288
        %v497 = vunpack.c.l.b16 %v289
        %v498 = vunpack.c.h.b16 %v289
        %v499 = vunpack.c.l.b16 %v290
        %v500 = vunpack.c.h.b16 %v290
        %v501 = vunpack.c.l.b16 %v291
        %v502 = vunpack.c.h.b16 %v291
        %v503 = vpack.c.b16 %v377, %v375
        %v504 = vpack.c.b16 %v378, %v376
        %v505 = vpack.c.b16 %v381, %v379
        %v506 = vpack.c.b16 %v382, %v380
        %v507 = vpack.c.b16 %v385, %v383
        %v508 = vpack.c.b16 %v386, %v384
        %v509 = vpack.c.b16 %v389, %v387
        %v510 = vpack.c.b16 %v390, %v388
        %v511 = vpack.c.b16 %v393, %v391
        %v512 = vpack.c.b16 %v394, %v392
        %v513 = vpack.c.b16 %v397, %v395
        %v514 = vpack.c.b16 %v398, %v396
        %v515 = vpack.c.b16 %v401, %v399
        %v516 = vpack.c.b16 %v402, %v400
        %v517 = vpack.c.b16 %v405, %v403
        %v518 = vpack.c.b16 %v406, %v404
        %v519 = vpack.c.b16 %v409, %v407
        %v520 = vpack.c.b16 %v410, %v408
        %v521 = vpack.c.b16 %v413, %v411
        %v522 = vpack.c.b16 %v414, %v412
        %v523 = vpack.c.b16 %v417, %v415
        %v524 = vpack.c.b16 %v418, %v416
        %v525 = vpack.c.b16 %v421, %v419
        %v526 = vpack.c.b16 %v422, %v420
        %v527 = vpack.c.b16 %v425, %v423
        %v528 = vpack.c.b16 %v426, %v424
        %v529 = vpack.c.b16 %v429, %v427
        %v530 = vpack.c.b16 %v430, %v428
        %v531 = vpack.c.b16 %v433, %v431
        %v532 = vpack.c.b16 %v434, %v432
        %v533 = vpack.c.b16 %v437, %v435
        %v534 = vpack.c.b16 %v438, %v436
        %v535 = vpack.c.b16 %v441, %v439
        %v536 = vpack.c.b16 %v442, %v440
        %v537 = vpack.c.b16 %v445, %v443
        %v538 = vpack.c.b16 %v446, %v444
        %v539 = vpack.c.b16 %v449, %v447
        %v540 = vpack.c.b16 %v450, %v448
        %v541 = vpack.c.b16 %v453, %v451
        %v542 = vpack.c.b16 %v454, %v452
        %v543 = vpack.c.b16 %v457, %v455
        %v544 = vpack.c.b16 %v458, %v456
        %v545 = vpack.c.b16 %v461, %v459
        %v546 = vpack.c.b16 %v462, %v460
        %v547 = vpack.c.b16 %v465, %v463
        %v548 = vpack.c.b16 %v466, %v464
        %v549 = vpack.c.b16 %v469, %v467
        %v550 = vpack.c.b16 %v470, %v468
        %v551 = vpack.c.b16 %v473, %v471
        %v552 = vpack.c.b16 %v474, %v472
        %v553 = vpack.c.b16 %v477, %v475
        %v554 = vpack.c.b16 %v478, %v476
        %v555 = vpack.c.b16 %v481, %v479
        %v556 = vpack.c.b16 %v482, %v480
        %v557 = vpack.c.b16 %v485, %v483
        %v558 = vpack.c.b16 %v486, %v484
        %v559 = vpack.c.b16 %v489, %v487
        %v560 = vpack.c.b16 %v490, %v488
        %v561 = vpack.c.b16 %v493, %v491
        %v562 = vpack.c.b16 %v494, %v492
        %v563 = vpack.c.b16 %v497, %v495
        %v564 = vpack.c.b16 %v498, %v496
        %v565 = vpack.c.b16 %v501, %v499
        %v566 = vpack.c.b16 %v502, %v500
        %v618 = vunpack.c.l.b16 %v292
        %v619 = vunpack.c.l.b16 %v293
        %v620 = vunpack.c.l.b16 %v294
        %v621 = vunpack.c.l.b16 %v295
        %v622 = vunpack.c.l.b16 %v296
        %v623 = vunpack.c.l.b16 %v297
        %v624 = vunpack.c.l.b16 %v298
        %v625 = vunpack.c.l.b16 %v299
        %v626 = vunpack.c.l.b16 %v300
        %v627 = vunpack.c.l.b16 %v301
        %v628 = vunpack.c.l.b16 %v302
        %v629 = vunpack.c.l.b16 %v303
        %v630 = vunpack.c.l.b16 %v304
        %v631 = vunpack.c.l.b16 %v305
        %v632 = vunpack.c.l.b16 %v306
        %v633 = vunpack.c.l.b16 %v307
        %v634 = vunpack.c.l.b16 %v308
        %v635 = vunpack.c.l.b16 %v309
        %v636 = vunpack.c.l.b16 %v310
        %v637 = vpack.c.b16 %v619, %v618
        %v638 = vpack.c.b16 %v621, %v620
        %v639 = vpack.c.b16 %v623, %v622
        %v640 = vpack.c.b16 %v625, %v624
        %v641 = vpack.c.b16 %v627, %v626
        %v642 = vpack.c.b16 %v629, %v628
        %v643 = vpack.c.b16 %v631, %v630
        %v644 = vpack.c.b16 %v633, %v632
        %v645 = vpack.c.b16 %v635, %v634
        %v646 = vpack.c.b16 %v636, %v636
        %vm656 = vcmask 154624
        %v658 = vsel %vm656, %v504, 0
        %v661 = vsel %vm656, %v506, 0
        %v664 = vsel %vm656, %v508, 0
        %v667 = vsel %vm656, %v510, 0
        %v670 = vsel %vm656, %v512, 0
        %v673 = vsel %vm656, %v514, 0
        %v676 = vsel %vm656, %v516, 0
        %v679 = vsel %vm656, %v518, 0
        %v682 = vsel %vm656, %v520, 0
        %v685 = vsel %vm656, %v522, 0
        %v688 = vsel %vm656, %v524, 0
        %v691 = vsel %vm656, %v526, 0
        %v694 = vsel %vm656, %v528, 0
        %v697 = vsel %vm656, %v530, 0
        %v700 = vsel %vm656, %v532, 0
        %v703 = vsel %vm656, %v534, 0
        %v706 = vsel %vm656, %v536, 0
        %v709 = vsel %vm656, %v538, 0
        %v712 = vsel %vm656, %v540, 0
        %v715 = vsel %vm656, %v542, 0
        %v718 = vsel %vm656, %v544, 0
        %v721 = vsel %vm656, %v546, 0
        %v724 = vsel %vm656, %v548, 0
        %v727 = vsel %vm656, %v550, 0
        %v730 = vsel %vm656, %v552, 0
        %v733 = vsel %vm656, %v554, 0
        %v736 = vsel %vm656, %v556, 0
        %v739 = vsel %vm656, %v558, 0
        %v742 = vsel %vm656, %v560, 0
        %v745 = vsel %vm656, %v562, 0
        %v748 = vsel %vm656, %v564, 0
        %v751 = vsel %vm656, %v566, 0
        %vm753 = vcmask 1040384
        %vm754 = vcmask 1041408
        %v755 = vsel %vm753, 4294967295, 65535
        %v756 = vsel %vm754, %v755, 0
        %v758 = vand.u32 %v646, %v756
        %760 = vmatprep.subr.bf16.mxu0 0
        %761 = vmatpush1.bf16.msra.mxu0 %v644
        %762 = vmatprep.subr.bf16.mxu0 0
        %763 = vmatpush1.bf16.msra.mxu0 %v643
        %764 = vmatprep.subr.bf16.mxu0 0
        %765 = vmatpush1.bf16.msra.mxu0 %v642
        %766 = vmatprep.subr.bf16.mxu0 0
        %767 = vmatpush1.bf16.msra.mxu0 %v641
        %768 = vmatprep.subr.bf16.mxu0 0
        %769 = vmatpush1.bf16.msra.mxu0 %v640
        %770 = vmatprep.subr.bf16.mxu0 0
        %771 = vmatpush1.bf16.msra.mxu0 %v639
        %772 = vmatprep.subr.bf16.mxu0 0
        %773 = vmatpush1.bf16.msra.mxu0 %v638
        %774 = vmatprep.subr.bf16.mxu0 0
        %775 = vmatpush1.bf16.msra.mxu0 %v637
        %776 = vmatprep.subr.bf16.mxu0 0
        %777 = vmatpush2.bf16.msra.mxu0 0
        %778 = vmatprep.subr.bf16.mxu0 0
        %779 = vmatpush2.bf16.msra.mxu0 0
        %780 = vmatprep.subr.bf16.mxu0 0
        %781 = vmatpush2.bf16.msra.mxu0 0
        %782 = vmatprep.subr.bf16.mxu0 0
        %783 = vmatpush2.bf16.msra.mxu0 0
        %784 = vmatprep.subr.bf16.mxu0 0
        %785 = vmatpush2.bf16.msra.mxu0 0
        %786 = vmatprep.subr.bf16.mxu0 0
        %787 = vmatpush2.bf16.msra.mxu0 0
        %788 = vmatprep.subr.bf16.mxu0 0
        %789 = vmatpush2.bf16.msra.mxu0 %v758
        %790 = vmatprep.subr.bf16.mxu0 0
        %791 = vmatpush2.bf16.msra.mxu0 %v645
        %792 = vmatprep.mubr.bf16.mxu0 %v658
        %793 = vmatmul.mubr.bf16.gmra.mxu0 %v503
        %v794 = vpop.f32.mrf.mxu0
        %v795 = vadd.f32 0.0, %v794
        %v796 = vpop.f32.mrf.mxu0
        %v797 = vpop.f32.mrf.mxu0
        %v798 = vadd.f32 0.0, %v797
        %v799 = vpop.f32.mrf.mxu0
        %800 = vmatprep.mubr.bf16.mxu0 %v661
        %801 = vmatmul.mubr.bf16.gmra.mxu0 %v505
        %v802 = vpop.f32.mrf.mxu0
        %v803 = vadd.f32 0.0, %v802
        %v804 = vpop.f32.mrf.mxu0
        %v805 = vpop.f32.mrf.mxu0
        %v806 = vadd.f32 0.0, %v805
        %v807 = vpop.f32.mrf.mxu0
        %808 = vmatprep.mubr.bf16.mxu0 %v664
        %809 = vmatmul.mubr.bf16.gmra.mxu0 %v507
        %v810 = vpop.f32.mrf.mxu0
        %v811 = vadd.f32 0.0, %v810
        %v812 = vpop.f32.mrf.mxu0
        %v813 = vpop.f32.mrf.mxu0
        %v814 = vadd.f32 0.0, %v813
        %v815 = vpop.f32.mrf.mxu0
        %816 = vmatprep.mubr.bf16.mxu0 %v667
        %817 = vmatmul.mubr.bf16.gmra.mxu0 %v509
        %v818 = vpop.f32.mrf.mxu0
        %v819 = vadd.f32 0.0, %v818
        %v820 = vpop.f32.mrf.mxu0
        %v821 = vpop.f32.mrf.mxu0
        %v822 = vadd.f32 0.0, %v821
        %v823 = vpop.f32.mrf.mxu0
        %824 = vmatprep.mubr.bf16.mxu0 %v670
        %825 = vmatmul.mubr.bf16.gmra.mxu0 %v511
        %v826 = vpop.f32.mrf.mxu0
        %v827 = vadd.f32 0.0, %v826
        %v828 = vpop.f32.mrf.mxu0
        %v829 = vpop.f32.mrf.mxu0
        %v830 = vadd.f32 0.0, %v829
        %v831 = vpop.f32.mrf.mxu0
        %832 = vmatprep.mubr.bf16.mxu0 %v673
        %833 = vmatmul.mubr.bf16.gmra.mxu0 %v513
        %v834 = vpop.f32.mrf.mxu0
        %v835 = vadd.f32 0.0, %v834
        %v836 = vpop.f32.mrf.mxu0
        %v837 = vpop.f32.mrf.mxu0
        %v838 = vadd.f32 0.0, %v837
        %v839 = vpop.f32.mrf.mxu0
        %840 = vmatprep.mubr.bf16.mxu0 %v676
        %841 = vmatmul.mubr.bf16.gmra.mxu0 %v515
        %v842 = vpop.f32.mrf.mxu0
        %v843 = vadd.f32 0.0, %v842
        %v844 = vpop.f32.mrf.mxu0
        %v845 = vpop.f32.mrf.mxu0
        %v846 = vadd.f32 0.0, %v845
        %v847 = vpop.f32.mrf.mxu0
        %848 = vmatprep.mubr.bf16.mxu0 %v679
        %849 = vmatmul.mubr.bf16.gmra.mxu0 %v517
        %v850 = vpop.f32.mrf.mxu0
        %v851 = vadd.f32 0.0, %v850
        %v852 = vpop.f32.mrf.mxu0
        %v853 = vpop.f32.mrf.mxu0
        %v854 = vadd.f32 0.0, %v853
        %v855 = vpop.f32.mrf.mxu0
        %856 = vmatprep.mubr.bf16.mxu0 %v682
        %857 = vmatmul.mubr.bf16.gmra.mxu0 %v519
        %v858 = vpop.f32.mrf.mxu0
        %v859 = vadd.f32 0.0, %v858
        %v860 = vpop.f32.mrf.mxu0
        %v861 = vpop.f32.mrf.mxu0
        %v862 = vadd.f32 0.0, %v861
        %v863 = vpop.f32.mrf.mxu0
        %864 = vmatprep.mubr.bf16.mxu0 %v685
        %865 = vmatmul.mubr.bf16.gmra.mxu0 %v521
        %v866 = vpop.f32.mrf.mxu0
        %v867 = vadd.f32 0.0, %v866
        %v868 = vpop.f32.mrf.mxu0
        %v869 = vpop.f32.mrf.mxu0
        %v870 = vadd.f32 0.0, %v869
        %v871 = vpop.f32.mrf.mxu0
        %872 = vmatprep.mubr.bf16.mxu0 %v688
        %873 = vmatmul.mubr.bf16.gmra.mxu0 %v523
        %v874 = vpop.f32.mrf.mxu0
        %v875 = vadd.f32 0.0, %v874
        %v876 = vpop.f32.mrf.mxu0
        %v877 = vpop.f32.mrf.mxu0
        %v878 = vadd.f32 0.0, %v877
        %v879 = vpop.f32.mrf.mxu0
        %880 = vmatprep.mubr.bf16.mxu0 %v691
        %881 = vmatmul.mubr.bf16.gmra.mxu0 %v525
        %v882 = vpop.f32.mrf.mxu0
        %v883 = vadd.f32 0.0, %v882
        %v884 = vpop.f32.mrf.mxu0
        %v885 = vpop.f32.mrf.mxu0
        %v886 = vadd.f32 0.0, %v885
        %v887 = vpop.f32.mrf.mxu0
        %888 = vmatprep.mubr.bf16.mxu0 %v694
        %889 = vmatmul.mubr.bf16.gmra.mxu0 %v527
        %v890 = vpop.f32.mrf.mxu0
        %v891 = vadd.f32 0.0, %v890
        %v892 = vpop.f32.mrf.mxu0
        %v893 = vpop.f32.mrf.mxu0
        %v894 = vadd.f32 0.0, %v893
        %v895 = vpop.f32.mrf.mxu0
        %896 = vmatprep.mubr.bf16.mxu0 %v697
        %897 = vmatmul.mubr.bf16.gmra.mxu0 %v529
        %v898 = vpop.f32.mrf.mxu0
        %v899 = vadd.f32 0.0, %v898
        %v900 = vpop.f32.mrf.mxu0
        %v901 = vpop.f32.mrf.mxu0
        %v902 = vadd.f32 0.0, %v901
        %v903 = vpop.f32.mrf.mxu0
        %904 = vmatprep.mubr.bf16.mxu0 %v700
        %905 = vmatmul.mubr.bf16.gmra.mxu0 %v531
        %v906 = vpop.f32.mrf.mxu0
        %v907 = vadd.f32 0.0, %v906
        %v908 = vpop.f32.mrf.mxu0
        %v909 = vpop.f32.mrf.mxu0
        %v910 = vadd.f32 0.0, %v909
        %v911 = vpop.f32.mrf.mxu0
        %912 = vmatprep.mubr.bf16.mxu0 %v703
        %913 = vmatmul.mubr.bf16.gmra.mxu0 %v533
        %v914 = vpop.f32.mrf.mxu0
        %v915 = vadd.f32 0.0, %v914
        %v916 = vpop.f32.mrf.mxu0
        %v917 = vpop.f32.mrf.mxu0
        %v918 = vadd.f32 0.0, %v917
        %v919 = vpop.f32.mrf.mxu0
        %920 = vmatprep.mubr.bf16.mxu0 %v706
        %921 = vmatmul.mubr.bf16.gmra.mxu0 %v535
        %v922 = vpop.f32.mrf.mxu0
        %v923 = vadd.f32 0.0, %v922
        %v924 = vpop.f32.mrf.mxu0
        %v925 = vpop.f32.mrf.mxu0
        %v926 = vadd.f32 0.0, %v925
        %v927 = vpop.f32.mrf.mxu0
        %928 = vmatprep.mubr.bf16.mxu0 %v709
        %929 = vmatmul.mubr.bf16.gmra.mxu0 %v537
        %v930 = vpop.f32.mrf.mxu0
        %v931 = vadd.f32 0.0, %v930
        %v932 = vpop.f32.mrf.mxu0
        %v933 = vpop.f32.mrf.mxu0
        %v934 = vadd.f32 0.0, %v933
        %v935 = vpop.f32.mrf.mxu0
        %936 = vmatprep.mubr.bf16.mxu0 %v712
        %937 = vmatmul.mubr.bf16.gmra.mxu0 %v539
        %v938 = vpop.f32.mrf.mxu0
        %v939 = vadd.f32 0.0, %v938
        %v940 = vpop.f32.mrf.mxu0
        %v941 = vpop.f32.mrf.mxu0
        %v942 = vadd.f32 0.0, %v941
        %v943 = vpop.f32.mrf.mxu0
        %944 = vmatprep.mubr.bf16.mxu0 %v715
        %945 = vmatmul.mubr.bf16.gmra.mxu0 %v541
        %v946 = vpop.f32.mrf.mxu0
        %v947 = vadd.f32 0.0, %v946
        %v948 = vpop.f32.mrf.mxu0
        %v949 = vpop.f32.mrf.mxu0
        %v950 = vadd.f32 0.0, %v949
        %v951 = vpop.f32.mrf.mxu0
        %952 = vmatprep.mubr.bf16.mxu0 %v718
        %953 = vmatmul.mubr.bf16.gmra.mxu0 %v543
        %v954 = vpop.f32.mrf.mxu0
        %v955 = vadd.f32 0.0, %v954
        %v956 = vpop.f32.mrf.mxu0
        %v957 = vpop.f32.mrf.mxu0
        %v958 = vadd.f32 0.0, %v957
        %v959 = vpop.f32.mrf.mxu0
        %960 = vmatprep.mubr.bf16.mxu0 %v721
        %961 = vmatmul.mubr.bf16.gmra.mxu0 %v545
        %v962 = vpop.f32.mrf.mxu0
        %v963 = vadd.f32 0.0, %v962
        %v964 = vpop.f32.mrf.mxu0
        %v965 = vpop.f32.mrf.mxu0
        %v966 = vadd.f32 0.0, %v965
        %v967 = vpop.f32.mrf.mxu0
        %968 = vmatprep.mubr.bf16.mxu0 %v724
        %969 = vmatmul.mubr.bf16.gmra.mxu0 %v547
        %v970 = vpop.f32.mrf.mxu0
        %v971 = vadd.f32 0.0, %v970
        %v972 = vpop.f32.mrf.mxu0
        %v973 = vpop.f32.mrf.mxu0
        %v974 = vadd.f32 0.0, %v973
        %v975 = vpop.f32.mrf.mxu0
        %976 = vmatprep.mubr.bf16.mxu0 %v727
        %977 = vmatmul.mubr.bf16.gmra.mxu0 %v549
        %v978 = vpop.f32.mrf.mxu0
        %v979 = vadd.f32 0.0, %v978
        %v980 = vpop.f32.mrf.mxu0
        %v981 = vpop.f32.mrf.mxu0
        %v982 = vadd.f32 0.0, %v981
        %v983 = vpop.f32.mrf.mxu0
        %984 = vmatprep.mubr.bf16.mxu0 %v730
        %985 = vmatmul.mubr.bf16.gmra.mxu0 %v551
        %v986 = vpop.f32.mrf.mxu0
        %v987 = vadd.f32 0.0, %v986
        %v988 = vpop.f32.mrf.mxu0
        %v989 = vpop.f32.mrf.mxu0
        %v990 = vadd.f32 0.0, %v989
        %v991 = vpop.f32.mrf.mxu0
        %992 = vmatprep.mubr.bf16.mxu0 %v733
        %993 = vmatmul.mubr.bf16.gmra.mxu0 %v553
        %v994 = vpop.f32.mrf.mxu0
        %v995 = vadd.f32 0.0, %v994
        %v996 = vpop.f32.mrf.mxu0
        %v997 = vpop.f32.mrf.mxu0
        %v998 = vadd.f32 0.0, %v997
        %v999 = vpop.f32.mrf.mxu0
        %1000 = vmatprep.mubr.bf16.mxu0 %v736
        %1001 = vmatmul.mubr.bf16.gmra.mxu0 %v555
        %v1002 = vpop.f32.mrf.mxu0
        %v1003 = vadd.f32 0.0, %v1002
        %v1004 = vpop.f32.mrf.mxu0
        %v1005 = vpop.f32.mrf.mxu0
        %v1006 = vadd.f32 0.0, %v1005
        %v1007 = vpop.f32.mrf.mxu0
        %1008 = vmatprep.mubr.bf16.mxu0 %v739
        %1009 = vmatmul.mubr.bf16.gmra.mxu0 %v557
        %v1010 = vpop.f32.mrf.mxu0
        %v1011 = vadd.f32 0.0, %v1010
        %v1012 = vpop.f32.mrf.mxu0
        %v1013 = vpop.f32.mrf.mxu0
        %v1014 = vadd.f32 0.0, %v1013
        %v1015 = vpop.f32.mrf.mxu0
        %1016 = vmatprep.mubr.bf16.mxu0 %v742
        %1017 = vmatmul.mubr.bf16.gmra.mxu0 %v559
        %v1018 = vpop.f32.mrf.mxu0
        %v1019 = vadd.f32 0.0, %v1018
        %v1020 = vpop.f32.mrf.mxu0
        %v1021 = vpop.f32.mrf.mxu0
        %v1022 = vadd.f32 0.0, %v1021
        %v1023 = vpop.f32.mrf.mxu0
        %1024 = vmatprep.mubr.bf16.mxu0 %v745
        %1025 = vmatmul.mubr.bf16.gmra.mxu0 %v561
        %v1026 = vpop.f32.mrf.mxu0
        %v1027 = vadd.f32 0.0, %v1026
        %v1028 = vpop.f32.mrf.mxu0
        %v1029 = vpop.f32.mrf.mxu0
        %v1030 = vadd.f32 0.0, %v1029
        %v1031 = vpop.f32.mrf.mxu0
        %1032 = vmatprep.mubr.bf16.mxu0 %v748
        %1033 = vmatmul.mubr.bf16.gmra.mxu0 %v563
        %v1034 = vpop.f32.mrf.mxu0
        %v1035 = vadd.f32 0.0, %v1034
        %v1036 = vpop.f32.mrf.mxu0
        %v1037 = vpop.f32.mrf.mxu0
        %v1038 = vadd.f32 0.0, %v1037
        %v1039 = vpop.f32.mrf.mxu0
        %1040 = vmatprep.mubr.bf16.mxu0 %v751
        %1041 = vmatmul.mubr.bf16.gmra.mxu0 %v565
        %v1042 = vpop.f32.mrf.mxu0
        %v1043 = vadd.f32 0.0, %v1042
        %v1044 = vpop.f32.mrf.mxu0
        %v1045 = vpop.f32.mrf.mxu0
        %v1046 = vadd.f32 0.0, %v1045
        %v1047 = vpop.f32.mrf.mxu0
        %1048 = vdwg.mxu0
        %v1049 = vld [vmem:[%s2] sm:$0x1]
        %v1051 = vlaneseq
        %v1052 = vshrl.u32 %v1051, 7
        %v1053 = vsub.s32 0, %v1052
        %v1054 = vrot.slane %v1049, %v1053
        %v1056 = vmul.f32 %v795, %v1054
        %v1057 = vmul.f32 %v798, %v1054
        %v1058 = vmul.f32 %v803, %v1054
        %v1059 = vmul.f32 %v806, %v1054
        %v1060 = vmul.f32 %v811, %v1054
        %v1061 = vmul.f32 %v814, %v1054
        %v1062 = vmul.f32 %v819, %v1054
        %v1063 = vmul.f32 %v822, %v1054
        %v1064 = vmul.f32 %v827, %v1054
        %v1065 = vmul.f32 %v830, %v1054
        %v1066 = vmul.f32 %v835, %v1054
        %v1067 = vmul.f32 %v838, %v1054
        %v1068 = vmul.f32 %v843, %v1054
        %v1069 = vmul.f32 %v846, %v1054
        %v1070 = vmul.f32 %v851, %v1054
        %v1071 = vmul.f32 %v854, %v1054
        %v1072 = vmul.f32 %v859, %v1054
        %v1073 = vmul.f32 %v862, %v1054
        %v1074 = vmul.f32 %v867, %v1054
        %v1075 = vmul.f32 %v870, %v1054
        %v1076 = vmul.f32 %v875, %v1054
        %v1077 = vmul.f32 %v878, %v1054
        %v1078 = vmul.f32 %v883, %v1054
        %v1079 = vmul.f32 %v886, %v1054
        %v1080 = vmul.f32 %v891, %v1054
        %v1081 = vmul.f32 %v894, %v1054
        %v1082 = vmul.f32 %v899, %v1054
        %v1083 = vmul.f32 %v902, %v1054
        %v1084 = vmul.f32 %v907, %v1054
        %v1085 = vmul.f32 %v910, %v1054
        %v1086 = vmul.f32 %v915, %v1054
        %v1087 = vmul.f32 %v918, %v1054
        %v1088 = vmul.f32 %v923, %v1054
        %v1089 = vmul.f32 %v926, %v1054
        %v1090 = vmul.f32 %v931, %v1054
        %v1091 = vmul.f32 %v934, %v1054
        %v1092 = vmul.f32 %v939, %v1054
        %v1093 = vmul.f32 %v942, %v1054
        %v1094 = vmul.f32 %v947, %v1054
        %v1095 = vmul.f32 %v950, %v1054
        %v1096 = vmul.f32 %v955, %v1054
        %v1097 = vmul.f32 %v958, %v1054
        %v1098 = vmul.f32 %v963, %v1054
        %v1099 = vmul.f32 %v966, %v1054
        %v1100 = vmul.f32 %v971, %v1054
        %v1101 = vmul.f32 %v974, %v1054
        %v1102 = vmul.f32 %v979, %v1054
        %v1103 = vmul.f32 %v982, %v1054
        %v1104 = vmul.f32 %v987, %v1054
        %v1105 = vmul.f32 %v990, %v1054
        %v1106 = vmul.f32 %v995, %v1054
        %v1107 = vmul.f32 %v998, %v1054
        %v1108 = vmul.f32 %v1003, %v1054
        %v1109 = vmul.f32 %v1006, %v1054
        %v1110 = vmul.f32 %v1011, %v1054
        %v1111 = vmul.f32 %v1014, %v1054
        %v1112 = vmul.f32 %v1019, %v1054
        %v1113 = vmul.f32 %v1022, %v1054
        %v1114 = vmul.f32 %v1027, %v1054
        %v1115 = vmul.f32 %v1030, %v1054
        %v1116 = vmul.f32 %v1035, %v1054
        %v1117 = vmul.f32 %v1038, %v1054
        %v1118 = vmul.f32 %v1043, %v1054
        %v1119 = vmul.f32 %v1046, %v1054
        %v1120 = vld [vmem:[%s3] sm:$0x1]
        %v1122 = vlaneseq
        %v1123 = vshrl.u32 %v1122, 7
        %v1124 = vsub.s32 0, %v1123
        %v1125 = vrot.slane %v1120, %v1124
        %v1127 = vadd.f32 %v1056, %v1125
        %v1128 = vadd.f32 %v1057, %v1125
        %v1129 = vadd.f32 %v1058, %v1125
        %v1130 = vadd.f32 %v1059, %v1125
        %v1131 = vadd.f32 %v1060, %v1125
        %v1132 = vadd.f32 %v1061, %v1125
        %v1133 = vadd.f32 %v1062, %v1125
        %v1134 = vadd.f32 %v1063, %v1125
        %v1135 = vadd.f32 %v1064, %v1125
        %v1136 = vadd.f32 %v1065, %v1125
        %v1137 = vadd.f32 %v1066, %v1125
        %v1138 = vadd.f32 %v1067, %v1125
        %v1139 = vadd.f32 %v1068, %v1125
        %v1140 = vadd.f32 %v1069, %v1125
        %v1141 = vadd.f32 %v1070, %v1125
        %v1142 = vadd.f32 %v1071, %v1125
        %v1143 = vadd.f32 %v1072, %v1125
        %v1144 = vadd.f32 %v1073, %v1125
        %v1145 = vadd.f32 %v1074, %v1125
        %v1146 = vadd.f32 %v1075, %v1125
        %v1147 = vadd.f32 %v1076, %v1125
        %v1148 = vadd.f32 %v1077, %v1125
        %v1149 = vadd.f32 %v1078, %v1125
        %v1150 = vadd.f32 %v1079, %v1125
        %v1151 = vadd.f32 %v1080, %v1125
        %v1152 = vadd.f32 %v1081, %v1125
        %v1153 = vadd.f32 %v1082, %v1125
        %v1154 = vadd.f32 %v1083, %v1125
        %v1155 = vadd.f32 %v1084, %v1125
        %v1156 = vadd.f32 %v1085, %v1125
        %v1157 = vadd.f32 %v1086, %v1125
        %v1158 = vadd.f32 %v1087, %v1125
        %v1159 = vadd.f32 %v1088, %v1125
        %v1160 = vadd.f32 %v1089, %v1125
        %v1161 = vadd.f32 %v1090, %v1125
        %v1162 = vadd.f32 %v1091, %v1125
        %v1163 = vadd.f32 %v1092, %v1125
        %v1164 = vadd.f32 %v1093, %v1125
        %v1165 = vadd.f32 %v1094, %v1125
        %v1166 = vadd.f32 %v1095, %v1125
        %v1167 = vadd.f32 %v1096, %v1125
        %v1168 = vadd.f32 %v1097, %v1125
        %v1169 = vadd.f32 %v1098, %v1125
        %v1170 = vadd.f32 %v1099, %v1125
        %v1171 = vadd.f32 %v1100, %v1125
        %v1172 = vadd.f32 %v1101, %v1125
        %v1173 = vadd.f32 %v1102, %v1125
        %v1174 = vadd.f32 %v1103, %v1125
        %v1175 = vadd.f32 %v1104, %v1125
        %v1176 = vadd.f32 %v1105, %v1125
        %v1177 = vadd.f32 %v1106, %v1125
        %v1178 = vadd.f32 %v1107, %v1125
        %v1179 = vadd.f32 %v1108, %v1125
        %v1180 = vadd.f32 %v1109, %v1125
        %v1181 = vadd.f32 %v1110, %v1125
        %v1182 = vadd.f32 %v1111, %v1125
        %v1183 = vadd.f32 %v1112, %v1125
        %v1184 = vadd.f32 %v1113, %v1125
        %v1185 = vadd.f32 %v1114, %v1125
        %v1186 = vadd.f32 %v1115, %v1125
        %v1187 = vadd.f32 %v1116, %v1125
        %v1188 = vadd.f32 %v1117, %v1125
        %v1189 = vadd.f32 %v1118, %v1125
        %v1190 = vadd.f32 %v1119, %v1125
        %v1191 = vmax.f32 %v1127, 0.0
        %v1192 = vmax.f32 %v1128, 0.0
        %v1193 = vmax.f32 %v1129, 0.0
        %v1194 = vmax.f32 %v1130, 0.0
        %v1195 = vmax.f32 %v1131, 0.0
        %v1196 = vmax.f32 %v1132, 0.0
        %v1197 = vmax.f32 %v1133, 0.0
        %v1198 = vmax.f32 %v1134, 0.0
        %v1199 = vmax.f32 %v1135, 0.0
        %v1200 = vmax.f32 %v1136, 0.0
        %v1201 = vmax.f32 %v1137, 0.0
        %v1202 = vmax.f32 %v1138, 0.0
        %v1203 = vmax.f32 %v1139, 0.0
        %v1204 = vmax.f32 %v1140, 0.0
        %v1205 = vmax.f32 %v1141, 0.0
        %v1206 = vmax.f32 %v1142, 0.0
        %v1207 = vmax.f32 %v1143, 0.0
        %v1208 = vmax.f32 %v1144, 0.0
        %v1209 = vmax.f32 %v1145, 0.0
        %v1210 = vmax.f32 %v1146, 0.0
        %v1211 = vmax.f32 %v1147, 0.0
        %v1212 = vmax.f32 %v1148, 0.0
        %v1213 = vmax.f32 %v1149, 0.0
        %v1214 = vmax.f32 %v1150, 0.0
        %v1215 = vmax.f32 %v1151, 0.0
        %v1216 = vmax.f32 %v1152, 0.0
        %v1217 = vmax.f32 %v1153, 0.0
        %v1218 = vmax.f32 %v1154, 0.0
        %v1219 = vmax.f32 %v1155, 0.0
        %v1220 = vmax.f32 %v1156, 0.0
        %v1221 = vmax.f32 %v1157, 0.0
        %v1222 = vmax.f32 %v1158, 0.0
        %v1223 = vmax.f32 %v1159, 0.0
        %v1224 = vmax.f32 %v1160, 0.0
        %v1225 = vmax.f32 %v1161, 0.0
        %v1226 = vmax.f32 %v1162, 0.0
        %v1227 = vmax.f32 %v1163, 0.0
        %v1228 = vmax.f32 %v1164, 0.0
        %v1229 = vmax.f32 %v1165, 0.0
        %v1230 = vmax.f32 %v1166, 0.0
        %v1231 = vmax.f32 %v1167, 0.0
        %v1232 = vmax.f32 %v1168, 0.0
        %v1233 = vmax.f32 %v1169, 0.0
        %v1234 = vmax.f32 %v1170, 0.0
        %v1235 = vmax.f32 %v1171, 0.0
        %v1236 = vmax.f32 %v1172, 0.0
        %v1237 = vmax.f32 %v1173, 0.0
        %v1238 = vmax.f32 %v1174, 0.0
        %v1239 = vmax.f32 %v1175, 0.0
        %v1240 = vmax.f32 %v1176, 0.0
        %v1241 = vmax.f32 %v1177, 0.0
        %v1242 = vmax.f32 %v1178, 0.0
        %v1243 = vmax.f32 %v1179, 0.0
        %v1244 = vmax.f32 %v1180, 0.0
        %v1245 = vmax.f32 %v1181, 0.0
        %v1246 = vmax.f32 %v1182, 0.0
        %v1247 = vmax.f32 %v1183, 0.0
        %v1248 = vmax.f32 %v1184, 0.0
        %v1249 = vmax.f32 %v1185, 0.0
        %v1250 = vmax.f32 %v1186, 0.0
        %v1251 = vmax.f32 %v1187, 0.0
        %v1252 = vmax.f32 %v1188, 0.0
        %v1253 = vmax.f32 %v1189, 0.0
        %v1254 = vmax.f32 %v1190, 0.0
        %v1255 = vpack.c.bf16 %v1192, %v1191
        %v1256 = vpack.c.bf16 %v1194, %v1193
        %v1257 = vpack.c.bf16 %v1196, %v1195
        %v1258 = vpack.c.bf16 %v1198, %v1197
        %v1259 = vpack.c.bf16 %v1200, %v1199
        %v1260 = vpack.c.bf16 %v1202, %v1201
        %v1261 = vpack.c.bf16 %v1204, %v1203
        %v1262 = vpack.c.bf16 %v1206, %v1205
        %v1263 = vpack.c.bf16 %v1208, %v1207
        %v1264 = vpack.c.bf16 %v1210, %v1209
        %v1265 = vpack.c.bf16 %v1212, %v1211
        %v1266 = vpack.c.bf16 %v1214, %v1213
        %v1267 = vpack.c.bf16 %v1216, %v1215
        %v1268 = vpack.c.bf16 %v1218, %v1217
        %v1269 = vpack.c.bf16 %v1220, %v1219
        %v1270 = vpack.c.bf16 %v1222, %v1221
        %v1271 = vpack.c.bf16 %v1224, %v1223
        %v1272 = vpack.c.bf16 %v1226, %v1225
        %v1273 = vpack.c.bf16 %v1228, %v1227
        %v1274 = vpack.c.bf16 %v1230, %v1229
        %v1275 = vpack.c.bf16 %v1232, %v1231
        %v1276 = vpack.c.bf16 %v1234, %v1233
        %v1277 = vpack.c.bf16 %v1236, %v1235
        %v1278 = vpack.c.bf16 %v1238, %v1237
        %v1279 = vpack.c.bf16 %v1240, %v1239
        %v1280 = vpack.c.bf16 %v1242, %v1241
        %v1281 = vpack.c.bf16 %v1244, %v1243
        %v1282 = vpack.c.bf16 %v1246, %v1245
        %v1283 = vpack.c.bf16 %v1248, %v1247
        %v1284 = vpack.c.bf16 %v1250, %v1249
        %v1285 = vpack.c.bf16 %v1252, %v1251
        %v1286 = vpack.c.bf16 %v1254, %v1253
        %v1319 = vunpack.c.l.b16 %v1255
        %v1320 = vunpack.c.h.b16 %v1255
        %v1321 = vunpack.c.l.b16 %v1256
        %v1322 = vunpack.c.h.b16 %v1256
        %v1323 = vunpack.c.l.b16 %v1257
        %v1324 = vunpack.c.h.b16 %v1257
        %v1325 = vunpack.c.l.b16 %v1258
        %v1326 = vunpack.c.h.b16 %v1258
        %v1327 = vunpack.c.l.b16 %v1259
        %v1328 = vunpack.c.h.b16 %v1259
        %v1329 = vunpack.c.l.b16 %v1260
        %v1330 = vunpack.c.h.b16 %v1260
        %v1331 = vunpack.c.l.b16 %v1261
        %v1332 = vunpack.c.h.b16 %v1261
        %v1333 = vunpack.c.l.b16 %v1262
        %v1334 = vunpack.c.h.b16 %v1262
        %v1335 = vunpack.c.l.b16 %v1263
        %v1336 = vunpack.c.h.b16 %v1263
        %v1337 = vunpack.c.l.b16 %v1264
        %v1338 = vunpack.c.h.b16 %v1264
        %v1339 = vunpack.c.l.b16 %v1265
        %v1340 = vunpack.c.h.b16 %v1265
        %v1341 = vunpack.c.l.b16 %v1266
        %v1342 = vunpack.c.h.b16 %v1266
        %v1343 = vunpack.c.l.b16 %v1267
        %v1344 = vunpack.c.h.b16 %v1267
        %v1345 = vunpack.c.l.b16 %v1268
        %v1346 = vunpack.c.h.b16 %v1268
        %v1347 = vunpack.c.l.b16 %v1269
        %v1348 = vunpack.c.h.b16 %v1269
        %v1349 = vunpack.c.l.b16 %v1270
        %v1350 = vunpack.c.h.b16 %v1270
        %v1351 = vunpack.c.l.b16 %v1271
        %v1352 = vunpack.c.h.b16 %v1271
        %v1353 = vunpack.c.l.b16 %v1272
        %v1354 = vunpack.c.h.b16 %v1272
        %v1355 = vunpack.c.l.b16 %v1273
        %v1356 = vunpack.c.h.b16 %v1273
        %v1357 = vunpack.c.l.b16 %v1274
        %v1358 = vunpack.c.h.b16 %v1274
        %v1359 = vunpack.c.l.b16 %v1275
        %v1360 = vunpack.c.h.b16 %v1275
        %v1361 = vunpack.c.l.b16 %v1276
        %v1362 = vunpack.c.h.b16 %v1276
        %v1363 = vunpack.c.l.b16 %v1277
        %v1364 = vunpack.c.h.b16 %v1277
        %v1365 = vunpack.c.l.b16 %v1278
        %v1366 = vunpack.c.h.b16 %v1278
        %v1367 = vunpack.c.l.b16 %v1279
        %v1368 = vunpack.c.h.b16 %v1279
        %v1369 = vunpack.c.l.b16 %v1280
        %v1370 = vunpack.c.h.b16 %v1280
        %v1371 = vunpack.c.l.b16 %v1281
        %v1372 = vunpack.c.h.b16 %v1281
        %v1373 = vunpack.c.l.b16 %v1282
        %v1374 = vunpack.c.h.b16 %v1282
        %v1375 = vunpack.c.l.b16 %v1283
        %v1376 = vunpack.c.h.b16 %v1283
        %v1377 = vunpack.c.l.b16 %v1284
        %v1378 = vunpack.c.h.b16 %v1284
        %v1379 = vunpack.c.l.b16 %v1285
        %v1380 = vunpack.c.h.b16 %v1285
        %v1381 = vunpack.c.l.b16 %v1286
        %v1382 = vunpack.c.h.b16 %v1286
        %v1383 = vpack.c.b16 %v1319, %v1319
        %v1384 = vpack.c.b16 %v1320, %v1320
        %v1385 = vpack.c.b16 %v1321, %v1321
        %v1386 = vpack.c.b16 %v1322, %v1322
        %v1387 = vpack.c.b16 %v1323, %v1323
        %v1388 = vpack.c.b16 %v1324, %v1324
        %v1389 = vpack.c.b16 %v1325, %v1325
        %v1390 = vpack.c.b16 %v1326, %v1326
        %v1391 = vpack.c.b16 %v1327, %v1327
        %v1392 = vpack.c.b16 %v1328, %v1328
        %v1393 = vpack.c.b16 %v1329, %v1329
        %v1394 = vpack.c.b16 %v1330, %v1330
        %v1395 = vpack.c.b16 %v1331, %v1331
        %v1396 = vpack.c.b16 %v1332, %v1332
        %v1397 = vpack.c.b16 %v1333, %v1333
        %v1398 = vpack.c.b16 %v1334, %v1334
        %v1399 = vpack.c.b16 %v1335, %v1335
        %v1400 = vpack.c.b16 %v1336, %v1336
        %v1401 = vpack.c.b16 %v1337, %v1337
        %v1402 = vpack.c.b16 %v1338, %v1338
        %v1403 = vpack.c.b16 %v1339, %v1339
        %v1404 = vpack.c.b16 %v1340, %v1340
        %v1405 = vpack.c.b16 %v1341, %v1341
        %v1406 = vpack.c.b16 %v1342, %v1342
        %v1407 = vpack.c.b16 %v1343, %v1343
        %v1408 = vpack.c.b16 %v1344, %v1344
        %v1409 = vpack.c.b16 %v1345, %v1345
        %v1410 = vpack.c.b16 %v1346, %v1346
        %v1411 = vpack.c.b16 %v1347, %v1347
        %v1412 = vpack.c.b16 %v1348, %v1348
        %v1413 = vpack.c.b16 %v1349, %v1349
        %v1414 = vpack.c.b16 %v1350, %v1350
        %v1415 = vpack.c.b16 %v1351, %v1351
        %v1416 = vpack.c.b16 %v1352, %v1352
        %v1417 = vpack.c.b16 %v1353, %v1353
        %v1418 = vpack.c.b16 %v1354, %v1354
        %v1419 = vpack.c.b16 %v1355, %v1355
        %v1420 = vpack.c.b16 %v1356, %v1356
        %v1421 = vpack.c.b16 %v1357, %v1357
        %v1422 = vpack.c.b16 %v1358, %v1358
        %v1423 = vpack.c.b16 %v1359, %v1359
        %v1424 = vpack.c.b16 %v1360, %v1360
        %v1425 = vpack.c.b16 %v1361, %v1361
        %v1426 = vpack.c.b16 %v1362, %v1362
        %v1427 = vpack.c.b16 %v1363, %v1363
        %v1428 = vpack.c.b16 %v1364, %v1364
        %v1429 = vpack.c.b16 %v1365, %v1365
        %v1430 = vpack.c.b16 %v1366, %v1366
        %v1431 = vpack.c.b16 %v1367, %v1367
        %v1432 = vpack.c.b16 %v1368, %v1368
        %v1433 = vpack.c.b16 %v1369, %v1369
        %v1434 = vpack.c.b16 %v1370, %v1370
        %v1435 = vpack.c.b16 %v1371, %v1371
        %v1436 = vpack.c.b16 %v1372, %v1372
        %v1437 = vpack.c.b16 %v1373, %v1373
        %v1438 = vpack.c.b16 %v1374, %v1374
        %v1439 = vpack.c.b16 %v1375, %v1375
        %v1440 = vpack.c.b16 %v1376, %v1376
        %v1441 = vpack.c.b16 %v1377, %v1377
        %v1442 = vpack.c.b16 %v1378, %v1378
        %v1443 = vpack.c.b16 %v1379, %v1379
        %v1444 = vpack.c.b16 %v1380, %v1380
        %v1445 = vpack.c.b16 %v1381, %v1381
        %v1446 = vpack.c.b16 %v1382, %v1382
        %vm1511 = vcmask 257024
        %1512 = vst.msk [vmem:[%s204] sm:$0xf] %vm1511, %v1383
        %1513 = vst.msk [vmem:[%s204 + $0x4] sm:$0xf] %vm1511, %v1384
        %1514 = vst.msk [vmem:[%s204 + $0x8] sm:$0xf] %vm1511, %v1385
        %1515 = vst.msk [vmem:[%s204 + $0xc] sm:$0xf] %vm1511, %v1386
        %1516 = vst.msk [vmem:[%s204 + $0x10] sm:$0xf] %vm1511, %v1387
        %1517 = vst.msk [vmem:[%s204 + $0x14] sm:$0xf] %vm1511, %v1388
        %1518 = vst.msk [vmem:[%s204 + $0x18] sm:$0xf] %vm1511, %v1389
        %1519 = vst.msk [vmem:[%s204 + $0x1c] sm:$0xf] %vm1511, %v1390
        %1520 = vst.msk [vmem:[%s204 + $0x20] sm:$0xf] %vm1511, %v1391
        %1521 = vst.msk [vmem:[%s204 + $0x24] sm:$0xf] %vm1511, %v1392
        %1522 = vst.msk [vmem:[%s204 + $0x28] sm:$0xf] %vm1511, %v1393
        %1523 = vst.msk [vmem:[%s204 + $0x2c] sm:$0xf] %vm1511, %v1394
        %1524 = vst.msk [vmem:[%s204 + $0x30] sm:$0xf] %vm1511, %v1395
        %1525 = vst.msk [vmem:[%s204 + $0x34] sm:$0xf] %vm1511, %v1396
        %1526 = vst.msk [vmem:[%s204 + $0x38] sm:$0xf] %vm1511, %v1397
        %1527 = vst.msk [vmem:[%s204 + $0x3c] sm:$0xf] %vm1511, %v1398
        %1528 = vst.msk [vmem:[%s204 + $0x40] sm:$0xf] %vm1511, %v1399
        %1529 = vst.msk [vmem:[%s204 + $0x44] sm:$0xf] %vm1511, %v1400
        %1530 = vst.msk [vmem:[%s204 + $0x48] sm:$0xf] %vm1511, %v1401
        %1531 = vst.msk [vmem:[%s204 + $0x4c] sm:$0xf] %vm1511, %v1402
        %1532 = vst.msk [vmem:[%s204 + $0x50] sm:$0xf] %vm1511, %v1403
        %1533 = vst.msk [vmem:[%s204 + $0x54] sm:$0xf] %vm1511, %v1404
        %1534 = vst.msk [vmem:[%s204 + $0x58] sm:$0xf] %vm1511, %v1405
        %1535 = vst.msk [vmem:[%s204 + $0x5c] sm:$0xf] %vm1511, %v1406
        %1536 = vst.msk [vmem:[%s204 + $0x60] sm:$0xf] %vm1511, %v1407
        %1537 = vst.msk [vmem:[%s204 + $0x64] sm:$0xf] %vm1511, %v1408
        %1538 = vst.msk [vmem:[%s204 + $0x68] sm:$0xf] %vm1511, %v1409
        %1539 = vst.msk [vmem:[%s204 + $0x6c] sm:$0xf] %vm1511, %v1410
        %1540 = vst.msk [vmem:[%s204 + $0x70] sm:$0xf] %vm1511, %v1411
        %1541 = vst.msk [vmem:[%s204 + $0x74] sm:$0xf] %vm1511, %v1412
        %1542 = vst.msk [vmem:[%s204 + $0x78] sm:$0xf] %vm1511, %v1413
        %1543 = vst.msk [vmem:[%s204 + $0x7c] sm:$0xf] %vm1511, %v1414
        %1544 = vst.msk [vmem:[%s204 + $0x80] sm:$0xf] %vm1511, %v1415
        %1545 = vst.msk [vmem:[%s204 + $0x84] sm:$0xf] %vm1511, %v1416
        %1546 = vst.msk [vmem:[%s204 + $0x88] sm:$0xf] %vm1511, %v1417
        %1547 = vst.msk [vmem:[%s204 + $0x8c] sm:$0xf] %vm1511, %v1418
        %1548 = vst.msk [vmem:[%s204 + $0x90] sm:$0xf] %vm1511, %v1419
        %1549 = vst.msk [vmem:[%s204 + $0x94] sm:$0xf] %vm1511, %v1420
        %1550 = vst.msk [vmem:[%s204 + $0x98] sm:$0xf] %vm1511, %v1421
        %1551 = vst.msk [vmem:[%s204 + $0x9c] sm:$0xf] %vm1511, %v1422
        %1552 = vst.msk [vmem:[%s204 + $0xa0] sm:$0xf] %vm1511, %v1423
        %1553 = vst.msk [vmem:[%s204 + $0xa4] sm:$0xf] %vm1511, %v1424
        %1554 = vst.msk [vmem:[%s204 + $0xa8] sm:$0xf] %vm1511, %v1425
        %1555 = vst.msk [vmem:[%s204 + $0xac] sm:$0xf] %vm1511, %v1426
        %1556 = vst.msk [vmem:[%s204 + $0xb0] sm:$0xf] %vm1511, %v1427
        %1557 = vst.msk [vmem:[%s204 + $0xb4] sm:$0xf] %vm1511, %v1428
        %1558 = vst.msk [vmem:[%s204 + $0xb8] sm:$0xf] %vm1511, %v1429
        %1559 = vst.msk [vmem:[%s204 + $0xbc] sm:$0xf] %vm1511, %v1430
        %1560 = vst.msk [vmem:[%s204 + $0xc0] sm:$0xf] %vm1511, %v1431
        %1561 = vst.msk [vmem:[%s204 + $0xc4] sm:$0xf] %vm1511, %v1432
        %1562 = vst.msk [vmem:[%s204 + $0xc8] sm:$0xf] %vm1511, %v1433
        %1563 = vst.msk [vmem:[%s204 + $0xcc] sm:$0xf] %vm1511, %v1434
        %1564 = vst.msk [vmem:[%s204 + $0xd0] sm:$0xf] %vm1511, %v1435
        %1565 = vst.msk [vmem:[%s204 + $0xd4] sm:$0xf] %vm1511, %v1436
        %1566 = vst.msk [vmem:[%s204 + $0xd8] sm:$0xf] %vm1511, %v1437
        %1567 = vst.msk [vmem:[%s204 + $0xdc] sm:$0xf] %vm1511, %v1438
        %1568 = vst.msk [vmem:[%s204 + $0xe0] sm:$0xf] %vm1511, %v1439
        %1569 = vst.msk [vmem:[%s204 + $0xe4] sm:$0xf] %vm1511, %v1440
        %1570 = vst.msk [vmem:[%s204 + $0xe8] sm:$0xf] %vm1511, %v1441
        %1571 = vst.msk [vmem:[%s204 + $0xec] sm:$0xf] %vm1511, %v1442
        %1572 = vst.msk [vmem:[%s204 + $0xf0] sm:$0xf] %vm1511, %v1443
        %1573 = vst.msk [vmem:[%s204 + $0xf4] sm:$0xf] %vm1511, %v1444
        %1574 = vst.msk [vmem:[%s204 + $0xf8] sm:$0xf] %vm1511, %v1445
        %1575 = vst.msk [vmem:[%s204 + $0xfc] sm:$0xf] %vm1511, %v1446
        %s1576 = sand.u32 %s112, 1
        %s1577 = sand.u32 %s112, 1
        %s1578 = smul.addr %s1577, 256
        %s1579 = scalar_lea.vmem [#allocation2], %s1578
        // Predicated region
        $region37: #{densenet_forward.12} parent=35 // pred_check
          %p1580 = pneg %p122
        $region38: #{densenet_forward.12} parent=35 // pred_check_branch
          %1582 = sbr.rel (%p1580) target = $region40
        $region39: #{densenet_forward.12} parent=35 // pred_region
          %s1583 = smul.u32 64, %s15
          %s1584 = ssub.s32 196, %s1583
          %p1585 = scmp.lt.s32.totalorder %s1584, 64
          %s1586 = scalar_select %p1585, %s1584, 64
          %s1587 = smul.u32 64, %s1586
          %p1588 = scmp.ne.s32.totalorder 0, %s1587
          %s1589 = smul.addr %s1583, 4
          %s1590 = scalar_lea.vmem %s4, %s1589
          // Predicated region
          $region41: #{densenet_forward.12} parent=39 // pred_check
            %p1591 = pneg %p1588
          $region42: #{densenet_forward.12} parent=39 // pred_check_branch
            %1593 = sbr.rel (%p1591) target = $region44
          $region43: #{densenet_forward.12} parent=39 // pred_region
            // Predicated region
            $region45: #{densenet_forward.12} parent=43 // pred_check
              _
            $region46: #{densenet_forward.12} parent=43 // pred_check_branch
              %1595 = sbr.rel target = $region48
            $region47: #{densenet_forward.12} parent=43 // pred_region
              // Predicated region
              $region67: #{densenet_forward.12} parent=47 // pred_check
                _
              $region68: #{densenet_forward.12} parent=47 // pred_check_branch
                %1771 = sbr.rel (0) target = $region70
              $region69: #{densenet_forward.12} parent=47 // pred_region
                %s1773 = ssub.s32 16, 1
                %s1774 = sshrl.u32 %s1586, 6
                // While loop
                $region71: #{densenet_forward.12} parent=69 // loop_pre_header
                  _
                $region72: #{densenet_forward.12} parent=69 // loop_header
                  %s1776 = sphi 0, %s1778
                  %p1777 = scmp.ge.s32.totalorder %s1776, %s1774
                  %s1781 = sphi 0, %s1914
                  %s1782 = sphi %s1579, %s1917
                  %s1783 = sphi %s1590, %s1918
                $region73: #{densenet_forward.12} parent=69 // loop_header_branch
                  %1780 = sbr.rel (%p1777) target = $region77
                $region74: #{densenet_forward.12} parent=69 // loop_body
                  %v1784 = vld [vmem:[%s1782] sm:%s1773]
                  %1785 = vst [vmem:[%s1783] sm:%s1773] %v1784
                  %v1786 = vld [vmem:[%s1782 + $0x4] sm:%s1773]
                  %1787 = vst [vmem:[%s1783 + $0x4] sm:%s1773] %v1786
                  %v1788 = vld [vmem:[%s1782 + $0x8] sm:%s1773]
                  %1789 = vst [vmem:[%s1783 + $0x8] sm:%s1773] %v1788
                  %v1790 = vld [vmem:[%s1782 + $0xc] sm:%s1773]
                  %1791 = vst [vmem:[%s1783 + $0xc] sm:%s1773] %v1790
                  %v1792 = vld [vmem:[%s1782 + $0x10] sm:%s1773]
                  %1793 = vst [vmem:[%s1783 + $0x10] sm:%s1773] %v1792
                  %v1794 = vld [vmem:[%s1782 + $0x14] sm:%s1773]
                  %1795 = vst [vmem:[%s1783 + $0x14] sm:%s1773] %v1794
                  %v1796 = vld [vmem:[%s1782 + $0x18] sm:%s1773]
                  %1797 = vst [vmem:[%s1783 + $0x18] sm:%s1773] %v1796
                  %v1798 = vld [vmem:[%s1782 + $0x1c] sm:%s1773]
                  %1799 = vst [vmem:[%s1783 + $0x1c] sm:%s1773] %v1798
                  %v1800 = vld [vmem:[%s1782 + $0x20] sm:%s1773]
                  %1801 = vst [vmem:[%s1783 + $0x20] sm:%s1773] %v1800
                  %v1802 = vld [vmem:[%s1782 + $0x24] sm:%s1773]
                  %1803 = vst [vmem:[%s1783 + $0x24] sm:%s1773] %v1802
                  %v1804 = vld [vmem:[%s1782 + $0x28] sm:%s1773]
                  %1805 = vst [vmem:[%s1783 + $0x28] sm:%s1773] %v1804
                  %v1806 = vld [vmem:[%s1782 + $0x2c] sm:%s1773]
                  %1807 = vst [vmem:[%s1783 + $0x2c] sm:%s1773] %v1806
                  %v1808 = vld [vmem:[%s1782 + $0x30] sm:%s1773]
                  %1809 = vst [vmem:[%s1783 + $0x30] sm:%s1773] %v1808
                  %v1810 = vld [vmem:[%s1782 + $0x34] sm:%s1773]
                  %1811 = vst [vmem:[%s1783 + $0x34] sm:%s1773] %v1810
                  %v1812 = vld [vmem:[%s1782 + $0x38] sm:%s1773]
                  %1813 = vst [vmem:[%s1783 + $0x38] sm:%s1773] %v1812
                  %v1814 = vld [vmem:[%s1782 + $0x3c] sm:%s1773]
                  %1815 = vst [vmem:[%s1783 + $0x3c] sm:%s1773] %v1814
                  %v1816 = vld [vmem:[%s1782 + $0x40] sm:%s1773]
                  %1817 = vst [vmem:[%s1783 + $0x40] sm:%s1773] %v1816
                  %v1818 = vld [vmem:[%s1782 + $0x44] sm:%s1773]
                  %1819 = vst [vmem:[%s1783 + $0x44] sm:%s1773] %v1818
                  %v1820 = vld [vmem:[%s1782 + $0x48] sm:%s1773]
                  %1821 = vst [vmem:[%s1783 + $0x48] sm:%s1773] %v1820
                  %v1822 = vld [vmem:[%s1782 + $0x4c] sm:%s1773]
                  %1823 = vst [vmem:[%s1783 + $0x4c] sm:%s1773] %v1822
                  %v1824 = vld [vmem:[%s1782 + $0x50] sm:%s1773]
                  %1825 = vst [vmem:[%s1783 + $0x50] sm:%s1773] %v1824
                  %v1826 = vld [vmem:[%s1782 + $0x54] sm:%s1773]
                  %1827 = vst [vmem:[%s1783 + $0x54] sm:%s1773] %v1826
                  %v1828 = vld [vmem:[%s1782 + $0x58] sm:%s1773]
                  %1829 = vst [vmem:[%s1783 + $0x58] sm:%s1773] %v1828
                  %v1830 = vld [vmem:[%s1782 + $0x5c] sm:%s1773]
                  %1831 = vst [vmem:[%s1783 + $0x5c] sm:%s1773] %v1830
                  %v1832 = vld [vmem:[%s1782 + $0x60] sm:%s1773]
                  %1833 = vst [vmem:[%s1783 + $0x60] sm:%s1773] %v1832
                  %v1834 = vld [vmem:[%s1782 + $0x64] sm:%s1773]
                  %1835 = vst [vmem:[%s1783 + $0x64] sm:%s1773] %v1834
                  %v1836 = vld [vmem:[%s1782 + $0x68] sm:%s1773]
                  %1837 = vst [vmem:[%s1783 + $0x68] sm:%s1773] %v1836
                  %v1838 = vld [vmem:[%s1782 + $0x6c] sm:%s1773]
                  %1839 = vst [vmem:[%s1783 + $0x6c] sm:%s1773] %v1838
                  %v1840 = vld [vmem:[%s1782 + $0x70] sm:%s1773]
                  %1841 = vst [vmem:[%s1783 + $0x70] sm:%s1773] %v1840
                  %v1842 = vld [vmem:[%s1782 + $0x74] sm:%s1773]
                  %1843 = vst [vmem:[%s1783 + $0x74] sm:%s1773] %v1842
                  %v1844 = vld [vmem:[%s1782 + $0x78] sm:%s1773]
                  %1845 = vst [vmem:[%s1783 + $0x78] sm:%s1773] %v1844
                  %v1846 = vld [vmem:[%s1782 + $0x7c] sm:%s1773]
                  %1847 = vst [vmem:[%s1783 + $0x7c] sm:%s1773] %v1846
                  %v1848 = vld [vmem:[%s1782 + $0x80] sm:%s1773]
                  %1849 = vst [vmem:[%s1783 + $0x80] sm:%s1773] %v1848
                  %v1850 = vld [vmem:[%s1782 + $0x84] sm:%s1773]
                  %1851 = vst [vmem:[%s1783 + $0x84] sm:%s1773] %v1850
                  %v1852 = vld [vmem:[%s1782 + $0x88] sm:%s1773]
                  %1853 = vst [vmem:[%s1783 + $0x88] sm:%s1773] %v1852
                  %v1854 = vld [vmem:[%s1782 + $0x8c] sm:%s1773]
                  %1855 = vst [vmem:[%s1783 + $0x8c] sm:%s1773] %v1854
                  %v1856 = vld [vmem:[%s1782 + $0x90] sm:%s1773]
                  %1857 = vst [vmem:[%s1783 + $0x90] sm:%s1773] %v1856
                  %v1858 = vld [vmem:[%s1782 + $0x94] sm:%s1773]
                  %1859 = vst [vmem:[%s1783 + $0x94] sm:%s1773] %v1858
                  %v1860 = vld [vmem:[%s1782 + $0x98] sm:%s1773]
                  %1861 = vst [vmem:[%s1783 + $0x98] sm:%s1773] %v1860
                  %v1862 = vld [vmem:[%s1782 + $0x9c] sm:%s1773]
                  %1863 = vst [vmem:[%s1783 + $0x9c] sm:%s1773] %v1862
                  %v1864 = vld [vmem:[%s1782 + $0xa0] sm:%s1773]
                  %1865 = vst [vmem:[%s1783 + $0xa0] sm:%s1773] %v1864
                  %v1866 = vld [vmem:[%s1782 + $0xa4] sm:%s1773]
                  %1867 = vst [vmem:[%s1783 + $0xa4] sm:%s1773] %v1866
                  %v1868 = vld [vmem:[%s1782 + $0xa8] sm:%s1773]
                  %1869 = vst [vmem:[%s1783 + $0xa8] sm:%s1773] %v1868
                  %v1870 = vld [vmem:[%s1782 + $0xac] sm:%s1773]
                  %1871 = vst [vmem:[%s1783 + $0xac] sm:%s1773] %v1870
                  %v1872 = vld [vmem:[%s1782 + $0xb0] sm:%s1773]
                  %1873 = vst [vmem:[%s1783 + $0xb0] sm:%s1773] %v1872
                  %v1874 = vld [vmem:[%s1782 + $0xb4] sm:%s1773]
                  %1875 = vst [vmem:[%s1783 + $0xb4] sm:%s1773] %v1874
                  %v1876 = vld [vmem:[%s1782 + $0xb8] sm:%s1773]
                  %1877 = vst [vmem:[%s1783 + $0xb8] sm:%s1773] %v1876
                  %v1878 = vld [vmem:[%s1782 + $0xbc] sm:%s1773]
                  %1879 = vst [vmem:[%s1783 + $0xbc] sm:%s1773] %v1878
                  %v1880 = vld [vmem:[%s1782 + $0xc0] sm:%s1773]
                  %1881 = vst [vmem:[%s1783 + $0xc0] sm:%s1773] %v1880
                  %v1882 = vld [vmem:[%s1782 + $0xc4] sm:%s1773]
                  %1883 = vst [vmem:[%s1783 + $0xc4] sm:%s1773] %v1882
                  %v1884 = vld [vmem:[%s1782 + $0xc8] sm:%s1773]
                  %1885 = vst [vmem:[%s1783 + $0xc8] sm:%s1773] %v1884
                  %v1886 = vld [vmem:[%s1782 + $0xcc] sm:%s1773]
                  %1887 = vst [vmem:[%s1783 + $0xcc] sm:%s1773] %v1886
                  %v1888 = vld [vmem:[%s1782 + $0xd0] sm:%s1773]
                  %1889 = vst [vmem:[%s1783 + $0xd0] sm:%s1773] %v1888
                  %v1890 = vld [vmem:[%s1782 + $0xd4] sm:%s1773]
                  %1891 = vst [vmem:[%s1783 + $0xd4] sm:%s1773] %v1890
                  %v1892 = vld [vmem:[%s1782 + $0xd8] sm:%s1773]
                  %1893 = vst [vmem:[%s1783 + $0xd8] sm:%s1773] %v1892
                  %v1894 = vld [vmem:[%s1782 + $0xdc] sm:%s1773]
                  %1895 = vst [vmem:[%s1783 + $0xdc] sm:%s1773] %v1894
                  %v1896 = vld [vmem:[%s1782 + $0xe0] sm:%s1773]
                  %1897 = vst [vmem:[%s1783 + $0xe0] sm:%s1773] %v1896
                  %v1898 = vld [vmem:[%s1782 + $0xe4] sm:%s1773]
                  %1899 = vst [vmem:[%s1783 + $0xe4] sm:%s1773] %v1898
                  %v1900 = vld [vmem:[%s1782 + $0xe8] sm:%s1773]
                  %1901 = vst [vmem:[%s1783 + $0xe8] sm:%s1773] %v1900
                  %v1902 = vld [vmem:[%s1782 + $0xec] sm:%s1773]
                  %1903 = vst [vmem:[%s1783 + $0xec] sm:%s1773] %v1902
                  %v1904 = vld [vmem:[%s1782 + $0xf0] sm:%s1773]
                  %1905 = vst [vmem:[%s1783 + $0xf0] sm:%s1773] %v1904
                  %v1906 = vld [vmem:[%s1782 + $0xf4] sm:%s1773]
                  %1907 = vst [vmem:[%s1783 + $0xf4] sm:%s1773] %v1906
                  %v1908 = vld [vmem:[%s1782 + $0xf8] sm:%s1773]
                  %1909 = vst [vmem:[%s1783 + $0xf8] sm:%s1773] %v1908
                  %v1910 = vld [vmem:[%s1782 + $0xfc] sm:%s1773]
                  %1911 = vst [vmem:[%s1783 + $0xfc] sm:%s1773] %v1910
                  %s1912 = sadd.s32 1, %s1781
                  %p1913 = scmp.ge.s32.totalorder %s1912, %s1774
                  %s1914 = scalar_select %p1913, 0, %s1912
                  %s1915 = smul.u32 %s1914, 256
                  %s1916 = smul.u32 %s1914, 256
                  %s1917 = scalar_lea.vmem %s1579, %s1915 [#allocation2]
                  %s1918 = scalar_lea.vmem %s1590, %s1916
                $region75: #{densenet_forward.12} parent=69 // loop_footer
                  %s1778 = sadd.s32 %s1776, 1
                $region76: #{densenet_forward.12} parent=69 // loop_footer_branch
                  %1775 = sbr.rel target = $region72
                $region77: #{densenet_forward.12} parent=69 // loop_exit
                  _
                %s1919 = sshrl.u32 %s1586, 6
                %s1920 = sand.u32 %s1586, 63
                %s1921 = smul.u32 %s1919, 64
                %s1922 = smul.u32 4, %s1921
                %s1923 = scalar_lea.vmem %s1579, %s1922 [#allocation2]
                %s1924 = smul.u32 4, %s1921
                %s1925 = scalar_lea.vmem %s1590, %s1924
                // While loop
                $region78: #{densenet_forward.12} parent=69 // loop_pre_header
                  _
                $region79: #{densenet_forward.12} parent=69 // loop_header
                  %s1927 = sphi 0, %s1929
                  %p1928 = scmp.ge.s32.totalorder %s1927, %s1920
                  %s1932 = sphi 0, %s1939
                  %s1933 = sphi %s1923, %s1942
                  %s1934 = sphi %s1925, %s1943
                $region80: #{densenet_forward.12} parent=69 // loop_header_branch
                  %1931 = sbr.rel (%p1928) target = $region84
                $region81: #{densenet_forward.12} parent=69 // loop_body
                  %v1935 = vld [vmem:[%s1933] sm:%s1773]
                  %1936 = vst [vmem:[%s1934] sm:%s1773] %v1935
                  %s1937 = sadd.s32 1, %s1932
                  %p1938 = scmp.ge.s32.totalorder %s1937, %s1920
                  %s1939 = scalar_select %p1938, 0, %s1937
                  %s1940 = smul.u32 %s1939, 4
                  %s1941 = smul.u32 %s1939, 4
                  %s1942 = scalar_lea.vmem %s1923, %s1940 [#allocation2]
                  %s1943 = scalar_lea.vmem %s1925, %s1941
                $region82: #{densenet_forward.12} parent=69 // loop_footer
                  %s1929 = sadd.s32 %s1927, 1
                $region83: #{densenet_forward.12} parent=69 // loop_footer_branch
                  %1926 = sbr.rel target = $region79
                $region84: #{densenet_forward.12} parent=69 // loop_exit
                  _
              $region70: #{densenet_forward.12} parent=47 // pred_fallthru
                _
            $region48: #{densenet_forward.12} parent=43 // pred_fallthru
              _
            // Predicated region
            $region49: #{densenet_forward.12} parent=43 // pred_check
              _
            $region50: #{densenet_forward.12} parent=43 // pred_check_branch
              %1597 = sbr.rel (0) target = $region52
            $region51: #{densenet_forward.12} parent=43 // pred_region
              %s1599 = ssub.s32 16, 1
              %s1600 = sshrl.u32 %s1586, 6
              // While loop
              $region53: #{densenet_forward.12} parent=51 // loop_pre_header
                _
              $region54: #{densenet_forward.12} parent=51 // loop_header
                %s1602 = sphi 0, %s1604
                %p1603 = scmp.ge.s32.totalorder %s1602, %s1600
                %s1607 = sphi 0, %s1740
                %s1608 = sphi %s1579, %s1743
                %s1609 = sphi %s1590, %s1744
              $region55: #{densenet_forward.12} parent=51 // loop_header_branch
                %1606 = sbr.rel (%p1603) target = $region59
              $region56: #{densenet_forward.12} parent=51 // loop_body
                %v1610 = vld [vmem:[%s1608] sm:%s1599]
                %1611 = vst [vmem:[%s1609] sm:%s1599] %v1610
                %v1612 = vld [vmem:[%s1608 + $0x4] sm:%s1599]
                %1613 = vst [vmem:[%s1609 + $0x4] sm:%s1599] %v1612
                %v1614 = vld [vmem:[%s1608 + $0x8] sm:%s1599]
                %1615 = vst [vmem:[%s1609 + $0x8] sm:%s1599] %v1614
                %v1616 = vld [vmem:[%s1608 + $0xc] sm:%s1599]
                %1617 = vst [vmem:[%s1609 + $0xc] sm:%s1599] %v1616
                %v1618 = vld [vmem:[%s1608 + $0x10] sm:%s1599]
                %1619 = vst [vmem:[%s1609 + $0x10] sm:%s1599] %v1618
                %v1620 = vld [vmem:[%s1608 + $0x14] sm:%s1599]
                %1621 = vst [vmem:[%s1609 + $0x14] sm:%s1599] %v1620
                %v1622 = vld [vmem:[%s1608 + $0x18] sm:%s1599]
                %1623 = vst [vmem:[%s1609 + $0x18] sm:%s1599] %v1622
                %v1624 = vld [vmem:[%s1608 + $0x1c] sm:%s1599]
                %1625 = vst [vmem:[%s1609 + $0x1c] sm:%s1599] %v1624
                %v1626 = vld [vmem:[%s1608 + $0x20] sm:%s1599]
                %1627 = vst [vmem:[%s1609 + $0x20] sm:%s1599] %v1626
                %v1628 = vld [vmem:[%s1608 + $0x24] sm:%s1599]
                %1629 = vst [vmem:[%s1609 + $0x24] sm:%s1599] %v1628
                %v1630 = vld [vmem:[%s1608 + $0x28] sm:%s1599]
                %1631 = vst [vmem:[%s1609 + $0x28] sm:%s1599] %v1630
                %v1632 = vld [vmem:[%s1608 + $0x2c] sm:%s1599]
                %1633 = vst [vmem:[%s1609 + $0x2c] sm:%s1599] %v1632
                %v1634 = vld [vmem:[%s1608 + $0x30] sm:%s1599]
                %1635 = vst [vmem:[%s1609 + $0x30] sm:%s1599] %v1634
                %v1636 = vld [vmem:[%s1608 + $0x34] sm:%s1599]
                %1637 = vst [vmem:[%s1609 + $0x34] sm:%s1599] %v1636
                %v1638 = vld [vmem:[%s1608 + $0x38] sm:%s1599]
                %1639 = vst [vmem:[%s1609 + $0x38] sm:%s1599] %v1638
                %v1640 = vld [vmem:[%s1608 + $0x3c] sm:%s1599]
                %1641 = vst [vmem:[%s1609 + $0x3c] sm:%s1599] %v1640
                %v1642 = vld [vmem:[%s1608 + $0x40] sm:%s1599]
                %1643 = vst [vmem:[%s1609 + $0x40] sm:%s1599] %v1642
                %v1644 = vld [vmem:[%s1608 + $0x44] sm:%s1599]
                %1645 = vst [vmem:[%s1609 + $0x44] sm:%s1599] %v1644
                %v1646 = vld [vmem:[%s1608 + $0x48] sm:%s1599]
                %1647 = vst [vmem:[%s1609 + $0x48] sm:%s1599] %v1646
                %v1648 = vld [vmem:[%s1608 + $0x4c] sm:%s1599]
                %1649 = vst [vmem:[%s1609 + $0x4c] sm:%s1599] %v1648
                %v1650 = vld [vmem:[%s1608 + $0x50] sm:%s1599]
                %1651 = vst [vmem:[%s1609 + $0x50] sm:%s1599] %v1650
                %v1652 = vld [vmem:[%s1608 + $0x54] sm:%s1599]
                %1653 = vst [vmem:[%s1609 + $0x54] sm:%s1599] %v1652
                %v1654 = vld [vmem:[%s1608 + $0x58] sm:%s1599]
                %1655 = vst [vmem:[%s1609 + $0x58] sm:%s1599] %v1654
                %v1656 = vld [vmem:[%s1608 + $0x5c] sm:%s1599]
                %1657 = vst [vmem:[%s1609 + $0x5c] sm:%s1599] %v1656
                %v1658 = vld [vmem:[%s1608 + $0x60] sm:%s1599]
                %1659 = vst [vmem:[%s1609 + $0x60] sm:%s1599] %v1658
                %v1660 = vld [vmem:[%s1608 + $0x64] sm:%s1599]
                %1661 = vst [vmem:[%s1609 + $0x64] sm:%s1599] %v1660
                %v1662 = vld [vmem:[%s1608 + $0x68] sm:%s1599]
                %1663 = vst [vmem:[%s1609 + $0x68] sm:%s1599] %v1662
                %v1664 = vld [vmem:[%s1608 + $0x6c] sm:%s1599]
                %1665 = vst [vmem:[%s1609 + $0x6c] sm:%s1599] %v1664
                %v1666 = vld [vmem:[%s1608 + $0x70] sm:%s1599]
                %1667 = vst [vmem:[%s1609 + $0x70] sm:%s1599] %v1666
                %v1668 = vld [vmem:[%s1608 + $0x74] sm:%s1599]
                %1669 = vst [vmem:[%s1609 + $0x74] sm:%s1599] %v1668
                %v1670 = vld [vmem:[%s1608 + $0x78] sm:%s1599]
                %1671 = vst [vmem:[%s1609 + $0x78] sm:%s1599] %v1670
                %v1672 = vld [vmem:[%s1608 + $0x7c] sm:%s1599]
                %1673 = vst [vmem:[%s1609 + $0x7c] sm:%s1599] %v1672
                %v1674 = vld [vmem:[%s1608 + $0x80] sm:%s1599]
                %1675 = vst [vmem:[%s1609 + $0x80] sm:%s1599] %v1674
                %v1676 = vld [vmem:[%s1608 + $0x84] sm:%s1599]
                %1677 = vst [vmem:[%s1609 + $0x84] sm:%s1599] %v1676
                %v1678 = vld [vmem:[%s1608 + $0x88] sm:%s1599]
                %1679 = vst [vmem:[%s1609 + $0x88] sm:%s1599] %v1678
                %v1680 = vld [vmem:[%s1608 + $0x8c] sm:%s1599]
                %1681 = vst [vmem:[%s1609 + $0x8c] sm:%s1599] %v1680
                %v1682 = vld [vmem:[%s1608 + $0x90] sm:%s1599]
                %1683 = vst [vmem:[%s1609 + $0x90] sm:%s1599] %v1682
                %v1684 = vld [vmem:[%s1608 + $0x94] sm:%s1599]
                %1685 = vst [vmem:[%s1609 + $0x94] sm:%s1599] %v1684
                %v1686 = vld [vmem:[%s1608 + $0x98] sm:%s1599]
                %1687 = vst [vmem:[%s1609 + $0x98] sm:%s1599] %v1686
                %v1688 = vld [vmem:[%s1608 + $0x9c] sm:%s1599]
                %1689 = vst [vmem:[%s1609 + $0x9c] sm:%s1599] %v1688
                %v1690 = vld [vmem:[%s1608 + $0xa0] sm:%s1599]
                %1691 = vst [vmem:[%s1609 + $0xa0] sm:%s1599] %v1690
                %v1692 = vld [vmem:[%s1608 + $0xa4] sm:%s1599]
                %1693 = vst [vmem:[%s1609 + $0xa4] sm:%s1599] %v1692
                %v1694 = vld [vmem:[%s1608 + $0xa8] sm:%s1599]
                %1695 = vst [vmem:[%s1609 + $0xa8] sm:%s1599] %v1694
                %v1696 = vld [vmem:[%s1608 + $0xac] sm:%s1599]
                %1697 = vst [vmem:[%s1609 + $0xac] sm:%s1599] %v1696
                %v1698 = vld [vmem:[%s1608 + $0xb0] sm:%s1599]
                %1699 = vst [vmem:[%s1609 + $0xb0] sm:%s1599] %v1698
                %v1700 = vld [vmem:[%s1608 + $0xb4] sm:%s1599]
                %1701 = vst [vmem:[%s1609 + $0xb4] sm:%s1599] %v1700
                %v1702 = vld [vmem:[%s1608 + $0xb8] sm:%s1599]
                %1703 = vst [vmem:[%s1609 + $0xb8] sm:%s1599] %v1702
                %v1704 = vld [vmem:[%s1608 + $0xbc] sm:%s1599]
                %1705 = vst [vmem:[%s1609 + $0xbc] sm:%s1599] %v1704
                %v1706 = vld [vmem:[%s1608 + $0xc0] sm:%s1599]
                %1707 = vst [vmem:[%s1609 + $0xc0] sm:%s1599] %v1706
                %v1708 = vld [vmem:[%s1608 + $0xc4] sm:%s1599]
                %1709 = vst [vmem:[%s1609 + $0xc4] sm:%s1599] %v1708
                %v1710 = vld [vmem:[%s1608 + $0xc8] sm:%s1599]
                %1711 = vst [vmem:[%s1609 + $0xc8] sm:%s1599] %v1710
                %v1712 = vld [vmem:[%s1608 + $0xcc] sm:%s1599]
                %1713 = vst [vmem:[%s1609 + $0xcc] sm:%s1599] %v1712
                %v1714 = vld [vmem:[%s1608 + $0xd0] sm:%s1599]
                %1715 = vst [vmem:[%s1609 + $0xd0] sm:%s1599] %v1714
                %v1716 = vld [vmem:[%s1608 + $0xd4] sm:%s1599]
                %1717 = vst [vmem:[%s1609 + $0xd4] sm:%s1599] %v1716
                %v1718 = vld [vmem:[%s1608 + $0xd8] sm:%s1599]
                %1719 = vst [vmem:[%s1609 + $0xd8] sm:%s1599] %v1718
                %v1720 = vld [vmem:[%s1608 + $0xdc] sm:%s1599]
                %1721 = vst [vmem:[%s1609 + $0xdc] sm:%s1599] %v1720
                %v1722 = vld [vmem:[%s1608 + $0xe0] sm:%s1599]
                %1723 = vst [vmem:[%s1609 + $0xe0] sm:%s1599] %v1722
                %v1724 = vld [vmem:[%s1608 + $0xe4] sm:%s1599]
                %1725 = vst [vmem:[%s1609 + $0xe4] sm:%s1599] %v1724
                %v1726 = vld [vmem:[%s1608 + $0xe8] sm:%s1599]
                %1727 = vst [vmem:[%s1609 + $0xe8] sm:%s1599] %v1726
                %v1728 = vld [vmem:[%s1608 + $0xec] sm:%s1599]
                %1729 = vst [vmem:[%s1609 + $0xec] sm:%s1599] %v1728
                %v1730 = vld [vmem:[%s1608 + $0xf0] sm:%s1599]
                %1731 = vst [vmem:[%s1609 + $0xf0] sm:%s1599] %v1730
                %v1732 = vld [vmem:[%s1608 + $0xf4] sm:%s1599]
                %1733 = vst [vmem:[%s1609 + $0xf4] sm:%s1599] %v1732
                %v1734 = vld [vmem:[%s1608 + $0xf8] sm:%s1599]
                %1735 = vst [vmem:[%s1609 + $0xf8] sm:%s1599] %v1734
                %v1736 = vld [vmem:[%s1608 + $0xfc] sm:%s1599]
                %1737 = vst [vmem:[%s1609 + $0xfc] sm:%s1599] %v1736
                %s1738 = sadd.s32 1, %s1607
                %p1739 = scmp.ge.s32.totalorder %s1738, %s1600
                %s1740 = scalar_select %p1739, 0, %s1738
                %s1741 = smul.u32 %s1740, 256
                %s1742 = smul.u32 %s1740, 256
                %s1743 = scalar_lea.vmem %s1579, %s1741 [#allocation2]
                %s1744 = scalar_lea.vmem %s1590, %s1742
              $region57: #{densenet_forward.12} parent=51 // loop_footer
                %s1604 = sadd.s32 %s1602, 1
              $region58: #{densenet_forward.12} parent=51 // loop_footer_branch
                %1601 = sbr.rel target = $region54
              $region59: #{densenet_forward.12} parent=51 // loop_exit
                _
              %s1745 = sshrl.u32 %s1586, 6
              %s1746 = sand.u32 %s1586, 63
              %s1747 = smul.u32 %s1745, 64
              %s1748 = smul.u32 4, %s1747
              %s1749 = scalar_lea.vmem %s1579, %s1748 [#allocation2]
              %s1750 = smul.u32 4, %s1747
              %s1751 = scalar_lea.vmem %s1590, %s1750
              // While loop
              $region60: #{densenet_forward.12} parent=51 // loop_pre_header
                _
              $region61: #{densenet_forward.12} parent=51 // loop_header
                %s1753 = sphi 0, %s1755
                %p1754 = scmp.ge.s32.totalorder %s1753, %s1746
                %s1758 = sphi 0, %s1765
                %s1759 = sphi %s1749, %s1768
                %s1760 = sphi %s1751, %s1769
              $region62: #{densenet_forward.12} parent=51 // loop_header_branch
                %1757 = sbr.rel (%p1754) target = $region66
              $region63: #{densenet_forward.12} parent=51 // loop_body
                %v1761 = vld [vmem:[%s1759] sm:%s1599]
                %1762 = vst [vmem:[%s1760] sm:%s1599] %v1761
                %s1763 = sadd.s32 1, %s1758
                %p1764 = scmp.ge.s32.totalorder %s1763, %s1746
                %s1765 = scalar_select %p1764, 0, %s1763
                %s1766 = smul.u32 %s1765, 4
                %s1767 = smul.u32 %s1765, 4
                %s1768 = scalar_lea.vmem %s1749, %s1766 [#allocation2]
                %s1769 = scalar_lea.vmem %s1751, %s1767
              $region64: #{densenet_forward.12} parent=51 // loop_footer
                %s1755 = sadd.s32 %s1753, 1
              $region65: #{densenet_forward.12} parent=51 // loop_footer_branch
                %1752 = sbr.rel target = $region61
              $region66: #{densenet_forward.12} parent=51 // loop_exit
                _
            $region52: #{densenet_forward.12} parent=43 // pred_fallthru
              _
          $region44: #{densenet_forward.12} parent=39 // pred_fallthru
            _
          %1944 = vnop
        $region40: #{densenet_forward.12} parent=35 // pred_fallthru
          _
      $region36: #{densenet_forward.12} parent=5 // pred_fallthru
        _
      %p1945 = scmp.le.s32.totalorder 2, %s10
      // Predicated region
      $region85: #{densenet_forward.12} parent=5 // pred_check
        %p1946 = pneg %p1945
      $region86: #{densenet_forward.12} parent=5 // pred_check_branch
        %1948 = sbr.rel (%p1946) target = $region88
      $region87: #{densenet_forward.12} parent=5 // pred_region
        %s1949 = ssub.s32 %s10, 2
        // Predicated region
        $region89: #{densenet_forward.12} parent=87 // pred_check
          %p1950 = pneg %p128
        $region90: #{densenet_forward.12} parent=87 // pred_check_branch
          %1952 = sbr.rel (%p1950) target = $region92
        $region91: #{densenet_forward.12} parent=87 // pred_region
          %s1953 = sand.u32 %s113, 1
          %s1954 = sand.u32 %s113, 1
          %s1955 = smul.addr %s1954, 256
          %s1956 = scalar_lea.vmem [#allocation2], %s1955
        $region92: #{densenet_forward.12} parent=87 // pred_fallthru
          _
      $region88: #{densenet_forward.12} parent=5 // pred_fallthru
        _
    $region6: #{densenet_forward.12} parent=1 // loop_footer
      %s14 = sadd.s32 1, %s10
    $region7: #{densenet_forward.12} parent=1 // loop_footer_branch
      %9 = sbr.rel target = $region3
    $region8: #{densenet_forward.12} parent=1 // loop_exit
      _

// kernel: densenet_forward.13
$region0: #{densenet_forward.13}
  #allocation0 [shape = 'u32[]', space=smem, size = 0x4, offset = 0x4, fixed_abs, tag = 'smem constant byte address 0x4 - core index']
  #allocation1 [shape = 'u32[144,128]{1,0:T(1,128)}', space=vmem, size = 0x12000, scoped, tag = 'internal scratch']
  %s0 = inlined_call_operand.vmem [shape: bf16[2,15,15,32], index: 0, kind: input, shape index: {}]
  %s1 = inlined_call_operand.vmem [shape: bf16[2,15,15,32], index: 1, kind: input, shape index: {}]
  %s2 = inlined_call_operand.vmem [shape: bf16[2,15,15,32], index: 2, kind: input, shape index: {}]
  %s3 = inlined_call_operand.vmem [shape: bf16[2,15,15,32], index: 3, kind: input, shape index: {}]
  %s4 = inlined_call_operand.vmem [shape: bf16[2,14,14,32], index: 4, kind: output, shape index: {}]
  %s5 = sld [smem:[#allocation0]]
  $region49: #{densenet_forward.13} parent=0
    _
  %s7 = ssub.s32 1, %s5
  %s8 = scalar_select 0, %s7, %s5
  loop: start=0, step=1, limit=4
  $region2: #{densenet_forward.13} parent=0 // loop_pre_header
    _
  $region3: #{densenet_forward.13} parent=0 // loop_header
    %s10 = sphi 0, %s14
    %p11 = scmp.ge.s32.totalorder %s10, 4
    %s20 = sphi 0, %s22
    %s23 = sphi 0, %s20
    %s24 = sphi 0, %s23
    %s40 = sphi 0, %s24
    %s46 = sphi 0, %s48
    %s49 = sphi 0, %s46
    %s50 = sphi 0, %s49
    %s66 = sphi 0, %s50
    %s72 = sphi 0, %s74
    %s75 = sphi 0, %s72
    %s76 = sphi 0, %s75
    %s92 = sphi 0, %s76
    %s98 = sphi 0, %s100
    %s101 = sphi 0, %s98
    %s102 = sphi 0, %s101
    %s118 = sphi 0, %s102
    %s124 = sphi 0, %s126
    %s127 = sphi 0, %s124
    %s128 = sphi 0, %s127
    %s144 = sphi 0, %s128
  $region4: #{densenet_forward.13} parent=0 // loop_header_branch
    %13 = sbr.rel (%p11) target = $region8
  $region5: #{densenet_forward.13} parent=0 // loop_body
    %s15 = ssub.s32 %s10, 1
    %s16 = ssub.s32 %s10, 2
    %s17 = sadd.s32 %s10, 1
    %s18 = ssub.s32 %s10, %s17
    %p19 = scmp.eq.s32.totalorder %s18, 0
    %s21 = sadd.s32 %s20, 1
    %s22 = scalar_select %p19, %s20, %s21
    %p25 = pneg %p19
    %p26 = scmp.eq.s32.totalorder %s10, 1
    %p27 = por %p25, %p26
    %p28 = scmp.ne.s32.totalorder %s20, %s23
    %p29 = scmp.eq.s32.totalorder %s10, 0
    %p30 = por %p28, %p29
    %p31 = scmp.ne.s32.totalorder %s20, %s23
    %p32 = scmp.eq.s32.totalorder %s15, 1
    %p33 = por %p31, %p32
    %p34 = scmp.ne.s32.totalorder %s23, %s24
    %p35 = scmp.eq.s32.totalorder %s15, 0
    %p36 = por %p34, %p35
    %p37 = scmp.ne.s32.totalorder %s23, %s24
    %p38 = scmp.eq.s32.totalorder %s16, 1
    %p39 = por %p37, %p38
    %p41 = scmp.ne.s32.totalorder %s24, %s40
    %p42 = scmp.eq.s32.totalorder %s16, 0
    %p43 = por %p41, %p42
    %s44 = ssub.s32 %s10, %s17
    %p45 = scmp.eq.s32.totalorder %s44, 0
    %s47 = sadd.s32 %s46, 1
    %s48 = scalar_select %p45, %s46, %s47
    %p51 = pneg %p45
    %p52 = scmp.eq.s32.totalorder %s10, 1
    %p53 = por %p51, %p52
    %p54 = scmp.ne.s32.totalorder %s46, %s49
    %p55 = scmp.eq.s32.totalorder %s10, 0
    %p56 = por %p54, %p55
    %p57 = scmp.ne.s32.totalorder %s46, %s49
    %p58 = scmp.eq.s32.totalorder %s15, 1
    %p59 = por %p57, %p58
    %p60 = scmp.ne.s32.totalorder %s49, %s50
    %p61 = scmp.eq.s32.totalorder %s15, 0
    %p62 = por %p60, %p61
    %p63 = scmp.ne.s32.totalorder %s49, %s50
    %p64 = scmp.eq.s32.totalorder %s16, 1
    %p65 = por %p63, %p64
    %p67 = scmp.ne.s32.totalorder %s50, %s66
    %p68 = scmp.eq.s32.totalorder %s16, 0
    %p69 = por %p67, %p68
    %s70 = ssub.s32 %s10, %s17
    %p71 = scmp.eq.s32.totalorder %s70, 0
    %s73 = sadd.s32 %s72, 1
    %s74 = scalar_select %p71, %s72, %s73
    %p77 = pneg %p71
    %p78 = scmp.eq.s32.totalorder %s10, 1
    %p79 = por %p77, %p78
    %p80 = scmp.ne.s32.totalorder %s72, %s75
    %p81 = scmp.eq.s32.totalorder %s10, 0
    %p82 = por %p80, %p81
    %p83 = scmp.ne.s32.totalorder %s72, %s75
    %p84 = scmp.eq.s32.totalorder %s15, 1
    %p85 = por %p83, %p84
    %p86 = scmp.ne.s32.totalorder %s75, %s76
    %p87 = scmp.eq.s32.totalorder %s15, 0
    %p88 = por %p86, %p87
    %p89 = scmp.ne.s32.totalorder %s75, %s76
    %p90 = scmp.eq.s32.totalorder %s16, 1
    %p91 = por %p89, %p90
    %p93 = scmp.ne.s32.totalorder %s76, %s92
    %p94 = scmp.eq.s32.totalorder %s16, 0
    %p95 = por %p93, %p94
    %s96 = ssub.s32 %s10, %s17
    %p97 = scmp.eq.s32.totalorder %s96, 0
    %s99 = sadd.s32 %s98, 1
    %s100 = scalar_select %p97, %s98, %s99
    %p103 = pneg %p97
    %p104 = scmp.eq.s32.totalorder %s10, 1
    %p105 = por %p103, %p104
    %p106 = scmp.ne.s32.totalorder %s98, %s101
    %p107 = scmp.eq.s32.totalorder %s10, 0
    %p108 = por %p106, %p107
    %p109 = scmp.ne.s32.totalorder %s98, %s101
    %p110 = scmp.eq.s32.totalorder %s15, 1
    %p111 = por %p109, %p110
    %p112 = scmp.ne.s32.totalorder %s101, %s102
    %p113 = scmp.eq.s32.totalorder %s15, 0
    %p114 = por %p112, %p113
    %p115 = scmp.ne.s32.totalorder %s101, %s102
    %p116 = scmp.eq.s32.totalorder %s16, 1
    %p117 = por %p115, %p116
    %p119 = scmp.ne.s32.totalorder %s102, %s118
    %p120 = scmp.eq.s32.totalorder %s16, 0
    %p121 = por %p119, %p120
    %s122 = ssub.s32 %s10, %s17
    %p123 = scmp.eq.s32.totalorder %s122, 0
    %s125 = sadd.s32 %s124, 1
    %s126 = scalar_select %p123, %s124, %s125
    %p129 = pneg %p123
    %p130 = scmp.eq.s32.totalorder %s10, 1
    %p131 = por %p129, %p130
    %p132 = scmp.ne.s32.totalorder %s124, %s127
    %p133 = scmp.eq.s32.totalorder %s10, 0
    %p134 = por %p132, %p133
    %p135 = scmp.ne.s32.totalorder %s124, %s127
    %p136 = scmp.eq.s32.totalorder %s15, 1
    %p137 = por %p135, %p136
    %p138 = scmp.ne.s32.totalorder %s127, %s128
    %p139 = scmp.eq.s32.totalorder %s15, 0
    %p140 = por %p138, %p139
    %p141 = scmp.ne.s32.totalorder %s127, %s128
    %p142 = scmp.eq.s32.totalorder %s16, 1
    %p143 = por %p141, %p142
    %p145 = scmp.ne.s32.totalorder %s128, %s144
    %p146 = scmp.eq.s32.totalorder %s16, 0
    %p147 = por %p145, %p146
    %p148 = scmp.le.s32.totalorder 1, %s10
    %p149 = scmp.lt.s32.totalorder %s10, 3
    %p150 = pnand %p148, %p149
    %p151 = pneg %p150
    // Predicated region
    $region9: #{densenet_forward.13} parent=5 // pred_check
      _
    $region10: #{densenet_forward.13} parent=5 // pred_check_branch
      %153 = sbr.rel (%p150) target = $region12
    $region11: #{densenet_forward.13} parent=5 // pred_region
      %s154 = ssub.s32 %s10, 1
    $region12: #{densenet_forward.13} parent=5 // pred_fallthru
      _
    %p155 = scmp.lt.s32.totalorder %s10, 2
    // Predicated region
    $region13: #{densenet_forward.13} parent=5 // pred_check
      %p156 = pneg %p155
    $region14: #{densenet_forward.13} parent=5 // pred_check_branch
      %158 = sbr.rel (%p156) target = $region16
    $region15: #{densenet_forward.13} parent=5 // pred_region
      // Predicated region
      $region17: #{densenet_forward.13} parent=15 // pred_check
        %p159 = pneg %p30
      $region18: #{densenet_forward.13} parent=15 // pred_check_branch
        %161 = sbr.rel (%p159) target = $region20
      $region19: #{densenet_forward.13} parent=15 // pred_region
        %p162 = scmp.lt.s32.totalorder %s10, 1
        %s163 = scalar_select %p162, %s10, 1
        %s164 = smul.addr %s163, 30
        %s165 = smul.addr %s164, 4
        %s166 = scalar_lea.vmem %s0, %s165
      $region20: #{densenet_forward.13} parent=15 // pred_fallthru
        _
      // Predicated region
      $region21: #{densenet_forward.13} parent=15 // pred_check
        %p167 = pneg %p56
      $region22: #{densenet_forward.13} parent=15 // pred_check_branch
        %169 = sbr.rel (%p167) target = $region24
      $region23: #{densenet_forward.13} parent=15 // pred_region
        %p170 = scmp.lt.s32.totalorder %s10, 1
        %s171 = scalar_select %p170, %s10, 1
        %s172 = smul.addr %s171, 30
        %s173 = smul.addr %s172, 4
        %s174 = scalar_lea.vmem %s1, %s173
      $region24: #{densenet_forward.13} parent=15 // pred_fallthru
        _
      // Predicated region
      $region25: #{densenet_forward.13} parent=15 // pred_check
        %p175 = pneg %p82
      $region26: #{densenet_forward.13} parent=15 // pred_check_branch
        %177 = sbr.rel (%p175) target = $region28
      $region27: #{densenet_forward.13} parent=15 // pred_region
        %p178 = scmp.lt.s32.totalorder %s10, 1
        %s179 = scalar_select %p178, %s10, 1
        %s180 = smul.addr %s179, 30
        %s181 = smul.addr %s180, 4
        %s182 = scalar_lea.vmem %s2, %s181
      $region28: #{densenet_forward.13} parent=15 // pred_fallthru
        _
      // Predicated region
      $region29: #{densenet_forward.13} parent=15 // pred_check
        %p183 = pneg %p108
      $region30: #{densenet_forward.13} parent=15 // pred_check_branch
        %185 = sbr.rel (%p183) target = $region32
      $region31: #{densenet_forward.13} parent=15 // pred_region
        %p186 = scmp.lt.s32.totalorder %s10, 1
        %s187 = scalar_select %p186, %s10, 1
        %s188 = smul.addr %s187, 30
        %s189 = smul.addr %s188, 4
        %s190 = scalar_lea.vmem %s3, %s189
      $region32: #{densenet_forward.13} parent=15 // pred_fallthru
        _
    $region16: #{densenet_forward.13} parent=5 // pred_fallthru
      _
    %p191 = scmp.le.s32.totalorder 1, %s10
    %p192 = scmp.lt.s32.totalorder %s10, 3
    %p193 = pnand %p191, %p192
    %p194 = pneg %p193
    // Predicated region
    $region33: #{densenet_forward.13} parent=5 // pred_check
      _
    $region34: #{densenet_forward.13} parent=5 // pred_check_branch
      %196 = sbr.rel (%p193) target = $region36
    $region35: #{densenet_forward.13} parent=5 // pred_region
      %s197 = ssub.s32 %s10, 1
      %p198 = scmp.lt.s32.totalorder %s15, 1
      %s199 = scalar_select %p198, %s15, 1
      %s200 = smul.addr %s199, 30
      %s201 = smul.addr %s200, 4
      %s202 = scalar_lea.vmem %s0, %s201
      %p203 = pneg %p36
      %p204 = pneg %p33
      %p205 = scmp.lt.s32.totalorder %s15, 1
      %s206 = scalar_select %p205, %s15, 1
      %s207 = smul.addr %s206, 30
      %s208 = smul.addr %s207, 4
      %s209 = scalar_lea.vmem %s1, %s208
      %p210 = pneg %p62
      %p211 = pneg %p59
      %p212 = scmp.lt.s32.totalorder %s15, 1
      %s213 = scalar_select %p212, %s15, 1
      %s214 = smul.addr %s213, 30
      %s215 = smul.addr %s214, 4
      %s216 = scalar_lea.vmem %s2, %s215
      %p217 = pneg %p88
      %p218 = pneg %p85
      %p219 = scmp.lt.s32.totalorder %s15, 1
      %s220 = scalar_select %p219, %s15, 1
      %s221 = smul.addr %s220, 30
      %s222 = smul.addr %s221, 4
      %s223 = scalar_lea.vmem %s3, %s222
      %p224 = pneg %p114
      %p225 = pneg %p111
      %p226 = pneg %p140
      %p227 = pneg %p137
      %p228 = scmp.lt.s32.totalorder %s15, 1
      %s229 = scalar_select %p228, %s15, 1
      %s230 = smul.addr %s229, 28
      %s231 = smul.addr %s230, 4
      %s232 = scalar_lea.vmem %s4, %s231
      %p233 = scmp.lt.s32.totalorder %s15, 1
      %s234 = scalar_select %p233, %s15, 1
      %s235 = smul.addr %s234, 30
      %s236 = smul.addr %s235, 4
      %s237 = scalar_lea.vmem %s0, %s236
      %p238 = scmp.lt.s32.totalorder %s15, 1
      %s239 = scalar_select %p238, %s15, 1
      %s240 = smul.addr %s239, 30
      %s241 = smul.addr %s240, 4
      %s242 = scalar_lea.vmem %s1, %s241
      %p243 = scmp.lt.s32.totalorder %s15, 1
      %s244 = scalar_select %p243, %s15, 1
      %s245 = smul.addr %s244, 30
      %s246 = smul.addr %s245, 4
      %s247 = scalar_lea.vmem %s2, %s246
      %p248 = scmp.lt.s32.totalorder %s15, 1
      %s249 = scalar_select %p248, %s15, 1
      %s250 = smul.addr %s249, 30
      %s251 = smul.addr %s250, 4
      %s252 = scalar_lea.vmem %s3, %s251
      %p253 = scmp.lt.s32.totalorder %s15, 1
      %s254 = scalar_select %p253, %s15, 1
      %s255 = smul.addr %s254, 28
      %s256 = smul.addr %s255, 4
      %s257 = scalar_lea.vmem %s4, %s256
      %v258 = vld [vmem:[%s237] sm:$0xf]
      %v259 = vld [vmem:[%s237 + $0x4] sm:$0xf]
      %v260 = vld [vmem:[%s237 + $0x8] sm:$0xf]
      %v261 = vld [vmem:[%s237 + $0xc] sm:$0xf]
      %v262 = vld [vmem:[%s237 + $0x10] sm:$0xf]
      %v263 = vld [vmem:[%s237 + $0x14] sm:$0xf]
      %v264 = vld [vmem:[%s237 + $0x18] sm:$0xf]
      %v265 = vld [vmem:[%s237 + $0x1c] sm:$0xf]
      %v266 = vld [vmem:[%s237 + $0x20] sm:$0xf]
      %v267 = vld [vmem:[%s237 + $0x24] sm:$0xf]
      %v268 = vld [vmem:[%s237 + $0x28] sm:$0xf]
      %v269 = vld [vmem:[%s237 + $0x2c] sm:$0xf]
      %v270 = vld [vmem:[%s237 + $0x30] sm:$0xf]
      %v271 = vld [vmem:[%s237 + $0x34] sm:$0xf]
      %v272 = vld [vmem:[%s237 + $0x38] sm:$0xf]
      %v273 = vld [vmem:[%s237 + $0x3c] sm:$0xf]
      %v274 = vld [vmem:[%s237 + $0x40] sm:$0xf]
      %v275 = vld [vmem:[%s237 + $0x44] sm:$0xf]
      %v276 = vld [vmem:[%s237 + $0x48] sm:$0xf]
      %v277 = vld [vmem:[%s237 + $0x4c] sm:$0xf]
      %v278 = vld [vmem:[%s237 + $0x50] sm:$0xf]
      %v279 = vld [vmem:[%s237 + $0x54] sm:$0xf]
      %v280 = vld [vmem:[%s237 + $0x58] sm:$0xf]
      %v281 = vld [vmem:[%s237 + $0x5c] sm:$0xf]
      %v282 = vld [vmem:[%s237 + $0x60] sm:$0xf]
      %v283 = vld [vmem:[%s237 + $0x64] sm:$0xf]
      %v284 = vld [vmem:[%s237 + $0x68] sm:$0xf]
      %v285 = vld [vmem:[%s237 + $0x6c] sm:$0xf]
      %v286 = vld [vmem:[%s237 + $0x70] sm:$0xf]
      %v287 = vld [vmem:[%s237 + $0x74] sm:$0xf]
      %v288 = vunpack.c.l.bf16 %v258
      %v289 = vunpack.c.l.bf16 %v259
      %v290 = vunpack.c.l.bf16 %v260
      %v291 = vunpack.c.l.bf16 %v261
      %v292 = vunpack.c.l.bf16 %v262
      %v293 = vunpack.c.l.bf16 %v263
      %v294 = vunpack.c.l.bf16 %v264
      %v295 = vunpack.c.l.bf16 %v265
      %v296 = vunpack.c.l.bf16 %v266
      %v297 = vunpack.c.l.bf16 %v267
      %v298 = vunpack.c.l.bf16 %v268
      %v299 = vunpack.c.l.bf16 %v269
      %v300 = vunpack.c.l.bf16 %v270
      %v301 = vunpack.c.l.bf16 %v271
      %v302 = vunpack.c.l.bf16 %v272
      %v303 = vunpack.c.l.bf16 %v273
      %v304 = vunpack.c.l.bf16 %v274
      %v305 = vunpack.c.l.bf16 %v275
      %v306 = vunpack.c.l.bf16 %v276
      %v307 = vunpack.c.l.bf16 %v277
      %v308 = vunpack.c.l.bf16 %v278
      %v309 = vunpack.c.l.bf16 %v279
      %v310 = vunpack.c.l.bf16 %v280
      %v311 = vunpack.c.l.bf16 %v281
      %v312 = vunpack.c.l.bf16 %v282
      %v313 = vunpack.c.l.bf16 %v283
      %v314 = vunpack.c.l.bf16 %v284
      %v315 = vunpack.c.l.bf16 %v285
      %v316 = vunpack.c.l.bf16 %v286
      %v317 = vunpack.c.l.bf16 %v287
      %v318 = vld [vmem:[%s242] sm:$0xf]
      %v319 = vld [vmem:[%s242 + $0x4] sm:$0xf]
      %v320 = vld [vmem:[%s242 + $0x8] sm:$0xf]
      %v321 = vld [vmem:[%s242 + $0xc] sm:$0xf]
      %v322 = vld [vmem:[%s242 + $0x10] sm:$0xf]
      %v323 = vld [vmem:[%s242 + $0x14] sm:$0xf]
      %v324 = vld [vmem:[%s242 + $0x18] sm:$0xf]
      %v325 = vld [vmem:[%s242 + $0x1c] sm:$0xf]
      %v326 = vld [vmem:[%s242 + $0x20] sm:$0xf]
      %v327 = vld [vmem:[%s242 + $0x24] sm:$0xf]
      %v328 = vld [vmem:[%s242 + $0x28] sm:$0xf]
      %v329 = vld [vmem:[%s242 + $0x2c] sm:$0xf]
      %v330 = vld [vmem:[%s242 + $0x30] sm:$0xf]
      %v331 = vld [vmem:[%s242 + $0x34] sm:$0xf]
      %v332 = vld [vmem:[%s242 + $0x38] sm:$0xf]
      %v333 = vld [vmem:[%s242 + $0x3c] sm:$0xf]
      %v334 = vld [vmem:[%s242 + $0x40] sm:$0xf]
      %v335 = vld [vmem:[%s242 + $0x44] sm:$0xf]
      %v336 = vld [vmem:[%s242 + $0x48] sm:$0xf]
      %v337 = vld [vmem:[%s242 + $0x4c] sm:$0xf]
      %v338 = vld [vmem:[%s242 + $0x50] sm:$0xf]
      %v339 = vld [vmem:[%s242 + $0x54] sm:$0xf]
      %v340 = vld [vmem:[%s242 + $0x58] sm:$0xf]
      %v341 = vld [vmem:[%s242 + $0x5c] sm:$0xf]
      %v342 = vld [vmem:[%s242 + $0x60] sm:$0xf]
      %v343 = vld [vmem:[%s242 + $0x64] sm:$0xf]
      %v344 = vld [vmem:[%s242 + $0x68] sm:$0xf]
      %v345 = vld [vmem:[%s242 + $0x6c] sm:$0xf]
      %v346 = vld [vmem:[%s242 + $0x70] sm:$0xf]
      %v347 = vld [vmem:[%s242 + $0x74] sm:$0xf]
      %v348 = vunpack.c.l.bf16 %v318
      %v349 = vunpack.c.l.bf16 %v319
      %v350 = vunpack.c.l.bf16 %v320
      %v351 = vunpack.c.l.bf16 %v321
      %v352 = vunpack.c.l.bf16 %v322
      %v353 = vunpack.c.l.bf16 %v323
      %v354 = vunpack.c.l.bf16 %v324
      %v355 = vunpack.c.l.bf16 %v325
      %v356 = vunpack.c.l.bf16 %v326
      %v357 = vunpack.c.l.bf16 %v327
      %v358 = vunpack.c.l.bf16 %v328
      %v359 = vunpack.c.l.bf16 %v329
      %v360 = vunpack.c.l.bf16 %v330
      %v361 = vunpack.c.l.bf16 %v331
      %v362 = vunpack.c.l.bf16 %v332
      %v363 = vunpack.c.l.bf16 %v333
      %v364 = vunpack.c.l.bf16 %v334
      %v365 = vunpack.c.l.bf16 %v335
      %v366 = vunpack.c.l.bf16 %v336
      %v367 = vunpack.c.l.bf16 %v337
      %v368 = vunpack.c.l.bf16 %v338
      %v369 = vunpack.c.l.bf16 %v339
      %v370 = vunpack.c.l.bf16 %v340
      %v371 = vunpack.c.l.bf16 %v341
      %v372 = vunpack.c.l.bf16 %v342
      %v373 = vunpack.c.l.bf16 %v343
      %v374 = vunpack.c.l.bf16 %v344
      %v375 = vunpack.c.l.bf16 %v345
      %v376 = vunpack.c.l.bf16 %v346
      %v377 = vunpack.c.l.bf16 %v347
      %v378 = vld [vmem:[%s247] sm:$0xf]
      %v379 = vld [vmem:[%s247 + $0x4] sm:$0xf]
      %v380 = vld [vmem:[%s247 + $0x8] sm:$0xf]
      %v381 = vld [vmem:[%s247 + $0xc] sm:$0xf]
      %v382 = vld [vmem:[%s247 + $0x10] sm:$0xf]
      %v383 = vld [vmem:[%s247 + $0x14] sm:$0xf]
      %v384 = vld [vmem:[%s247 + $0x18] sm:$0xf]
      %v385 = vld [vmem:[%s247 + $0x1c] sm:$0xf]
      %v386 = vld [vmem:[%s247 + $0x20] sm:$0xf]
      %v387 = vld [vmem:[%s247 + $0x24] sm:$0xf]
      %v388 = vld [vmem:[%s247 + $0x28] sm:$0xf]
      %v389 = vld [vmem:[%s247 + $0x2c] sm:$0xf]
      %v390 = vld [vmem:[%s247 + $0x30] sm:$0xf]
      %v391 = vld [vmem:[%s247 + $0x34] sm:$0xf]
      %v392 = vld [vmem:[%s247 + $0x38] sm:$0xf]
      %v393 = vld [vmem:[%s247 + $0x3c] sm:$0xf]
      %v394 = vld [vmem:[%s247 + $0x40] sm:$0xf]
      %v395 = vld [vmem:[%s247 + $0x44] sm:$0xf]
      %v396 = vld [vmem:[%s247 + $0x48] sm:$0xf]
      %v397 = vld [vmem:[%s247 + $0x4c] sm:$0xf]
      %v398 = vld [vmem:[%s247 + $0x50] sm:$0xf]
      %v399 = vld [vmem:[%s247 + $0x54] sm:$0xf]
      %v400 = vld [vmem:[%s247 + $0x58] sm:$0xf]
      %v401 = vld [vmem:[%s247 + $0x5c] sm:$0xf]
      %v402 = vld [vmem:[%s247 + $0x60] sm:$0xf]
      %v403 = vld [vmem:[%s247 + $0x64] sm:$0xf]
      %v404 = vld [vmem:[%s247 + $0x68] sm:$0xf]
      %v405 = vld [vmem:[%s247 + $0x6c] sm:$0xf]
      %v406 = vunpack.c.l.bf16 %v378
      %v407 = vunpack.c.l.bf16 %v379
      %v408 = vunpack.c.l.bf16 %v380
      %v409 = vunpack.c.l.bf16 %v381
      %v410 = vunpack.c.l.bf16 %v382
      %v411 = vunpack.c.l.bf16 %v383
      %v412 = vunpack.c.l.bf16 %v384
      %v413 = vunpack.c.l.bf16 %v385
      %v414 = vunpack.c.l.bf16 %v386
      %v415 = vunpack.c.l.bf16 %v387
      %v416 = vunpack.c.l.bf16 %v388
      %v417 = vunpack.c.l.bf16 %v389
      %v418 = vunpack.c.l.bf16 %v390
      %v419 = vunpack.c.l.bf16 %v391
      %v420 = vunpack.c.l.bf16 %v392
      %v421 = vunpack.c.l.bf16 %v393
      %v422 = vunpack.c.l.bf16 %v394
      %v423 = vunpack.c.l.bf16 %v395
      %v424 = vunpack.c.l.bf16 %v396
      %v425 = vunpack.c.l.bf16 %v397
      %v426 = vunpack.c.l.bf16 %v398
      %v427 = vunpack.c.l.bf16 %v399
      %v428 = vunpack.c.l.bf16 %v400
      %v429 = vunpack.c.l.bf16 %v401
      %v430 = vunpack.c.l.bf16 %v402
      %v431 = vunpack.c.l.bf16 %v403
      %v432 = vunpack.c.l.bf16 %v404
      %v433 = vunpack.c.l.bf16 %v405
      %v434 = vld [vmem:[%s252] sm:$0xf]
      %v435 = vld [vmem:[%s252 + $0x4] sm:$0xf]
      %v436 = vld [vmem:[%s252 + $0x8] sm:$0xf]
      %v437 = vld [vmem:[%s252 + $0xc] sm:$0xf]
      %v438 = vld [vmem:[%s252 + $0x10] sm:$0xf]
      %v439 = vld [vmem:[%s252 + $0x14] sm:$0xf]
      %v440 = vld [vmem:[%s252 + $0x18] sm:$0xf]
      %v441 = vld [vmem:[%s252 + $0x1c] sm:$0xf]
      %v442 = vld [vmem:[%s252 + $0x20] sm:$0xf]
      %v443 = vld [vmem:[%s252 + $0x24] sm:$0xf]
      %v444 = vld [vmem:[%s252 + $0x28] sm:$0xf]
      %v445 = vld [vmem:[%s252 + $0x2c] sm:$0xf]
      %v446 = vld [vmem:[%s252 + $0x30] sm:$0xf]
      %v447 = vld [vmem:[%s252 + $0x34] sm:$0xf]
      %v448 = vld [vmem:[%s252 + $0x38] sm:$0xf]
      %v449 = vld [vmem:[%s252 + $0x3c] sm:$0xf]
      %v450 = vld [vmem:[%s252 + $0x40] sm:$0xf]
      %v451 = vld [vmem:[%s252 + $0x44] sm:$0xf]
      %v452 = vld [vmem:[%s252 + $0x48] sm:$0xf]
      %v453 = vld [vmem:[%s252 + $0x4c] sm:$0xf]
      %v454 = vld [vmem:[%s252 + $0x50] sm:$0xf]
      %v455 = vld [vmem:[%s252 + $0x54] sm:$0xf]
      %v456 = vld [vmem:[%s252 + $0x58] sm:$0xf]
      %v457 = vld [vmem:[%s252 + $0x5c] sm:$0xf]
      %v458 = vld [vmem:[%s252 + $0x60] sm:$0xf]
      %v459 = vld [vmem:[%s252 + $0x64] sm:$0xf]
      %v460 = vld [vmem:[%s252 + $0x68] sm:$0xf]
      %v461 = vld [vmem:[%s252 + $0x6c] sm:$0xf]
      %v462 = vunpack.c.l.bf16 %v434
      %v463 = vunpack.c.l.bf16 %v435
      %v464 = vunpack.c.l.bf16 %v436
      %v465 = vunpack.c.l.bf16 %v437
      %v466 = vunpack.c.l.bf16 %v438
      %v467 = vunpack.c.l.bf16 %v439
      %v468 = vunpack.c.l.bf16 %v440
      %v469 = vunpack.c.l.bf16 %v441
      %v470 = vunpack.c.l.bf16 %v442
      %v471 = vunpack.c.l.bf16 %v443
      %v472 = vunpack.c.l.bf16 %v444
      %v473 = vunpack.c.l.bf16 %v445
      %v474 = vunpack.c.l.bf16 %v446
      %v475 = vunpack.c.l.bf16 %v447
      %v476 = vunpack.c.l.bf16 %v448
      %v477 = vunpack.c.l.bf16 %v449
      %v478 = vunpack.c.l.bf16 %v450
      %v479 = vunpack.c.l.bf16 %v451
      %v480 = vunpack.c.l.bf16 %v452
      %v481 = vunpack.c.l.bf16 %v453
      %v482 = vunpack.c.l.bf16 %v454
      %v483 = vunpack.c.l.bf16 %v455
      %v484 = vunpack.c.l.bf16 %v456
      %v485 = vunpack.c.l.bf16 %v457
      %v486 = vunpack.c.l.bf16 %v458
      %v487 = vunpack.c.l.bf16 %v459
      %v488 = vunpack.c.l.bf16 %v460
      %v489 = vunpack.c.l.bf16 %v461
      %vm518 = vcmask 1046528
      %v519 = vrot.slane %v288, 1
      %v520 = vrot.slane %v289, 1
      %v521 = vsel %vm518, %v519, %v520
      %v522 = vrot.slane %v290, 1
      %v523 = vrot.slane %v291, 1
      %v524 = vsel %vm518, %v522, %v523
      %v525 = vrot.slane %v292, 1
      %v526 = vrot.slane %v293, 1
      %v527 = vsel %vm518, %v525, %v526
      %v528 = vrot.slane %v294, 1
      %v529 = vrot.slane %v295, 1
      %v530 = vsel %vm518, %v528, %v529
      %v531 = vrot.slane %v296, 1
      %v532 = vrot.slane %v297, 1
      %v533 = vsel %vm518, %v531, %v532
      %v534 = vrot.slane %v298, 1
      %v535 = vrot.slane %v299, 1
      %v536 = vsel %vm518, %v534, %v535
      %v537 = vrot.slane %v300, 1
      %v538 = vrot.slane %v301, 1
      %v539 = vsel %vm518, %v537, %v538
      %v540 = vrot.slane %v302, 1
      %v541 = vrot.slane %v303, 1
      %v542 = vsel %vm518, %v540, %v541
      %v543 = vrot.slane %v304, 1
      %v544 = vrot.slane %v305, 1
      %v545 = vsel %vm518, %v543, %v544
      %v546 = vrot.slane %v306, 1
      %v547 = vrot.slane %v307, 1
      %v548 = vsel %vm518, %v546, %v547
      %v549 = vrot.slane %v308, 1
      %v550 = vrot.slane %v309, 1
      %v551 = vsel %vm518, %v549, %v550
      %v552 = vrot.slane %v310, 1
      %v553 = vrot.slane %v311, 1
      %v554 = vsel %vm518, %v552, %v553
      %v555 = vrot.slane %v312, 1
      %v556 = vrot.slane %v313, 1
      %v557 = vsel %vm518, %v555, %v556
      %v558 = vrot.slane %v314, 1
      %v559 = vrot.slane %v315, 1
      %v560 = vsel %vm518, %v558, %v559
      %v589 = vmax.f32 %v288, %v521
      %v590 = vmax.f32 %v289, %v520
      %v591 = vmax.f32 %v290, %v524
      %v592 = vmax.f32 %v291, %v523
      %v593 = vmax.f32 %v292, %v527
      %v594 = vmax.f32 %v293, %v526
      %v595 = vmax.f32 %v294, %v530
      %v596 = vmax.f32 %v295, %v529
      %v597 = vmax.f32 %v296, %v533
      %v598 = vmax.f32 %v297, %v532
      %v599 = vmax.f32 %v298, %v536
      %v600 = vmax.f32 %v299, %v535
      %v601 = vmax.f32 %v300, %v539
      %v602 = vmax.f32 %v301, %v538
      %v603 = vmax.f32 %v302, %v542
      %v604 = vmax.f32 %v303, %v541
      %v605 = vmax.f32 %v304, %v545
      %v606 = vmax.f32 %v305, %v544
      %v607 = vmax.f32 %v306, %v548
      %v608 = vmax.f32 %v307, %v547
      %v609 = vmax.f32 %v308, %v551
      %v610 = vmax.f32 %v309, %v550
      %v611 = vmax.f32 %v310, %v554
      %v612 = vmax.f32 %v311, %v553
      %v613 = vmax.f32 %v312, %v557
      %v614 = vmax.f32 %v313, %v556
      %v615 = vmax.f32 %v314, %v560
      %v616 = vmax.f32 %v315, %v559
      %v617 = vmax.f32 %v589, %v290
      %v618 = vmax.f32 %v590, %v291
      %v619 = vmax.f32 %v591, %v292
      %v620 = vmax.f32 %v592, %v293
      %v621 = vmax.f32 %v593, %v294
      %v622 = vmax.f32 %v594, %v295
      %v623 = vmax.f32 %v595, %v296
      %v624 = vmax.f32 %v596, %v297
      %v625 = vmax.f32 %v597, %v298
      %v626 = vmax.f32 %v598, %v299
      %v627 = vmax.f32 %v599, %v300
      %v628 = vmax.f32 %v600, %v301
      %v629 = vmax.f32 %v601, %v302
      %v630 = vmax.f32 %v602, %v303
      %v631 = vmax.f32 %v603, %v304
      %v632 = vmax.f32 %v604, %v305
      %v633 = vmax.f32 %v605, %v306
      %v634 = vmax.f32 %v606, %v307
      %v635 = vmax.f32 %v607, %v308
      %v636 = vmax.f32 %v608, %v309
      %v637 = vmax.f32 %v609, %v310
      %v638 = vmax.f32 %v610, %v311
      %v639 = vmax.f32 %v611, %v312
      %v640 = vmax.f32 %v612, %v313
      %v641 = vmax.f32 %v613, %v314
      %v642 = vmax.f32 %v614, %v315
      %v643 = vmax.f32 %v615, %v316
      %v644 = vmax.f32 %v616, %v317
      %v647 = vrot.slane %v316, 1
      %v648 = vrot.slane %v317, 1
      %v649 = vsel %vm518, %v647, %v648
      %v652 = vmax.f32 %v617, %v524
      %v653 = vmax.f32 %v618, %v523
      %v654 = vmax.f32 %v619, %v527
      %v655 = vmax.f32 %v620, %v526
      %v656 = vmax.f32 %v621, %v530
      %v657 = vmax.f32 %v622, %v529
      %v658 = vmax.f32 %v623, %v533
      %v659 = vmax.f32 %v624, %v532
      %v660 = vmax.f32 %v625, %v536
      %v661 = vmax.f32 %v626, %v535
      %v662 = vmax.f32 %v627, %v539
      %v663 = vmax.f32 %v628, %v538
      %v664 = vmax.f32 %v629, %v542
      %v665 = vmax.f32 %v630, %v541
      %v666 = vmax.f32 %v631, %v545
      %v667 = vmax.f32 %v632, %v544
      %v668 = vmax.f32 %v633, %v548
      %v669 = vmax.f32 %v634, %v547
      %v670 = vmax.f32 %v635, %v551
      %v671 = vmax.f32 %v636, %v550
      %v672 = vmax.f32 %v637, %v554
      %v673 = vmax.f32 %v638, %v553
      %v674 = vmax.f32 %v639, %v557
      %v675 = vmax.f32 %v640, %v556
      %v676 = vmax.f32 %v641, %v560
      %v677 = vmax.f32 %v642, %v559
      %v678 = vmax.f32 %v643, %v649
      %v679 = vmax.f32 %v644, %v648
      %v680 = vmax.f32 %v652, %v348
      %v681 = vmax.f32 %v653, %v349
      %v682 = vmax.f32 %v654, %v350
      %v683 = vmax.f32 %v655, %v351
      %v684 = vmax.f32 %v656, %v352
      %v685 = vmax.f32 %v657, %v353
      %v686 = vmax.f32 %v658, %v354
      %v687 = vmax.f32 %v659, %v355
      %v688 = vmax.f32 %v660, %v356
      %v689 = vmax.f32 %v661, %v357
      %v690 = vmax.f32 %v662, %v358
      %v691 = vmax.f32 %v663, %v359
      %v692 = vmax.f32 %v664, %v360
      %v693 = vmax.f32 %v665, %v361
      %v694 = vmax.f32 %v666, %v362
      %v695 = vmax.f32 %v667, %v363
      %v696 = vmax.f32 %v668, %v364
      %v697 = vmax.f32 %v669, %v365
      %v698 = vmax.f32 %v670, %v366
      %v699 = vmax.f32 %v671, %v367
      %v700 = vmax.f32 %v672, %v368
      %v701 = vmax.f32 %v673, %v369
      %v702 = vmax.f32 %v674, %v370
      %v703 = vmax.f32 %v675, %v371
      %v704 = vmax.f32 %v676, %v372
      %v705 = vmax.f32 %v677, %v373
      %v706 = vmax.f32 %v678, %v374
      %v707 = vmax.f32 %v679, %v375
      %v708 = vmax.f32 %v680, %v350
      %v709 = vmax.f32 %v681, %v351
      %v710 = vmax.f32 %v682, %v352
      %v711 = vmax.f32 %v683, %v353
      %v712 = vmax.f32 %v684, %v354
      %v713 = vmax.f32 %v685, %v355
      %v714 = vmax.f32 %v686, %v356
      %v715 = vmax.f32 %v687, %v357
      %v716 = vmax.f32 %v688, %v358
      %v717 = vmax.f32 %v689, %v359
      %v718 = vmax.f32 %v690, %v360
      %v719 = vmax.f32 %v691, %v361
      %v720 = vmax.f32 %v692, %v362
      %v721 = vmax.f32 %v693, %v363
      %v722 = vmax.f32 %v694, %v364
      %v723 = vmax.f32 %v695, %v365
      %v724 = vmax.f32 %v696, %v366
      %v725 = vmax.f32 %v697, %v367
      %v726 = vmax.f32 %v698, %v368
      %v727 = vmax.f32 %v699, %v369
      %v728 = vmax.f32 %v700, %v370
      %v729 = vmax.f32 %v701, %v371
      %v730 = vmax.f32 %v702, %v372
      %v731 = vmax.f32 %v703, %v373
      %v732 = vmax.f32 %v704, %v374
      %v733 = vmax.f32 %v705, %v375
      %v734 = vmax.f32 %v706, %v376
      %v735 = vmax.f32 %v707, %v377
      %v736 = vmax.f32 %v708, %v406
      %v737 = vmax.f32 %v709, %v407
      %v738 = vmax.f32 %v710, %v408
      %v739 = vmax.f32 %v711, %v409
      %v740 = vmax.f32 %v712, %v410
      %v741 = vmax.f32 %v713, %v411
      %v742 = vmax.f32 %v714, %v412
      %v743 = vmax.f32 %v715, %v413
      %v744 = vmax.f32 %v716, %v414
      %v745 = vmax.f32 %v717, %v415
      %v746 = vmax.f32 %v718, %v416
      %v747 = vmax.f32 %v719, %v417
      %v748 = vmax.f32 %v720, %v418
      %v749 = vmax.f32 %v721, %v419
      %v750 = vmax.f32 %v722, %v420
      %v751 = vmax.f32 %v723, %v421
      %v752 = vmax.f32 %v724, %v422
      %v753 = vmax.f32 %v725, %v423
      %v754 = vmax.f32 %v726, %v424
      %v755 = vmax.f32 %v727, %v425
      %v756 = vmax.f32 %v728, %v426
      %v757 = vmax.f32 %v729, %v427
      %v758 = vmax.f32 %v730, %v428
      %v759 = vmax.f32 %v731, %v429
      %v760 = vmax.f32 %v732, %v430
      %v761 = vmax.f32 %v733, %v431
      %v762 = vmax.f32 %v734, %v432
      %v763 = vmax.f32 %v735, %v433
      %v792 = vrot.slane %v406, 1
      %v793 = vrot.slane %v407, 1
      %v794 = vsel %vm518, %v792, %v793
      %v795 = vrot.slane %v408, 1
      %v796 = vrot.slane %v409, 1
      %v797 = vsel %vm518, %v795, %v796
      %v798 = vrot.slane %v410, 1
      %v799 = vrot.slane %v411, 1
      %v800 = vsel %vm518, %v798, %v799
      %v801 = vrot.slane %v412, 1
      %v802 = vrot.slane %v413, 1
      %v803 = vsel %vm518, %v801, %v802
      %v804 = vrot.slane %v414, 1
      %v805 = vrot.slane %v415, 1
      %v806 = vsel %vm518, %v804, %v805
      %v807 = vrot.slane %v416, 1
      %v808 = vrot.slane %v417, 1
      %v809 = vsel %vm518, %v807, %v808
      %v810 = vrot.slane %v418, 1
      %v811 = vrot.slane %v419, 1
      %v812 = vsel %vm518, %v810, %v811
      %v813 = vrot.slane %v420, 1
      %v814 = vrot.slane %v421, 1
      %v815 = vsel %vm518, %v813, %v814
      %v816 = vrot.slane %v422, 1
      %v817 = vrot.slane %v423, 1
      %v818 = vsel %vm518, %v816, %v817
      %v819 = vrot.slane %v424, 1
      %v820 = vrot.slane %v425, 1
      %v821 = vsel %vm518, %v819, %v820
      %v822 = vrot.slane %v426, 1
      %v823 = vrot.slane %v427, 1
      %v824 = vsel %vm518, %v822, %v823
      %v825 = vrot.slane %v428, 1
      %v826 = vrot.slane %v429, 1
      %v827 = vsel %vm518, %v825, %v826
      %v828 = vrot.slane %v430, 1
      %v829 = vrot.slane %v431, 1
      %v830 = vsel %vm518, %v828, %v829
      %v831 = vrot.slane %v432, 1
      %v832 = vrot.slane %v433, 1
      %v833 = vsel %vm518, %v831, %v832
      %v862 = vmax.f32 %v736, %v794
      %v863 = vmax.f32 %v737, %v793
      %v864 = vmax.f32 %v738, %v797
      %v865 = vmax.f32 %v739, %v796
      %v866 = vmax.f32 %v740, %v800
      %v867 = vmax.f32 %v741, %v799
      %v868 = vmax.f32 %v742, %v803
      %v869 = vmax.f32 %v743, %v802
      %v870 = vmax.f32 %v744, %v806
      %v871 = vmax.f32 %v745, %v805
      %v872 = vmax.f32 %v746, %v809
      %v873 = vmax.f32 %v747, %v808
      %v874 = vmax.f32 %v748, %v812
      %v875 = vmax.f32 %v749, %v811
      %v876 = vmax.f32 %v750, %v815
      %v877 = vmax.f32 %v751, %v814
      %v878 = vmax.f32 %v752, %v818
      %v879 = vmax.f32 %v753, %v817
      %v880 = vmax.f32 %v754, %v821
      %v881 = vmax.f32 %v755, %v820
      %v882 = vmax.f32 %v756, %v824
      %v883 = vmax.f32 %v757, %v823
      %v884 = vmax.f32 %v758, %v827
      %v885 = vmax.f32 %v759, %v826
      %v886 = vmax.f32 %v760, %v830
      %v887 = vmax.f32 %v761, %v829
      %v888 = vmax.f32 %v762, %v833
      %v889 = vmax.f32 %v763, %v832
      %v890 = vmax.f32 %v862, %v462
      %v891 = vmax.f32 %v863, %v463
      %v892 = vmax.f32 %v864, %v464
      %v893 = vmax.f32 %v865, %v465
      %v894 = vmax.f32 %v866, %v466
      %v895 = vmax.f32 %v867, %v467
      %v896 = vmax.f32 %v868, %v468
      %v897 = vmax.f32 %v869, %v469
      %v898 = vmax.f32 %v870, %v470
      %v899 = vmax.f32 %v871, %v471
      %v900 = vmax.f32 %v872, %v472
      %v901 = vmax.f32 %v873, %v473
      %v902 = vmax.f32 %v874, %v474
      %v903 = vmax.f32 %v875, %v475
      %v904 = vmax.f32 %v876, %v476
      %v905 = vmax.f32 %v877, %v477
      %v906 = vmax.f32 %v878, %v478
      %v907 = vmax.f32 %v879, %v479
      %v908 = vmax.f32 %v880, %v480
      %v909 = vmax.f32 %v881, %v481
      %v910 = vmax.f32 %v882, %v482
      %v911 = vmax.f32 %v883, %v483
      %v912 = vmax.f32 %v884, %v484
      %v913 = vmax.f32 %v885, %v485
      %v914 = vmax.f32 %v886, %v486
      %v915 = vmax.f32 %v887, %v487
      %v916 = vmax.f32 %v888, %v488
      %v917 = vmax.f32 %v889, %v489
      %v918 = vpack.c.bf16 %v891, %v890
      %v919 = vpack.c.bf16 %v893, %v892
      %v920 = vpack.c.bf16 %v895, %v894
      %v921 = vpack.c.bf16 %v897, %v896
      %v922 = vpack.c.bf16 %v899, %v898
      %v923 = vpack.c.bf16 %v901, %v900
      %v924 = vpack.c.bf16 %v903, %v902
      %v925 = vpack.c.bf16 %v905, %v904
      %v926 = vpack.c.bf16 %v907, %v906
      %v927 = vpack.c.bf16 %v909, %v908
      %v928 = vpack.c.bf16 %v911, %v910
      %v929 = vpack.c.bf16 %v913, %v912
      %v930 = vpack.c.bf16 %v915, %v914
      %v931 = vpack.c.bf16 %v917, %v916
      %v946 = vunpack.c.l.b16 %v918
      %v947 = vunpack.c.h.b16 %v918
      %v948 = vunpack.c.l.b16 %v919
      %v949 = vunpack.c.h.b16 %v919
      %v950 = vunpack.c.l.b16 %v920
      %v951 = vunpack.c.h.b16 %v920
      %v952 = vunpack.c.l.b16 %v921
      %v953 = vunpack.c.h.b16 %v921
      %v954 = vunpack.c.l.b16 %v922
      %v955 = vunpack.c.h.b16 %v922
      %v956 = vunpack.c.l.b16 %v923
      %v957 = vunpack.c.h.b16 %v923
      %v958 = vunpack.c.l.b16 %v924
      %v959 = vunpack.c.h.b16 %v924
      %v960 = vunpack.c.l.b16 %v925
      %v961 = vunpack.c.h.b16 %v925
      %v962 = vunpack.c.l.b16 %v926
      %v963 = vunpack.c.h.b16 %v926
      %v964 = vunpack.c.l.b16 %v927
      %v965 = vunpack.c.h.b16 %v927
      %v966 = vunpack.c.l.b16 %v928
      %v967 = vunpack.c.h.b16 %v928
      %v968 = vunpack.c.l.b16 %v929
      %v969 = vunpack.c.h.b16 %v929
      %v970 = vunpack.c.l.b16 %v930
      %v971 = vunpack.c.h.b16 %v930
      %v972 = vunpack.c.l.b16 %v931
      %v973 = vunpack.c.h.b16 %v931
      %v974 = vpack.c.b16 %v946, %v946
      %v975 = vpack.c.b16 %v947, %v947
      %v976 = vpack.c.b16 %v948, %v948
      %v977 = vpack.c.b16 %v949, %v949
      %v978 = vpack.c.b16 %v950, %v950
      %v979 = vpack.c.b16 %v951, %v951
      %v980 = vpack.c.b16 %v952, %v952
      %v981 = vpack.c.b16 %v953, %v953
      %v982 = vpack.c.b16 %v954, %v954
      %v983 = vpack.c.b16 %v955, %v955
      %v984 = vpack.c.b16 %v956, %v956
      %v985 = vpack.c.b16 %v957, %v957
      %v986 = vpack.c.b16 %v958, %v958
      %v987 = vpack.c.b16 %v959, %v959
      %v988 = vpack.c.b16 %v960, %v960
      %v989 = vpack.c.b16 %v961, %v961
      %v990 = vpack.c.b16 %v962, %v962
      %v991 = vpack.c.b16 %v963, %v963
      %v992 = vpack.c.b16 %v964, %v964
      %v993 = vpack.c.b16 %v965, %v965
      %v994 = vpack.c.b16 %v966, %v966
      %v995 = vpack.c.b16 %v967, %v967
      %v996 = vpack.c.b16 %v968, %v968
      %v997 = vpack.c.b16 %v969, %v969
      %v998 = vpack.c.b16 %v970, %v970
      %v999 = vpack.c.b16 %v971, %v971
      %v1000 = vpack.c.b16 %v972, %v972
      %v1001 = vpack.c.b16 %v973, %v973
      %vm1030 = vcmask 257024
      %1031 = vst.msk [vmem:[%s257] sm:$0xf] %vm1030, %v974
      %vm1032 = vcmask 256000
      %1033 = vst.msk [vmem:[%s257 + $0x4] sm:$0x7] %vm1032, %v975
      %1034 = vst.msk [vmem:[%s257 + $0x8] sm:$0xf] %vm1030, %v976
      %1035 = vst.msk [vmem:[%s257 + $0xc] sm:$0x7] %vm1032, %v977
      %1036 = vst.msk [vmem:[%s257 + $0x10] sm:$0xf] %vm1030, %v978
      %1037 = vst.msk [vmem:[%s257 + $0x14] sm:$0x7] %vm1032, %v979
      %1038 = vst.msk [vmem:[%s257 + $0x18] sm:$0xf] %vm1030, %v980
      %1039 = vst.msk [vmem:[%s257 + $0x1c] sm:$0x7] %vm1032, %v981
      %1040 = vst.msk [vmem:[%s257 + $0x20] sm:$0xf] %vm1030, %v982
      %1041 = vst.msk [vmem:[%s257 + $0x24] sm:$0x7] %vm1032, %v983
      %1042 = vst.msk [vmem:[%s257 + $0x28] sm:$0xf] %vm1030, %v984
      %1043 = vst.msk [vmem:[%s257 + $0x2c] sm:$0x7] %vm1032, %v985
      %1044 = vst.msk [vmem:[%s257 + $0x30] sm:$0xf] %vm1030, %v986
      %1045 = vst.msk [vmem:[%s257 + $0x34] sm:$0x7] %vm1032, %v987
      %1046 = vst.msk [vmem:[%s257 + $0x38] sm:$0xf] %vm1030, %v988
      %1047 = vst.msk [vmem:[%s257 + $0x3c] sm:$0x7] %vm1032, %v989
      %1048 = vst.msk [vmem:[%s257 + $0x40] sm:$0xf] %vm1030, %v990
      %1049 = vst.msk [vmem:[%s257 + $0x44] sm:$0x7] %vm1032, %v991
      %1050 = vst.msk [vmem:[%s257 + $0x48] sm:$0xf] %vm1030, %v992
      %1051 = vst.msk [vmem:[%s257 + $0x4c] sm:$0x7] %vm1032, %v993
      %1052 = vst.msk [vmem:[%s257 + $0x50] sm:$0xf] %vm1030, %v994
      %1053 = vst.msk [vmem:[%s257 + $0x54] sm:$0x7] %vm1032, %v995
      %1054 = vst.msk [vmem:[%s257 + $0x58] sm:$0xf] %vm1030, %v996
      %1055 = vst.msk [vmem:[%s257 + $0x5c] sm:$0x7] %vm1032, %v997
      %1056 = vst.msk [vmem:[%s257 + $0x60] sm:$0xf] %vm1030, %v998
      %1057 = vst.msk [vmem:[%s257 + $0x64] sm:$0x7] %vm1032, %v999
      %1058 = vst.msk [vmem:[%s257 + $0x68] sm:$0xf] %vm1030, %v1000
      %1059 = vst.msk [vmem:[%s257 + $0x6c] sm:$0x7] %vm1032, %v1001
      %p1060 = scmp.lt.s32.totalorder %s15, 1
      %s1061 = scalar_select %p1060, %s15, 1
      %s1062 = smul.addr %s1061, 28
      %s1063 = smul.addr %s1062, 4
      %s1064 = scalar_lea.vmem %s4, %s1063
      // Predicated region
      $region37: #{densenet_forward.13} parent=35 // pred_check
        %p1065 = pneg %p137
      $region38: #{densenet_forward.13} parent=35 // pred_check_branch
        %1067 = sbr.rel (%p1065) target = $region40
      $region39: #{densenet_forward.13} parent=35 // pred_region
        _
      $region40: #{densenet_forward.13} parent=35 // pred_fallthru
        _
    $region36: #{densenet_forward.13} parent=5 // pred_fallthru
      _
    %p1068 = scmp.le.s32.totalorder 2, %s10
    // Predicated region
    $region41: #{densenet_forward.13} parent=5 // pred_check
      %p1069 = pneg %p1068
    $region42: #{densenet_forward.13} parent=5 // pred_check_branch
      %1071 = sbr.rel (%p1069) target = $region44
    $region43: #{densenet_forward.13} parent=5 // pred_region
      %s1072 = ssub.s32 %s10, 2
      // Predicated region
      $region45: #{densenet_forward.13} parent=43 // pred_check
        %p1073 = pneg %p143
      $region46: #{densenet_forward.13} parent=43 // pred_check_branch
        %1075 = sbr.rel (%p1073) target = $region48
      $region47: #{densenet_forward.13} parent=43 // pred_region
        %p1076 = scmp.lt.s32.totalorder %s16, 1
        %s1077 = scalar_select %p1076, %s16, 1
        %s1078 = smul.addr %s1077, 28
        %s1079 = smul.addr %s1078, 4
        %s1080 = scalar_lea.vmem %s4, %s1079
      $region48: #{densenet_forward.13} parent=43 // pred_fallthru
        _
    $region44: #{densenet_forward.13} parent=5 // pred_fallthru
      _
  $region6: #{densenet_forward.13} parent=0 // loop_footer
    %s14 = sadd.s32 1, %s10
  $region7: #{densenet_forward.13} parent=0 // loop_footer_branch
    %9 = sbr.rel target = $region3
  $region8: #{densenet_forward.13} parent=0 // loop_exit
    _

// kernel: densenet_forward.14
$region0: #{densenet_forward.14}
  #allocation0 [shape = 'u32[]', space=smem, size = 0x4, offset = 0x4, fixed_abs, tag = 'smem constant byte address 0x4 - core index']
  #allocation1 [shape = 'u32[144,128]{1,0:T(1,128)}', space=vmem, size = 0x12000, scoped, tag = 'internal scratch']
  %s0 = inlined_call_operand.vmem [shape: bf16[392,64], index: 0, kind: input, shape index: {}]
  %s1 = inlined_call_operand.vmem [shape: f32[1,64], index: 1, kind: input, shape index: {}]
  %s2 = inlined_call_operand.vmem [shape: f32[1,64], index: 2, kind: input, shape index: {}]
  %s3 = inlined_call_operand.vmem [shape: bf16[64,64], index: 3, kind: input, shape index: {}]
  %s4 = inlined_call_operand.vmem [shape: f32[1,64], index: 4, kind: input, shape index: {}]
  %s5 = inlined_call_operand.vmem [shape: f32[1,64], index: 5, kind: input, shape index: {}]
  %s6 = inlined_call_operand.vmem [shape: bf16[392,64], index: 6, kind: output, shape index: {}]
  %s7 = sld [smem:[#allocation0]]
  $region34: #{densenet_forward.14} parent=0
    _
  %s9 = ssub.s32 1, %s7
  %s10 = scalar_select 0, %s9, %s7
  // Predicated region
  $region2: #{densenet_forward.14} parent=0 // pred_check
    _
  $region3: #{densenet_forward.14} parent=0 // pred_check_branch
    %12 = sbr.rel (0) target = $region5
  $region4: #{densenet_forward.14} parent=0 // pred_region
    _
  $region5: #{densenet_forward.14} parent=0 // pred_fallthru
    _
  // Predicated region
  $region6: #{densenet_forward.14} parent=0 // pred_check
    _
  $region7: #{densenet_forward.14} parent=0 // pred_check_branch
    %14 = sbr.rel (0) target = $region9
  $region8: #{densenet_forward.14} parent=0 // pred_region
    _
  $region9: #{densenet_forward.14} parent=0 // pred_fallthru
    _
  // Predicated region
  $region10: #{densenet_forward.14} parent=0 // pred_check
    _
  $region11: #{densenet_forward.14} parent=0 // pred_check_branch
    %16 = sbr.rel (0) target = $region13
  $region12: #{densenet_forward.14} parent=0 // pred_region
    _
  $region13: #{densenet_forward.14} parent=0 // pred_fallthru
    _
  // Predicated region
  $region14: #{densenet_forward.14} parent=0 // pred_check
    _
  $region15: #{densenet_forward.14} parent=0 // pred_check_branch
    %18 = sbr.rel (0) target = $region17
  $region16: #{densenet_forward.14} parent=0 // pred_region
    _
  $region17: #{densenet_forward.14} parent=0 // pred_fallthru
    _
  // Predicated region
  $region18: #{densenet_forward.14} parent=0 // pred_check
    _
  $region19: #{densenet_forward.14} parent=0 // pred_check_branch
    %20 = sbr.rel (0) target = $region21
  $region20: #{densenet_forward.14} parent=0 // pred_region
    _
  $region21: #{densenet_forward.14} parent=0 // pred_fallthru
    _
  // Predicated region
  $region22: #{densenet_forward.14} parent=0 // pred_check
    _
  $region23: #{densenet_forward.14} parent=0 // pred_check_branch
    %22 = sbr.rel (0) target = $region25
  $region24: #{densenet_forward.14} parent=0 // pred_region
    _
  $region25: #{densenet_forward.14} parent=0 // pred_fallthru
    _
  %v24 = vld [vmem:[%s0] sm:$0xf]
  %v25 = vld [vmem:[%s0 + $0x4] sm:$0xf]
  %v26 = vld [vmem:[%s0 + $0x8] sm:$0xf]
  %v27 = vld [vmem:[%s0 + $0xc] sm:$0xf]
  %v28 = vld [vmem:[%s0 + $0x10] sm:$0xf]
  %v29 = vld [vmem:[%s0 + $0x14] sm:$0xf]
  %v30 = vld [vmem:[%s0 + $0x18] sm:$0xf]
  %v31 = vld [vmem:[%s0 + $0x1c] sm:$0xf]
  %v32 = vld [vmem:[%s0 + $0x20] sm:$0xf]
  %v33 = vld [vmem:[%s0 + $0x24] sm:$0xf]
  %v34 = vld [vmem:[%s0 + $0x28] sm:$0xf]
  %v35 = vld [vmem:[%s0 + $0x2c] sm:$0xf]
  %v36 = vld [vmem:[%s0 + $0x30] sm:$0xf]
  %v37 = vld [vmem:[%s0 + $0x34] sm:$0xf]
  %v38 = vld [vmem:[%s0 + $0x38] sm:$0xf]
  %v39 = vld [vmem:[%s0 + $0x3c] sm:$0xf]
  %v40 = vld [vmem:[%s0 + $0x40] sm:$0xf]
  %v41 = vld [vmem:[%s0 + $0x44] sm:$0xf]
  %v42 = vld [vmem:[%s0 + $0x48] sm:$0xf]
  %v43 = vld [vmem:[%s0 + $0x4c] sm:$0xf]
  %v44 = vld [vmem:[%s0 + $0x50] sm:$0xf]
  %v45 = vld [vmem:[%s0 + $0x54] sm:$0xf]
  %v46 = vld [vmem:[%s0 + $0x58] sm:$0xf]
  %v47 = vld [vmem:[%s0 + $0x5c] sm:$0xf]
  %v48 = vld [vmem:[%s0 + $0x60] sm:$0xf]
  %v49 = vld [vmem:[%s0 + $0x64] sm:$0xf]
  %v50 = vld [vmem:[%s0 + $0x68] sm:$0xf]
  %v51 = vld [vmem:[%s0 + $0x6c] sm:$0xf]
  %v52 = vld [vmem:[%s0 + $0x70] sm:$0xf]
  %v53 = vld [vmem:[%s0 + $0x74] sm:$0xf]
  %v54 = vld [vmem:[%s0 + $0x78] sm:$0xf]
  %v55 = vld [vmem:[%s0 + $0x7c] sm:$0xf]
  %v56 = vld [vmem:[%s0 + $0x80] sm:$0xf]
  %v57 = vld [vmem:[%s0 + $0x84] sm:$0xf]
  %v58 = vld [vmem:[%s0 + $0x88] sm:$0xf]
  %v59 = vld [vmem:[%s0 + $0x8c] sm:$0xf]
  %v60 = vld [vmem:[%s0 + $0x90] sm:$0xf]
  %v61 = vld [vmem:[%s0 + $0x94] sm:$0xf]
  %v62 = vld [vmem:[%s0 + $0x98] sm:$0xf]
  %v63 = vld [vmem:[%s0 + $0x9c] sm:$0xf]
  %v64 = vld [vmem:[%s0 + $0xa0] sm:$0xf]
  %v65 = vld [vmem:[%s0 + $0xa4] sm:$0xf]
  %v66 = vld [vmem:[%s0 + $0xa8] sm:$0xf]
  %v67 = vld [vmem:[%s0 + $0xac] sm:$0xf]
  %v68 = vld [vmem:[%s0 + $0xb0] sm:$0xf]
  %v69 = vld [vmem:[%s0 + $0xb4] sm:$0xf]
  %v70 = vld [vmem:[%s0 + $0xb8] sm:$0xf]
  %v71 = vld [vmem:[%s0 + $0xbc] sm:$0xf]
  %v72 = vld [vmem:[%s0 + $0xc0] sm:$0xf]
  %v73 = vld [vmem:[%s1] sm:$0x1]
  %v74 = vunpack.c.l.bf16 %v24
  %v75 = vunpack.c.l.bf16 %v25
  %v76 = vunpack.c.l.bf16 %v26
  %v77 = vunpack.c.l.bf16 %v27
  %v78 = vunpack.c.l.bf16 %v28
  %v79 = vunpack.c.l.bf16 %v29
  %v80 = vunpack.c.l.bf16 %v30
  %v81 = vunpack.c.l.bf16 %v31
  %v82 = vunpack.c.l.bf16 %v32
  %v83 = vunpack.c.l.bf16 %v33
  %v84 = vunpack.c.l.bf16 %v34
  %v85 = vunpack.c.l.bf16 %v35
  %v86 = vunpack.c.l.bf16 %v36
  %v87 = vunpack.c.l.bf16 %v37
  %v88 = vunpack.c.l.bf16 %v38
  %v89 = vunpack.c.l.bf16 %v39
  %v90 = vunpack.c.l.bf16 %v40
  %v91 = vunpack.c.l.bf16 %v41
  %v92 = vunpack.c.l.bf16 %v42
  %v93 = vunpack.c.l.bf16 %v43
  %v94 = vunpack.c.l.bf16 %v44
  %v95 = vunpack.c.l.bf16 %v45
  %v96 = vunpack.c.l.bf16 %v46
  %v97 = vunpack.c.l.bf16 %v47
  %v98 = vunpack.c.l.bf16 %v48
  %v99 = vunpack.c.l.bf16 %v49
  %v100 = vunpack.c.l.bf16 %v50
  %v101 = vunpack.c.l.bf16 %v51
  %v102 = vunpack.c.l.bf16 %v52
  %v103 = vunpack.c.l.bf16 %v53
  %v104 = vunpack.c.l.bf16 %v54
  %v105 = vunpack.c.l.bf16 %v55
  %v106 = vunpack.c.l.bf16 %v56
  %v107 = vunpack.c.l.bf16 %v57
  %v108 = vunpack.c.l.bf16 %v58
  %v109 = vunpack.c.l.bf16 %v59
  %v110 = vunpack.c.l.bf16 %v60
  %v111 = vunpack.c.l.bf16 %v61
  %v112 = vunpack.c.l.bf16 %v62
  %v113 = vunpack.c.l.bf16 %v63
  %v114 = vunpack.c.l.bf16 %v64
  %v115 = vunpack.c.l.bf16 %v65
  %v116 = vunpack.c.l.bf16 %v66
  %v117 = vunpack.c.l.bf16 %v67
  %v118 = vunpack.c.l.bf16 %v68
  %v119 = vunpack.c.l.bf16 %v69
  %v120 = vunpack.c.l.bf16 %v70
  %v121 = vunpack.c.l.bf16 %v71
  %v122 = vunpack.c.l.bf16 %v72
  %v124 = vlaneseq
  %v125 = vshrl.u32 %v124, 7
  %v126 = vsub.s32 0, %v125
  %v127 = vrot.slane %v73, %v126
  %v129 = vmul.f32 %v74, %v127
  %v130 = vmul.f32 %v75, %v127
  %v131 = vmul.f32 %v76, %v127
  %v132 = vmul.f32 %v77, %v127
  %v133 = vmul.f32 %v78, %v127
  %v134 = vmul.f32 %v79, %v127
  %v135 = vmul.f32 %v80, %v127
  %v136 = vmul.f32 %v81, %v127
  %v137 = vmul.f32 %v82, %v127
  %v138 = vmul.f32 %v83, %v127
  %v139 = vmul.f32 %v84, %v127
  %v140 = vmul.f32 %v85, %v127
  %v141 = vmul.f32 %v86, %v127
  %v142 = vmul.f32 %v87, %v127
  %v143 = vmul.f32 %v88, %v127
  %v144 = vmul.f32 %v89, %v127
  %v145 = vmul.f32 %v90, %v127
  %v146 = vmul.f32 %v91, %v127
  %v147 = vmul.f32 %v92, %v127
  %v148 = vmul.f32 %v93, %v127
  %v149 = vmul.f32 %v94, %v127
  %v150 = vmul.f32 %v95, %v127
  %v151 = vmul.f32 %v96, %v127
  %v152 = vmul.f32 %v97, %v127
  %v153 = vmul.f32 %v98, %v127
  %v154 = vmul.f32 %v99, %v127
  %v155 = vmul.f32 %v100, %v127
  %v156 = vmul.f32 %v101, %v127
  %v157 = vmul.f32 %v102, %v127
  %v158 = vmul.f32 %v103, %v127
  %v159 = vmul.f32 %v104, %v127
  %v160 = vmul.f32 %v105, %v127
  %v161 = vmul.f32 %v106, %v127
  %v162 = vmul.f32 %v107, %v127
  %v163 = vmul.f32 %v108, %v127
  %v164 = vmul.f32 %v109, %v127
  %v165 = vmul.f32 %v110, %v127
  %v166 = vmul.f32 %v111, %v127
  %v167 = vmul.f32 %v112, %v127
  %v168 = vmul.f32 %v113, %v127
  %v169 = vmul.f32 %v114, %v127
  %v170 = vmul.f32 %v115, %v127
  %v171 = vmul.f32 %v116, %v127
  %v172 = vmul.f32 %v117, %v127
  %v173 = vmul.f32 %v118, %v127
  %v174 = vmul.f32 %v119, %v127
  %v175 = vmul.f32 %v120, %v127
  %v176 = vmul.f32 %v121, %v127
  %v177 = vmul.f32 %v122, %v127
  %v178 = vld [vmem:[%s2] sm:$0x1]
  %v180 = vlaneseq
  %v181 = vshrl.u32 %v180, 7
  %v182 = vsub.s32 0, %v181
  %v183 = vrot.slane %v178, %v182
  %v185 = vadd.f32 %v129, %v183
  %v186 = vadd.f32 %v130, %v183
  %v187 = vadd.f32 %v131, %v183
  %v188 = vadd.f32 %v132, %v183
  %v189 = vadd.f32 %v133, %v183
  %v190 = vadd.f32 %v134, %v183
  %v191 = vadd.f32 %v135, %v183
  %v192 = vadd.f32 %v136, %v183
  %v193 = vadd.f32 %v137, %v183
  %v194 = vadd.f32 %v138, %v183
  %v195 = vadd.f32 %v139, %v183
  %v196 = vadd.f32 %v140, %v183
  %v197 = vadd.f32 %v141, %v183
  %v198 = vadd.f32 %v142, %v183
  %v199 = vadd.f32 %v143, %v183
  %v200 = vadd.f32 %v144, %v183
  %v201 = vadd.f32 %v145, %v183
  %v202 = vadd.f32 %v146, %v183
  %v203 = vadd.f32 %v147, %v183
  %v204 = vadd.f32 %v148, %v183
  %v205 = vadd.f32 %v149, %v183
  %v206 = vadd.f32 %v150, %v183
  %v207 = vadd.f32 %v151, %v183
  %v208 = vadd.f32 %v152, %v183
  %v209 = vadd.f32 %v153, %v183
  %v210 = vadd.f32 %v154, %v183
  %v211 = vadd.f32 %v155, %v183
  %v212 = vadd.f32 %v156, %v183
  %v213 = vadd.f32 %v157, %v183
  %v214 = vadd.f32 %v158, %v183
  %v215 = vadd.f32 %v159, %v183
  %v216 = vadd.f32 %v160, %v183
  %v217 = vadd.f32 %v161, %v183
  %v218 = vadd.f32 %v162, %v183
  %v219 = vadd.f32 %v163, %v183
  %v220 = vadd.f32 %v164, %v183
  %v221 = vadd.f32 %v165, %v183
  %v222 = vadd.f32 %v166, %v183
  %v223 = vadd.f32 %v167, %v183
  %v224 = vadd.f32 %v168, %v183
  %v225 = vadd.f32 %v169, %v183
  %v226 = vadd.f32 %v170, %v183
  %v227 = vadd.f32 %v171, %v183
  %v228 = vadd.f32 %v172, %v183
  %v229 = vadd.f32 %v173, %v183
  %v230 = vadd.f32 %v174, %v183
  %v231 = vadd.f32 %v175, %v183
  %v232 = vadd.f32 %v176, %v183
  %v233 = vadd.f32 %v177, %v183
  %v234 = vmax.f32 %v185, 0.0
  %v235 = vmax.f32 %v186, 0.0
  %v236 = vmax.f32 %v187, 0.0
  %v237 = vmax.f32 %v188, 0.0
  %v238 = vmax.f32 %v189, 0.0
  %v239 = vmax.f32 %v190, 0.0
  %v240 = vmax.f32 %v191, 0.0
  %v241 = vmax.f32 %v192, 0.0
  %v242 = vmax.f32 %v193, 0.0
  %v243 = vmax.f32 %v194, 0.0
  %v244 = vmax.f32 %v195, 0.0
  %v245 = vmax.f32 %v196, 0.0
  %v246 = vmax.f32 %v197, 0.0
  %v247 = vmax.f32 %v198, 0.0
  %v248 = vmax.f32 %v199, 0.0
  %v249 = vmax.f32 %v200, 0.0
  %v250 = vmax.f32 %v201, 0.0
  %v251 = vmax.f32 %v202, 0.0
  %v252 = vmax.f32 %v203, 0.0
  %v253 = vmax.f32 %v204, 0.0
  %v254 = vmax.f32 %v205, 0.0
  %v255 = vmax.f32 %v206, 0.0
  %v256 = vmax.f32 %v207, 0.0
  %v257 = vmax.f32 %v208, 0.0
  %v258 = vmax.f32 %v209, 0.0
  %v259 = vmax.f32 %v210, 0.0
  %v260 = vmax.f32 %v211, 0.0
  %v261 = vmax.f32 %v212, 0.0
  %v262 = vmax.f32 %v213, 0.0
  %v263 = vmax.f32 %v214, 0.0
  %v264 = vmax.f32 %v215, 0.0
  %v265 = vmax.f32 %v216, 0.0
  %v266 = vmax.f32 %v217, 0.0
  %v267 = vmax.f32 %v218, 0.0
  %v268 = vmax.f32 %v219, 0.0
  %v269 = vmax.f32 %v220, 0.0
  %v270 = vmax.f32 %v221, 0.0
  %v271 = vmax.f32 %v222, 0.0
  %v272 = vmax.f32 %v223, 0.0
  %v273 = vmax.f32 %v224, 0.0
  %v274 = vmax.f32 %v225, 0.0
  %v275 = vmax.f32 %v226, 0.0
  %v276 = vmax.f32 %v227, 0.0
  %v277 = vmax.f32 %v228, 0.0
  %v278 = vmax.f32 %v229, 0.0
  %v279 = vmax.f32 %v230, 0.0
  %v280 = vmax.f32 %v231, 0.0
  %v281 = vmax.f32 %v232, 0.0
  %v282 = vmax.f32 %v233, 0.0
  %v283 = vpack.c.bf16 %v235, %v234
  %v284 = vpack.c.bf16 %v237, %v236
  %v285 = vpack.c.bf16 %v239, %v238
  %v286 = vpack.c.bf16 %v241, %v240
  %v287 = vpack.c.bf16 %v243, %v242
  %v288 = vpack.c.bf16 %v245, %v244
  %v289 = vpack.c.bf16 %v247, %v246
  %v290 = vpack.c.bf16 %v249, %v248
  %v291 = vpack.c.bf16 %v251, %v250
  %v292 = vpack.c.bf16 %v253, %v252
  %v293 = vpack.c.bf16 %v255, %v254
  %v294 = vpack.c.bf16 %v257, %v256
  %v295 = vpack.c.bf16 %v259, %v258
  %v296 = vpack.c.bf16 %v261, %v260
  %v297 = vpack.c.bf16 %v263, %v262
  %v298 = vpack.c.bf16 %v265, %v264
  %v299 = vpack.c.bf16 %v267, %v266
  %v300 = vpack.c.bf16 %v269, %v268
  %v301 = vpack.c.bf16 %v271, %v270
  %v302 = vpack.c.bf16 %v273, %v272
  %v303 = vpack.c.bf16 %v275, %v274
  %v304 = vpack.c.bf16 %v277, %v276
  %v305 = vpack.c.bf16 %v279, %v278
  %v306 = vpack.c.bf16 %v281, %v280
  %v307 = vpack.c.bf16 %v282, %v282
  %v308 = vld [vmem:[%s3] sm:$0xf]
  %v309 = vld [vmem:[%s3 + $0x4] sm:$0xf]
  %v310 = vld [vmem:[%s3 + $0x8] sm:$0xf]
  %v311 = vld [vmem:[%s3 + $0xc] sm:$0xf]
  %v312 = vld [vmem:[%s3 + $0x10] sm:$0xf]
  %v313 = vld [vmem:[%s3 + $0x14] sm:$0xf]
  %v314 = vld [vmem:[%s3 + $0x18] sm:$0xf]
  %v315 = vld [vmem:[%s3 + $0x1c] sm:$0xf]
  %v324 = vunpack.c.l.b16 %v308
  %v325 = vunpack.c.l.b16 %v309
  %v326 = vunpack.c.l.b16 %v310
  %v327 = vunpack.c.l.b16 %v311
  %v328 = vunpack.c.l.b16 %v312
  %v329 = vunpack.c.l.b16 %v313
  %v330 = vunpack.c.l.b16 %v314
  %v331 = vunpack.c.l.b16 %v315
  %v332 = vpack.c.b16 %v325, %v324
  %v333 = vpack.c.b16 %v327, %v326
  %v334 = vpack.c.b16 %v329, %v328
  %v335 = vpack.c.b16 %v331, %v330
  %vm340 = vcmask 523264
  %v342 = vsel %vm340, %v283, 0
  %v345 = vsel %vm340, %v284, 0
  %v348 = vsel %vm340, %v285, 0
  %v351 = vsel %vm340, %v286, 0
  %v354 = vsel %vm340, %v287, 0
  %v357 = vsel %vm340, %v288, 0
  %v360 = vsel %vm340, %v289, 0
  %v363 = vsel %vm340, %v290, 0
  %v366 = vsel %vm340, %v291, 0
  %v369 = vsel %vm340, %v292, 0
  %v372 = vsel %vm340, %v293, 0
  %v375 = vsel %vm340, %v294, 0
  %v378 = vsel %vm340, %v295, 0
  %v381 = vsel %vm340, %v296, 0
  %v384 = vsel %vm340, %v297, 0
  %v387 = vsel %vm340, %v298, 0
  %v390 = vsel %vm340, %v299, 0
  %v393 = vsel %vm340, %v300, 0
  %v396 = vsel %vm340, %v301, 0
  %v399 = vsel %vm340, %v302, 0
  %v402 = vsel %vm340, %v303, 0
  %v405 = vsel %vm340, %v304, 0
  %v408 = vsel %vm340, %v305, 0
  %v411 = vsel %vm340, %v306, 0
  %v414 = vsel %vm340, %v307, 0
  %416 = vmatprep.subr.bf16.mxu0 0
  %417 = vmatpush1.bf16.msra.mxu0 0
  %418 = vmatprep.subr.bf16.mxu0 0
  %419 = vmatpush1.bf16.msra.mxu0 0
  %420 = vmatprep.subr.bf16.mxu0 0
  %421 = vmatpush1.bf16.msra.mxu0 0
  %422 = vmatprep.subr.bf16.mxu0 0
  %423 = vmatpush1.bf16.msra.mxu0 0
  %424 = vmatprep.subr.bf16.mxu0 0
  %425 = vmatpush1.bf16.msra.mxu0 %v335
  %426 = vmatprep.subr.bf16.mxu0 0
  %427 = vmatpush1.bf16.msra.mxu0 %v334
  %428 = vmatprep.subr.bf16.mxu0 0
  %429 = vmatpush1.bf16.msra.mxu0 %v333
  %430 = vmatprep.subr.bf16.mxu0 0
  %431 = vmatpush1.bf16.msra.mxu0 %v332
  %432 = vmatprep.subr.bf16.mxu0 0
  %433 = vmatpush2.bf16.msra.mxu0 0
  %434 = vmatprep.subr.bf16.mxu0 0
  %435 = vmatpush2.bf16.msra.mxu0 0
  %436 = vmatprep.subr.bf16.mxu0 0
  %437 = vmatpush2.bf16.msra.mxu0 0
  %438 = vmatprep.subr.bf16.mxu0 0
  %439 = vmatpush2.bf16.msra.mxu0 0
  %440 = vmatprep.subr.bf16.mxu0 0
  %441 = vmatpush2.bf16.msra.mxu0 0
  %442 = vmatprep.subr.bf16.mxu0 0
  %443 = vmatpush2.bf16.msra.mxu0 0
  %444 = vmatprep.subr.bf16.mxu0 0
  %445 = vmatpush2.bf16.msra.mxu0 0
  %446 = vmatprep.subr.bf16.mxu0 0
  %447 = vmatpush2.bf16.msra.mxu0 0
  %448 = vmatprep.mubr.bf16.mxu0 0
  %449 = vmatmul.mubr.bf16.gmra.mxu0 %v342
  %v450 = vpop.f32.mrf.mxu0
  %v451 = vadd.f32 0.0, %v450
  %v452 = vpop.f32.mrf.mxu0
  %v453 = vpop.f32.mrf.mxu0
  %v454 = vadd.f32 0.0, %v453
  %v455 = vpop.f32.mrf.mxu0
  %456 = vmatprep.mubr.bf16.mxu0 0
  %457 = vmatmul.mubr.bf16.gmra.mxu0 %v345
  %v458 = vpop.f32.mrf.mxu0
  %v459 = vadd.f32 0.0, %v458
  %v460 = vpop.f32.mrf.mxu0
  %v461 = vpop.f32.mrf.mxu0
  %v462 = vadd.f32 0.0, %v461
  %v463 = vpop.f32.mrf.mxu0
  %464 = vmatprep.mubr.bf16.mxu0 0
  %465 = vmatmul.mubr.bf16.gmra.mxu0 %v348
  %v466 = vpop.f32.mrf.mxu0
  %v467 = vadd.f32 0.0, %v466
  %v468 = vpop.f32.mrf.mxu0
  %v469 = vpop.f32.mrf.mxu0
  %v470 = vadd.f32 0.0, %v469
  %v471 = vpop.f32.mrf.mxu0
  %472 = vmatprep.mubr.bf16.mxu0 0
  %473 = vmatmul.mubr.bf16.gmra.mxu0 %v351
  %v474 = vpop.f32.mrf.mxu0
  %v475 = vadd.f32 0.0, %v474
  %v476 = vpop.f32.mrf.mxu0
  %v477 = vpop.f32.mrf.mxu0
  %v478 = vadd.f32 0.0, %v477
  %v479 = vpop.f32.mrf.mxu0
  %480 = vmatprep.mubr.bf16.mxu0 0
  %481 = vmatmul.mubr.bf16.gmra.mxu0 %v354
  %v482 = vpop.f32.mrf.mxu0
  %v483 = vadd.f32 0.0, %v482
  %v484 = vpop.f32.mrf.mxu0
  %v485 = vpop.f32.mrf.mxu0
  %v486 = vadd.f32 0.0, %v485
  %v487 = vpop.f32.mrf.mxu0
  %488 = vmatprep.mubr.bf16.mxu0 0
  %489 = vmatmul.mubr.bf16.gmra.mxu0 %v357
  %v490 = vpop.f32.mrf.mxu0
  %v491 = vadd.f32 0.0, %v490
  %v492 = vpop.f32.mrf.mxu0
  %v493 = vpop.f32.mrf.mxu0
  %v494 = vadd.f32 0.0, %v493
  %v495 = vpop.f32.mrf.mxu0
  %496 = vmatprep.mubr.bf16.mxu0 0
  %497 = vmatmul.mubr.bf16.gmra.mxu0 %v360
  %v498 = vpop.f32.mrf.mxu0
  %v499 = vadd.f32 0.0, %v498
  %v500 = vpop.f32.mrf.mxu0
  %v501 = vpop.f32.mrf.mxu0
  %v502 = vadd.f32 0.0, %v501
  %v503 = vpop.f32.mrf.mxu0
  %504 = vmatprep.mubr.bf16.mxu0 0
  %505 = vmatmul.mubr.bf16.gmra.mxu0 %v363
  %v506 = vpop.f32.mrf.mxu0
  %v507 = vadd.f32 0.0, %v506
  %v508 = vpop.f32.mrf.mxu0
  %v509 = vpop.f32.mrf.mxu0
  %v510 = vadd.f32 0.0, %v509
  %v511 = vpop.f32.mrf.mxu0
  %512 = vmatprep.mubr.bf16.mxu0 0
  %513 = vmatmul.mubr.bf16.gmra.mxu0 %v366
  %v514 = vpop.f32.mrf.mxu0
  %v515 = vadd.f32 0.0, %v514
  %v516 = vpop.f32.mrf.mxu0
  %v517 = vpop.f32.mrf.mxu0
  %v518 = vadd.f32 0.0, %v517
  %v519 = vpop.f32.mrf.mxu0
  %520 = vmatprep.mubr.bf16.mxu0 0
  %521 = vmatmul.mubr.bf16.gmra.mxu0 %v369
  %v522 = vpop.f32.mrf.mxu0
  %v523 = vadd.f32 0.0, %v522
  %v524 = vpop.f32.mrf.mxu0
  %v525 = vpop.f32.mrf.mxu0
  %v526 = vadd.f32 0.0, %v525
  %v527 = vpop.f32.mrf.mxu0
  %528 = vmatprep.mubr.bf16.mxu0 0
  %529 = vmatmul.mubr.bf16.gmra.mxu0 %v372
  %v530 = vpop.f32.mrf.mxu0
  %v531 = vadd.f32 0.0, %v530
  %v532 = vpop.f32.mrf.mxu0
  %v533 = vpop.f32.mrf.mxu0
  %v534 = vadd.f32 0.0, %v533
  %v535 = vpop.f32.mrf.mxu0
  %536 = vmatprep.mubr.bf16.mxu0 0
  %537 = vmatmul.mubr.bf16.gmra.mxu0 %v375
  %v538 = vpop.f32.mrf.mxu0
  %v539 = vadd.f32 0.0, %v538
  %v540 = vpop.f32.mrf.mxu0
  %v541 = vpop.f32.mrf.mxu0
  %v542 = vadd.f32 0.0, %v541
  %v543 = vpop.f32.mrf.mxu0
  %544 = vmatprep.mubr.bf16.mxu0 0
  %545 = vmatmul.mubr.bf16.gmra.mxu0 %v378
  %v546 = vpop.f32.mrf.mxu0
  %v547 = vadd.f32 0.0, %v546
  %v548 = vpop.f32.mrf.mxu0
  %v549 = vpop.f32.mrf.mxu0
  %v550 = vadd.f32 0.0, %v549
  %v551 = vpop.f32.mrf.mxu0
  %552 = vmatprep.mubr.bf16.mxu0 0
  %553 = vmatmul.mubr.bf16.gmra.mxu0 %v381
  %v554 = vpop.f32.mrf.mxu0
  %v555 = vadd.f32 0.0, %v554
  %v556 = vpop.f32.mrf.mxu0
  %v557 = vpop.f32.mrf.mxu0
  %v558 = vadd.f32 0.0, %v557
  %v559 = vpop.f32.mrf.mxu0
  %560 = vmatprep.mubr.bf16.mxu0 0
  %561 = vmatmul.mubr.bf16.gmra.mxu0 %v384
  %v562 = vpop.f32.mrf.mxu0
  %v563 = vadd.f32 0.0, %v562
  %v564 = vpop.f32.mrf.mxu0
  %v565 = vpop.f32.mrf.mxu0
  %v566 = vadd.f32 0.0, %v565
  %v567 = vpop.f32.mrf.mxu0
  %568 = vmatprep.mubr.bf16.mxu0 0
  %569 = vmatmul.mubr.bf16.gmra.mxu0 %v387
  %v570 = vpop.f32.mrf.mxu0
  %v571 = vadd.f32 0.0, %v570
  %v572 = vpop.f32.mrf.mxu0
  %v573 = vpop.f32.mrf.mxu0
  %v574 = vadd.f32 0.0, %v573
  %v575 = vpop.f32.mrf.mxu0
  %576 = vmatprep.mubr.bf16.mxu0 0
  %577 = vmatmul.mubr.bf16.gmra.mxu0 %v390
  %v578 = vpop.f32.mrf.mxu0
  %v579 = vadd.f32 0.0, %v578
  %v580 = vpop.f32.mrf.mxu0
  %v581 = vpop.f32.mrf.mxu0
  %v582 = vadd.f32 0.0, %v581
  %v583 = vpop.f32.mrf.mxu0
  %584 = vmatprep.mubr.bf16.mxu0 0
  %585 = vmatmul.mubr.bf16.gmra.mxu0 %v393
  %v586 = vpop.f32.mrf.mxu0
  %v587 = vadd.f32 0.0, %v586
  %v588 = vpop.f32.mrf.mxu0
  %v589 = vpop.f32.mrf.mxu0
  %v590 = vadd.f32 0.0, %v589
  %v591 = vpop.f32.mrf.mxu0
  %592 = vmatprep.mubr.bf16.mxu0 0
  %593 = vmatmul.mubr.bf16.gmra.mxu0 %v396
  %v594 = vpop.f32.mrf.mxu0
  %v595 = vadd.f32 0.0, %v594
  %v596 = vpop.f32.mrf.mxu0
  %v597 = vpop.f32.mrf.mxu0
  %v598 = vadd.f32 0.0, %v597
  %v599 = vpop.f32.mrf.mxu0
  %600 = vmatprep.mubr.bf16.mxu0 0
  %601 = vmatmul.mubr.bf16.gmra.mxu0 %v399
  %v602 = vpop.f32.mrf.mxu0
  %v603 = vadd.f32 0.0, %v602
  %v604 = vpop.f32.mrf.mxu0
  %v605 = vpop.f32.mrf.mxu0
  %v606 = vadd.f32 0.0, %v605
  %v607 = vpop.f32.mrf.mxu0
  %608 = vmatprep.mubr.bf16.mxu0 0
  %609 = vmatmul.mubr.bf16.gmra.mxu0 %v402
  %v610 = vpop.f32.mrf.mxu0
  %v611 = vadd.f32 0.0, %v610
  %v612 = vpop.f32.mrf.mxu0
  %v613 = vpop.f32.mrf.mxu0
  %v614 = vadd.f32 0.0, %v613
  %v615 = vpop.f32.mrf.mxu0
  %616 = vmatprep.mubr.bf16.mxu0 0
  %617 = vmatmul.mubr.bf16.gmra.mxu0 %v405
  %v618 = vpop.f32.mrf.mxu0
  %v619 = vadd.f32 0.0, %v618
  %v620 = vpop.f32.mrf.mxu0
  %v621 = vpop.f32.mrf.mxu0
  %v622 = vadd.f32 0.0, %v621
  %v623 = vpop.f32.mrf.mxu0
  %624 = vmatprep.mubr.bf16.mxu0 0
  %625 = vmatmul.mubr.bf16.gmra.mxu0 %v408
  %v626 = vpop.f32.mrf.mxu0
  %v627 = vadd.f32 0.0, %v626
  %v628 = vpop.f32.mrf.mxu0
  %v629 = vpop.f32.mrf.mxu0
  %v630 = vadd.f32 0.0, %v629
  %v631 = vpop.f32.mrf.mxu0
  %632 = vmatprep.mubr.bf16.mxu0 0
  %633 = vmatmul.mubr.bf16.gmra.mxu0 %v411
  %v634 = vpop.f32.mrf.mxu0
  %v635 = vadd.f32 0.0, %v634
  %v636 = vpop.f32.mrf.mxu0
  %v637 = vpop.f32.mrf.mxu0
  %v638 = vadd.f32 0.0, %v637
  %v639 = vpop.f32.mrf.mxu0
  %640 = vmatprep.mubr.bf16.mxu0 0
  %641 = vmatmul.mubr.bf16.gmra.mxu0 %v414
  %v642 = vpop.f32.mrf.mxu0
  %v643 = vadd.f32 0.0, %v642
  %v644 = vpop.f32.mrf.mxu0
  %v645 = vpop.f32.mrf.mxu0
  %v646 = vpop.f32.mrf.mxu0
  %647 = vdwg.mxu0
  %v648 = vld [vmem:[%s4] sm:$0x1]
  %v650 = vlaneseq
  %v651 = vshrl.u32 %v650, 7
  %v652 = vsub.s32 0, %v651
  %v653 = vrot.slane %v648, %v652
  %v655 = vmul.f32 %v451, %v653
  %v656 = vmul.f32 %v454, %v653
  %v657 = vmul.f32 %v459, %v653
  %v658 = vmul.f32 %v462, %v653
  %v659 = vmul.f32 %v467, %v653
  %v660 = vmul.f32 %v470, %v653
  %v661 = vmul.f32 %v475, %v653
  %v662 = vmul.f32 %v478, %v653
  %v663 = vmul.f32 %v483, %v653
  %v664 = vmul.f32 %v486, %v653
  %v665 = vmul.f32 %v491, %v653
  %v666 = vmul.f32 %v494, %v653
  %v667 = vmul.f32 %v499, %v653
  %v668 = vmul.f32 %v502, %v653
  %v669 = vmul.f32 %v507, %v653
  %v670 = vmul.f32 %v510, %v653
  %v671 = vmul.f32 %v515, %v653
  %v672 = vmul.f32 %v518, %v653
  %v673 = vmul.f32 %v523, %v653
  %v674 = vmul.f32 %v526, %v653
  %v675 = vmul.f32 %v531, %v653
  %v676 = vmul.f32 %v534, %v653
  %v677 = vmul.f32 %v539, %v653
  %v678 = vmul.f32 %v542, %v653
  %v679 = vmul.f32 %v547, %v653
  %v680 = vmul.f32 %v550, %v653
  %v681 = vmul.f32 %v555, %v653
  %v682 = vmul.f32 %v558, %v653
  %v683 = vmul.f32 %v563, %v653
  %v684 = vmul.f32 %v566, %v653
  %v685 = vmul.f32 %v571, %v653
  %v686 = vmul.f32 %v574, %v653
  %v687 = vmul.f32 %v579, %v653
  %v688 = vmul.f32 %v582, %v653
  %v689 = vmul.f32 %v587, %v653
  %v690 = vmul.f32 %v590, %v653
  %v691 = vmul.f32 %v595, %v653
  %v692 = vmul.f32 %v598, %v653
  %v693 = vmul.f32 %v603, %v653
  %v694 = vmul.f32 %v606, %v653
  %v695 = vmul.f32 %v611, %v653
  %v696 = vmul.f32 %v614, %v653
  %v697 = vmul.f32 %v619, %v653
  %v698 = vmul.f32 %v622, %v653
  %v699 = vmul.f32 %v627, %v653
  %v700 = vmul.f32 %v630, %v653
  %v701 = vmul.f32 %v635, %v653
  %v702 = vmul.f32 %v638, %v653
  %v703 = vmul.f32 %v643, %v653
  %v704 = vld [vmem:[%s5] sm:$0x1]
  %v706 = vlaneseq
  %v707 = vshrl.u32 %v706, 7
  %v708 = vsub.s32 0, %v707
  %v709 = vrot.slane %v704, %v708
  %v711 = vadd.f32 %v655, %v709
  %v712 = vadd.f32 %v656, %v709
  %v713 = vadd.f32 %v657, %v709
  %v714 = vadd.f32 %v658, %v709
  %v715 = vadd.f32 %v659, %v709
  %v716 = vadd.f32 %v660, %v709
  %v717 = vadd.f32 %v661, %v709
  %v718 = vadd.f32 %v662, %v709
  %v719 = vadd.f32 %v663, %v709
  %v720 = vadd.f32 %v664, %v709
  %v721 = vadd.f32 %v665, %v709
  %v722 = vadd.f32 %v666, %v709
  %v723 = vadd.f32 %v667, %v709
  %v724 = vadd.f32 %v668, %v709
  %v725 = vadd.f32 %v669, %v709
  %v726 = vadd.f32 %v670, %v709
  %v727 = vadd.f32 %v671, %v709
  %v728 = vadd.f32 %v672, %v709
  %v729 = vadd.f32 %v673, %v709
  %v730 = vadd.f32 %v674, %v709
  %v731 = vadd.f32 %v675, %v709
  %v732 = vadd.f32 %v676, %v709
  %v733 = vadd.f32 %v677, %v709
  %v734 = vadd.f32 %v678, %v709
  %v735 = vadd.f32 %v679, %v709
  %v736 = vadd.f32 %v680, %v709
  %v737 = vadd.f32 %v681, %v709
  %v738 = vadd.f32 %v682, %v709
  %v739 = vadd.f32 %v683, %v709
  %v740 = vadd.f32 %v684, %v709
  %v741 = vadd.f32 %v685, %v709
  %v742 = vadd.f32 %v686, %v709
  %v743 = vadd.f32 %v687, %v709
  %v744 = vadd.f32 %v688, %v709
  %v745 = vadd.f32 %v689, %v709
  %v746 = vadd.f32 %v690, %v709
  %v747 = vadd.f32 %v691, %v709
  %v748 = vadd.f32 %v692, %v709
  %v749 = vadd.f32 %v693, %v709
  %v750 = vadd.f32 %v694, %v709
  %v751 = vadd.f32 %v695, %v709
  %v752 = vadd.f32 %v696, %v709
  %v753 = vadd.f32 %v697, %v709
  %v754 = vadd.f32 %v698, %v709
  %v755 = vadd.f32 %v699, %v709
  %v756 = vadd.f32 %v700, %v709
  %v757 = vadd.f32 %v701, %v709
  %v758 = vadd.f32 %v702, %v709
  %v759 = vadd.f32 %v703, %v709
  %v760 = vmax.f32 %v711, 0.0
  %v761 = vmax.f32 %v712, 0.0
  %v762 = vmax.f32 %v713, 0.0
  %v763 = vmax.f32 %v714, 0.0
  %v764 = vmax.f32 %v715, 0.0
  %v765 = vmax.f32 %v716, 0.0
  %v766 = vmax.f32 %v717, 0.0
  %v767 = vmax.f32 %v718, 0.0
  %v768 = vmax.f32 %v719, 0.0
  %v769 = vmax.f32 %v720, 0.0
  %v770 = vmax.f32 %v721, 0.0
  %v771 = vmax.f32 %v722, 0.0
  %v772 = vmax.f32 %v723, 0.0
  %v773 = vmax.f32 %v724, 0.0
  %v774 = vmax.f32 %v725, 0.0
  %v775 = vmax.f32 %v726, 0.0
  %v776 = vmax.f32 %v727, 0.0
  %v777 = vmax.f32 %v728, 0.0
  %v778 = vmax.f32 %v729, 0.0
  %v779 = vmax.f32 %v730, 0.0
  %v780 = vmax.f32 %v731, 0.0
  %v781 = vmax.f32 %v732, 0.0
  %v782 = vmax.f32 %v733, 0.0
  %v783 = vmax.f32 %v734, 0.0
  %v784 = vmax.f32 %v735, 0.0
  %v785 = vmax.f32 %v736, 0.0
  %v786 = vmax.f32 %v737, 0.0
  %v787 = vmax.f32 %v738, 0.0
  %v788 = vmax.f32 %v739, 0.0
  %v789 = vmax.f32 %v740, 0.0
  %v790 = vmax.f32 %v741, 0.0
  %v791 = vmax.f32 %v742, 0.0
  %v792 = vmax.f32 %v743, 0.0
  %v793 = vmax.f32 %v744, 0.0
  %v794 = vmax.f32 %v745, 0.0
  %v795 = vmax.f32 %v746, 0.0
  %v796 = vmax.f32 %v747, 0.0
  %v797 = vmax.f32 %v748, 0.0
  %v798 = vmax.f32 %v749, 0.0
  %v799 = vmax.f32 %v750, 0.0
  %v800 = vmax.f32 %v751, 0.0
  %v801 = vmax.f32 %v752, 0.0
  %v802 = vmax.f32 %v753, 0.0
  %v803 = vmax.f32 %v754, 0.0
  %v804 = vmax.f32 %v755, 0.0
  %v805 = vmax.f32 %v756, 0.0
  %v806 = vmax.f32 %v757, 0.0
  %v807 = vmax.f32 %v758, 0.0
  %v808 = vmax.f32 %v759, 0.0
  %v809 = vpack.c.bf16 %v761, %v760
  %v810 = vpack.c.bf16 %v763, %v762
  %v811 = vpack.c.bf16 %v765, %v764
  %v812 = vpack.c.bf16 %v767, %v766
  %v813 = vpack.c.bf16 %v769, %v768
  %v814 = vpack.c.bf16 %v771, %v770
  %v815 = vpack.c.bf16 %v773, %v772
  %v816 = vpack.c.bf16 %v775, %v774
  %v817 = vpack.c.bf16 %v777, %v776
  %v818 = vpack.c.bf16 %v779, %v778
  %v819 = vpack.c.bf16 %v781, %v780
  %v820 = vpack.c.bf16 %v783, %v782
  %v821 = vpack.c.bf16 %v785, %v784
  %v822 = vpack.c.bf16 %v787, %v786
  %v823 = vpack.c.bf16 %v789, %v788
  %v824 = vpack.c.bf16 %v791, %v790
  %v825 = vpack.c.bf16 %v793, %v792
  %v826 = vpack.c.bf16 %v795, %v794
  %v827 = vpack.c.bf16 %v797, %v796
  %v828 = vpack.c.bf16 %v799, %v798
  %v829 = vpack.c.bf16 %v801, %v800
  %v830 = vpack.c.bf16 %v803, %v802
  %v831 = vpack.c.bf16 %v805, %v804
  %v832 = vpack.c.bf16 %v807, %v806
  %v833 = vpack.c.bf16 %v808, %v808
  %v859 = vunpack.c.l.b16 %v809
  %v860 = vunpack.c.h.b16 %v809
  %v861 = vunpack.c.l.b16 %v810
  %v862 = vunpack.c.h.b16 %v810
  %v863 = vunpack.c.l.b16 %v811
  %v864 = vunpack.c.h.b16 %v811
  %v865 = vunpack.c.l.b16 %v812
  %v866 = vunpack.c.h.b16 %v812
  %v867 = vunpack.c.l.b16 %v813
  %v868 = vunpack.c.h.b16 %v813
  %v869 = vunpack.c.l.b16 %v814
  %v870 = vunpack.c.h.b16 %v814
  %v871 = vunpack.c.l.b16 %v815
  %v872 = vunpack.c.h.b16 %v815
  %v873 = vunpack.c.l.b16 %v816
  %v874 = vunpack.c.h.b16 %v816
  %v875 = vunpack.c.l.b16 %v817
  %v876 = vunpack.c.h.b16 %v817
  %v877 = vunpack.c.l.b16 %v818
  %v878 = vunpack.c.h.b16 %v818
  %v879 = vunpack.c.l.b16 %v819
  %v880 = vunpack.c.h.b16 %v819
  %v881 = vunpack.c.l.b16 %v820
  %v882 = vunpack.c.h.b16 %v820
  %v883 = vunpack.c.l.b16 %v821
  %v884 = vunpack.c.h.b16 %v821
  %v885 = vunpack.c.l.b16 %v822
  %v886 = vunpack.c.h.b16 %v822
  %v887 = vunpack.c.l.b16 %v823
  %v888 = vunpack.c.h.b16 %v823
  %v889 = vunpack.c.l.b16 %v824
  %v890 = vunpack.c.h.b16 %v824
  %v891 = vunpack.c.l.b16 %v825
  %v892 = vunpack.c.h.b16 %v825
  %v893 = vunpack.c.l.b16 %v826
  %v894 = vunpack.c.h.b16 %v826
  %v895 = vunpack.c.l.b16 %v827
  %v896 = vunpack.c.h.b16 %v827
  %v897 = vunpack.c.l.b16 %v828
  %v898 = vunpack.c.h.b16 %v828
  %v899 = vunpack.c.l.b16 %v829
  %v900 = vunpack.c.h.b16 %v829
  %v901 = vunpack.c.l.b16 %v830
  %v902 = vunpack.c.h.b16 %v830
  %v903 = vunpack.c.l.b16 %v831
  %v904 = vunpack.c.h.b16 %v831
  %v905 = vunpack.c.l.b16 %v832
  %v906 = vunpack.c.h.b16 %v832
  %v907 = vunpack.c.l.b16 %v833
  %v908 = vpack.c.b16 %v859, %v859
  %v909 = vpack.c.b16 %v860, %v860
  %v910 = vpack.c.b16 %v861, %v861
  %v911 = vpack.c.b16 %v862, %v862
  %v912 = vpack.c.b16 %v863, %v863
  %v913 = vpack.c.b16 %v864, %v864
  %v914 = vpack.c.b16 %v865, %v865
  %v915 = vpack.c.b16 %v866, %v866
  %v916 = vpack.c.b16 %v867, %v867
  %v917 = vpack.c.b16 %v868, %v868
  %v918 = vpack.c.b16 %v869, %v869
  %v919 = vpack.c.b16 %v870, %v870
  %v920 = vpack.c.b16 %v871, %v871
  %v921 = vpack.c.b16 %v872, %v872
  %v922 = vpack.c.b16 %v873, %v873
  %v923 = vpack.c.b16 %v874, %v874
  %v924 = vpack.c.b16 %v875, %v875
  %v925 = vpack.c.b16 %v876, %v876
  %v926 = vpack.c.b16 %v877, %v877
  %v927 = vpack.c.b16 %v878, %v878
  %v928 = vpack.c.b16 %v879, %v879
  %v929 = vpack.c.b16 %v880, %v880
  %v930 = vpack.c.b16 %v881, %v881
  %v931 = vpack.c.b16 %v882, %v882
  %v932 = vpack.c.b16 %v883, %v883
  %v933 = vpack.c.b16 %v884, %v884
  %v934 = vpack.c.b16 %v885, %v885
  %v935 = vpack.c.b16 %v886, %v886
  %v936 = vpack.c.b16 %v887, %v887
  %v937 = vpack.c.b16 %v888, %v888
  %v938 = vpack.c.b16 %v889, %v889
  %v939 = vpack.c.b16 %v890, %v890
  %v940 = vpack.c.b16 %v891, %v891
  %v941 = vpack.c.b16 %v892, %v892
  %v942 = vpack.c.b16 %v893, %v893
  %v943 = vpack.c.b16 %v894, %v894
  %v944 = vpack.c.b16 %v895, %v895
  %v945 = vpack.c.b16 %v896, %v896
  %v946 = vpack.c.b16 %v897, %v897
  %v947 = vpack.c.b16 %v898, %v898
  %v948 = vpack.c.b16 %v899, %v899
  %v949 = vpack.c.b16 %v900, %v900
  %v950 = vpack.c.b16 %v901, %v901
  %v951 = vpack.c.b16 %v902, %v902
  %v952 = vpack.c.b16 %v903, %v903
  %v953 = vpack.c.b16 %v904, %v904
  %v954 = vpack.c.b16 %v905, %v905
  %v955 = vpack.c.b16 %v906, %v906
  %v956 = vpack.c.b16 %v907, %v907
  %vm1006 = vcmask 519168
  %1007 = vst.msk [vmem:[%s6] sm:$0xf] %vm1006, %v908
  %1008 = vst.msk [vmem:[%s6 + $0x4] sm:$0xf] %vm1006, %v909
  %1009 = vst.msk [vmem:[%s6 + $0x8] sm:$0xf] %vm1006, %v910
  %1010 = vst.msk [vmem:[%s6 + $0xc] sm:$0xf] %vm1006, %v911
  %1011 = vst.msk [vmem:[%s6 + $0x10] sm:$0xf] %vm1006, %v912
  %1012 = vst.msk [vmem:[%s6 + $0x14] sm:$0xf] %vm1006, %v913
  %1013 = vst.msk [vmem:[%s6 + $0x18] sm:$0xf] %vm1006, %v914
  %1014 = vst.msk [vmem:[%s6 + $0x1c] sm:$0xf] %vm1006, %v915
  %1015 = vst.msk [vmem:[%s6 + $0x20] sm:$0xf] %vm1006, %v916
  %1016 = vst.msk [vmem:[%s6 + $0x24] sm:$0xf] %vm1006, %v917
  %1017 = vst.msk [vmem:[%s6 + $0x28] sm:$0xf] %vm1006, %v918
  %1018 = vst.msk [vmem:[%s6 + $0x2c] sm:$0xf] %vm1006, %v919
  %1019 = vst.msk [vmem:[%s6 + $0x30] sm:$0xf] %vm1006, %v920
  %1020 = vst.msk [vmem:[%s6 + $0x34] sm:$0xf] %vm1006, %v921
  %1021 = vst.msk [vmem:[%s6 + $0x38] sm:$0xf] %vm1006, %v922
  %1022 = vst.msk [vmem:[%s6 + $0x3c] sm:$0xf] %vm1006, %v923
  %1023 = vst.msk [vmem:[%s6 + $0x40] sm:$0xf] %vm1006, %v924
  %1024 = vst.msk [vmem:[%s6 + $0x44] sm:$0xf] %vm1006, %v925
  %1025 = vst.msk [vmem:[%s6 + $0x48] sm:$0xf] %vm1006, %v926
  %1026 = vst.msk [vmem:[%s6 + $0x4c] sm:$0xf] %vm1006, %v927
  %1027 = vst.msk [vmem:[%s6 + $0x50] sm:$0xf] %vm1006, %v928
  %1028 = vst.msk [vmem:[%s6 + $0x54] sm:$0xf] %vm1006, %v929
  %1029 = vst.msk [vmem:[%s6 + $0x58] sm:$0xf] %vm1006, %v930
  %1030 = vst.msk [vmem:[%s6 + $0x5c] sm:$0xf] %vm1006, %v931
  %1031 = vst.msk [vmem:[%s6 + $0x60] sm:$0xf] %vm1006, %v932
  %1032 = vst.msk [vmem:[%s6 + $0x64] sm:$0xf] %vm1006, %v933
  %1033 = vst.msk [vmem:[%s6 + $0x68] sm:$0xf] %vm1006, %v934
  %1034 = vst.msk [vmem:[%s6 + $0x6c] sm:$0xf] %vm1006, %v935
  %1035 = vst.msk [vmem:[%s6 + $0x70] sm:$0xf] %vm1006, %v936
  %1036 = vst.msk [vmem:[%s6 + $0x74] sm:$0xf] %vm1006, %v937
  %1037 = vst.msk [vmem:[%s6 + $0x78] sm:$0xf] %vm1006, %v938
  %1038 = vst.msk [vmem:[%s6 + $0x7c] sm:$0xf] %vm1006, %v939
  %1039 = vst.msk [vmem:[%s6 + $0x80] sm:$0xf] %vm1006, %v940
  %1040 = vst.msk [vmem:[%s6 + $0x84] sm:$0xf] %vm1006, %v941
  %1041 = vst.msk [vmem:[%s6 + $0x88] sm:$0xf] %vm1006, %v942
  %1042 = vst.msk [vmem:[%s6 + $0x8c] sm:$0xf] %vm1006, %v943
  %1043 = vst.msk [vmem:[%s6 + $0x90] sm:$0xf] %vm1006, %v944
  %1044 = vst.msk [vmem:[%s6 + $0x94] sm:$0xf] %vm1006, %v945
  %1045 = vst.msk [vmem:[%s6 + $0x98] sm:$0xf] %vm1006, %v946
  %1046 = vst.msk [vmem:[%s6 + $0x9c] sm:$0xf] %vm1006, %v947
  %1047 = vst.msk [vmem:[%s6 + $0xa0] sm:$0xf] %vm1006, %v948
  %1048 = vst.msk [vmem:[%s6 + $0xa4] sm:$0xf] %vm1006, %v949
  %1049 = vst.msk [vmem:[%s6 + $0xa8] sm:$0xf] %vm1006, %v950
  %1050 = vst.msk [vmem:[%s6 + $0xac] sm:$0xf] %vm1006, %v951
  %1051 = vst.msk [vmem:[%s6 + $0xb0] sm:$0xf] %vm1006, %v952
  %1052 = vst.msk [vmem:[%s6 + $0xb4] sm:$0xf] %vm1006, %v953
  %1053 = vst.msk [vmem:[%s6 + $0xb8] sm:$0xf] %vm1006, %v954
  %1054 = vst.msk [vmem:[%s6 + $0xbc] sm:$0xf] %vm1006, %v955
  %1055 = vst.msk [vmem:[%s6 + $0xc0] sm:$0xf] %vm1006, %v956
  // Predicated region
  $region26: #{densenet_forward.14} parent=0 // pred_check
    _
  $region27: #{densenet_forward.14} parent=0 // pred_check_branch
    %1057 = sbr.rel (0) target = $region29
  $region28: #{densenet_forward.14} parent=0 // pred_region
    _
  $region29: #{densenet_forward.14} parent=0 // pred_fallthru
    _
  // Predicated region
  $region30: #{densenet_forward.14} parent=0 // pred_check
    _
  $region31: #{densenet_forward.14} parent=0 // pred_check_branch
    %1059 = sbr.rel (0) target = $region33
  $region32: #{densenet_forward.14} parent=0 // pred_region
    _
  $region33: #{densenet_forward.14} parent=0 // pred_fallthru
    _

// kernel: densenet_forward.15
$region0: #{densenet_forward.15}
  #allocation0 [shape = 'u32[]', space=smem, size = 0x4, offset = 0x4, fixed_abs, tag = 'smem constant byte address 0x4 - core index']
  #allocation1 [shape = 'u32[144,128]{1,0:T(1,128)}', space=vmem, size = 0x12000, scoped, tag = 'internal scratch']
  %s0 = inlined_call_operand.vmem [shape: bf16[2,272,64], index: 0, kind: input, shape index: {}]
  %s1 = inlined_call_operand.vmem [shape: bf16[64,144], index: 1, kind: input, shape index: {}]
  %s2 = inlined_call_operand.vmem [shape: bf16[2,14,14,16], index: 2, kind: output, shape index: {}]
  %s3 = sld [smem:[#allocation0]]
  $region41: #{densenet_forward.15} parent=0
    _
  %s5 = ssub.s32 1, %s3
  %s6 = scalar_select 0, %s5, %s3
  loop: start=0, step=1, limit=6
  $region2: #{densenet_forward.15} parent=0 // loop_pre_header
    _
  $region3: #{densenet_forward.15} parent=0 // loop_header
    %s8 = sphi 0, %s12
    %p9 = scmp.ge.s32.totalorder %s8, 6
    %s15 = sphi 0, %s27
    %s16 = sphi 0, %s23
    %s17 = sphi 0, %s15
    %s18 = sphi 0, %s16
    %s19 = sphi 0, %s17
    %s20 = sphi 0, %s18
    %s30 = sphi 0, %s32
    %s33 = sphi 0, %s30
    %s34 = sphi 0, %s33
    %s50 = sphi 0, %s34
    %s54 = sphi 0, %s54
    %s56 = sphi 0, %s54
    %s57 = sphi 0, %s56
    %s71 = sphi 0, %s57
    %s79 = sphi 0, %s81
    %s82 = sphi 0, %s79
    %s83 = sphi 0, %s82
    %s99 = sphi 0, %s83
  $region4: #{densenet_forward.15} parent=0 // loop_header_branch
    %11 = sbr.rel (%p9) target = $region8
  $region5: #{densenet_forward.15} parent=0 // loop_body
    %s13 = ssub.s32 %s8, 1
    %s14 = ssub.s32 %s8, 2
    %s21 = sadd.s32 1, %s16
    %p22 = scmp.ge.s32.totalorder %s21, 2
    %s23 = scalar_select %p22, 0, %s21
    %s24 = sadd.s32 1, %s15
    %s25 = scalar_select %p22, %s24, %s15
    %p26 = scmp.ge.s32.totalorder %s25, 2
    %s27 = scalar_select %p26, 0, %s25
    %s28 = ssub.s32 %s15, %s27
    %p29 = scmp.eq.s32.totalorder %s28, 0
    %s31 = sadd.s32 %s30, 1
    %s32 = scalar_select %p29, %s30, %s31
    %p35 = pneg %p29
    %p36 = scmp.eq.s32.totalorder %s8, 3
    %p37 = por %p35, %p36
    %p38 = scmp.ne.s32.totalorder %s30, %s33
    %p39 = scmp.eq.s32.totalorder %s8, 0
    %p40 = por %p38, %p39
    %p41 = scmp.ne.s32.totalorder %s30, %s33
    %p42 = scmp.eq.s32.totalorder %s13, 3
    %p43 = por %p41, %p42
    %p44 = scmp.ne.s32.totalorder %s33, %s34
    %p45 = scmp.eq.s32.totalorder %s13, 0
    %p46 = por %p44, %p45
    %p47 = scmp.ne.s32.totalorder %s33, %s34
    %p48 = scmp.eq.s32.totalorder %s14, 3
    %p49 = por %p47, %p48
    %p51 = scmp.ne.s32.totalorder %s34, %s50
    %p52 = scmp.eq.s32.totalorder %s14, 0
    %p53 = por %p51, %p52
    %s55 = sadd.s32 %s54, 1
    %p58 = scmp.eq.s32.totalorder %s8, 3
    %p59 = scmp.ne.s32.totalorder %s54, %s56
    %p60 = scmp.eq.s32.totalorder %s8, 0
    %p61 = por %p59, %p60
    %p62 = scmp.ne.s32.totalorder %s54, %s56
    %p63 = scmp.eq.s32.totalorder %s13, 3
    %p64 = por %p62, %p63
    %p65 = scmp.ne.s32.totalorder %s56, %s57
    %p66 = scmp.eq.s32.totalorder %s13, 0
    %p67 = por %p65, %p66
    %p68 = scmp.ne.s32.totalorder %s56, %s57
    %p69 = scmp.eq.s32.totalorder %s14, 3
    %p70 = por %p68, %p69
    %p72 = scmp.ne.s32.totalorder %s57, %s71
    %p73 = scmp.eq.s32.totalorder %s14, 0
    %p74 = por %p72, %p73
    %s75 = ssub.s32 %s15, %s27
    %s76 = ssub.s32 %s16, %s23
    %s77 = sor.u32 %s75, %s76
    %p78 = scmp.eq.s32.totalorder %s77, 0
    %s80 = sadd.s32 %s79, 1
    %s81 = scalar_select %p78, %s79, %s80
    %p84 = pneg %p78
    %p85 = scmp.eq.s32.totalorder %s8, 3
    %p86 = por %p84, %p85
    %p87 = scmp.ne.s32.totalorder %s79, %s82
    %p88 = scmp.eq.s32.totalorder %s8, 0
    %p89 = por %p87, %p88
    %p90 = scmp.ne.s32.totalorder %s79, %s82
    %p91 = scmp.eq.s32.totalorder %s13, 3
    %p92 = por %p90, %p91
    %p93 = scmp.ne.s32.totalorder %s82, %s83
    %p94 = scmp.eq.s32.totalorder %s13, 0
    %p95 = por %p93, %p94
    %p96 = scmp.ne.s32.totalorder %s82, %s83
    %p97 = scmp.eq.s32.totalorder %s14, 3
    %p98 = por %p96, %p97
    %p100 = scmp.ne.s32.totalorder %s83, %s99
    %p101 = scmp.eq.s32.totalorder %s14, 0
    %p102 = por %p100, %p101
    %p103 = scmp.le.s32.totalorder 1, %s8
    %p104 = scmp.lt.s32.totalorder %s8, 5
    %p105 = pnand %p103, %p104
    %p106 = pneg %p105
    // Predicated region
    $region9: #{densenet_forward.15} parent=5 // pred_check
      _
    $region10: #{densenet_forward.15} parent=5 // pred_check_branch
      %108 = sbr.rel (%p105) target = $region12
    $region11: #{densenet_forward.15} parent=5 // pred_region
      %s109 = ssub.s32 %s8, 1
      // Predicated region
      $region13: #{densenet_forward.15} parent=11 // pred_check
        %p110 = pneg %p67
      $region14: #{densenet_forward.15} parent=11 // pred_check_branch
        %112 = sbr.rel (%p110) target = $region16
      $region15: #{densenet_forward.15} parent=11 // pred_region
        _
      $region16: #{densenet_forward.15} parent=11 // pred_fallthru
        _
    $region12: #{densenet_forward.15} parent=5 // pred_fallthru
      _
    %p113 = scmp.lt.s32.totalorder %s8, 4
    // Predicated region
    $region17: #{densenet_forward.15} parent=5 // pred_check
      %p114 = pneg %p113
    $region18: #{densenet_forward.15} parent=5 // pred_check_branch
      %116 = sbr.rel (%p114) target = $region20
    $region19: #{densenet_forward.15} parent=5 // pred_region
      // Predicated region
      $region21: #{densenet_forward.15} parent=19 // pred_check
        %p117 = pneg %p40
      $region22: #{densenet_forward.15} parent=19 // pred_check_branch
        %119 = sbr.rel (%p117) target = $region24
      $region23: #{densenet_forward.15} parent=19 // pred_region
        %p120 = scmp.lt.s32.totalorder %s15, 1
        %s121 = scalar_select %p120, %s15, 1
        %s122 = smul.addr %s121, 34
        %s123 = smul.addr %s122, 4
        %s124 = scalar_lea.vmem %s0, %s123
      $region24: #{densenet_forward.15} parent=19 // pred_fallthru
        _
    $region20: #{densenet_forward.15} parent=5 // pred_fallthru
      _
    %p125 = scmp.le.s32.totalorder 1, %s8
    %p126 = scmp.lt.s32.totalorder %s8, 5
    %p127 = pnand %p125, %p126
    %p128 = pneg %p127
    // Predicated region
    $region25: #{densenet_forward.15} parent=5 // pred_check
      _
    $region26: #{densenet_forward.15} parent=5 // pred_check_branch
      %130 = sbr.rel (%p127) target = $region28
    $region27: #{densenet_forward.15} parent=5 // pred_region
      %s131 = ssub.s32 %s8, 1
      %p132 = scmp.lt.s32.totalorder %s17, 1
      %s133 = scalar_select %p132, %s17, 1
      %s134 = smul.addr %s133, 34
      %s135 = smul.addr %s134, 4
      %s136 = scalar_lea.vmem %s0, %s135
      %p137 = pneg %p46
      %p138 = pneg %p43
      %p139 = pneg %p67
      %p140 = pneg %p64
      %p141 = pneg %p95
      %p142 = pneg %p92
      %s143 = smul.u32 7, %s18
      %p144 = scmp.lt.s32.totalorder %s17, 1
      %s145 = scalar_select %p144, %s17, 1
      %p146 = scmp.lt.s32.totalorder %s143, 13
      %s147 = scalar_select %p146, %s143, 13
      %s148 = smul.addr %s147, 2
      %s149 = smul.addr %s145, 28
      %s150 = sadd.s32 %s148, %s149
      %s151 = smul.addr %s150, 4
      %s152 = scalar_lea.vmem %s2, %s151
      %p153 = scmp.lt.s32.totalorder %s17, 1
      %s154 = scalar_select %p153, %s17, 1
      %s155 = smul.addr %s154, 34
      %s156 = smul.addr %s155, 4
      %s157 = scalar_lea.vmem %s0, %s156
      %s158 = smul.u32 7, %s18
      %p159 = scmp.lt.s32.totalorder %s17, 1
      %s160 = scalar_select %p159, %s17, 1
      %p161 = scmp.lt.s32.totalorder %s158, 13
      %s162 = scalar_select %p161, %s158, 13
      %s163 = smul.addr %s162, 2
      %s164 = smul.addr %s160, 28
      %s165 = sadd.s32 %s163, %s164
      %s166 = smul.addr %s165, 4
      %s167 = scalar_lea.vmem %s2, %s166
      %s168 = smul.u32 7, %s18
      %s170 = smul.u32 %s18, 112
      %s171 = sshra.s32 %s170, 3
      %s172 = sand.u32 %s170, 7
      %s173 = smul.addr %s171, 4
      %s174 = scalar_lea.vmem %s157, %s173
      %v175 = vld [vmem:[%s174] sm:$0xf]
      %v176 = vld [vmem:[%s174 + $0x4] sm:$0xf]
      %v177 = vld [vmem:[%s174 + $0x8] sm:$0xf]
      %v178 = vld [vmem:[%s174 + $0xc] sm:$0xf]
      %v179 = vld [vmem:[%s174 + $0x10] sm:$0xf]
      %v180 = vld [vmem:[%s174 + $0x14] sm:$0xf]
      %v181 = vld [vmem:[%s174 + $0x18] sm:$0xf]
      %v182 = vld [vmem:[%s174 + $0x1c] sm:$0xf]
      %v183 = vld [vmem:[%s174 + $0x20] sm:$0xf]
      %v184 = vld [vmem:[%s174 + $0x24] sm:$0xf]
      %v185 = vld [vmem:[%s174 + $0x28] sm:$0xf]
      %v186 = vld [vmem:[%s174 + $0x2c] sm:$0xf]
      %v187 = vld [vmem:[%s174 + $0x30] sm:$0xf]
      %v188 = vld [vmem:[%s174 + $0x34] sm:$0xf]
      %v189 = vld [vmem:[%s174 + $0x38] sm:$0xf]
      %v190 = vld [vmem:[%s174 + $0x3c] sm:$0xf]
      %v191 = vld [vmem:[%s174 + $0x40] sm:$0xf]
      %v192 = vld [vmem:[%s174 + $0x44] sm:$0xf]
      %v193 = vld [vmem:[%s174 + $0x48] sm:$0xf]
      %v194 = vld [vmem:[%s1] sm:$0xff]
      %v195 = vld [vmem:[%s1 + $0x8] sm:$0xff]
      %v196 = vld [vmem:[%s1 + $0x10] sm:$0xff]
      %v197 = vld [vmem:[%s1 + $0x18] sm:$0xff]
      %v198 = vld [vmem:[%s1 + $0x20] sm:$0xff]
      %v199 = vld [vmem:[%s1 + $0x28] sm:$0xff]
      %v200 = vld [vmem:[%s1 + $0x30] sm:$0xff]
      %v201 = vld [vmem:[%s1 + $0x38] sm:$0xff]
      %v221 = vunpack.c.l.b16 %v175
      %v222 = vunpack.c.l.b16 %v176
      %v223 = vunpack.c.l.b16 %v177
      %v224 = vunpack.c.l.b16 %v178
      %v225 = vunpack.c.l.b16 %v179
      %v226 = vunpack.c.l.b16 %v180
      %v227 = vunpack.c.l.b16 %v181
      %v228 = vunpack.c.l.b16 %v182
      %v229 = vunpack.c.l.b16 %v183
      %v230 = vunpack.c.l.b16 %v184
      %v231 = vunpack.c.l.b16 %v185
      %v232 = vunpack.c.l.b16 %v186
      %v233 = vunpack.c.l.b16 %v187
      %v234 = vunpack.c.l.b16 %v188
      %v235 = vunpack.c.l.b16 %v189
      %v236 = vunpack.c.l.b16 %v190
      %v237 = vunpack.c.l.b16 %v191
      %v238 = vunpack.c.l.b16 %v192
      %v239 = vunpack.c.l.b16 %v193
      %v240 = vpack.c.b16 %v222, %v221
      %v241 = vpack.c.b16 %v224, %v223
      %v242 = vpack.c.b16 %v226, %v225
      %v243 = vpack.c.b16 %v228, %v227
      %v244 = vpack.c.b16 %v230, %v229
      %v245 = vpack.c.b16 %v232, %v231
      %v246 = vpack.c.b16 %v234, %v233
      %v247 = vpack.c.b16 %v236, %v235
      %v248 = vpack.c.b16 %v238, %v237
      %v249 = vpack.c.b16 %v239, %v239
      %v258 = vunpack.c.l.b16 %v194
      %v259 = vunpack.c.h.b16 %v194
      %v260 = vunpack.c.l.b16 %v195
      %v261 = vunpack.c.h.b16 %v195
      %v262 = vunpack.c.l.b16 %v196
      %v263 = vunpack.c.h.b16 %v196
      %v264 = vunpack.c.l.b16 %v197
      %v265 = vunpack.c.h.b16 %v197
      %v266 = vunpack.c.l.b16 %v198
      %v267 = vunpack.c.h.b16 %v198
      %v268 = vunpack.c.l.b16 %v199
      %v269 = vunpack.c.h.b16 %v199
      %v270 = vunpack.c.l.b16 %v200
      %v271 = vunpack.c.h.b16 %v200
      %v272 = vunpack.c.l.b16 %v201
      %v273 = vunpack.c.h.b16 %v201
      %v274 = vpack.c.b16 %v260, %v258
      %v275 = vpack.c.b16 %v261, %v259
      %v276 = vpack.c.b16 %v264, %v262
      %v277 = vpack.c.b16 %v265, %v263
      %v278 = vpack.c.b16 %v268, %v266
      %v279 = vpack.c.b16 %v269, %v267
      %v280 = vpack.c.b16 %v272, %v270
      %v281 = vpack.c.b16 %v273, %v271
      %vm290 = vcmask 523264
      %v292 = vsel %vm290, %v240, 0
      %v295 = vsel %vm290, %v241, 0
      %v298 = vsel %vm290, %v242, 0
      %v301 = vsel %vm290, %v243, 0
      %v304 = vsel %vm290, %v244, 0
      %v307 = vsel %vm290, %v245, 0
      %v310 = vsel %vm290, %v246, 0
      %v313 = vsel %vm290, %v247, 0
      %v316 = vsel %vm290, %v248, 0
      %v319 = vsel %vm290, %v249, 0
      %321 = vmatprep.subr.bf16.mxu0 0
      %322 = vmatpush1.bf16.msra.mxu0 0
      %323 = vmatprep.subr.bf16.mxu0 0
      %324 = vmatpush1.bf16.msra.mxu0 0
      %325 = vmatprep.subr.bf16.mxu0 0
      %326 = vmatpush1.bf16.msra.mxu0 0
      %327 = vmatprep.subr.bf16.mxu0 0
      %328 = vmatpush1.bf16.msra.mxu0 0
      %329 = vmatprep.subr.bf16.mxu0 %v281
      %330 = vmatpush1.bf16.msra.mxu0 %v280
      %331 = vmatprep.subr.bf16.mxu0 %v279
      %332 = vmatpush1.bf16.msra.mxu0 %v278
      %333 = vmatprep.subr.bf16.mxu0 %v277
      %334 = vmatpush1.bf16.msra.mxu0 %v276
      %335 = vmatprep.subr.bf16.mxu0 %v275
      %336 = vmatpush1.bf16.msra.mxu0 %v274
      %337 = vmatprep.subr.bf16.mxu0 0
      %338 = vmatpush2.bf16.msra.mxu0 0
      %339 = vmatprep.subr.bf16.mxu0 0
      %340 = vmatpush2.bf16.msra.mxu0 0
      %341 = vmatprep.subr.bf16.mxu0 0
      %342 = vmatpush2.bf16.msra.mxu0 0
      %343 = vmatprep.subr.bf16.mxu0 0
      %344 = vmatpush2.bf16.msra.mxu0 0
      %345 = vmatprep.subr.bf16.mxu0 0
      %346 = vmatpush2.bf16.msra.mxu0 0
      %347 = vmatprep.subr.bf16.mxu0 0
      %348 = vmatpush2.bf16.msra.mxu0 0
      %349 = vmatprep.subr.bf16.mxu0 0
      %350 = vmatpush2.bf16.msra.mxu0 0
      %351 = vmatprep.subr.bf16.mxu0 0
      %352 = vmatpush2.bf16.msra.mxu0 0
      %353 = vmatprep.mubr.bf16.mxu0 0
      %354 = vmatmul.mubr.bf16.gmra.mxu0 %v292
      %v355 = vpop.f32.mrf.mxu0
      %v356 = vadd.f32 0.0, %v355
      %v357 = vpop.f32.mrf.mxu0
      %v358 = vpop.f32.mrf.mxu0
      %v359 = vadd.f32 0.0, %v358
      %v360 = vpop.f32.mrf.mxu0
      %361 = vmatprep.mubr.bf16.mxu0 0
      %362 = vmatmul.mubr.bf16.gmra.mxu0 %v295
      %v363 = vpop.f32.mrf.mxu0
      %v364 = vadd.f32 0.0, %v363
      %v365 = vpop.f32.mrf.mxu0
      %v366 = vpop.f32.mrf.mxu0
      %v367 = vadd.f32 0.0, %v366
      %v368 = vpop.f32.mrf.mxu0
      %369 = vmatprep.mubr.bf16.mxu0 0
      %370 = vmatmul.mubr.bf16.gmra.mxu0 %v298
      %v371 = vpop.f32.mrf.mxu0
      %v372 = vadd.f32 0.0, %v371
      %v373 = vpop.f32.mrf.mxu0
      %v374 = vadd.f32 0.0, %v373
      %v375 = vpop.f32.mrf.mxu0
      %v376 = vadd.f32 0.0, %v375
      %v377 = vpop.f32.mrf.mxu0
      %v378 = vadd.f32 0.0, %v377
      %379 = vmatprep.mubr.bf16.mxu0 0
      %380 = vmatmul.mubr.bf16.gmra.mxu0 %v301
      %v381 = vpop.f32.mrf.mxu0
      %v382 = vadd.f32 0.0, %v381
      %v383 = vpop.f32.mrf.mxu0
      %v384 = vadd.f32 0.0, %v383
      %v385 = vpop.f32.mrf.mxu0
      %v386 = vadd.f32 0.0, %v385
      %v387 = vpop.f32.mrf.mxu0
      %v388 = vadd.f32 0.0, %v387
      %389 = vmatprep.mubr.bf16.mxu0 0
      %390 = vmatmul.mubr.bf16.gmra.mxu0 %v304
      %v391 = vpop.f32.mrf.mxu0
      %v392 = vadd.f32 0.0, %v391
      %v393 = vpop.f32.mrf.mxu0
      %v394 = vadd.f32 0.0, %v393
      %v395 = vpop.f32.mrf.mxu0
      %v396 = vadd.f32 0.0, %v395
      %v397 = vpop.f32.mrf.mxu0
      %v398 = vadd.f32 0.0, %v397
      %399 = vmatprep.mubr.bf16.mxu0 0
      %400 = vmatmul.mubr.bf16.gmra.mxu0 %v307
      %v401 = vpop.f32.mrf.mxu0
      %v402 = vadd.f32 0.0, %v401
      %v403 = vpop.f32.mrf.mxu0
      %v404 = vadd.f32 0.0, %v403
      %v405 = vpop.f32.mrf.mxu0
      %v406 = vadd.f32 0.0, %v405
      %v407 = vpop.f32.mrf.mxu0
      %v408 = vadd.f32 0.0, %v407
      %409 = vmatprep.mubr.bf16.mxu0 0
      %410 = vmatmul.mubr.bf16.gmra.mxu0 %v310
      %v411 = vpop.f32.mrf.mxu0
      %v412 = vadd.f32 0.0, %v411
      %v413 = vpop.f32.mrf.mxu0
      %v414 = vadd.f32 0.0, %v413
      %v415 = vpop.f32.mrf.mxu0
      %v416 = vadd.f32 0.0, %v415
      %v417 = vpop.f32.mrf.mxu0
      %v418 = vadd.f32 0.0, %v417
      %419 = vmatprep.mubr.bf16.mxu0 0
      %420 = vmatmul.mubr.bf16.gmra.mxu0 %v313
      %v421 = vpop.f32.mrf.mxu0
      %v422 = vadd.f32 0.0, %v421
      %v423 = vpop.f32.mrf.mxu0
      %v424 = vadd.f32 0.0, %v423
      %v425 = vpop.f32.mrf.mxu0
      %v426 = vadd.f32 0.0, %v425
      %v427 = vpop.f32.mrf.mxu0
      %v428 = vadd.f32 0.0, %v427
      %429 = vmatprep.mubr.bf16.mxu0 0
      %430 = vmatmul.mubr.bf16.gmra.mxu0 %v316
      %v431 = vpop.f32.mrf.mxu0
      %v432 = vadd.f32 0.0, %v431
      %v433 = vpop.f32.mrf.mxu0
      %v434 = vadd.f32 0.0, %v433
      %v435 = vpop.f32.mrf.mxu0
      %v436 = vadd.f32 0.0, %v435
      %v437 = vpop.f32.mrf.mxu0
      %v438 = vadd.f32 0.0, %v437
      %439 = vmatprep.mubr.bf16.mxu0 0
      %440 = vmatmul.mubr.bf16.gmra.mxu0 %v319
      %v441 = vpop.f32.mrf.mxu0
      %v442 = vadd.f32 0.0, %v441
      %v443 = vpop.f32.mrf.mxu0
      %v444 = vadd.f32 0.0, %v443
      %v445 = vpop.f32.mrf.mxu0
      %v446 = vpop.f32.mrf.mxu0
      %447 = vdwg.mxu0
      %vm463 = vcmask 1046528
      %v464 = vrot.slane %v356, 1
      %v465 = vrot.slane %v359, 1
      %v466 = vsel %vm463, %v464, %v465
      %v467 = vrot.slane %v364, 1
      %v468 = vsel %vm463, %v465, %v467
      %v469 = vrot.slane %v367, 1
      %v470 = vsel %vm463, %v467, %v469
      %v471 = vrot.slane %v372, 1
      %v472 = vsel %vm463, %v469, %v471
      %v473 = vrot.slane %v376, 1
      %v474 = vsel %vm463, %v471, %v473
      %v475 = vrot.slane %v382, 1
      %v476 = vsel %vm463, %v473, %v475
      %v477 = vrot.slane %v386, 1
      %v478 = vsel %vm463, %v475, %v477
      %v479 = vrot.slane %v392, 1
      %v480 = vsel %vm463, %v477, %v479
      %v481 = vrot.slane %v396, 1
      %v482 = vsel %vm463, %v479, %v481
      %v483 = vrot.slane %v402, 1
      %v484 = vsel %vm463, %v481, %v483
      %v485 = vrot.slane %v406, 1
      %v486 = vsel %vm463, %v483, %v485
      %v487 = vrot.slane %v412, 1
      %v488 = vsel %vm463, %v485, %v487
      %v489 = vrot.slane %v416, 1
      %v490 = vsel %vm463, %v487, %v489
      %v491 = vrot.slane %v422, 1
      %v492 = vsel %vm463, %v489, %v491
      %493 = vrot.lane.b32.xlu0 %v466, 112
      %v494 = vpop.permute.xlu0 %493
      %495 = vrot.lane.b32.xlu0 %v468, 112
      %v496 = vpop.permute.xlu0 %495
      %497 = vrot.lane.b32.xlu0 %v470, 112
      %v498 = vpop.permute.xlu0 %497
      %499 = vrot.lane.b32.xlu0 %v472, 112
      %v500 = vpop.permute.xlu0 %499
      %501 = vrot.lane.b32.xlu0 %v474, 112
      %v502 = vpop.permute.xlu0 %501
      %503 = vrot.lane.b32.xlu0 %v476, 112
      %v504 = vpop.permute.xlu0 %503
      %505 = vrot.lane.b32.xlu0 %v478, 112
      %v506 = vpop.permute.xlu0 %505
      %507 = vrot.lane.b32.xlu0 %v480, 112
      %v508 = vpop.permute.xlu0 %507
      %509 = vrot.lane.b32.xlu0 %v482, 112
      %v510 = vpop.permute.xlu0 %509
      %511 = vrot.lane.b32.xlu0 %v484, 112
      %v512 = vpop.permute.xlu0 %511
      %513 = vrot.lane.b32.xlu0 %v486, 112
      %v514 = vpop.permute.xlu0 %513
      %515 = vrot.lane.b32.xlu0 %v488, 112
      %v516 = vpop.permute.xlu0 %515
      %517 = vrot.lane.b32.xlu0 %v490, 112
      %v518 = vpop.permute.xlu0 %517
      %519 = vrot.lane.b32.xlu0 %v492, 112
      %v520 = vpop.permute.xlu0 %519
      %v535 = vadd.f32 %v356, %v494
      %v536 = vadd.f32 %v359, %v496
      %v537 = vadd.f32 %v364, %v498
      %v538 = vadd.f32 %v367, %v500
      %v539 = vadd.f32 %v372, %v502
      %v540 = vadd.f32 %v376, %v504
      %v541 = vadd.f32 %v382, %v506
      %v542 = vadd.f32 %v386, %v508
      %v543 = vadd.f32 %v392, %v510
      %v544 = vadd.f32 %v396, %v512
      %v545 = vadd.f32 %v402, %v514
      %v546 = vadd.f32 %v406, %v516
      %v547 = vadd.f32 %v412, %v518
      %v548 = vadd.f32 %v416, %v520
      %vm549 = vcmask 1045504
      %v550 = vrot.slane %v356, 2
      %v551 = vrot.slane %v359, 2
      %v552 = vsel %vm549, %v550, %v551
      %v553 = vrot.slane %v364, 2
      %v554 = vsel %vm549, %v551, %v553
      %v555 = vrot.slane %v367, 2
      %v556 = vsel %vm549, %v553, %v555
      %v557 = vrot.slane %v372, 2
      %v558 = vsel %vm549, %v555, %v557
      %v559 = vrot.slane %v376, 2
      %v560 = vsel %vm549, %v557, %v559
      %v561 = vrot.slane %v382, 2
      %v562 = vsel %vm549, %v559, %v561
      %v563 = vrot.slane %v386, 2
      %v564 = vsel %vm549, %v561, %v563
      %v565 = vrot.slane %v392, 2
      %v566 = vsel %vm549, %v563, %v565
      %v567 = vrot.slane %v396, 2
      %v568 = vsel %vm549, %v565, %v567
      %v569 = vrot.slane %v402, 2
      %v570 = vsel %vm549, %v567, %v569
      %v571 = vrot.slane %v406, 2
      %v572 = vsel %vm549, %v569, %v571
      %v573 = vrot.slane %v412, 2
      %v574 = vsel %vm549, %v571, %v573
      %v575 = vrot.slane %v416, 2
      %v576 = vsel %vm549, %v573, %v575
      %v577 = vrot.slane %v422, 2
      %v578 = vsel %vm549, %v575, %v577
      %579 = vrot.lane.b32.xlu0 %v552, 96
      %v580 = vpop.permute.xlu0 %579
      %581 = vrot.lane.b32.xlu0 %v554, 96
      %v582 = vpop.permute.xlu0 %581
      %583 = vrot.lane.b32.xlu0 %v556, 96
      %v584 = vpop.permute.xlu0 %583
      %585 = vrot.lane.b32.xlu0 %v558, 96
      %v586 = vpop.permute.xlu0 %585
      %587 = vrot.lane.b32.xlu0 %v560, 96
      %v588 = vpop.permute.xlu0 %587
      %589 = vrot.lane.b32.xlu0 %v562, 96
      %v590 = vpop.permute.xlu0 %589
      %591 = vrot.lane.b32.xlu0 %v564, 96
      %v592 = vpop.permute.xlu0 %591
      %593 = vrot.lane.b32.xlu0 %v566, 96
      %v594 = vpop.permute.xlu0 %593
      %595 = vrot.lane.b32.xlu0 %v568, 96
      %v596 = vpop.permute.xlu0 %595
      %597 = vrot.lane.b32.xlu0 %v570, 96
      %v598 = vpop.permute.xlu0 %597
      %599 = vrot.lane.b32.xlu0 %v572, 96
      %v600 = vpop.permute.xlu0 %599
      %601 = vrot.lane.b32.xlu0 %v574, 96
      %v602 = vpop.permute.xlu0 %601
      %603 = vrot.lane.b32.xlu0 %v576, 96
      %v604 = vpop.permute.xlu0 %603
      %605 = vrot.lane.b32.xlu0 %v578, 96
      %v606 = vpop.permute.xlu0 %605
      %v621 = vadd.f32 %v535, %v580
      %v622 = vadd.f32 %v536, %v582
      %v623 = vadd.f32 %v537, %v584
      %v624 = vadd.f32 %v538, %v586
      %v625 = vadd.f32 %v539, %v588
      %v626 = vadd.f32 %v540, %v590
      %v627 = vadd.f32 %v541, %v592
      %v628 = vadd.f32 %v542, %v594
      %v629 = vadd.f32 %v543, %v596
      %v630 = vadd.f32 %v544, %v598
      %v631 = vadd.f32 %v545, %v600
      %v632 = vadd.f32 %v546, %v602
      %v633 = vadd.f32 %v547, %v604
      %v634 = vadd.f32 %v548, %v606
      %636 = vrot.lane.b32.xlu0 %v364, 80
      %v637 = vpop.permute.xlu0 %636
      %638 = vrot.lane.b32.xlu0 %v367, 80
      %v639 = vpop.permute.xlu0 %638
      %640 = vrot.lane.b32.xlu0 %v372, 80
      %v641 = vpop.permute.xlu0 %640
      %642 = vrot.lane.b32.xlu0 %v376, 80
      %v643 = vpop.permute.xlu0 %642
      %644 = vrot.lane.b32.xlu0 %v382, 80
      %v645 = vpop.permute.xlu0 %644
      %646 = vrot.lane.b32.xlu0 %v386, 80
      %v647 = vpop.permute.xlu0 %646
      %648 = vrot.lane.b32.xlu0 %v392, 80
      %v649 = vpop.permute.xlu0 %648
      %650 = vrot.lane.b32.xlu0 %v396, 80
      %v651 = vpop.permute.xlu0 %650
      %652 = vrot.lane.b32.xlu0 %v402, 80
      %v653 = vpop.permute.xlu0 %652
      %654 = vrot.lane.b32.xlu0 %v406, 80
      %v655 = vpop.permute.xlu0 %654
      %656 = vrot.lane.b32.xlu0 %v412, 80
      %v657 = vpop.permute.xlu0 %656
      %658 = vrot.lane.b32.xlu0 %v416, 80
      %v659 = vpop.permute.xlu0 %658
      %660 = vrot.lane.b32.xlu0 %v422, 80
      %v661 = vpop.permute.xlu0 %660
      %662 = vrot.lane.b32.xlu0 %v426, 80
      %v663 = vpop.permute.xlu0 %662
      %v678 = vadd.f32 %v621, %v637
      %v679 = vadd.f32 %v622, %v639
      %v680 = vadd.f32 %v623, %v641
      %v681 = vadd.f32 %v624, %v643
      %v682 = vadd.f32 %v625, %v645
      %v683 = vadd.f32 %v626, %v647
      %v684 = vadd.f32 %v627, %v649
      %v685 = vadd.f32 %v628, %v651
      %v686 = vadd.f32 %v629, %v653
      %v687 = vadd.f32 %v630, %v655
      %v688 = vadd.f32 %v631, %v657
      %v689 = vadd.f32 %v632, %v659
      %v690 = vadd.f32 %v633, %v661
      %v691 = vadd.f32 %v634, %v663
      %v693 = vrot.slane %v426, 1
      %v694 = vsel %vm463, %v491, %v693
      %v695 = vrot.slane %v432, 1
      %v696 = vsel %vm463, %v693, %v695
      %697 = vrot.lane.b32.xlu0 %v470, 64
      %v698 = vpop.permute.xlu0 %697
      %699 = vrot.lane.b32.xlu0 %v472, 64
      %v700 = vpop.permute.xlu0 %699
      %701 = vrot.lane.b32.xlu0 %v474, 64
      %v702 = vpop.permute.xlu0 %701
      %703 = vrot.lane.b32.xlu0 %v476, 64
      %v704 = vpop.permute.xlu0 %703
      %705 = vrot.lane.b32.xlu0 %v478, 64
      %v706 = vpop.permute.xlu0 %705
      %707 = vrot.lane.b32.xlu0 %v480, 64
      %v708 = vpop.permute.xlu0 %707
      %709 = vrot.lane.b32.xlu0 %v482, 64
      %v710 = vpop.permute.xlu0 %709
      %711 = vrot.lane.b32.xlu0 %v484, 64
      %v712 = vpop.permute.xlu0 %711
      %713 = vrot.lane.b32.xlu0 %v486, 64
      %v714 = vpop.permute.xlu0 %713
      %715 = vrot.lane.b32.xlu0 %v488, 64
      %v716 = vpop.permute.xlu0 %715
      %717 = vrot.lane.b32.xlu0 %v490, 64
      %v718 = vpop.permute.xlu0 %717
      %719 = vrot.lane.b32.xlu0 %v492, 64
      %v720 = vpop.permute.xlu0 %719
      %721 = vrot.lane.b32.xlu0 %v694, 64
      %v722 = vpop.permute.xlu0 %721
      %723 = vrot.lane.b32.xlu0 %v696, 64
      %v724 = vpop.permute.xlu0 %723
      %v739 = vadd.f32 %v678, %v698
      %v740 = vadd.f32 %v679, %v700
      %v741 = vadd.f32 %v680, %v702
      %v742 = vadd.f32 %v681, %v704
      %v743 = vadd.f32 %v682, %v706
      %v744 = vadd.f32 %v683, %v708
      %v745 = vadd.f32 %v684, %v710
      %v746 = vadd.f32 %v685, %v712
      %v747 = vadd.f32 %v686, %v714
      %v748 = vadd.f32 %v687, %v716
      %v749 = vadd.f32 %v688, %v718
      %v750 = vadd.f32 %v689, %v720
      %v751 = vadd.f32 %v690, %v722
      %v752 = vadd.f32 %v691, %v724
      %v753 = vrot.slane %v426, 2
      %v754 = vsel %vm549, %v577, %v753
      %v755 = vrot.slane %v432, 2
      %v756 = vsel %vm549, %v753, %v755
      %757 = vrot.lane.b32.xlu0 %v556, 48
      %v758 = vpop.permute.xlu0 %757
      %759 = vrot.lane.b32.xlu0 %v558, 48
      %v760 = vpop.permute.xlu0 %759
      %761 = vrot.lane.b32.xlu0 %v560, 48
      %v762 = vpop.permute.xlu0 %761
      %763 = vrot.lane.b32.xlu0 %v562, 48
      %v764 = vpop.permute.xlu0 %763
      %765 = vrot.lane.b32.xlu0 %v564, 48
      %v766 = vpop.permute.xlu0 %765
      %767 = vrot.lane.b32.xlu0 %v566, 48
      %v768 = vpop.permute.xlu0 %767
      %769 = vrot.lane.b32.xlu0 %v568, 48
      %v770 = vpop.permute.xlu0 %769
      %771 = vrot.lane.b32.xlu0 %v570, 48
      %v772 = vpop.permute.xlu0 %771
      %773 = vrot.lane.b32.xlu0 %v572, 48
      %v774 = vpop.permute.xlu0 %773
      %775 = vrot.lane.b32.xlu0 %v574, 48
      %v776 = vpop.permute.xlu0 %775
      %777 = vrot.lane.b32.xlu0 %v576, 48
      %v778 = vpop.permute.xlu0 %777
      %779 = vrot.lane.b32.xlu0 %v578, 48
      %v780 = vpop.permute.xlu0 %779
      %781 = vrot.lane.b32.xlu0 %v754, 48
      %v782 = vpop.permute.xlu0 %781
      %783 = vrot.lane.b32.xlu0 %v756, 48
      %v784 = vpop.permute.xlu0 %783
      %v799 = vadd.f32 %v739, %v758
      %v800 = vadd.f32 %v740, %v760
      %v801 = vadd.f32 %v741, %v762
      %v802 = vadd.f32 %v742, %v764
      %v803 = vadd.f32 %v743, %v766
      %v804 = vadd.f32 %v744, %v768
      %v805 = vadd.f32 %v745, %v770
      %v806 = vadd.f32 %v746, %v772
      %v807 = vadd.f32 %v747, %v774
      %v808 = vadd.f32 %v748, %v776
      %v809 = vadd.f32 %v749, %v778
      %v810 = vadd.f32 %v750, %v780
      %v811 = vadd.f32 %v751, %v782
      %v812 = vadd.f32 %v752, %v784
      %814 = vrot.lane.b32.xlu0 %v372, 32
      %v815 = vpop.permute.xlu0 %814
      %816 = vrot.lane.b32.xlu0 %v376, 32
      %v817 = vpop.permute.xlu0 %816
      %818 = vrot.lane.b32.xlu0 %v382, 32
      %v819 = vpop.permute.xlu0 %818
      %820 = vrot.lane.b32.xlu0 %v386, 32
      %v821 = vpop.permute.xlu0 %820
      %822 = vrot.lane.b32.xlu0 %v392, 32
      %v823 = vpop.permute.xlu0 %822
      %824 = vrot.lane.b32.xlu0 %v396, 32
      %v825 = vpop.permute.xlu0 %824
      %826 = vrot.lane.b32.xlu0 %v402, 32
      %v827 = vpop.permute.xlu0 %826
      %828 = vrot.lane.b32.xlu0 %v406, 32
      %v829 = vpop.permute.xlu0 %828
      %830 = vrot.lane.b32.xlu0 %v412, 32
      %v831 = vpop.permute.xlu0 %830
      %832 = vrot.lane.b32.xlu0 %v416, 32
      %v833 = vpop.permute.xlu0 %832
      %834 = vrot.lane.b32.xlu0 %v422, 32
      %v835 = vpop.permute.xlu0 %834
      %836 = vrot.lane.b32.xlu0 %v426, 32
      %v837 = vpop.permute.xlu0 %836
      %838 = vrot.lane.b32.xlu0 %v432, 32
      %v839 = vpop.permute.xlu0 %838
      %840 = vrot.lane.b32.xlu0 %v436, 32
      %v841 = vpop.permute.xlu0 %840
      %v856 = vadd.f32 %v799, %v815
      %v857 = vadd.f32 %v800, %v817
      %v858 = vadd.f32 %v801, %v819
      %v859 = vadd.f32 %v802, %v821
      %v860 = vadd.f32 %v803, %v823
      %v861 = vadd.f32 %v804, %v825
      %v862 = vadd.f32 %v805, %v827
      %v863 = vadd.f32 %v806, %v829
      %v864 = vadd.f32 %v807, %v831
      %v865 = vadd.f32 %v808, %v833
      %v866 = vadd.f32 %v809, %v835
      %v867 = vadd.f32 %v810, %v837
      %v868 = vadd.f32 %v811, %v839
      %v869 = vadd.f32 %v812, %v841
      %v871 = vrot.slane %v436, 1
      %v872 = vsel %vm463, %v695, %v871
      %v873 = vrot.slane %v442, 1
      %v874 = vsel %vm463, %v871, %v873
      %875 = vrot.lane.b32.xlu0 %v474, 16
      %v876 = vpop.permute.xlu0 %875
      %877 = vrot.lane.b32.xlu0 %v476, 16
      %v878 = vpop.permute.xlu0 %877
      %879 = vrot.lane.b32.xlu0 %v478, 16
      %v880 = vpop.permute.xlu0 %879
      %881 = vrot.lane.b32.xlu0 %v480, 16
      %v882 = vpop.permute.xlu0 %881
      %883 = vrot.lane.b32.xlu0 %v482, 16
      %v884 = vpop.permute.xlu0 %883
      %885 = vrot.lane.b32.xlu0 %v484, 16
      %v886 = vpop.permute.xlu0 %885
      %887 = vrot.lane.b32.xlu0 %v486, 16
      %v888 = vpop.permute.xlu0 %887
      %889 = vrot.lane.b32.xlu0 %v488, 16
      %v890 = vpop.permute.xlu0 %889
      %891 = vrot.lane.b32.xlu0 %v490, 16
      %v892 = vpop.permute.xlu0 %891
      %893 = vrot.lane.b32.xlu0 %v492, 16
      %v894 = vpop.permute.xlu0 %893
      %895 = vrot.lane.b32.xlu0 %v694, 16
      %v896 = vpop.permute.xlu0 %895
      %897 = vrot.lane.b32.xlu0 %v696, 16
      %v898 = vpop.permute.xlu0 %897
      %899 = vrot.lane.b32.xlu0 %v872, 16
      %v900 = vpop.permute.xlu0 %899
      %901 = vrot.lane.b32.xlu0 %v874, 16
      %v902 = vpop.permute.xlu0 %901
      %v917 = vadd.f32 %v856, %v876
      %v918 = vadd.f32 %v857, %v878
      %v919 = vadd.f32 %v858, %v880
      %v920 = vadd.f32 %v859, %v882
      %v921 = vadd.f32 %v860, %v884
      %v922 = vadd.f32 %v861, %v886
      %v923 = vadd.f32 %v862, %v888
      %v924 = vadd.f32 %v863, %v890
      %v925 = vadd.f32 %v864, %v892
      %v926 = vadd.f32 %v865, %v894
      %v927 = vadd.f32 %v866, %v896
      %v928 = vadd.f32 %v867, %v898
      %v929 = vadd.f32 %v868, %v900
      %v930 = vadd.f32 %v869, %v902
      %v946 = vrot.slane %v374, 2
      %v947 = vrot.slane %v378, 2
      %v948 = vsel %vm549, %v946, %v947
      %v949 = vrot.slane %v384, 2
      %v950 = vsel %vm549, %v947, %v949
      %v951 = vrot.slane %v388, 2
      %v952 = vsel %vm549, %v949, %v951
      %v953 = vrot.slane %v394, 2
      %v954 = vsel %vm549, %v951, %v953
      %v955 = vrot.slane %v398, 2
      %v956 = vsel %vm549, %v953, %v955
      %v957 = vrot.slane %v404, 2
      %v958 = vsel %vm549, %v955, %v957
      %v959 = vrot.slane %v408, 2
      %v960 = vsel %vm549, %v957, %v959
      %v961 = vrot.slane %v414, 2
      %v962 = vsel %vm549, %v959, %v961
      %v963 = vrot.slane %v418, 2
      %v964 = vsel %vm549, %v961, %v963
      %v965 = vrot.slane %v424, 2
      %v966 = vsel %vm549, %v963, %v965
      %v967 = vrot.slane %v428, 2
      %v968 = vsel %vm549, %v965, %v967
      %v969 = vrot.slane %v434, 2
      %v970 = vsel %vm549, %v967, %v969
      %v971 = vrot.slane %v438, 2
      %v972 = vsel %vm549, %v969, %v971
      %v973 = vrot.slane %v444, 2
      %v974 = vsel %vm549, %v971, %v973
      %v989 = vadd.f32 %v917, %v948
      %v990 = vadd.f32 %v918, %v950
      %v991 = vadd.f32 %v919, %v952
      %v992 = vadd.f32 %v920, %v954
      %v993 = vadd.f32 %v921, %v956
      %v994 = vadd.f32 %v922, %v958
      %v995 = vadd.f32 %v923, %v960
      %v996 = vadd.f32 %v924, %v962
      %v997 = vadd.f32 %v925, %v964
      %v998 = vadd.f32 %v926, %v966
      %v999 = vadd.f32 %v927, %v968
      %v1000 = vadd.f32 %v928, %v970
      %v1001 = vadd.f32 %v929, %v972
      %v1002 = vadd.f32 %v930, %v974
      %v1003 = vpack.c.bf16 %v990, %v989
      %v1005 = vunpack.c.l.b16 %v1003
      %v1006 = vunpack.c.h.b16 %v1003
      %v1007 = vpack.c.b16 %v1005, %v1005
      %v1008 = vpack.c.b16 %v1006, %v1006
      %vm1011 = vcmask 125952
      %1012 = vst.msk [vmem:[%s167] sm:$0xf] %vm1011, %v1007
      %vm1013 = vcmask 124928
      %1014 = vst.msk [vmem:[%s167 + $0x4] sm:$0x7] %vm1013, %v1008
      %v1015 = vpack.c.bf16 %v992, %v991
      %v1017 = vunpack.c.l.b16 %v1015
      %v1018 = vunpack.c.h.b16 %v1015
      %v1019 = vpack.c.b16 %v1017, %v1017
      %v1020 = vpack.c.b16 %v1018, %v1018
      %s1023 = scalar_lea.vmem %s167, 8
      %1024 = vst.msk [vmem:[%s1023] sm:$0xf] %vm1011, %v1019
      %1025 = vst.msk [vmem:[%s1023 + $0x4] sm:$0x7] %vm1013, %v1020
      %v1026 = vpack.c.bf16 %v994, %v993
      %v1028 = vunpack.c.l.b16 %v1026
      %v1029 = vunpack.c.h.b16 %v1026
      %v1030 = vpack.c.b16 %v1028, %v1028
      %v1031 = vpack.c.b16 %v1029, %v1029
      %s1034 = scalar_lea.vmem %s167, 16
      %1035 = vst.msk [vmem:[%s1034] sm:$0xf] %vm1011, %v1030
      %1036 = vst.msk [vmem:[%s1034 + $0x4] sm:$0x7] %vm1013, %v1031
      %v1037 = vpack.c.bf16 %v996, %v995
      %v1039 = vunpack.c.l.b16 %v1037
      %v1040 = vunpack.c.h.b16 %v1037
      %v1041 = vpack.c.b16 %v1039, %v1039
      %v1042 = vpack.c.b16 %v1040, %v1040
      %s1045 = scalar_lea.vmem %s167, 24
      %1046 = vst.msk [vmem:[%s1045] sm:$0xf] %vm1011, %v1041
      %1047 = vst.msk [vmem:[%s1045 + $0x4] sm:$0x7] %vm1013, %v1042
      %v1048 = vpack.c.bf16 %v998, %v997
      %v1050 = vunpack.c.l.b16 %v1048
      %v1051 = vunpack.c.h.b16 %v1048
      %v1052 = vpack.c.b16 %v1050, %v1050
      %v1053 = vpack.c.b16 %v1051, %v1051
      %s1056 = scalar_lea.vmem %s167, 32
      %1057 = vst.msk [vmem:[%s1056] sm:$0xf] %vm1011, %v1052
      %1058 = vst.msk [vmem:[%s1056 + $0x4] sm:$0x7] %vm1013, %v1053
      %v1059 = vpack.c.bf16 %v1000, %v999
      %v1061 = vunpack.c.l.b16 %v1059
      %v1062 = vunpack.c.h.b16 %v1059
      %v1063 = vpack.c.b16 %v1061, %v1061
      %v1064 = vpack.c.b16 %v1062, %v1062
      %s1067 = scalar_lea.vmem %s167, 40
      %1068 = vst.msk [vmem:[%s1067] sm:$0xf] %vm1011, %v1063
      %1069 = vst.msk [vmem:[%s1067 + $0x4] sm:$0x7] %vm1013, %v1064
      %v1070 = vpack.c.bf16 %v1002, %v1001
      %v1072 = vunpack.c.l.b16 %v1070
      %v1073 = vunpack.c.h.b16 %v1070
      %v1074 = vpack.c.b16 %v1072, %v1072
      %v1075 = vpack.c.b16 %v1073, %v1073
      %s1078 = scalar_lea.vmem %s167, 48
      %1079 = vst.msk [vmem:[%s1078] sm:$0xf] %vm1011, %v1074
      %1080 = vst.msk [vmem:[%s1078 + $0x4] sm:$0x7] %vm1013, %v1075
      %s1081 = smul.u32 7, %s18
      %p1082 = scmp.lt.s32.totalorder %s17, 1
      %s1083 = scalar_select %p1082, %s17, 1
      %p1084 = scmp.lt.s32.totalorder %s1081, 13
      %s1085 = scalar_select %p1084, %s1081, 13
      %s1086 = smul.addr %s1085, 2
      %s1087 = smul.addr %s1083, 28
      %s1088 = sadd.s32 %s1086, %s1087
      %s1089 = smul.addr %s1088, 4
      %s1090 = scalar_lea.vmem %s2, %s1089
      // Predicated region
      $region29: #{densenet_forward.15} parent=27 // pred_check
        %p1091 = pneg %p92
      $region30: #{densenet_forward.15} parent=27 // pred_check_branch
        %1093 = sbr.rel (%p1091) target = $region32
      $region31: #{densenet_forward.15} parent=27 // pred_region
        %s1094 = smul.u32 7, %s18
      $region32: #{densenet_forward.15} parent=27 // pred_fallthru
        _
    $region28: #{densenet_forward.15} parent=5 // pred_fallthru
      _
    %p1095 = scmp.le.s32.totalorder 2, %s8
    // Predicated region
    $region33: #{densenet_forward.15} parent=5 // pred_check
      %p1096 = pneg %p1095
    $region34: #{densenet_forward.15} parent=5 // pred_check_branch
      %1098 = sbr.rel (%p1096) target = $region36
    $region35: #{densenet_forward.15} parent=5 // pred_region
      %s1099 = ssub.s32 %s8, 2
      // Predicated region
      $region37: #{densenet_forward.15} parent=35 // pred_check
        %p1100 = pneg %p98
      $region38: #{densenet_forward.15} parent=35 // pred_check_branch
        %1102 = sbr.rel (%p1100) target = $region40
      $region39: #{densenet_forward.15} parent=35 // pred_region
        %s1103 = smul.u32 7, %s20
        %p1104 = scmp.lt.s32.totalorder %s19, 1
        %s1105 = scalar_select %p1104, %s19, 1
        %p1106 = scmp.lt.s32.totalorder %s1103, 13
        %s1107 = scalar_select %p1106, %s1103, 13
        %s1108 = smul.addr %s1107, 2
        %s1109 = smul.addr %s1105, 28
        %s1110 = sadd.s32 %s1108, %s1109
        %s1111 = smul.addr %s1110, 4
        %s1112 = scalar_lea.vmem %s2, %s1111
      $region40: #{densenet_forward.15} parent=35 // pred_fallthru
        _
    $region36: #{densenet_forward.15} parent=5 // pred_fallthru
      _
  $region6: #{densenet_forward.15} parent=0 // loop_footer
    %s12 = sadd.s32 1, %s8
  $region7: #{densenet_forward.15} parent=0 // loop_footer_branch
    %7 = sbr.rel target = $region3
  $region8: #{densenet_forward.15} parent=0 // loop_exit
    _

// kernel: densenet_forward.18
$region0: #{densenet_forward.18}
  #allocation0 [shape = 'u32[]', space=smem, size = 0x4, offset = 0x4, fixed_abs, tag = 'smem constant byte address 0x4 - core index']
  #allocation1 [shape = 'u32[144,128]{1,0:T(1,128)}', space=vmem, size = 0x12000, scoped, tag = 'internal scratch']
  %s0 = inlined_call_operand.vmem [shape: bf16[98,64], index: 0, kind: input, shape index: {}]
  %s1 = inlined_call_operand.vmem [shape: bf16[98,64], index: 1, kind: input, shape index: {}]
  %s2 = inlined_call_operand.vmem [shape: bf16[98,64], index: 2, kind: input, shape index: {}]
  %s3 = inlined_call_operand.vmem [shape: bf16[98,64], index: 3, kind: input, shape index: {}]
  %s4 = inlined_call_operand.vmem [shape: f32[1,64], index: 4, kind: input, shape index: {}]
  %s5 = inlined_call_operand.vmem [shape: f32[1,64], index: 5, kind: input, shape index: {}]
  %s6 = inlined_call_operand.vmem [shape: bf16[64,32], index: 6, kind: input, shape index: {}]
  %s7 = inlined_call_operand.vmem [shape: bf16[98,32], index: 7, kind: output, shape index: {}]
  %s8 = sld [smem:[#allocation0]]
  $region38: #{densenet_forward.18} parent=0
    _
  %s10 = ssub.s32 1, %s8
  %s11 = scalar_select 0, %s10, %s8
  // Predicated region
  $region2: #{densenet_forward.18} parent=0 // pred_check
    _
  $region3: #{densenet_forward.18} parent=0 // pred_check_branch
    %13 = sbr.rel (0) target = $region5
  $region4: #{densenet_forward.18} parent=0 // pred_region
    _
  $region5: #{densenet_forward.18} parent=0 // pred_fallthru
    _
  // Predicated region
  $region6: #{densenet_forward.18} parent=0 // pred_check
    _
  $region7: #{densenet_forward.18} parent=0 // pred_check_branch
    %15 = sbr.rel (0) target = $region9
  $region8: #{densenet_forward.18} parent=0 // pred_region
    _
  $region9: #{densenet_forward.18} parent=0 // pred_fallthru
    _
  // Predicated region
  $region10: #{densenet_forward.18} parent=0 // pred_check
    _
  $region11: #{densenet_forward.18} parent=0 // pred_check_branch
    %17 = sbr.rel (0) target = $region13
  $region12: #{densenet_forward.18} parent=0 // pred_region
    _
  $region13: #{densenet_forward.18} parent=0 // pred_fallthru
    _
  // Predicated region
  $region14: #{densenet_forward.18} parent=0 // pred_check
    _
  $region15: #{densenet_forward.18} parent=0 // pred_check_branch
    %19 = sbr.rel (0) target = $region17
  $region16: #{densenet_forward.18} parent=0 // pred_region
    _
  $region17: #{densenet_forward.18} parent=0 // pred_fallthru
    _
  // Predicated region
  $region18: #{densenet_forward.18} parent=0 // pred_check
    _
  $region19: #{densenet_forward.18} parent=0 // pred_check_branch
    %21 = sbr.rel (0) target = $region21
  $region20: #{densenet_forward.18} parent=0 // pred_region
    _
  $region21: #{densenet_forward.18} parent=0 // pred_fallthru
    _
  // Predicated region
  $region22: #{densenet_forward.18} parent=0 // pred_check
    _
  $region23: #{densenet_forward.18} parent=0 // pred_check_branch
    %23 = sbr.rel (0) target = $region25
  $region24: #{densenet_forward.18} parent=0 // pred_region
    _
  $region25: #{densenet_forward.18} parent=0 // pred_fallthru
    _
  // Predicated region
  $region26: #{densenet_forward.18} parent=0 // pred_check
    _
  $region27: #{densenet_forward.18} parent=0 // pred_check_branch
    %25 = sbr.rel (0) target = $region29
  $region28: #{densenet_forward.18} parent=0 // pred_region
    _
  $region29: #{densenet_forward.18} parent=0 // pred_fallthru
    _
  %v27 = vld [vmem:[%s4] sm:$0x1]
  %v28 = vld [vmem:[%s5] sm:$0x1]
  %v29 = vld [vmem:[%s0] sm:$0xf]
  %v30 = vld [vmem:[%s0 + $0x4] sm:$0xf]
  %v31 = vld [vmem:[%s0 + $0x8] sm:$0xf]
  %v32 = vld [vmem:[%s0 + $0xc] sm:$0xf]
  %v33 = vld [vmem:[%s0 + $0x10] sm:$0xf]
  %v34 = vld [vmem:[%s0 + $0x14] sm:$0xf]
  %v35 = vld [vmem:[%s0 + $0x18] sm:$0xf]
  %v36 = vld [vmem:[%s0 + $0x1c] sm:$0xf]
  %v37 = vld [vmem:[%s0 + $0x20] sm:$0xf]
  %v38 = vld [vmem:[%s0 + $0x24] sm:$0xf]
  %v39 = vld [vmem:[%s0 + $0x28] sm:$0xf]
  %v40 = vld [vmem:[%s0 + $0x2c] sm:$0xf]
  %v41 = vld [vmem:[%s0 + $0x30] sm:$0x1]
  %v42 = vunpack.c.l.bf16 %v29
  %v43 = vunpack.c.l.bf16 %v30
  %v44 = vunpack.c.l.bf16 %v31
  %v45 = vunpack.c.l.bf16 %v32
  %v46 = vunpack.c.l.bf16 %v33
  %v47 = vunpack.c.l.bf16 %v34
  %v48 = vunpack.c.l.bf16 %v35
  %v49 = vunpack.c.l.bf16 %v36
  %v50 = vunpack.c.l.bf16 %v37
  %v51 = vunpack.c.l.bf16 %v38
  %v52 = vunpack.c.l.bf16 %v39
  %v53 = vunpack.c.l.bf16 %v40
  %v54 = vunpack.c.l.bf16 %v41
  %v56 = vlaneseq
  %v57 = vshrl.u32 %v56, 7
  %v58 = vsub.s32 0, %v57
  %v59 = vrot.slane %v27, %v58
  %v61 = vmul.f32 %v42, %v59
  %v62 = vmul.f32 %v43, %v59
  %v63 = vmul.f32 %v44, %v59
  %v64 = vmul.f32 %v45, %v59
  %v65 = vmul.f32 %v46, %v59
  %v66 = vmul.f32 %v47, %v59
  %v67 = vmul.f32 %v48, %v59
  %v68 = vmul.f32 %v49, %v59
  %v69 = vmul.f32 %v50, %v59
  %v70 = vmul.f32 %v51, %v59
  %v71 = vmul.f32 %v52, %v59
  %v72 = vmul.f32 %v53, %v59
  %v73 = vmul.f32 %v54, %v59
  %v75 = vlaneseq
  %v76 = vshrl.u32 %v75, 7
  %v77 = vsub.s32 0, %v76
  %v78 = vrot.slane %v28, %v77
  %v80 = vadd.f32 %v61, %v78
  %v81 = vadd.f32 %v62, %v78
  %v82 = vadd.f32 %v63, %v78
  %v83 = vadd.f32 %v64, %v78
  %v84 = vadd.f32 %v65, %v78
  %v85 = vadd.f32 %v66, %v78
  %v86 = vadd.f32 %v67, %v78
  %v87 = vadd.f32 %v68, %v78
  %v88 = vadd.f32 %v69, %v78
  %v89 = vadd.f32 %v70, %v78
  %v90 = vadd.f32 %v71, %v78
  %v91 = vadd.f32 %v72, %v78
  %v92 = vadd.f32 %v73, %v78
  %v93 = vmax.f32 %v80, 0.0
  %v94 = vmax.f32 %v81, 0.0
  %v95 = vmax.f32 %v82, 0.0
  %v96 = vmax.f32 %v83, 0.0
  %v97 = vmax.f32 %v84, 0.0
  %v98 = vmax.f32 %v85, 0.0
  %v99 = vmax.f32 %v86, 0.0
  %v100 = vmax.f32 %v87, 0.0
  %v101 = vmax.f32 %v88, 0.0
  %v102 = vmax.f32 %v89, 0.0
  %v103 = vmax.f32 %v90, 0.0
  %v104 = vmax.f32 %v91, 0.0
  %v105 = vmax.f32 %v92, 0.0
  %v106 = vld [vmem:[%s1] sm:$0xf]
  %v107 = vld [vmem:[%s1 + $0x4] sm:$0xf]
  %v108 = vld [vmem:[%s1 + $0x8] sm:$0xf]
  %v109 = vld [vmem:[%s1 + $0xc] sm:$0xf]
  %v110 = vld [vmem:[%s1 + $0x10] sm:$0xf]
  %v111 = vld [vmem:[%s1 + $0x14] sm:$0xf]
  %v112 = vld [vmem:[%s1 + $0x18] sm:$0xf]
  %v113 = vld [vmem:[%s1 + $0x1c] sm:$0xf]
  %v114 = vld [vmem:[%s1 + $0x20] sm:$0xf]
  %v115 = vld [vmem:[%s1 + $0x24] sm:$0xf]
  %v116 = vld [vmem:[%s1 + $0x28] sm:$0xf]
  %v117 = vld [vmem:[%s1 + $0x2c] sm:$0xf]
  %v118 = vld [vmem:[%s1 + $0x30] sm:$0x1]
  %v119 = vunpack.c.l.bf16 %v106
  %v120 = vunpack.c.l.bf16 %v107
  %v121 = vunpack.c.l.bf16 %v108
  %v122 = vunpack.c.l.bf16 %v109
  %v123 = vunpack.c.l.bf16 %v110
  %v124 = vunpack.c.l.bf16 %v111
  %v125 = vunpack.c.l.bf16 %v112
  %v126 = vunpack.c.l.bf16 %v113
  %v127 = vunpack.c.l.bf16 %v114
  %v128 = vunpack.c.l.bf16 %v115
  %v129 = vunpack.c.l.bf16 %v116
  %v130 = vunpack.c.l.bf16 %v117
  %v131 = vunpack.c.l.bf16 %v118
  %v132 = vmul.f32 %v119, %v59
  %v133 = vmul.f32 %v120, %v59
  %v134 = vmul.f32 %v121, %v59
  %v135 = vmul.f32 %v122, %v59
  %v136 = vmul.f32 %v123, %v59
  %v137 = vmul.f32 %v124, %v59
  %v138 = vmul.f32 %v125, %v59
  %v139 = vmul.f32 %v126, %v59
  %v140 = vmul.f32 %v127, %v59
  %v141 = vmul.f32 %v128, %v59
  %v142 = vmul.f32 %v129, %v59
  %v143 = vmul.f32 %v130, %v59
  %v144 = vmul.f32 %v131, %v59
  %v145 = vadd.f32 %v132, %v78
  %v146 = vadd.f32 %v133, %v78
  %v147 = vadd.f32 %v134, %v78
  %v148 = vadd.f32 %v135, %v78
  %v149 = vadd.f32 %v136, %v78
  %v150 = vadd.f32 %v137, %v78
  %v151 = vadd.f32 %v138, %v78
  %v152 = vadd.f32 %v139, %v78
  %v153 = vadd.f32 %v140, %v78
  %v154 = vadd.f32 %v141, %v78
  %v155 = vadd.f32 %v142, %v78
  %v156 = vadd.f32 %v143, %v78
  %v157 = vadd.f32 %v144, %v78
  %v158 = vmax.f32 %v145, 0.0
  %v159 = vmax.f32 %v146, 0.0
  %v160 = vmax.f32 %v147, 0.0
  %v161 = vmax.f32 %v148, 0.0
  %v162 = vmax.f32 %v149, 0.0
  %v163 = vmax.f32 %v150, 0.0
  %v164 = vmax.f32 %v151, 0.0
  %v165 = vmax.f32 %v152, 0.0
  %v166 = vmax.f32 %v153, 0.0
  %v167 = vmax.f32 %v154, 0.0
  %v168 = vmax.f32 %v155, 0.0
  %v169 = vmax.f32 %v156, 0.0
  %v170 = vmax.f32 %v157, 0.0
  %v171 = vadd.f32 %v93, %v158
  %v172 = vadd.f32 %v94, %v159
  %v173 = vadd.f32 %v95, %v160
  %v174 = vadd.f32 %v96, %v161
  %v175 = vadd.f32 %v97, %v162
  %v176 = vadd.f32 %v98, %v163
  %v177 = vadd.f32 %v99, %v164
  %v178 = vadd.f32 %v100, %v165
  %v179 = vadd.f32 %v101, %v166
  %v180 = vadd.f32 %v102, %v167
  %v181 = vadd.f32 %v103, %v168
  %v182 = vadd.f32 %v104, %v169
  %v183 = vadd.f32 %v105, %v170
  %v184 = vld [vmem:[%s2] sm:$0xf]
  %v185 = vld [vmem:[%s2 + $0x4] sm:$0xf]
  %v186 = vld [vmem:[%s2 + $0x8] sm:$0xf]
  %v187 = vld [vmem:[%s2 + $0xc] sm:$0xf]
  %v188 = vld [vmem:[%s2 + $0x10] sm:$0xf]
  %v189 = vld [vmem:[%s2 + $0x14] sm:$0xf]
  %v190 = vld [vmem:[%s2 + $0x18] sm:$0xf]
  %v191 = vld [vmem:[%s2 + $0x1c] sm:$0xf]
  %v192 = vld [vmem:[%s2 + $0x20] sm:$0xf]
  %v193 = vld [vmem:[%s2 + $0x24] sm:$0xf]
  %v194 = vld [vmem:[%s2 + $0x28] sm:$0xf]
  %v195 = vld [vmem:[%s2 + $0x2c] sm:$0xf]
  %v196 = vld [vmem:[%s2 + $0x30] sm:$0x1]
  %v197 = vunpack.c.l.bf16 %v184
  %v198 = vunpack.c.l.bf16 %v185
  %v199 = vunpack.c.l.bf16 %v186
  %v200 = vunpack.c.l.bf16 %v187
  %v201 = vunpack.c.l.bf16 %v188
  %v202 = vunpack.c.l.bf16 %v189
  %v203 = vunpack.c.l.bf16 %v190
  %v204 = vunpack.c.l.bf16 %v191
  %v205 = vunpack.c.l.bf16 %v192
  %v206 = vunpack.c.l.bf16 %v193
  %v207 = vunpack.c.l.bf16 %v194
  %v208 = vunpack.c.l.bf16 %v195
  %v209 = vunpack.c.l.bf16 %v196
  %v210 = vmul.f32 %v197, %v59
  %v211 = vmul.f32 %v198, %v59
  %v212 = vmul.f32 %v199, %v59
  %v213 = vmul.f32 %v200, %v59
  %v214 = vmul.f32 %v201, %v59
  %v215 = vmul.f32 %v202, %v59
  %v216 = vmul.f32 %v203, %v59
  %v217 = vmul.f32 %v204, %v59
  %v218 = vmul.f32 %v205, %v59
  %v219 = vmul.f32 %v206, %v59
  %v220 = vmul.f32 %v207, %v59
  %v221 = vmul.f32 %v208, %v59
  %v222 = vmul.f32 %v209, %v59
  %v223 = vadd.f32 %v210, %v78
  %v224 = vadd.f32 %v211, %v78
  %v225 = vadd.f32 %v212, %v78
  %v226 = vadd.f32 %v213, %v78
  %v227 = vadd.f32 %v214, %v78
  %v228 = vadd.f32 %v215, %v78
  %v229 = vadd.f32 %v216, %v78
  %v230 = vadd.f32 %v217, %v78
  %v231 = vadd.f32 %v218, %v78
  %v232 = vadd.f32 %v219, %v78
  %v233 = vadd.f32 %v220, %v78
  %v234 = vadd.f32 %v221, %v78
  %v235 = vadd.f32 %v222, %v78
  %v236 = vmax.f32 %v223, 0.0
  %v237 = vmax.f32 %v224, 0.0
  %v238 = vmax.f32 %v225, 0.0
  %v239 = vmax.f32 %v226, 0.0
  %v240 = vmax.f32 %v227, 0.0
  %v241 = vmax.f32 %v228, 0.0
  %v242 = vmax.f32 %v229, 0.0
  %v243 = vmax.f32 %v230, 0.0
  %v244 = vmax.f32 %v231, 0.0
  %v245 = vmax.f32 %v232, 0.0
  %v246 = vmax.f32 %v233, 0.0
  %v247 = vmax.f32 %v234, 0.0
  %v248 = vmax.f32 %v235, 0.0
  %v249 = vadd.f32 %v171, %v236
  %v250 = vadd.f32 %v172, %v237
  %v251 = vadd.f32 %v173, %v238
  %v252 = vadd.f32 %v174, %v239
  %v253 = vadd.f32 %v175, %v240
  %v254 = vadd.f32 %v176, %v241
  %v255 = vadd.f32 %v177, %v242
  %v256 = vadd.f32 %v178, %v243
  %v257 = vadd.f32 %v179, %v244
  %v258 = vadd.f32 %v180, %v245
  %v259 = vadd.f32 %v181, %v246
  %v260 = vadd.f32 %v182, %v247
  %v261 = vadd.f32 %v183, %v248
  %v262 = vld [vmem:[%s3] sm:$0xf]
  %v263 = vld [vmem:[%s3 + $0x4] sm:$0xf]
  %v264 = vld [vmem:[%s3 + $0x8] sm:$0xf]
  %v265 = vld [vmem:[%s3 + $0xc] sm:$0xf]
  %v266 = vld [vmem:[%s3 + $0x10] sm:$0xf]
  %v267 = vld [vmem:[%s3 + $0x14] sm:$0xf]
  %v268 = vld [vmem:[%s3 + $0x18] sm:$0xf]
  %v269 = vld [vmem:[%s3 + $0x1c] sm:$0xf]
  %v270 = vld [vmem:[%s3 + $0x20] sm:$0xf]
  %v271 = vld [vmem:[%s3 + $0x24] sm:$0xf]
  %v272 = vld [vmem:[%s3 + $0x28] sm:$0xf]
  %v273 = vld [vmem:[%s3 + $0x2c] sm:$0xf]
  %v274 = vld [vmem:[%s3 + $0x30] sm:$0x1]
  %v275 = vunpack.c.l.bf16 %v262
  %v276 = vunpack.c.l.bf16 %v263
  %v277 = vunpack.c.l.bf16 %v264
  %v278 = vunpack.c.l.bf16 %v265
  %v279 = vunpack.c.l.bf16 %v266
  %v280 = vunpack.c.l.bf16 %v267
  %v281 = vunpack.c.l.bf16 %v268
  %v282 = vunpack.c.l.bf16 %v269
  %v283 = vunpack.c.l.bf16 %v270
  %v284 = vunpack.c.l.bf16 %v271
  %v285 = vunpack.c.l.bf16 %v272
  %v286 = vunpack.c.l.bf16 %v273
  %v287 = vunpack.c.l.bf16 %v274
  %v288 = vmul.f32 %v275, %v59
  %v289 = vmul.f32 %v276, %v59
  %v290 = vmul.f32 %v277, %v59
  %v291 = vmul.f32 %v278, %v59
  %v292 = vmul.f32 %v279, %v59
  %v293 = vmul.f32 %v280, %v59
  %v294 = vmul.f32 %v281, %v59
  %v295 = vmul.f32 %v282, %v59
  %v296 = vmul.f32 %v283, %v59
  %v297 = vmul.f32 %v284, %v59
  %v298 = vmul.f32 %v285, %v59
  %v299 = vmul.f32 %v286, %v59
  %v300 = vmul.f32 %v287, %v59
  %v301 = vadd.f32 %v288, %v78
  %v302 = vadd.f32 %v289, %v78
  %v303 = vadd.f32 %v290, %v78
  %v304 = vadd.f32 %v291, %v78
  %v305 = vadd.f32 %v292, %v78
  %v306 = vadd.f32 %v293, %v78
  %v307 = vadd.f32 %v294, %v78
  %v308 = vadd.f32 %v295, %v78
  %v309 = vadd.f32 %v296, %v78
  %v310 = vadd.f32 %v297, %v78
  %v311 = vadd.f32 %v298, %v78
  %v312 = vadd.f32 %v299, %v78
  %v313 = vadd.f32 %v300, %v78
  %v314 = vmax.f32 %v301, 0.0
  %v315 = vmax.f32 %v302, 0.0
  %v316 = vmax.f32 %v303, 0.0
  %v317 = vmax.f32 %v304, 0.0
  %v318 = vmax.f32 %v305, 0.0
  %v319 = vmax.f32 %v306, 0.0
  %v320 = vmax.f32 %v307, 0.0
  %v321 = vmax.f32 %v308, 0.0
  %v322 = vmax.f32 %v309, 0.0
  %v323 = vmax.f32 %v310, 0.0
  %v324 = vmax.f32 %v311, 0.0
  %v325 = vmax.f32 %v312, 0.0
  %v326 = vmax.f32 %v313, 0.0
  %v327 = vadd.f32 %v249, %v314
  %v328 = vadd.f32 %v250, %v315
  %v329 = vadd.f32 %v251, %v316
  %v330 = vadd.f32 %v252, %v317
  %v331 = vadd.f32 %v253, %v318
  %v332 = vadd.f32 %v254, %v319
  %v333 = vadd.f32 %v255, %v320
  %v334 = vadd.f32 %v256, %v321
  %v335 = vadd.f32 %v257, %v322
  %v336 = vadd.f32 %v258, %v323
  %v337 = vadd.f32 %v259, %v324
  %v338 = vadd.f32 %v260, %v325
  %v339 = vadd.f32 %v261, %v326
  %v340 = vmul.f32 %v327, 0.25
  %v341 = vmul.f32 %v328, 0.25
  %v342 = vmul.f32 %v329, 0.25
  %v343 = vmul.f32 %v330, 0.25
  %v344 = vmul.f32 %v331, 0.25
  %v345 = vmul.f32 %v332, 0.25
  %v346 = vmul.f32 %v333, 0.25
  %v347 = vmul.f32 %v334, 0.25
  %v348 = vmul.f32 %v335, 0.25
  %v349 = vmul.f32 %v336, 0.25
  %v350 = vmul.f32 %v337, 0.25
  %v351 = vmul.f32 %v338, 0.25
  %v352 = vmul.f32 %v339, 0.25
  %v353 = vpack.c.bf16 %v341, %v340
  %v354 = vpack.c.bf16 %v343, %v342
  %v355 = vpack.c.bf16 %v345, %v344
  %v356 = vpack.c.bf16 %v347, %v346
  %v357 = vpack.c.bf16 %v349, %v348
  %v358 = vpack.c.bf16 %v351, %v350
  %v359 = vpack.c.bf16 %v352, %v352
  %v360 = vld [vmem:[%s6] sm:$0xf]
  %v361 = vld [vmem:[%s6 + $0x4] sm:$0xf]
  %v362 = vld [vmem:[%s6 + $0x8] sm:$0xf]
  %v363 = vld [vmem:[%s6 + $0xc] sm:$0xf]
  %v364 = vld [vmem:[%s6 + $0x10] sm:$0xf]
  %v365 = vld [vmem:[%s6 + $0x14] sm:$0xf]
  %v366 = vld [vmem:[%s6 + $0x18] sm:$0xf]
  %v367 = vld [vmem:[%s6 + $0x1c] sm:$0xf]
  %v376 = vunpack.c.l.b16 %v360
  %v377 = vunpack.c.l.b16 %v361
  %v378 = vunpack.c.l.b16 %v362
  %v379 = vunpack.c.l.b16 %v363
  %v380 = vunpack.c.l.b16 %v364
  %v381 = vunpack.c.l.b16 %v365
  %v382 = vunpack.c.l.b16 %v366
  %v383 = vunpack.c.l.b16 %v367
  %v384 = vpack.c.b16 %v377, %v376
  %v385 = vpack.c.b16 %v379, %v378
  %v386 = vpack.c.b16 %v381, %v380
  %v387 = vpack.c.b16 %v383, %v382
  %vm392 = vcmask 523264
  %v394 = vsel %vm392, %v353, 0
  %v397 = vsel %vm392, %v354, 0
  %v400 = vsel %vm392, %v355, 0
  %v403 = vsel %vm392, %v356, 0
  %v406 = vsel %vm392, %v357, 0
  %v409 = vsel %vm392, %v358, 0
  %v412 = vsel %vm392, %v359, 0
  %414 = vmatprep.subr.bf16.mxu0 0
  %415 = vmatpush1.bf16.msra.mxu0 0
  %416 = vmatprep.subr.bf16.mxu0 0
  %417 = vmatpush1.bf16.msra.mxu0 0
  %418 = vmatprep.subr.bf16.mxu0 0
  %419 = vmatpush1.bf16.msra.mxu0 0
  %420 = vmatprep.subr.bf16.mxu0 0
  %421 = vmatpush1.bf16.msra.mxu0 0
  %422 = vmatprep.subr.bf16.mxu0 0
  %423 = vmatpush1.bf16.msra.mxu0 %v387
  %424 = vmatprep.subr.bf16.mxu0 0
  %425 = vmatpush1.bf16.msra.mxu0 %v386
  %426 = vmatprep.subr.bf16.mxu0 0
  %427 = vmatpush1.bf16.msra.mxu0 %v385
  %428 = vmatprep.subr.bf16.mxu0 0
  %429 = vmatpush1.bf16.msra.mxu0 %v384
  %430 = vmatprep.subr.bf16.mxu0 0
  %431 = vmatpush2.bf16.msra.mxu0 0
  %432 = vmatprep.subr.bf16.mxu0 0
  %433 = vmatpush2.bf16.msra.mxu0 0
  %434 = vmatprep.subr.bf16.mxu0 0
  %435 = vmatpush2.bf16.msra.mxu0 0
  %436 = vmatprep.subr.bf16.mxu0 0
  %437 = vmatpush2.bf16.msra.mxu0 0
  %438 = vmatprep.subr.bf16.mxu0 0
  %439 = vmatpush2.bf16.msra.mxu0 0
  %440 = vmatprep.subr.bf16.mxu0 0
  %441 = vmatpush2.bf16.msra.mxu0 0
  %442 = vmatprep.subr.bf16.mxu0 0
  %443 = vmatpush2.bf16.msra.mxu0 0
  %444 = vmatprep.subr.bf16.mxu0 0
  %445 = vmatpush2.bf16.msra.mxu0 0
  %446 = vmatprep.mubr.bf16.mxu0 0
  %447 = vmatmul.mubr.bf16.gmra.mxu0 %v394
  %v448 = vpop.f32.mrf.mxu0
  %v449 = vadd.f32 0.0, %v448
  %v450 = vpop.f32.mrf.mxu0
  %v451 = vpop.f32.mrf.mxu0
  %v452 = vadd.f32 0.0, %v451
  %v453 = vpop.f32.mrf.mxu0
  %454 = vmatprep.mubr.bf16.mxu0 0
  %455 = vmatmul.mubr.bf16.gmra.mxu0 %v397
  %v456 = vpop.f32.mrf.mxu0
  %v457 = vadd.f32 0.0, %v456
  %v458 = vpop.f32.mrf.mxu0
  %v459 = vpop.f32.mrf.mxu0
  %v460 = vadd.f32 0.0, %v459
  %v461 = vpop.f32.mrf.mxu0
  %462 = vmatprep.mubr.bf16.mxu0 0
  %463 = vmatmul.mubr.bf16.gmra.mxu0 %v400
  %v464 = vpop.f32.mrf.mxu0
  %v465 = vadd.f32 0.0, %v464
  %v466 = vpop.f32.mrf.mxu0
  %v467 = vpop.f32.mrf.mxu0
  %v468 = vadd.f32 0.0, %v467
  %v469 = vpop.f32.mrf.mxu0
  %470 = vmatprep.mubr.bf16.mxu0 0
  %471 = vmatmul.mubr.bf16.gmra.mxu0 %v403
  %v472 = vpop.f32.mrf.mxu0
  %v473 = vadd.f32 0.0, %v472
  %v474 = vpop.f32.mrf.mxu0
  %v475 = vpop.f32.mrf.mxu0
  %v476 = vadd.f32 0.0, %v475
  %v477 = vpop.f32.mrf.mxu0
  %478 = vmatprep.mubr.bf16.mxu0 0
  %479 = vmatmul.mubr.bf16.gmra.mxu0 %v406
  %v480 = vpop.f32.mrf.mxu0
  %v481 = vadd.f32 0.0, %v480
  %v482 = vpop.f32.mrf.mxu0
  %v483 = vpop.f32.mrf.mxu0
  %v484 = vadd.f32 0.0, %v483
  %v485 = vpop.f32.mrf.mxu0
  %486 = vmatprep.mubr.bf16.mxu0 0
  %487 = vmatmul.mubr.bf16.gmra.mxu0 %v409
  %v488 = vpop.f32.mrf.mxu0
  %v489 = vadd.f32 0.0, %v488
  %v490 = vpop.f32.mrf.mxu0
  %v491 = vpop.f32.mrf.mxu0
  %v492 = vadd.f32 0.0, %v491
  %v493 = vpop.f32.mrf.mxu0
  %494 = vmatprep.mubr.bf16.mxu0 0
  %495 = vmatmul.mubr.bf16.gmra.mxu0 %v412
  %v496 = vpop.f32.mrf.mxu0
  %v497 = vadd.f32 0.0, %v496
  %v498 = vpop.f32.mrf.mxu0
  %v499 = vpop.f32.mrf.mxu0
  %v500 = vpop.f32.mrf.mxu0
  %501 = vdwg.mxu0
  %v502 = vpack.c.bf16 %v452, %v449
  %v503 = vpack.c.bf16 %v460, %v457
  %v504 = vpack.c.bf16 %v468, %v465
  %v505 = vpack.c.bf16 %v476, %v473
  %v506 = vpack.c.bf16 %v484, %v481
  %v507 = vpack.c.bf16 %v492, %v489
  %v508 = vpack.c.bf16 %v497, %v497
  %v516 = vunpack.c.l.b16 %v502
  %v517 = vunpack.c.h.b16 %v502
  %v518 = vunpack.c.l.b16 %v503
  %v519 = vunpack.c.h.b16 %v503
  %v520 = vunpack.c.l.b16 %v504
  %v521 = vunpack.c.h.b16 %v504
  %v522 = vunpack.c.l.b16 %v505
  %v523 = vunpack.c.h.b16 %v505
  %v524 = vunpack.c.l.b16 %v506
  %v525 = vunpack.c.h.b16 %v506
  %v526 = vunpack.c.l.b16 %v507
  %v527 = vunpack.c.h.b16 %v507
  %v528 = vunpack.c.l.b16 %v508
  %v529 = vpack.c.b16 %v516, %v516
  %v530 = vpack.c.b16 %v517, %v517
  %v531 = vpack.c.b16 %v518, %v518
  %v532 = vpack.c.b16 %v519, %v519
  %v533 = vpack.c.b16 %v520, %v520
  %v534 = vpack.c.b16 %v521, %v521
  %v535 = vpack.c.b16 %v522, %v522
  %v536 = vpack.c.b16 %v523, %v523
  %v537 = vpack.c.b16 %v524, %v524
  %v538 = vpack.c.b16 %v525, %v525
  %v539 = vpack.c.b16 %v526, %v526
  %v540 = vpack.c.b16 %v527, %v527
  %v541 = vpack.c.b16 %v528, %v528
  %vm555 = vcmask 257024
  %556 = vst.msk [vmem:[%s7] sm:$0xf] %vm555, %v529
  %557 = vst.msk [vmem:[%s7 + $0x4] sm:$0xf] %vm555, %v530
  %558 = vst.msk [vmem:[%s7 + $0x8] sm:$0xf] %vm555, %v531
  %559 = vst.msk [vmem:[%s7 + $0xc] sm:$0xf] %vm555, %v532
  %560 = vst.msk [vmem:[%s7 + $0x10] sm:$0xf] %vm555, %v533
  %561 = vst.msk [vmem:[%s7 + $0x14] sm:$0xf] %vm555, %v534
  %562 = vst.msk [vmem:[%s7 + $0x18] sm:$0xf] %vm555, %v535
  %563 = vst.msk [vmem:[%s7 + $0x1c] sm:$0xf] %vm555, %v536
  %564 = vst.msk [vmem:[%s7 + $0x20] sm:$0xf] %vm555, %v537
  %565 = vst.msk [vmem:[%s7 + $0x24] sm:$0xf] %vm555, %v538
  %566 = vst.msk [vmem:[%s7 + $0x28] sm:$0xf] %vm555, %v539
  %567 = vst.msk [vmem:[%s7 + $0x2c] sm:$0xf] %vm555, %v540
  %vm568 = vcmask 253952
  %569 = vst.msk [vmem:[%s7 + $0x30] sm:$0x1] %vm568, %v541
  // Predicated region
  $region30: #{densenet_forward.18} parent=0 // pred_check
    _
  $region31: #{densenet_forward.18} parent=0 // pred_check_branch
    %571 = sbr.rel (0) target = $region33
  $region32: #{densenet_forward.18} parent=0 // pred_region
    _
  $region33: #{densenet_forward.18} parent=0 // pred_fallthru
    _
  // Predicated region
  $region34: #{densenet_forward.18} parent=0 // pred_check
    _
  $region35: #{densenet_forward.18} parent=0 // pred_check_branch
    %573 = sbr.rel (0) target = $region37
  $region36: #{densenet_forward.18} parent=0 // pred_region
    _
  $region37: #{densenet_forward.18} parent=0 // pred_fallthru
    _

// kernel: densenet_forward.19
$region0: #{densenet_forward.19}
  #allocation0 [shape = 'u32[]', space=smem, size = 0x4, offset = 0x4, fixed_abs, tag = 'smem constant byte address 0x4 - core index']
  #allocation1 [shape = 'u32[144,128]{1,0:T(1,128)}', space=vmem, size = 0x12000, scoped, tag = 'internal scratch']
  %s0 = inlined_call_operand.vmem [shape: bf16[98,64], index: 0, kind: input, shape index: {}]
  %s1 = inlined_call_operand.vmem [shape: f32[1,64], index: 1, kind: input, shape index: {}]
  %s2 = inlined_call_operand.vmem [shape: f32[1,64], index: 2, kind: input, shape index: {}]
  %s3 = inlined_call_operand.vmem [shape: bf16[64,64], index: 3, kind: input, shape index: {}]
  %s4 = inlined_call_operand.vmem [shape: f32[1,64], index: 4, kind: input, shape index: {}]
  %s5 = inlined_call_operand.vmem [shape: f32[1,64], index: 5, kind: input, shape index: {}]
  %s6 = inlined_call_operand.vmem [shape: bf16[98,64], index: 6, kind: output, shape index: {}]
  %s7 = sld [smem:[#allocation0]]
  $region34: #{densenet_forward.19} parent=0
    _
  %s9 = ssub.s32 1, %s7
  %s10 = scalar_select 0, %s9, %s7
  // Predicated region
  $region2: #{densenet_forward.19} parent=0 // pred_check
    _
  $region3: #{densenet_forward.19} parent=0 // pred_check_branch
    %12 = sbr.rel (0) target = $region5
  $region4: #{densenet_forward.19} parent=0 // pred_region
    _
  $region5: #{densenet_forward.19} parent=0 // pred_fallthru
    _
  // Predicated region
  $region6: #{densenet_forward.19} parent=0 // pred_check
    _
  $region7: #{densenet_forward.19} parent=0 // pred_check_branch
    %14 = sbr.rel (0) target = $region9
  $region8: #{densenet_forward.19} parent=0 // pred_region
    _
  $region9: #{densenet_forward.19} parent=0 // pred_fallthru
    _
  // Predicated region
  $region10: #{densenet_forward.19} parent=0 // pred_check
    _
  $region11: #{densenet_forward.19} parent=0 // pred_check_branch
    %16 = sbr.rel (0) target = $region13
  $region12: #{densenet_forward.19} parent=0 // pred_region
    _
  $region13: #{densenet_forward.19} parent=0 // pred_fallthru
    _
  // Predicated region
  $region14: #{densenet_forward.19} parent=0 // pred_check
    _
  $region15: #{densenet_forward.19} parent=0 // pred_check_branch
    %18 = sbr.rel (0) target = $region17
  $region16: #{densenet_forward.19} parent=0 // pred_region
    _
  $region17: #{densenet_forward.19} parent=0 // pred_fallthru
    _
  // Predicated region
  $region18: #{densenet_forward.19} parent=0 // pred_check
    _
  $region19: #{densenet_forward.19} parent=0 // pred_check_branch
    %20 = sbr.rel (0) target = $region21
  $region20: #{densenet_forward.19} parent=0 // pred_region
    _
  $region21: #{densenet_forward.19} parent=0 // pred_fallthru
    _
  // Predicated region
  $region22: #{densenet_forward.19} parent=0 // pred_check
    _
  $region23: #{densenet_forward.19} parent=0 // pred_check_branch
    %22 = sbr.rel (0) target = $region25
  $region24: #{densenet_forward.19} parent=0 // pred_region
    _
  $region25: #{densenet_forward.19} parent=0 // pred_fallthru
    _
  %v24 = vld [vmem:[%s0] sm:$0xf]
  %v25 = vld [vmem:[%s0 + $0x4] sm:$0xf]
  %v26 = vld [vmem:[%s0 + $0x8] sm:$0xf]
  %v27 = vld [vmem:[%s0 + $0xc] sm:$0xf]
  %v28 = vld [vmem:[%s0 + $0x10] sm:$0xf]
  %v29 = vld [vmem:[%s0 + $0x14] sm:$0xf]
  %v30 = vld [vmem:[%s0 + $0x18] sm:$0xf]
  %v31 = vld [vmem:[%s0 + $0x1c] sm:$0xf]
  %v32 = vld [vmem:[%s0 + $0x20] sm:$0xf]
  %v33 = vld [vmem:[%s0 + $0x24] sm:$0xf]
  %v34 = vld [vmem:[%s0 + $0x28] sm:$0xf]
  %v35 = vld [vmem:[%s0 + $0x2c] sm:$0xf]
  %v36 = vld [vmem:[%s0 + $0x30] sm:$0x1]
  %v37 = vld [vmem:[%s1] sm:$0x1]
  %v38 = vunpack.c.l.bf16 %v24
  %v39 = vunpack.c.l.bf16 %v25
  %v40 = vunpack.c.l.bf16 %v26
  %v41 = vunpack.c.l.bf16 %v27
  %v42 = vunpack.c.l.bf16 %v28
  %v43 = vunpack.c.l.bf16 %v29
  %v44 = vunpack.c.l.bf16 %v30
  %v45 = vunpack.c.l.bf16 %v31
  %v46 = vunpack.c.l.bf16 %v32
  %v47 = vunpack.c.l.bf16 %v33
  %v48 = vunpack.c.l.bf16 %v34
  %v49 = vunpack.c.l.bf16 %v35
  %v50 = vunpack.c.l.bf16 %v36
  %v52 = vlaneseq
  %v53 = vshrl.u32 %v52, 7
  %v54 = vsub.s32 0, %v53
  %v55 = vrot.slane %v37, %v54
  %v57 = vmul.f32 %v38, %v55
  %v58 = vmul.f32 %v39, %v55
  %v59 = vmul.f32 %v40, %v55
  %v60 = vmul.f32 %v41, %v55
  %v61 = vmul.f32 %v42, %v55
  %v62 = vmul.f32 %v43, %v55
  %v63 = vmul.f32 %v44, %v55
  %v64 = vmul.f32 %v45, %v55
  %v65 = vmul.f32 %v46, %v55
  %v66 = vmul.f32 %v47, %v55
  %v67 = vmul.f32 %v48, %v55
  %v68 = vmul.f32 %v49, %v55
  %v69 = vmul.f32 %v50, %v55
  %v70 = vld [vmem:[%s2] sm:$0x1]
  %v72 = vlaneseq
  %v73 = vshrl.u32 %v72, 7
  %v74 = vsub.s32 0, %v73
  %v75 = vrot.slane %v70, %v74
  %v77 = vadd.f32 %v57, %v75
  %v78 = vadd.f32 %v58, %v75
  %v79 = vadd.f32 %v59, %v75
  %v80 = vadd.f32 %v60, %v75
  %v81 = vadd.f32 %v61, %v75
  %v82 = vadd.f32 %v62, %v75
  %v83 = vadd.f32 %v63, %v75
  %v84 = vadd.f32 %v64, %v75
  %v85 = vadd.f32 %v65, %v75
  %v86 = vadd.f32 %v66, %v75
  %v87 = vadd.f32 %v67, %v75
  %v88 = vadd.f32 %v68, %v75
  %v89 = vadd.f32 %v69, %v75
  %v90 = vmax.f32 %v77, 0.0
  %v91 = vmax.f32 %v78, 0.0
  %v92 = vmax.f32 %v79, 0.0
  %v93 = vmax.f32 %v80, 0.0
  %v94 = vmax.f32 %v81, 0.0
  %v95 = vmax.f32 %v82, 0.0
  %v96 = vmax.f32 %v83, 0.0
  %v97 = vmax.f32 %v84, 0.0
  %v98 = vmax.f32 %v85, 0.0
  %v99 = vmax.f32 %v86, 0.0
  %v100 = vmax.f32 %v87, 0.0
  %v101 = vmax.f32 %v88, 0.0
  %v102 = vmax.f32 %v89, 0.0
  %v103 = vpack.c.bf16 %v91, %v90
  %v104 = vpack.c.bf16 %v93, %v92
  %v105 = vpack.c.bf16 %v95, %v94
  %v106 = vpack.c.bf16 %v97, %v96
  %v107 = vpack.c.bf16 %v99, %v98
  %v108 = vpack.c.bf16 %v101, %v100
  %v109 = vpack.c.bf16 %v102, %v102
  %v110 = vld [vmem:[%s3] sm:$0xf]
  %v111 = vld [vmem:[%s3 + $0x4] sm:$0xf]
  %v112 = vld [vmem:[%s3 + $0x8] sm:$0xf]
  %v113 = vld [vmem:[%s3 + $0xc] sm:$0xf]
  %v114 = vld [vmem:[%s3 + $0x10] sm:$0xf]
  %v115 = vld [vmem:[%s3 + $0x14] sm:$0xf]
  %v116 = vld [vmem:[%s3 + $0x18] sm:$0xf]
  %v117 = vld [vmem:[%s3 + $0x1c] sm:$0xf]
  %v126 = vunpack.c.l.b16 %v110
  %v127 = vunpack.c.l.b16 %v111
  %v128 = vunpack.c.l.b16 %v112
  %v129 = vunpack.c.l.b16 %v113
  %v130 = vunpack.c.l.b16 %v114
  %v131 = vunpack.c.l.b16 %v115
  %v132 = vunpack.c.l.b16 %v116
  %v133 = vunpack.c.l.b16 %v117
  %v134 = vpack.c.b16 %v127, %v126
  %v135 = vpack.c.b16 %v129, %v128
  %v136 = vpack.c.b16 %v131, %v130
  %v137 = vpack.c.b16 %v133, %v132
  %vm142 = vcmask 523264
  %v144 = vsel %vm142, %v103, 0
  %v147 = vsel %vm142, %v104, 0
  %v150 = vsel %vm142, %v105, 0
  %v153 = vsel %vm142, %v106, 0
  %v156 = vsel %vm142, %v107, 0
  %v159 = vsel %vm142, %v108, 0
  %v162 = vsel %vm142, %v109, 0
  %164 = vmatprep.subr.bf16.mxu0 0
  %165 = vmatpush1.bf16.msra.mxu0 0
  %166 = vmatprep.subr.bf16.mxu0 0
  %167 = vmatpush1.bf16.msra.mxu0 0
  %168 = vmatprep.subr.bf16.mxu0 0
  %169 = vmatpush1.bf16.msra.mxu0 0
  %170 = vmatprep.subr.bf16.mxu0 0
  %171 = vmatpush1.bf16.msra.mxu0 0
  %172 = vmatprep.subr.bf16.mxu0 0
  %173 = vmatpush1.bf16.msra.mxu0 %v137
  %174 = vmatprep.subr.bf16.mxu0 0
  %175 = vmatpush1.bf16.msra.mxu0 %v136
  %176 = vmatprep.subr.bf16.mxu0 0
  %177 = vmatpush1.bf16.msra.mxu0 %v135
  %178 = vmatprep.subr.bf16.mxu0 0
  %179 = vmatpush1.bf16.msra.mxu0 %v134
  %180 = vmatprep.subr.bf16.mxu0 0
  %181 = vmatpush2.bf16.msra.mxu0 0
  %182 = vmatprep.subr.bf16.mxu0 0
  %183 = vmatpush2.bf16.msra.mxu0 0
  %184 = vmatprep.subr.bf16.mxu0 0
  %185 = vmatpush2.bf16.msra.mxu0 0
  %186 = vmatprep.subr.bf16.mxu0 0
  %187 = vmatpush2.bf16.msra.mxu0 0
  %188 = vmatprep.subr.bf16.mxu0 0
  %189 = vmatpush2.bf16.msra.mxu0 0
  %190 = vmatprep.subr.bf16.mxu0 0
  %191 = vmatpush2.bf16.msra.mxu0 0
  %192 = vmatprep.subr.bf16.mxu0 0
  %193 = vmatpush2.bf16.msra.mxu0 0
  %194 = vmatprep.subr.bf16.mxu0 0
  %195 = vmatpush2.bf16.msra.mxu0 0
  %196 = vmatprep.mubr.bf16.mxu0 0
  %197 = vmatmul.mubr.bf16.gmra.mxu0 %v144
  %v198 = vpop.f32.mrf.mxu0
  %v199 = vadd.f32 0.0, %v198
  %v200 = vpop.f32.mrf.mxu0
  %v201 = vpop.f32.mrf.mxu0
  %v202 = vadd.f32 0.0, %v201
  %v203 = vpop.f32.mrf.mxu0
  %204 = vmatprep.mubr.bf16.mxu0 0
  %205 = vmatmul.mubr.bf16.gmra.mxu0 %v147
  %v206 = vpop.f32.mrf.mxu0
  %v207 = vadd.f32 0.0, %v206
  %v208 = vpop.f32.mrf.mxu0
  %v209 = vpop.f32.mrf.mxu0
  %v210 = vadd.f32 0.0, %v209
  %v211 = vpop.f32.mrf.mxu0
  %212 = vmatprep.mubr.bf16.mxu0 0
  %213 = vmatmul.mubr.bf16.gmra.mxu0 %v150
  %v214 = vpop.f32.mrf.mxu0
  %v215 = vadd.f32 0.0, %v214
  %v216 = vpop.f32.mrf.mxu0
  %v217 = vpop.f32.mrf.mxu0
  %v218 = vadd.f32 0.0, %v217
  %v219 = vpop.f32.mrf.mxu0
  %220 = vmatprep.mubr.bf16.mxu0 0
  %221 = vmatmul.mubr.bf16.gmra.mxu0 %v153
  %v222 = vpop.f32.mrf.mxu0
  %v223 = vadd.f32 0.0, %v222
  %v224 = vpop.f32.mrf.mxu0
  %v225 = vpop.f32.mrf.mxu0
  %v226 = vadd.f32 0.0, %v225
  %v227 = vpop.f32.mrf.mxu0
  %228 = vmatprep.mubr.bf16.mxu0 0
  %229 = vmatmul.mubr.bf16.gmra.mxu0 %v156
  %v230 = vpop.f32.mrf.mxu0
  %v231 = vadd.f32 0.0, %v230
  %v232 = vpop.f32.mrf.mxu0
  %v233 = vpop.f32.mrf.mxu0
  %v234 = vadd.f32 0.0, %v233
  %v235 = vpop.f32.mrf.mxu0
  %236 = vmatprep.mubr.bf16.mxu0 0
  %237 = vmatmul.mubr.bf16.gmra.mxu0 %v159
  %v238 = vpop.f32.mrf.mxu0
  %v239 = vadd.f32 0.0, %v238
  %v240 = vpop.f32.mrf.mxu0
  %v241 = vpop.f32.mrf.mxu0
  %v242 = vadd.f32 0.0, %v241
  %v243 = vpop.f32.mrf.mxu0
  %244 = vmatprep.mubr.bf16.mxu0 0
  %245 = vmatmul.mubr.bf16.gmra.mxu0 %v162
  %v246 = vpop.f32.mrf.mxu0
  %v247 = vadd.f32 0.0, %v246
  %v248 = vpop.f32.mrf.mxu0
  %v249 = vpop.f32.mrf.mxu0
  %v250 = vpop.f32.mrf.mxu0
  %251 = vdwg.mxu0
  %v252 = vld [vmem:[%s4] sm:$0x1]
  %v254 = vlaneseq
  %v255 = vshrl.u32 %v254, 7
  %v256 = vsub.s32 0, %v255
  %v257 = vrot.slane %v252, %v256
  %v259 = vmul.f32 %v199, %v257
  %v260 = vmul.f32 %v202, %v257
  %v261 = vmul.f32 %v207, %v257
  %v262 = vmul.f32 %v210, %v257
  %v263 = vmul.f32 %v215, %v257
  %v264 = vmul.f32 %v218, %v257
  %v265 = vmul.f32 %v223, %v257
  %v266 = vmul.f32 %v226, %v257
  %v267 = vmul.f32 %v231, %v257
  %v268 = vmul.f32 %v234, %v257
  %v269 = vmul.f32 %v239, %v257
  %v270 = vmul.f32 %v242, %v257
  %v271 = vmul.f32 %v247, %v257
  %v272 = vld [vmem:[%s5] sm:$0x1]
  %v274 = vlaneseq
  %v275 = vshrl.u32 %v274, 7
  %v276 = vsub.s32 0, %v275
  %v277 = vrot.slane %v272, %v276
  %v279 = vadd.f32 %v259, %v277
  %v280 = vadd.f32 %v260, %v277
  %v281 = vadd.f32 %v261, %v277
  %v282 = vadd.f32 %v262, %v277
  %v283 = vadd.f32 %v263, %v277
  %v284 = vadd.f32 %v264, %v277
  %v285 = vadd.f32 %v265, %v277
  %v286 = vadd.f32 %v266, %v277
  %v287 = vadd.f32 %v267, %v277
  %v288 = vadd.f32 %v268, %v277
  %v289 = vadd.f32 %v269, %v277
  %v290 = vadd.f32 %v270, %v277
  %v291 = vadd.f32 %v271, %v277
  %v292 = vmax.f32 %v279, 0.0
  %v293 = vmax.f32 %v280, 0.0
  %v294 = vmax.f32 %v281, 0.0
  %v295 = vmax.f32 %v282, 0.0
  %v296 = vmax.f32 %v283, 0.0
  %v297 = vmax.f32 %v284, 0.0
  %v298 = vmax.f32 %v285, 0.0
  %v299 = vmax.f32 %v286, 0.0
  %v300 = vmax.f32 %v287, 0.0
  %v301 = vmax.f32 %v288, 0.0
  %v302 = vmax.f32 %v289, 0.0
  %v303 = vmax.f32 %v290, 0.0
  %v304 = vmax.f32 %v291, 0.0
  %v305 = vpack.c.bf16 %v293, %v292
  %v306 = vpack.c.bf16 %v295, %v294
  %v307 = vpack.c.bf16 %v297, %v296
  %v308 = vpack.c.bf16 %v299, %v298
  %v309 = vpack.c.bf16 %v301, %v300
  %v310 = vpack.c.bf16 %v303, %v302
  %v311 = vpack.c.bf16 %v304, %v304
  %v319 = vunpack.c.l.b16 %v305
  %v320 = vunpack.c.h.b16 %v305
  %v321 = vunpack.c.l.b16 %v306
  %v322 = vunpack.c.h.b16 %v306
  %v323 = vunpack.c.l.b16 %v307
  %v324 = vunpack.c.h.b16 %v307
  %v325 = vunpack.c.l.b16 %v308
  %v326 = vunpack.c.h.b16 %v308
  %v327 = vunpack.c.l.b16 %v309
  %v328 = vunpack.c.h.b16 %v309
  %v329 = vunpack.c.l.b16 %v310
  %v330 = vunpack.c.h.b16 %v310
  %v331 = vunpack.c.l.b16 %v311
  %v332 = vpack.c.b16 %v319, %v319
  %v333 = vpack.c.b16 %v320, %v320
  %v334 = vpack.c.b16 %v321, %v321
  %v335 = vpack.c.b16 %v322, %v322
  %v336 = vpack.c.b16 %v323, %v323
  %v337 = vpack.c.b16 %v324, %v324
  %v338 = vpack.c.b16 %v325, %v325
  %v339 = vpack.c.b16 %v326, %v326
  %v340 = vpack.c.b16 %v327, %v327
  %v341 = vpack.c.b16 %v328, %v328
  %v342 = vpack.c.b16 %v329, %v329
  %v343 = vpack.c.b16 %v330, %v330
  %v344 = vpack.c.b16 %v331, %v331
  %vm358 = vcmask 519168
  %359 = vst.msk [vmem:[%s6] sm:$0xf] %vm358, %v332
  %360 = vst.msk [vmem:[%s6 + $0x4] sm:$0xf] %vm358, %v333
  %361 = vst.msk [vmem:[%s6 + $0x8] sm:$0xf] %vm358, %v334
  %362 = vst.msk [vmem:[%s6 + $0xc] sm:$0xf] %vm358, %v335
  %363 = vst.msk [vmem:[%s6 + $0x10] sm:$0xf] %vm358, %v336
  %364 = vst.msk [vmem:[%s6 + $0x14] sm:$0xf] %vm358, %v337
  %365 = vst.msk [vmem:[%s6 + $0x18] sm:$0xf] %vm358, %v338
  %366 = vst.msk [vmem:[%s6 + $0x1c] sm:$0xf] %vm358, %v339
  %367 = vst.msk [vmem:[%s6 + $0x20] sm:$0xf] %vm358, %v340
  %368 = vst.msk [vmem:[%s6 + $0x24] sm:$0xf] %vm358, %v341
  %369 = vst.msk [vmem:[%s6 + $0x28] sm:$0xf] %vm358, %v342
  %370 = vst.msk [vmem:[%s6 + $0x2c] sm:$0xf] %vm358, %v343
  %vm371 = vcmask 516096
  %372 = vst.msk [vmem:[%s6 + $0x30] sm:$0x1] %vm371, %v344
  // Predicated region
  $region26: #{densenet_forward.19} parent=0 // pred_check
    _
  $region27: #{densenet_forward.19} parent=0 // pred_check_branch
    %374 = sbr.rel (0) target = $region29
  $region28: #{densenet_forward.19} parent=0 // pred_region
    _
  $region29: #{densenet_forward.19} parent=0 // pred_fallthru
    _
  // Predicated region
  $region30: #{densenet_forward.19} parent=0 // pred_check
    _
  $region31: #{densenet_forward.19} parent=0 // pred_check_branch
    %376 = sbr.rel (0) target = $region33
  $region32: #{densenet_forward.19} parent=0 // pred_region
    _
  $region33: #{densenet_forward.19} parent=0 // pred_fallthru
    _

// kernel: densenet_forward.20
$region0: #{densenet_forward.20}
  #allocation0 [shape = 'u32[]', space=smem, size = 0x4, offset = 0x4, fixed_abs, tag = 'smem constant byte address 0x4 - core index']
  #allocation1 [shape = 'u32[144,128]{1,0:T(1,128)}', space=vmem, size = 0x12000, scoped, tag = 'internal scratch']
  %s0 = inlined_call_operand.vmem [shape: bf16[2,160,64], index: 0, kind: input, shape index: {}]
  %s1 = inlined_call_operand.vmem [shape: bf16[64,144], index: 1, kind: input, shape index: {}]
  %s2 = inlined_call_operand.vmem [shape: bf16[2,7,7,16], index: 2, kind: output, shape index: {}]
  %s3 = sld [smem:[#allocation0]]
  $region41: #{densenet_forward.20} parent=0
    _
  %s5 = ssub.s32 1, %s3
  %s6 = scalar_select 0, %s5, %s3
  loop: start=0, step=1, limit=4
  $region2: #{densenet_forward.20} parent=0 // loop_pre_header
    _
  $region3: #{densenet_forward.20} parent=0 // loop_header
    %s8 = sphi 0, %s12
    %p9 = scmp.ge.s32.totalorder %s8, 4
    %s15 = sphi 0, %s27
    %s16 = sphi 0, %s23
    %s17 = sphi 0, %s15
    %s18 = sphi 0, %s16
    %s19 = sphi 0, %s17
    %s20 = sphi 0, %s18
    %s30 = sphi 0, %s32
    %s33 = sphi 0, %s30
    %s34 = sphi 0, %s33
    %s50 = sphi 0, %s34
    %s54 = sphi 0, %s54
    %s56 = sphi 0, %s54
    %s57 = sphi 0, %s56
    %s71 = sphi 0, %s57
    %s79 = sphi 0, %s81
    %s82 = sphi 0, %s79
    %s83 = sphi 0, %s82
    %s99 = sphi 0, %s83
  $region4: #{densenet_forward.20} parent=0 // loop_header_branch
    %11 = sbr.rel (%p9) target = $region8
  $region5: #{densenet_forward.20} parent=0 // loop_body
    %s13 = ssub.s32 %s8, 1
    %s14 = ssub.s32 %s8, 2
    %s21 = sadd.s32 1, %s16
    %p22 = scmp.ge.s32.totalorder %s21, 1
    %s23 = scalar_select %p22, 0, %s21
    %s24 = sadd.s32 1, %s15
    %s25 = scalar_select %p22, %s24, %s15
    %p26 = scmp.ge.s32.totalorder %s25, 2
    %s27 = scalar_select %p26, 0, %s25
    %s28 = ssub.s32 %s15, %s27
    %p29 = scmp.eq.s32.totalorder %s28, 0
    %s31 = sadd.s32 %s30, 1
    %s32 = scalar_select %p29, %s30, %s31
    %p35 = pneg %p29
    %p36 = scmp.eq.s32.totalorder %s8, 1
    %p37 = por %p35, %p36
    %p38 = scmp.ne.s32.totalorder %s30, %s33
    %p39 = scmp.eq.s32.totalorder %s8, 0
    %p40 = por %p38, %p39
    %p41 = scmp.ne.s32.totalorder %s30, %s33
    %p42 = scmp.eq.s32.totalorder %s13, 1
    %p43 = por %p41, %p42
    %p44 = scmp.ne.s32.totalorder %s33, %s34
    %p45 = scmp.eq.s32.totalorder %s13, 0
    %p46 = por %p44, %p45
    %p47 = scmp.ne.s32.totalorder %s33, %s34
    %p48 = scmp.eq.s32.totalorder %s14, 1
    %p49 = por %p47, %p48
    %p51 = scmp.ne.s32.totalorder %s34, %s50
    %p52 = scmp.eq.s32.totalorder %s14, 0
    %p53 = por %p51, %p52
    %s55 = sadd.s32 %s54, 1
    %p58 = scmp.eq.s32.totalorder %s8, 1
    %p59 = scmp.ne.s32.totalorder %s54, %s56
    %p60 = scmp.eq.s32.totalorder %s8, 0
    %p61 = por %p59, %p60
    %p62 = scmp.ne.s32.totalorder %s54, %s56
    %p63 = scmp.eq.s32.totalorder %s13, 1
    %p64 = por %p62, %p63
    %p65 = scmp.ne.s32.totalorder %s56, %s57
    %p66 = scmp.eq.s32.totalorder %s13, 0
    %p67 = por %p65, %p66
    %p68 = scmp.ne.s32.totalorder %s56, %s57
    %p69 = scmp.eq.s32.totalorder %s14, 1
    %p70 = por %p68, %p69
    %p72 = scmp.ne.s32.totalorder %s57, %s71
    %p73 = scmp.eq.s32.totalorder %s14, 0
    %p74 = por %p72, %p73
    %s75 = ssub.s32 %s15, %s27
    %s76 = ssub.s32 %s16, %s23
    %s77 = sor.u32 %s75, %s76
    %p78 = scmp.eq.s32.totalorder %s77, 0
    %s80 = sadd.s32 %s79, 1
    %s81 = scalar_select %p78, %s79, %s80
    %p84 = pneg %p78
    %p85 = scmp.eq.s32.totalorder %s8, 1
    %p86 = por %p84, %p85
    %p87 = scmp.ne.s32.totalorder %s79, %s82
    %p88 = scmp.eq.s32.totalorder %s8, 0
    %p89 = por %p87, %p88
    %p90 = scmp.ne.s32.totalorder %s79, %s82
    %p91 = scmp.eq.s32.totalorder %s13, 1
    %p92 = por %p90, %p91
    %p93 = scmp.ne.s32.totalorder %s82, %s83
    %p94 = scmp.eq.s32.totalorder %s13, 0
    %p95 = por %p93, %p94
    %p96 = scmp.ne.s32.totalorder %s82, %s83
    %p97 = scmp.eq.s32.totalorder %s14, 1
    %p98 = por %p96, %p97
    %p100 = scmp.ne.s32.totalorder %s83, %s99
    %p101 = scmp.eq.s32.totalorder %s14, 0
    %p102 = por %p100, %p101
    %p103 = scmp.le.s32.totalorder 1, %s8
    %p104 = scmp.lt.s32.totalorder %s8, 3
    %p105 = pnand %p103, %p104
    %p106 = pneg %p105
    // Predicated region
    $region9: #{densenet_forward.20} parent=5 // pred_check
      _
    $region10: #{densenet_forward.20} parent=5 // pred_check_branch
      %108 = sbr.rel (%p105) target = $region12
    $region11: #{densenet_forward.20} parent=5 // pred_region
      %s109 = ssub.s32 %s8, 1
      // Predicated region
      $region13: #{densenet_forward.20} parent=11 // pred_check
        %p110 = pneg %p67
      $region14: #{densenet_forward.20} parent=11 // pred_check_branch
        %112 = sbr.rel (%p110) target = $region16
      $region15: #{densenet_forward.20} parent=11 // pred_region
        _
      $region16: #{densenet_forward.20} parent=11 // pred_fallthru
        _
    $region12: #{densenet_forward.20} parent=5 // pred_fallthru
      _
    %p113 = scmp.lt.s32.totalorder %s8, 2
    // Predicated region
    $region17: #{densenet_forward.20} parent=5 // pred_check
      %p114 = pneg %p113
    $region18: #{densenet_forward.20} parent=5 // pred_check_branch
      %116 = sbr.rel (%p114) target = $region20
    $region19: #{densenet_forward.20} parent=5 // pred_region
      // Predicated region
      $region21: #{densenet_forward.20} parent=19 // pred_check
        %p117 = pneg %p40
      $region22: #{densenet_forward.20} parent=19 // pred_check_branch
        %119 = sbr.rel (%p117) target = $region24
      $region23: #{densenet_forward.20} parent=19 // pred_region
        %p120 = scmp.lt.s32.totalorder %s15, 1
        %s121 = scalar_select %p120, %s15, 1
        %s122 = smul.addr %s121, 20
        %s123 = smul.addr %s122, 4
        %s124 = scalar_lea.vmem %s0, %s123
      $region24: #{densenet_forward.20} parent=19 // pred_fallthru
        _
    $region20: #{densenet_forward.20} parent=5 // pred_fallthru
      _
    %p125 = scmp.le.s32.totalorder 1, %s8
    %p126 = scmp.lt.s32.totalorder %s8, 3
    %p127 = pnand %p125, %p126
    %p128 = pneg %p127
    // Predicated region
    $region25: #{densenet_forward.20} parent=5 // pred_check
      _
    $region26: #{densenet_forward.20} parent=5 // pred_check_branch
      %130 = sbr.rel (%p127) target = $region28
    $region27: #{densenet_forward.20} parent=5 // pred_region
      %s131 = ssub.s32 %s8, 1
      %p132 = scmp.lt.s32.totalorder %s17, 1
      %s133 = scalar_select %p132, %s17, 1
      %s134 = smul.addr %s133, 20
      %s135 = smul.addr %s134, 4
      %s136 = scalar_lea.vmem %s0, %s135
      %p137 = pneg %p46
      %p138 = pneg %p43
      %p139 = pneg %p67
      %p140 = pneg %p64
      %p141 = pneg %p95
      %p142 = pneg %p92
      %s143 = smul.u32 7, %s18
      %p144 = scmp.lt.s32.totalorder %s17, 1
      %s145 = scalar_select %p144, %s17, 1
      %p146 = scmp.lt.s32.totalorder %s143, 6
      %s147 = scalar_select %p146, %s143, 6
      %s148 = smul.addr %s145, 7
      %s149 = sadd.s32 %s147, %s148
      %s150 = smul.addr %s149, 4
      %s151 = scalar_lea.vmem %s2, %s150
      %p152 = scmp.lt.s32.totalorder %s17, 1
      %s153 = scalar_select %p152, %s17, 1
      %s154 = smul.addr %s153, 20
      %s155 = smul.addr %s154, 4
      %s156 = scalar_lea.vmem %s0, %s155
      %s157 = smul.u32 7, %s18
      %p158 = scmp.lt.s32.totalorder %s17, 1
      %s159 = scalar_select %p158, %s17, 1
      %p160 = scmp.lt.s32.totalorder %s157, 6
      %s161 = scalar_select %p160, %s157, 6
      %s162 = smul.addr %s159, 7
      %s163 = sadd.s32 %s161, %s162
      %s164 = smul.addr %s163, 4
      %s165 = scalar_lea.vmem %s2, %s164
      %s166 = smul.u32 7, %s18
      %s168 = smul.u32 %s18, 112
      %s169 = sshra.s32 %s168, 3
      %s170 = sand.u32 %s168, 7
      %s171 = smul.addr %s169, 4
      %s172 = scalar_lea.vmem %s156, %s171
      %v173 = vld [vmem:[%s172] sm:$0xf]
      %v174 = vld [vmem:[%s172 + $0x4] sm:$0xf]
      %v175 = vld [vmem:[%s172 + $0x8] sm:$0xf]
      %v176 = vld [vmem:[%s172 + $0xc] sm:$0xf]
      %v177 = vld [vmem:[%s172 + $0x10] sm:$0xf]
      %v178 = vld [vmem:[%s172 + $0x14] sm:$0xf]
      %v179 = vld [vmem:[%s172 + $0x18] sm:$0xf]
      %v180 = vld [vmem:[%s172 + $0x1c] sm:$0xf]
      %v181 = vld [vmem:[%s172 + $0x20] sm:$0xf]
      %v182 = vld [vmem:[%s172 + $0x24] sm:$0xf]
      %v183 = vld [vmem:[%s172 + $0x28] sm:$0xf]
      %v184 = vld [vmem:[%s172 + $0x2c] sm:$0xf]
      %v185 = vld [vmem:[%s172 + $0x30] sm:$0xf]
      %v186 = vld [vmem:[%s172 + $0x34] sm:$0xf]
      %v187 = vld [vmem:[%s172 + $0x38] sm:$0xf]
      %v188 = vld [vmem:[%s172 + $0x3c] sm:$0xf]
      %v189 = vld [vmem:[%s172 + $0x40] sm:$0xf]
      %v190 = vld [vmem:[%s172 + $0x44] sm:$0xf]
      %v191 = vld [vmem:[%s172 + $0x48] sm:$0xf]
      %v192 = vld [vmem:[%s1] sm:$0xff]
      %v193 = vld [vmem:[%s1 + $0x8] sm:$0xff]
      %v194 = vld [vmem:[%s1 + $0x10] sm:$0xff]
      %v195 = vld [vmem:[%s1 + $0x18] sm:$0xff]
      %v196 = vld [vmem:[%s1 + $0x20] sm:$0xff]
      %v197 = vld [vmem:[%s1 + $0x28] sm:$0xff]
      %v198 = vld [vmem:[%s1 + $0x30] sm:$0xff]
      %v199 = vld [vmem:[%s1 + $0x38] sm:$0xff]
      %v219 = vunpack.c.l.b16 %v173
      %v220 = vunpack.c.l.b16 %v174
      %v221 = vunpack.c.l.b16 %v175
      %v222 = vunpack.c.l.b16 %v176
      %v223 = vunpack.c.l.b16 %v177
      %v224 = vunpack.c.l.b16 %v178
      %v225 = vunpack.c.l.b16 %v179
      %v226 = vunpack.c.l.b16 %v180
      %v227 = vunpack.c.l.b16 %v181
      %v228 = vunpack.c.l.b16 %v182
      %v229 = vunpack.c.l.b16 %v183
      %v230 = vunpack.c.l.b16 %v184
      %v231 = vunpack.c.l.b16 %v185
      %v232 = vunpack.c.l.b16 %v186
      %v233 = vunpack.c.l.b16 %v187
      %v234 = vunpack.c.l.b16 %v188
      %v235 = vunpack.c.l.b16 %v189
      %v236 = vunpack.c.l.b16 %v190
      %v237 = vunpack.c.l.b16 %v191
      %v238 = vpack.c.b16 %v220, %v219
      %v239 = vpack.c.b16 %v222, %v221
      %v240 = vpack.c.b16 %v224, %v223
      %v241 = vpack.c.b16 %v226, %v225
      %v242 = vpack.c.b16 %v228, %v227
      %v243 = vpack.c.b16 %v230, %v229
      %v244 = vpack.c.b16 %v232, %v231
      %v245 = vpack.c.b16 %v234, %v233
      %v246 = vpack.c.b16 %v236, %v235
      %v247 = vpack.c.b16 %v237, %v237
      %v256 = vunpack.c.l.b16 %v192
      %v257 = vunpack.c.h.b16 %v192
      %v258 = vunpack.c.l.b16 %v193
      %v259 = vunpack.c.h.b16 %v193
      %v260 = vunpack.c.l.b16 %v194
      %v261 = vunpack.c.h.b16 %v194
      %v262 = vunpack.c.l.b16 %v195
      %v263 = vunpack.c.h.b16 %v195
      %v264 = vunpack.c.l.b16 %v196
      %v265 = vunpack.c.h.b16 %v196
      %v266 = vunpack.c.l.b16 %v197
      %v267 = vunpack.c.h.b16 %v197
      %v268 = vunpack.c.l.b16 %v198
      %v269 = vunpack.c.h.b16 %v198
      %v270 = vunpack.c.l.b16 %v199
      %v271 = vunpack.c.h.b16 %v199
      %v272 = vpack.c.b16 %v258, %v256
      %v273 = vpack.c.b16 %v259, %v257
      %v274 = vpack.c.b16 %v262, %v260
      %v275 = vpack.c.b16 %v263, %v261
      %v276 = vpack.c.b16 %v266, %v264
      %v277 = vpack.c.b16 %v267, %v265
      %v278 = vpack.c.b16 %v270, %v268
      %v279 = vpack.c.b16 %v271, %v269
      %vm288 = vcmask 523264
      %v290 = vsel %vm288, %v238, 0
      %v293 = vsel %vm288, %v239, 0
      %v296 = vsel %vm288, %v240, 0
      %v299 = vsel %vm288, %v241, 0
      %v302 = vsel %vm288, %v242, 0
      %v305 = vsel %vm288, %v243, 0
      %v308 = vsel %vm288, %v244, 0
      %v311 = vsel %vm288, %v245, 0
      %v314 = vsel %vm288, %v246, 0
      %v317 = vsel %vm288, %v247, 0
      %319 = vmatprep.subr.bf16.mxu0 0
      %320 = vmatpush1.bf16.msra.mxu0 0
      %321 = vmatprep.subr.bf16.mxu0 0
      %322 = vmatpush1.bf16.msra.mxu0 0
      %323 = vmatprep.subr.bf16.mxu0 0
      %324 = vmatpush1.bf16.msra.mxu0 0
      %325 = vmatprep.subr.bf16.mxu0 0
      %326 = vmatpush1.bf16.msra.mxu0 0
      %327 = vmatprep.subr.bf16.mxu0 %v279
      %328 = vmatpush1.bf16.msra.mxu0 %v278
      %329 = vmatprep.subr.bf16.mxu0 %v277
      %330 = vmatpush1.bf16.msra.mxu0 %v276
      %331 = vmatprep.subr.bf16.mxu0 %v275
      %332 = vmatpush1.bf16.msra.mxu0 %v274
      %333 = vmatprep.subr.bf16.mxu0 %v273
      %334 = vmatpush1.bf16.msra.mxu0 %v272
      %335 = vmatprep.subr.bf16.mxu0 0
      %336 = vmatpush2.bf16.msra.mxu0 0
      %337 = vmatprep.subr.bf16.mxu0 0
      %338 = vmatpush2.bf16.msra.mxu0 0
      %339 = vmatprep.subr.bf16.mxu0 0
      %340 = vmatpush2.bf16.msra.mxu0 0
      %341 = vmatprep.subr.bf16.mxu0 0
      %342 = vmatpush2.bf16.msra.mxu0 0
      %343 = vmatprep.subr.bf16.mxu0 0
      %344 = vmatpush2.bf16.msra.mxu0 0
      %345 = vmatprep.subr.bf16.mxu0 0
      %346 = vmatpush2.bf16.msra.mxu0 0
      %347 = vmatprep.subr.bf16.mxu0 0
      %348 = vmatpush2.bf16.msra.mxu0 0
      %349 = vmatprep.subr.bf16.mxu0 0
      %350 = vmatpush2.bf16.msra.mxu0 0
      %351 = vmatprep.mubr.bf16.mxu0 0
      %352 = vmatmul.mubr.bf16.gmra.mxu0 %v290
      %v353 = vpop.f32.mrf.mxu0
      %v354 = vadd.f32 0.0, %v353
      %v355 = vpop.f32.mrf.mxu0
      %v356 = vpop.f32.mrf.mxu0
      %v357 = vadd.f32 0.0, %v356
      %v358 = vpop.f32.mrf.mxu0
      %359 = vmatprep.mubr.bf16.mxu0 0
      %360 = vmatmul.mubr.bf16.gmra.mxu0 %v293
      %v361 = vpop.f32.mrf.mxu0
      %v362 = vadd.f32 0.0, %v361
      %v363 = vpop.f32.mrf.mxu0
      %v364 = vpop.f32.mrf.mxu0
      %v365 = vadd.f32 0.0, %v364
      %v366 = vpop.f32.mrf.mxu0
      %367 = vmatprep.mubr.bf16.mxu0 0
      %368 = vmatmul.mubr.bf16.gmra.mxu0 %v296
      %v369 = vpop.f32.mrf.mxu0
      %v370 = vadd.f32 0.0, %v369
      %v371 = vpop.f32.mrf.mxu0
      %v372 = vadd.f32 0.0, %v371
      %v373 = vpop.f32.mrf.mxu0
      %v374 = vadd.f32 0.0, %v373
      %v375 = vpop.f32.mrf.mxu0
      %v376 = vadd.f32 0.0, %v375
      %377 = vmatprep.mubr.bf16.mxu0 0
      %378 = vmatmul.mubr.bf16.gmra.mxu0 %v299
      %v379 = vpop.f32.mrf.mxu0
      %v380 = vadd.f32 0.0, %v379
      %v381 = vpop.f32.mrf.mxu0
      %v382 = vadd.f32 0.0, %v381
      %v383 = vpop.f32.mrf.mxu0
      %v384 = vadd.f32 0.0, %v383
      %v385 = vpop.f32.mrf.mxu0
      %v386 = vadd.f32 0.0, %v385
      %387 = vmatprep.mubr.bf16.mxu0 0
      %388 = vmatmul.mubr.bf16.gmra.mxu0 %v302
      %v389 = vpop.f32.mrf.mxu0
      %v390 = vadd.f32 0.0, %v389
      %v391 = vpop.f32.mrf.mxu0
      %v392 = vadd.f32 0.0, %v391
      %v393 = vpop.f32.mrf.mxu0
      %v394 = vadd.f32 0.0, %v393
      %v395 = vpop.f32.mrf.mxu0
      %v396 = vadd.f32 0.0, %v395
      %397 = vmatprep.mubr.bf16.mxu0 0
      %398 = vmatmul.mubr.bf16.gmra.mxu0 %v305
      %v399 = vpop.f32.mrf.mxu0
      %v400 = vadd.f32 0.0, %v399
      %v401 = vpop.f32.mrf.mxu0
      %v402 = vadd.f32 0.0, %v401
      %v403 = vpop.f32.mrf.mxu0
      %v404 = vadd.f32 0.0, %v403
      %v405 = vpop.f32.mrf.mxu0
      %v406 = vadd.f32 0.0, %v405
      %407 = vmatprep.mubr.bf16.mxu0 0
      %408 = vmatmul.mubr.bf16.gmra.mxu0 %v308
      %v409 = vpop.f32.mrf.mxu0
      %v410 = vadd.f32 0.0, %v409
      %v411 = vpop.f32.mrf.mxu0
      %v412 = vadd.f32 0.0, %v411
      %v413 = vpop.f32.mrf.mxu0
      %v414 = vadd.f32 0.0, %v413
      %v415 = vpop.f32.mrf.mxu0
      %v416 = vadd.f32 0.0, %v415
      %417 = vmatprep.mubr.bf16.mxu0 0
      %418 = vmatmul.mubr.bf16.gmra.mxu0 %v311
      %v419 = vpop.f32.mrf.mxu0
      %v420 = vadd.f32 0.0, %v419
      %v421 = vpop.f32.mrf.mxu0
      %v422 = vadd.f32 0.0, %v421
      %v423 = vpop.f32.mrf.mxu0
      %v424 = vadd.f32 0.0, %v423
      %v425 = vpop.f32.mrf.mxu0
      %v426 = vadd.f32 0.0, %v425
      %427 = vmatprep.mubr.bf16.mxu0 0
      %428 = vmatmul.mubr.bf16.gmra.mxu0 %v314
      %v429 = vpop.f32.mrf.mxu0
      %v430 = vadd.f32 0.0, %v429
      %v431 = vpop.f32.mrf.mxu0
      %v432 = vadd.f32 0.0, %v431
      %v433 = vpop.f32.mrf.mxu0
      %v434 = vadd.f32 0.0, %v433
      %v435 = vpop.f32.mrf.mxu0
      %v436 = vadd.f32 0.0, %v435
      %437 = vmatprep.mubr.bf16.mxu0 0
      %438 = vmatmul.mubr.bf16.gmra.mxu0 %v317
      %v439 = vpop.f32.mrf.mxu0
      %v440 = vpop.f32.mrf.mxu0
      %v441 = vpop.f32.mrf.mxu0
      %v442 = vpop.f32.mrf.mxu0
      %443 = vdwg.mxu0
      %vm458 = vcmask 1046528
      %v459 = vrot.slane %v354, 1
      %v460 = vrot.slane %v357, 1
      %v461 = vsel %vm458, %v459, %v460
      %v462 = vrot.slane %v362, 1
      %v463 = vrot.slane %v365, 1
      %v464 = vsel %vm458, %v462, %v463
      %v465 = vrot.slane %v370, 1
      %v466 = vrot.slane %v374, 1
      %v467 = vsel %vm458, %v465, %v466
      %v468 = vrot.slane %v380, 1
      %v469 = vrot.slane %v384, 1
      %v470 = vsel %vm458, %v468, %v469
      %v471 = vrot.slane %v390, 1
      %v472 = vrot.slane %v394, 1
      %v473 = vsel %vm458, %v471, %v472
      %v474 = vrot.slane %v400, 1
      %v475 = vrot.slane %v404, 1
      %v476 = vsel %vm458, %v474, %v475
      %v477 = vrot.slane %v410, 1
      %v478 = vrot.slane %v414, 1
      %v479 = vsel %vm458, %v477, %v478
      %480 = vrot.lane.b32.xlu0 %v461, 112
      %v481 = vpop.permute.xlu0 %480
      %482 = vrot.lane.b32.xlu0 %v464, 112
      %v483 = vpop.permute.xlu0 %482
      %484 = vrot.lane.b32.xlu0 %v467, 112
      %v485 = vpop.permute.xlu0 %484
      %486 = vrot.lane.b32.xlu0 %v470, 112
      %v487 = vpop.permute.xlu0 %486
      %488 = vrot.lane.b32.xlu0 %v473, 112
      %v489 = vpop.permute.xlu0 %488
      %490 = vrot.lane.b32.xlu0 %v476, 112
      %v491 = vpop.permute.xlu0 %490
      %492 = vrot.lane.b32.xlu0 %v479, 112
      %v493 = vpop.permute.xlu0 %492
      %v501 = vadd.f32 %v354, %v481
      %v502 = vadd.f32 %v362, %v483
      %v503 = vadd.f32 %v370, %v485
      %v504 = vadd.f32 %v380, %v487
      %v505 = vadd.f32 %v390, %v489
      %v506 = vadd.f32 %v400, %v491
      %v507 = vadd.f32 %v410, %v493
      %vm508 = vcmask 1045504
      %v509 = vrot.slane %v354, 2
      %v510 = vrot.slane %v357, 2
      %v511 = vsel %vm508, %v509, %v510
      %v512 = vrot.slane %v362, 2
      %v513 = vrot.slane %v365, 2
      %v514 = vsel %vm508, %v512, %v513
      %v515 = vrot.slane %v370, 2
      %v516 = vrot.slane %v374, 2
      %v517 = vsel %vm508, %v515, %v516
      %v518 = vrot.slane %v380, 2
      %v519 = vrot.slane %v384, 2
      %v520 = vsel %vm508, %v518, %v519
      %v521 = vrot.slane %v390, 2
      %v522 = vrot.slane %v394, 2
      %v523 = vsel %vm508, %v521, %v522
      %v524 = vrot.slane %v400, 2
      %v525 = vrot.slane %v404, 2
      %v526 = vsel %vm508, %v524, %v525
      %v527 = vrot.slane %v410, 2
      %v528 = vrot.slane %v414, 2
      %v529 = vsel %vm508, %v527, %v528
      %530 = vrot.lane.b32.xlu0 %v511, 96
      %v531 = vpop.permute.xlu0 %530
      %532 = vrot.lane.b32.xlu0 %v514, 96
      %v533 = vpop.permute.xlu0 %532
      %534 = vrot.lane.b32.xlu0 %v517, 96
      %v535 = vpop.permute.xlu0 %534
      %536 = vrot.lane.b32.xlu0 %v520, 96
      %v537 = vpop.permute.xlu0 %536
      %538 = vrot.lane.b32.xlu0 %v523, 96
      %v539 = vpop.permute.xlu0 %538
      %540 = vrot.lane.b32.xlu0 %v526, 96
      %v541 = vpop.permute.xlu0 %540
      %542 = vrot.lane.b32.xlu0 %v529, 96
      %v543 = vpop.permute.xlu0 %542
      %v551 = vadd.f32 %v501, %v531
      %v552 = vadd.f32 %v502, %v533
      %v553 = vadd.f32 %v503, %v535
      %v554 = vadd.f32 %v504, %v537
      %v555 = vadd.f32 %v505, %v539
      %v556 = vadd.f32 %v506, %v541
      %v557 = vadd.f32 %v507, %v543
      %559 = vrot.lane.b32.xlu0 %v362, 80
      %v560 = vpop.permute.xlu0 %559
      %561 = vrot.lane.b32.xlu0 %v370, 80
      %v562 = vpop.permute.xlu0 %561
      %563 = vrot.lane.b32.xlu0 %v380, 80
      %v564 = vpop.permute.xlu0 %563
      %565 = vrot.lane.b32.xlu0 %v390, 80
      %v566 = vpop.permute.xlu0 %565
      %567 = vrot.lane.b32.xlu0 %v400, 80
      %v568 = vpop.permute.xlu0 %567
      %569 = vrot.lane.b32.xlu0 %v410, 80
      %v570 = vpop.permute.xlu0 %569
      %571 = vrot.lane.b32.xlu0 %v420, 80
      %v572 = vpop.permute.xlu0 %571
      %v580 = vadd.f32 %v551, %v560
      %v581 = vadd.f32 %v552, %v562
      %v582 = vadd.f32 %v553, %v564
      %v583 = vadd.f32 %v554, %v566
      %v584 = vadd.f32 %v555, %v568
      %v585 = vadd.f32 %v556, %v570
      %v586 = vadd.f32 %v557, %v572
      %v588 = vrot.slane %v420, 1
      %v589 = vrot.slane %v424, 1
      %v590 = vsel %vm458, %v588, %v589
      %591 = vrot.lane.b32.xlu0 %v464, 64
      %v592 = vpop.permute.xlu0 %591
      %593 = vrot.lane.b32.xlu0 %v467, 64
      %v594 = vpop.permute.xlu0 %593
      %595 = vrot.lane.b32.xlu0 %v470, 64
      %v596 = vpop.permute.xlu0 %595
      %597 = vrot.lane.b32.xlu0 %v473, 64
      %v598 = vpop.permute.xlu0 %597
      %599 = vrot.lane.b32.xlu0 %v476, 64
      %v600 = vpop.permute.xlu0 %599
      %601 = vrot.lane.b32.xlu0 %v479, 64
      %v602 = vpop.permute.xlu0 %601
      %603 = vrot.lane.b32.xlu0 %v590, 64
      %v604 = vpop.permute.xlu0 %603
      %v612 = vadd.f32 %v580, %v592
      %v613 = vadd.f32 %v581, %v594
      %v614 = vadd.f32 %v582, %v596
      %v615 = vadd.f32 %v583, %v598
      %v616 = vadd.f32 %v584, %v600
      %v617 = vadd.f32 %v585, %v602
      %v618 = vadd.f32 %v586, %v604
      %v619 = vrot.slane %v420, 2
      %v620 = vrot.slane %v424, 2
      %v621 = vsel %vm508, %v619, %v620
      %622 = vrot.lane.b32.xlu0 %v514, 48
      %v623 = vpop.permute.xlu0 %622
      %624 = vrot.lane.b32.xlu0 %v517, 48
      %v625 = vpop.permute.xlu0 %624
      %626 = vrot.lane.b32.xlu0 %v520, 48
      %v627 = vpop.permute.xlu0 %626
      %628 = vrot.lane.b32.xlu0 %v523, 48
      %v629 = vpop.permute.xlu0 %628
      %630 = vrot.lane.b32.xlu0 %v526, 48
      %v631 = vpop.permute.xlu0 %630
      %632 = vrot.lane.b32.xlu0 %v529, 48
      %v633 = vpop.permute.xlu0 %632
      %634 = vrot.lane.b32.xlu0 %v621, 48
      %v635 = vpop.permute.xlu0 %634
      %v643 = vadd.f32 %v612, %v623
      %v644 = vadd.f32 %v613, %v625
      %v645 = vadd.f32 %v614, %v627
      %v646 = vadd.f32 %v615, %v629
      %v647 = vadd.f32 %v616, %v631
      %v648 = vadd.f32 %v617, %v633
      %v649 = vadd.f32 %v618, %v635
      %651 = vrot.lane.b32.xlu0 %v370, 32
      %v652 = vpop.permute.xlu0 %651
      %653 = vrot.lane.b32.xlu0 %v380, 32
      %v654 = vpop.permute.xlu0 %653
      %655 = vrot.lane.b32.xlu0 %v390, 32
      %v656 = vpop.permute.xlu0 %655
      %657 = vrot.lane.b32.xlu0 %v400, 32
      %v658 = vpop.permute.xlu0 %657
      %659 = vrot.lane.b32.xlu0 %v410, 32
      %v660 = vpop.permute.xlu0 %659
      %661 = vrot.lane.b32.xlu0 %v420, 32
      %v662 = vpop.permute.xlu0 %661
      %663 = vrot.lane.b32.xlu0 %v430, 32
      %v664 = vpop.permute.xlu0 %663
      %v672 = vadd.f32 %v643, %v652
      %v673 = vadd.f32 %v644, %v654
      %v674 = vadd.f32 %v645, %v656
      %v675 = vadd.f32 %v646, %v658
      %v676 = vadd.f32 %v647, %v660
      %v677 = vadd.f32 %v648, %v662
      %v678 = vadd.f32 %v649, %v664
      %v680 = vrot.slane %v430, 1
      %v681 = vrot.slane %v434, 1
      %v682 = vsel %vm458, %v680, %v681
      %683 = vrot.lane.b32.xlu0 %v467, 16
      %v684 = vpop.permute.xlu0 %683
      %685 = vrot.lane.b32.xlu0 %v470, 16
      %v686 = vpop.permute.xlu0 %685
      %687 = vrot.lane.b32.xlu0 %v473, 16
      %v688 = vpop.permute.xlu0 %687
      %689 = vrot.lane.b32.xlu0 %v476, 16
      %v690 = vpop.permute.xlu0 %689
      %691 = vrot.lane.b32.xlu0 %v479, 16
      %v692 = vpop.permute.xlu0 %691
      %693 = vrot.lane.b32.xlu0 %v590, 16
      %v694 = vpop.permute.xlu0 %693
      %695 = vrot.lane.b32.xlu0 %v682, 16
      %v696 = vpop.permute.xlu0 %695
      %v704 = vadd.f32 %v672, %v684
      %v705 = vadd.f32 %v673, %v686
      %v706 = vadd.f32 %v674, %v688
      %v707 = vadd.f32 %v675, %v690
      %v708 = vadd.f32 %v676, %v692
      %v709 = vadd.f32 %v677, %v694
      %v710 = vadd.f32 %v678, %v696
      %v725 = vrot.slane %v372, 2
      %v726 = vrot.slane %v376, 2
      %v727 = vsel %vm508, %v725, %v726
      %v728 = vrot.slane %v382, 2
      %v729 = vrot.slane %v386, 2
      %v730 = vsel %vm508, %v728, %v729
      %v731 = vrot.slane %v392, 2
      %v732 = vrot.slane %v396, 2
      %v733 = vsel %vm508, %v731, %v732
      %v734 = vrot.slane %v402, 2
      %v735 = vrot.slane %v406, 2
      %v736 = vsel %vm508, %v734, %v735
      %v737 = vrot.slane %v412, 2
      %v738 = vrot.slane %v416, 2
      %v739 = vsel %vm508, %v737, %v738
      %v740 = vrot.slane %v422, 2
      %v741 = vrot.slane %v426, 2
      %v742 = vsel %vm508, %v740, %v741
      %v743 = vrot.slane %v432, 2
      %v744 = vrot.slane %v436, 2
      %v745 = vsel %vm508, %v743, %v744
      %v753 = vadd.f32 %v704, %v727
      %v754 = vadd.f32 %v705, %v730
      %v755 = vadd.f32 %v706, %v733
      %v756 = vadd.f32 %v707, %v736
      %v757 = vadd.f32 %v708, %v739
      %v758 = vadd.f32 %v709, %v742
      %v759 = vadd.f32 %v710, %v745
      %v760 = vpack.c.bf16 %v753, %v753
      %vm761 = vcmask 125952
      %vm762 = vsmask.f32 3328
      %vm763 = vmand %vm761, %vm762
      %v764 = vld [vmem:[%s165] sm:$0xf]
      %v765 = vsel %vm763, %v760, %v764
      %766 = vst [vmem:[%s165] sm:$0xf] %v765
      %v767 = vpack.c.bf16 %v754, %v754
      %s768 = scalar_lea.vmem %s165, 4
      %v769 = vld [vmem:[%s768] sm:$0xf]
      %v770 = vsel %vm763, %v767, %v769
      %771 = vst [vmem:[%s768] sm:$0xf] %v770
      %v772 = vpack.c.bf16 %v755, %v755
      %s773 = scalar_lea.vmem %s165, 8
      %v774 = vld [vmem:[%s773] sm:$0xf]
      %v775 = vsel %vm763, %v772, %v774
      %776 = vst [vmem:[%s773] sm:$0xf] %v775
      %v777 = vpack.c.bf16 %v756, %v756
      %s778 = scalar_lea.vmem %s165, 12
      %v779 = vld [vmem:[%s778] sm:$0xf]
      %v780 = vsel %vm763, %v777, %v779
      %781 = vst [vmem:[%s778] sm:$0xf] %v780
      %v782 = vpack.c.bf16 %v757, %v757
      %s783 = scalar_lea.vmem %s165, 16
      %v784 = vld [vmem:[%s783] sm:$0xf]
      %v785 = vsel %vm763, %v782, %v784
      %786 = vst [vmem:[%s783] sm:$0xf] %v785
      %v787 = vpack.c.bf16 %v758, %v758
      %s788 = scalar_lea.vmem %s165, 20
      %v789 = vld [vmem:[%s788] sm:$0xf]
      %v790 = vsel %vm763, %v787, %v789
      %791 = vst [vmem:[%s788] sm:$0xf] %v790
      %v792 = vpack.c.bf16 %v759, %v759
      %s793 = scalar_lea.vmem %s165, 24
      %v794 = vld [vmem:[%s793] sm:$0xf]
      %v795 = vsel %vm763, %v792, %v794
      %796 = vst [vmem:[%s793] sm:$0xf] %v795
      %s797 = smul.u32 7, %s18
      %p798 = scmp.lt.s32.totalorder %s17, 1
      %s799 = scalar_select %p798, %s17, 1
      %p800 = scmp.lt.s32.totalorder %s797, 6
      %s801 = scalar_select %p800, %s797, 6
      %s802 = smul.addr %s799, 7
      %s803 = sadd.s32 %s801, %s802
      %s804 = smul.addr %s803, 4
      %s805 = scalar_lea.vmem %s2, %s804
      // Predicated region
      $region29: #{densenet_forward.20} parent=27 // pred_check
        %p806 = pneg %p92
      $region30: #{densenet_forward.20} parent=27 // pred_check_branch
        %808 = sbr.rel (%p806) target = $region32
      $region31: #{densenet_forward.20} parent=27 // pred_region
        %s809 = smul.u32 7, %s18
      $region32: #{densenet_forward.20} parent=27 // pred_fallthru
        _
    $region28: #{densenet_forward.20} parent=5 // pred_fallthru
      _
    %p810 = scmp.le.s32.totalorder 2, %s8
    // Predicated region
    $region33: #{densenet_forward.20} parent=5 // pred_check
      %p811 = pneg %p810
    $region34: #{densenet_forward.20} parent=5 // pred_check_branch
      %813 = sbr.rel (%p811) target = $region36
    $region35: #{densenet_forward.20} parent=5 // pred_region
      %s814 = ssub.s32 %s8, 2
      // Predicated region
      $region37: #{densenet_forward.20} parent=35 // pred_check
        %p815 = pneg %p98
      $region38: #{densenet_forward.20} parent=35 // pred_check_branch
        %817 = sbr.rel (%p815) target = $region40
      $region39: #{densenet_forward.20} parent=35 // pred_region
        %s818 = smul.u32 7, %s20
        %p819 = scmp.lt.s32.totalorder %s19, 1
        %s820 = scalar_select %p819, %s19, 1
        %p821 = scmp.lt.s32.totalorder %s818, 6
        %s822 = scalar_select %p821, %s818, 6
        %s823 = smul.addr %s820, 7
        %s824 = sadd.s32 %s822, %s823
        %s825 = smul.addr %s824, 4
        %s826 = scalar_lea.vmem %s2, %s825
      $region40: #{densenet_forward.20} parent=35 // pred_fallthru
        _
    $region36: #{densenet_forward.20} parent=5 // pred_fallthru
      _
  $region6: #{densenet_forward.20} parent=0 // loop_footer
    %s12 = sadd.s32 1, %s8
  $region7: #{densenet_forward.20} parent=0 // loop_footer_branch
    %7 = sbr.rel target = $region3
  $region8: #{densenet_forward.20} parent=0 // loop_exit
    _

// kernel: densenet_forward.23
$region0: #{densenet_forward.23}
  #allocation0 [shape = 'u32[]', space=smem, size = 0x4, offset = 0x4, fixed_abs, tag = 'smem constant byte address 0x4 - core index']
  #allocation1 [shape = 'u32[144,128]{1,0:T(1,128)}', space=vmem, size = 0x12000, scoped, tag = 'internal scratch']
  %s0 = inlined_call_operand.vmem [shape: bf16[2,49,64], index: 0, kind: input, shape index: {}]
  %s1 = inlined_call_operand.vmem [shape: f32[1,1,64], index: 1, kind: input, shape index: {}]
  %s2 = inlined_call_operand.vmem [shape: f32[1,1,64], index: 2, kind: input, shape index: {}]
  %s3 = inlined_call_operand.vmem [shape: bf16[64,10], index: 3, kind: input, shape index: {}]
  %s4 = inlined_call_operand.vmem [shape: f32[1,10], index: 4, kind: input, shape index: {}]
  %s5 = inlined_call_operand.hbm [shape: f32[2,10], index: 5, kind: output, shape index: {}]
  %s6 = sld [smem:[#allocation0]]
  $region30: #{densenet_forward.23} parent=0
    _
  %s8 = ssub.s32 1, %s6
  %s9 = scalar_select 0, %s8, %s6
  $region1: #{densenet_forward.23} parent=0
    #allocation2 [shape = 'u8[1024]{0}', space=vmem, size = 0x400, scoped, tag = 'output window, operand 0, single buffered']
    #allocation3 [shape = 's32[1]{0}', space=sflag, size = 0x4, scoped, tag = 'scoped memory for densenet_forward.23']
    %10 = vsyncpa [#allocation3], 0
    // Predicated region
    $region2: #{densenet_forward.23} parent=1 // pred_check
      _
    $region3: #{densenet_forward.23} parent=1 // pred_check_branch
      %12 = sbr.rel (0) target = $region5
    $region4: #{densenet_forward.23} parent=1 // pred_region
      _
    $region5: #{densenet_forward.23} parent=1 // pred_fallthru
      _
    // Predicated region
    $region6: #{densenet_forward.23} parent=1 // pred_check
      _
    $region7: #{densenet_forward.23} parent=1 // pred_check_branch
      %14 = sbr.rel (0) target = $region9
    $region8: #{densenet_forward.23} parent=1 // pred_region
      _
    $region9: #{densenet_forward.23} parent=1 // pred_fallthru
      _
    // Predicated region
    $region10: #{densenet_forward.23} parent=1 // pred_check
      _
    $region11: #{densenet_forward.23} parent=1 // pred_check_branch
      %16 = sbr.rel (0) target = $region13
    $region12: #{densenet_forward.23} parent=1 // pred_region
      _
    $region13: #{densenet_forward.23} parent=1 // pred_fallthru
      _
    // Predicated region
    $region14: #{densenet_forward.23} parent=1 // pred_check
      _
    $region15: #{densenet_forward.23} parent=1 // pred_check_branch
      %18 = sbr.rel (0) target = $region17
    $region16: #{densenet_forward.23} parent=1 // pred_region
      _
    $region17: #{densenet_forward.23} parent=1 // pred_fallthru
      _
    // Predicated region
    $region18: #{densenet_forward.23} parent=1 // pred_check
      _
    $region19: #{densenet_forward.23} parent=1 // pred_check_branch
      %20 = sbr.rel (0) target = $region21
    $region20: #{densenet_forward.23} parent=1 // pred_region
      _
    $region21: #{densenet_forward.23} parent=1 // pred_fallthru
      _
    %v22 = vld [vmem:[%s0] sm:$0xf]
    %v23 = vld [vmem:[%s0 + $0x4] sm:$0xf]
    %v24 = vld [vmem:[%s0 + $0x8] sm:$0xf]
    %v25 = vld [vmem:[%s0 + $0xc] sm:$0xf]
    %v26 = vld [vmem:[%s0 + $0x10] sm:$0xf]
    %v27 = vld [vmem:[%s0 + $0x14] sm:$0xf]
    %v28 = vld [vmem:[%s0 + $0x18] sm:$0x1]
    %v29 = vld [vmem:[%s0 + $0x1c] sm:$0xf]
    %v30 = vld [vmem:[%s0 + $0x20] sm:$0xf]
    %v31 = vld [vmem:[%s0 + $0x24] sm:$0xf]
    %v32 = vld [vmem:[%s0 + $0x28] sm:$0xf]
    %v33 = vld [vmem:[%s0 + $0x2c] sm:$0xf]
    %v34 = vld [vmem:[%s0 + $0x30] sm:$0xf]
    %v35 = vld [vmem:[%s0 + $0x34] sm:$0x1]
    %v36 = vld [vmem:[%s1] sm:$0x1]
    %v37 = vunpack.c.l.bf16 %v22
    %v38 = vunpack.c.l.bf16 %v23
    %v39 = vunpack.c.l.bf16 %v24
    %v40 = vunpack.c.l.bf16 %v25
    %v41 = vunpack.c.l.bf16 %v26
    %v42 = vunpack.c.l.bf16 %v27
    %v43 = vunpack.c.l.bf16 %v28
    %v44 = vunpack.c.l.bf16 %v29
    %v45 = vunpack.c.l.bf16 %v30
    %v46 = vunpack.c.l.bf16 %v31
    %v47 = vunpack.c.l.bf16 %v32
    %v48 = vunpack.c.l.bf16 %v33
    %v49 = vunpack.c.l.bf16 %v34
    %v50 = vunpack.c.l.bf16 %v35
    %v52 = vlaneseq
    %v53 = vshrl.u32 %v52, 7
    %v54 = vsub.s32 0, %v53
    %v55 = vrot.slane %v36, %v54
    %v57 = vmul.f32 %v37, %v55
    %v58 = vmul.f32 %v38, %v55
    %v59 = vmul.f32 %v39, %v55
    %v60 = vmul.f32 %v40, %v55
    %v61 = vmul.f32 %v41, %v55
    %v62 = vmul.f32 %v42, %v55
    %v63 = vmul.f32 %v43, %v55
    %v64 = vmul.f32 %v44, %v55
    %v65 = vmul.f32 %v45, %v55
    %v66 = vmul.f32 %v46, %v55
    %v67 = vmul.f32 %v47, %v55
    %v68 = vmul.f32 %v48, %v55
    %v69 = vmul.f32 %v49, %v55
    %v70 = vmul.f32 %v50, %v55
    %v71 = vld [vmem:[%s2] sm:$0x1]
    %v73 = vlaneseq
    %v74 = vshrl.u32 %v73, 7
    %v75 = vsub.s32 0, %v74
    %v76 = vrot.slane %v71, %v75
    %v78 = vadd.f32 %v57, %v76
    %v79 = vadd.f32 %v58, %v76
    %v80 = vadd.f32 %v59, %v76
    %v81 = vadd.f32 %v60, %v76
    %v82 = vadd.f32 %v61, %v76
    %v83 = vadd.f32 %v62, %v76
    %v84 = vadd.f32 %v63, %v76
    %v85 = vadd.f32 %v64, %v76
    %v86 = vadd.f32 %v65, %v76
    %v87 = vadd.f32 %v66, %v76
    %v88 = vadd.f32 %v67, %v76
    %v89 = vadd.f32 %v68, %v76
    %v90 = vadd.f32 %v69, %v76
    %v91 = vadd.f32 %v70, %v76
    %vm92 = vcmask 523264
    %v93 = vsel %vm92, %v78, 0.0
    %v94 = vsel %vm92, %v79, 0.0
    %v95 = vadd.f32 %v93, %v94
    %v96 = vsel %vm92, %v80, 0.0
    %v97 = vadd.f32 %v95, %v96
    %v98 = vsel %vm92, %v81, 0.0
    %v99 = vadd.f32 %v97, %v98
    %v100 = vsel %vm92, %v82, 0.0
    %v101 = vadd.f32 %v99, %v100
    %v102 = vsel %vm92, %v83, 0.0
    %v103 = vadd.f32 %v101, %v102
    %vm104 = vcmask 516096
    %v105 = vsel %vm104, %v84, 0.0
    %v106 = vadd.f32 %v103, %v105
    %v107 = vrot.slane %v106, 4
    %v108 = vadd.f32 %v106, %v107
    %v109 = vrot.slane %v108, 2
    %v110 = vadd.f32 %v108, %v109
    %v111 = vrot.slane %v110, 1
    %v112 = vadd.f32 %v110, %v111
    %v113 = vsel %vm92, %v85, 0.0
    %v114 = vsel %vm92, %v86, 0.0
    %v115 = vadd.f32 %v113, %v114
    %v116 = vsel %vm92, %v87, 0.0
    %v117 = vadd.f32 %v115, %v116
    %v118 = vsel %vm92, %v88, 0.0
    %v119 = vadd.f32 %v117, %v118
    %v120 = vsel %vm92, %v89, 0.0
    %v121 = vadd.f32 %v119, %v120
    %v122 = vsel %vm92, %v90, 0.0
    %v123 = vadd.f32 %v121, %v122
    %v124 = vsel %vm104, %v91, 0.0
    %v125 = vadd.f32 %v123, %v124
    %v126 = vrot.slane %v125, 4
    %v127 = vadd.f32 %v125, %v126
    %v128 = vrot.slane %v127, 2
    %v129 = vadd.f32 %v127, %v128
    %v130 = vrot.slane %v129, 1
    %v131 = vadd.f32 %v129, %v130
    %v132 = vrcp.pop 49.0
    %v133 = vmul.f32 %v112, %v132
    %v134 = vmul.f32 %v131, %v132
    %v135 = vpack.c.bf16 %v133, %v133
    %v136 = vpack.c.bf16 %v134, %v134
    %v137 = vld [vmem:[%s3] sm:$0xf]
    %v138 = vld [vmem:[%s3 + $0x4] sm:$0xf]
    %v139 = vld [vmem:[%s3 + $0x8] sm:$0xf]
    %v140 = vld [vmem:[%s3 + $0xc] sm:$0xf]
    %v141 = vld [vmem:[%s3 + $0x10] sm:$0xf]
    %v142 = vld [vmem:[%s3 + $0x14] sm:$0xf]
    %v143 = vld [vmem:[%s3 + $0x18] sm:$0xf]
    %v144 = vld [vmem:[%s3 + $0x1c] sm:$0xf]
    %v145 = vld [vmem:[%s4] sm:$0x1]
    %v147 = vlaneseq
    %v148 = vshrl.u32 %v147, 7
    %v149 = vsub.s32 0, %v148
    %v150 = vrot.slane %v145, %v149
    %v154 = vunpack.c.l.b16 %v135
    %v155 = vunpack.c.l.b16 %v136
    %vm156 = vcmask 1041409
    %v157 = vsel %vm156, %v155, %v154
    %v158 = vpack.c.b16 %v157, %v157
    %v167 = vunpack.c.l.b16 %v137
    %v168 = vunpack.c.l.b16 %v138
    %v169 = vunpack.c.l.b16 %v139
    %v170 = vunpack.c.l.b16 %v140
    %v171 = vunpack.c.l.b16 %v141
    %v172 = vunpack.c.l.b16 %v142
    %v173 = vunpack.c.l.b16 %v143
    %v174 = vunpack.c.l.b16 %v144
    %v175 = vpack.c.b16 %v168, %v167
    %v176 = vpack.c.b16 %v170, %v169
    %v177 = vpack.c.b16 %v172, %v171
    %v178 = vpack.c.b16 %v174, %v173
    %v184 = vsel %vm92, %v158, 0
    %186 = vmatprep.subr.bf16.mxu0 0
    %187 = vmatpush1.bf16.msra.mxu0 0
    %188 = vmatprep.subr.bf16.mxu0 0
    %189 = vmatpush1.bf16.msra.mxu0 0
    %190 = vmatprep.subr.bf16.mxu0 0
    %191 = vmatpush1.bf16.msra.mxu0 0
    %192 = vmatprep.subr.bf16.mxu0 0
    %193 = vmatpush1.bf16.msra.mxu0 0
    %194 = vmatprep.subr.bf16.mxu0 0
    %195 = vmatpush1.bf16.msra.mxu0 %v178
    %196 = vmatprep.subr.bf16.mxu0 0
    %197 = vmatpush1.bf16.msra.mxu0 %v177
    %198 = vmatprep.subr.bf16.mxu0 0
    %199 = vmatpush1.bf16.msra.mxu0 %v176
    %200 = vmatprep.subr.bf16.mxu0 0
    %201 = vmatpush1.bf16.msra.mxu0 %v175
    %202 = vmatprep.subr.bf16.mxu0 0
    %203 = vmatpush2.bf16.msra.mxu0 0
    %204 = vmatprep.subr.bf16.mxu0 0
    %205 = vmatpush2.bf16.msra.mxu0 0
    %206 = vmatprep.subr.bf16.mxu0 0
    %207 = vmatpush2.bf16.msra.mxu0 0
    %208 = vmatprep.subr.bf16.mxu0 0
    %209 = vmatpush2.bf16.msra.mxu0 0
    %210 = vmatprep.subr.bf16.mxu0 0
    %211 = vmatpush2.bf16.msra.mxu0 0
    %212 = vmatprep.subr.bf16.mxu0 0
    %213 = vmatpush2.bf16.msra.mxu0 0
    %214 = vmatprep.subr.bf16.mxu0 0
    %215 = vmatpush2.bf16.msra.mxu0 0
    %216 = vmatprep.subr.bf16.mxu0 0
    %217 = vmatpush2.bf16.msra.mxu0 0
    %218 = vmatprep.mubr.bf16.mxu0 0
    %219 = vmatmul.mubr.bf16.gmra.mxu0 %v184
    %v220 = vpop.f32.mrf.mxu0
    %v221 = vadd.f32 %v150, %v220
    %v222 = vpop.f32.mrf.mxu0
    %v223 = vpop.f32.mrf.mxu0
    %v224 = vpop.f32.mrf.mxu0
    %225 = vdwg.mxu0
    %vm226 = vcmask 74752
    %227 = vst.msk [vmem:[#allocation2] sm:$0x3] %vm226, %v221
    // Predicated region
    $region22: #{densenet_forward.23} parent=1 // pred_check
      _
    $region23: #{densenet_forward.23} parent=1 // pred_check_branch
      %229 = sbr.rel (0) target = $region25
    $region24: #{densenet_forward.23} parent=1 // pred_region
      %s231 = ssub.s32 32, 32
      %232 = vsyncadd [#allocation3], %s231
      %s234 = sshll.u32 [#allocation2], 4
      %s235 = int_to_ptr.vmem [resolvable:$true] %s234
      %237 = dma.vmem_to_hbm [thread:$0]  %s235, 32, %s5, [#allocation3]
    $region25: #{densenet_forward.23} parent=1 // pred_fallthru
      _
    // Predicated region
    $region26: #{densenet_forward.23} parent=1 // pred_check
      _
    $region27: #{densenet_forward.23} parent=1 // pred_check_branch
      %239 = sbr.rel (0) target = $region29
    $region28: #{densenet_forward.23} parent=1 // pred_region
      %240 = dma.done [#allocation3], 32
    $region29: #{densenet_forward.23} parent=1 // pred_fallthru
      _
    %241 = vsyncpa [#allocation3], 1

</llo_original>
